<compile_context>
chip_gen: v7x
topology: tpu7x:2x2x1
jax: 0.10.0
libtpu: 0.0.40
codegen_flags: <defaults>
</compile_context>

<pallas_src>
import math

import jax
import jax.numpy as jnp
from jax.experimental import pallas as pl
from jax.experimental.pallas import tpu as pltpu

# ---- small-config hyperparameters (scaled-down versions of the module's) ----
MAX_FEATURES = 100     # vocab size        (module: 120000)
EMBED_SIZE   = 32      # embedding dim     (module: 300)
HIDDEN_SIZE  = 16      # gru3 hidden (H3)  (module: 60)
MAXLEN       = 8       # sequence length   (module: 70)
H1           = 32      # gru1 hidden       (module: 128)
H2           = 24      # gru2 hidden       (module: 100)
BATCH        = 2

# ---- TPU layout constants ----
GP    = 128            # per-gate lane padding (gate boundaries 128-aligned)
G3    = 3 * GP         # one direction's fused [r|z|n] gate width (384)
GG    = 2 * G3         # both directions fused (768)
HP    = 128            # per-direction hidden-state lane padding
B_PAD = 8              # batch padded to one sublane group
V_PAD = 128            # vocab rows padded for the in-kernel one-hot gather


# --------------------------- fused forward kernel ----------------------------
def fused_forward_kernel(
    tok_ref,     # (L*B_PAD, 1)  int32   time-major token ids (row = t*B_PAD + b)
    table_ref,   # (V_PAD, E)    bf16    embedding table (small config only)
    f_ref,       # (B_PAD, 2*HP) f32     extra dense features, zero-padded lanes
    w1_ref, b1_ref,   # (E + 2*HP, GG) bf16 ; (2, GG) f32   [row0=b_gi, row1=b_hh_n]
    w2_ref, b2_ref,   # (2*HP + 2*HP, GG) bf16 ; (2, GG) f32
    w3_ref, b3_ref,   # (2*HP + 2*HP, GG) bf16 ; (2, GG) f32
    attfc_ref,   # (3, 2*HP) f32  rows: [att_w | fc_w(hidden part) | fc_w(f part)]
    scal_ref,    # (L+1,) f32 SMEM: att_b per timestep + fc bias
    out_ref,     # (B_PAD, 128) f32  (result broadcast across lanes; lane-dense store)
    gi_ref,      # scratch (L*B_PAD, GG) f32  per-layer input projections
    act_ref,     # scratch (L*B_PAD, 2*HP) f32  per-layer bi-GRU output (padded lanes)
):
    L, Bp = MAXLEN, B_PAD

    # ---- embedding fused in-kernel (one-hot @ table on the MXU) ----
    # TODO(synk): at full vocab scale (120k x 300, ~144 MB) keep the table in HBM
    # (XLA gather or pl.ANY + per-row DMA) instead of a VMEM one-hot matmul.
    ids = tok_ref[...]                                               # (L*Bp, 1) i32
    vocab_iota = jax.lax.broadcasted_iota(jnp.int32, (L * Bp, V_PAD), 1)
    onehot = jnp.where(vocab_iota == ids, 1.0, 0.0).astype(jnp.bfloat16)
    emb = jnp.dot(onehot, table_ref[...],
                  preferred_element_type=jnp.float32)                # (L*Bp, E) f32

    def bigru(x_bf16, w_ref, b_ref, din_rows):
        """One bidirectional GRU layer; writes its output into act_ref."""
        w_ih = w_ref[0:din_rows, :]                      # (din_rows, GG) bf16
        w_hh = w_ref[din_rows:din_rows + 2 * HP, :]      # (2*HP, GG) bf16, block-diag
        b_gi = b_ref[0:1, :]                             # (1, GG) f32 (b_ih + r/z b_hh)
        b_hn = b_ref[1:2, :]                             # (1, GG) f32 (n-gate b_hh only)

        # One wide input-projection matmul for all timesteps & both directions.
        gi_ref[...] = jnp.dot(x_bf16, w_ih,
                              preferred_element_type=jnp.float32) + b_gi

        h_f = jnp.zeros((Bp, HP), jnp.float32)
        h_b = jnp.zeros((Bp, HP), jnp.float32)
        # TODO(synk): at full scale (L=70) replace this static unroll with
        # lax.fori_loop(..., unroll=2..4) to bound program size.
        for t in range(L):
            tb = L - 1 - t
            # ONE fused MXU op per timestep: [h_f|h_b] @ block-diag w_hh.
            h_cat = jnp.concatenate([h_f, h_b], axis=1).astype(jnp.bfloat16)
            gh = jnp.dot(h_cat, w_hh,
                         preferred_element_type=jnp.float32) + b_hn   # (Bp, GG)
            gi_f = gi_ref[t * Bp:(t + 1) * Bp, 0:G3]       # (Bp, G3) full-tile read
            gi_b = gi_ref[tb * Bp:(tb + 1) * Bp, G3:GG]    # (Bp, G3) full-tile read

            # forward direction (PyTorch GRU gate order [r, z, n])
            rz_f = jax.nn.sigmoid(gi_f[:, 0:2 * GP] + gh[:, 0:2 * GP])   # merged r,z
            n_f = jnp.tanh(gi_f[:, 2 * GP:3 * GP]
                           + rz_f[:, 0:GP] * gh[:, 2 * GP:3 * GP])
            z_f = rz_f[:, GP:2 * GP]
            h_f = (1.0 - z_f) * n_f + z_f * h_f

            # backward direction
            rz_b = jax.nn.sigmoid(gi_b[:, 0:2 * GP] + gh[:, G3:G3 + 2 * GP])
            n_b = jnp.tanh(gi_b[:, 2 * GP:3 * GP]
                           + rz_b[:, 0:GP] * gh[:, G3 + 2 * GP:G3 + 3 * GP])
            z_b = rz_b[:, GP:2 * GP]
            h_b = (1.0 - z_b) * n_b + z_b * h_b

            # Full (8,128) tile stores at 128-aligned lane / 8-aligned sublane offsets.
            act_ref[t * Bp:(t + 1) * Bp, 0:HP] = h_f
            act_ref[tb * Bp:(tb + 1) * Bp, HP:2 * HP] = h_b

    # ----- three stacked bidirectional GRU layers, activations stay in VMEM -----
    # TODO(synk): on v7x this single-program kernel uses one of the two
    # TensorCores; shard a leading batch grid axis ("parallel") once B grows.
    bigru(emb.astype(jnp.bfloat16), w1_ref, b1_ref, EMBED_SIZE)
    bigru(act_ref[...].astype(jnp.bfloat16), w2_ref, b2_ref, 2 * HP)
    bigru(act_ref[...].astype(jnp.bfloat16), w3_ref, b3_ref, 2 * HP)

    # ----- attention (feature weights padded like the act layout) + fc1 -----
    att_w = attfc_ref[0:1, :]                                        # (1, 2*HP)
    fcw_h = attfc_ref[1:2, :]
    fcw_f = attfc_ref[2:3, :]
    s = jnp.zeros((Bp, 1), jnp.float32)
    ctx = jnp.zeros((Bp, 2 * HP), jnp.float32)
    for t in range(L):
        h3_t = act_ref[t * Bp:(t + 1) * Bp, :]                       # (Bp, 2*HP)
        e_t = jnp.tanh(jnp.sum(h3_t * att_w, axis=-1, keepdims=True)
                       + scal_ref[t])                                # (Bp, 1)
        a_t = jnp.exp(e_t)
        s = s + a_t
        ctx = ctx + h3_t * a_t
    # Matches PyTorch: a = exp(e) / (sum(exp(e)) + 1e-10); exact divide.
    ctx = ctx * (1.0 / (s + 1e-10))                                  # (Bp, 2*HP)
    out_h = jnp.sum(ctx * fcw_h, axis=-1, keepdims=True)             # (Bp, 1)
    out_f = jnp.sum(f_ref[...] * fcw_f, axis=-1, keepdims=True)      # (Bp, 1)
    res = out_h + out_f + scal_ref[L]
    out_ref[...] = jnp.broadcast_to(res, (Bp, GP))                   # lane-dense store


# ------------------------------ parameter setup ------------------------------
def _gru_dir_params(key, din, h):
    """One direction, fused-gate layout (Din,3H)/(H,3H)/(1,3H)/(1,3H), gates [r|z|n]."""
    k1, k2, k3, k4 = jax.random.split(key, 4)
    s = 1.0 / math.sqrt(h)
    u = lambda k, shape: jax.random.uniform(k, shape, jnp.float32, -s, s)
    return (u(k1, (din, 3 * h)), u(k2, (h, 3 * h)), u(k3, (1, 3 * h)), u(k4, (1, 3 * h)))


def _bigru_params(key, din, h):
    kf, kb = jax.random.split(key)
    return (_gru_dir_params(kf, din, h), _gru_dir_params(kb, din, h))


def init_params(key):
    keys = jax.random.split(key, 7)
    F = 2 * HIDDEN_SIZE
    embed = 0.1 * jax.random.normal(keys[0], (MAX_FEATURES, EMBED_SIZE), jnp.float32)
    att_bound = math.sqrt(6.0 / (F + 1))                 # xavier_uniform for (F, 1)
    att_w = jax.random.uniform(keys[1], (F,), jnp.float32, -att_bound, att_bound)
    att_b = jnp.zeros((MAXLEN,), jnp.float32)
    fc_in = F + 2
    fs = 1.0 / math.sqrt(fc_in)
    fc_w = jax.random.uniform(keys[2], (fc_in,), jnp.float32, -fs, fs)
    fc_b = jax.random.uniform(keys[3], (1,), jnp.float32, -fs, fs)
    return {
        "embedding": embed,
        "gru1": _bigru_params(keys[4], EMBED_SIZE, H1),
        "gru2": _bigru_params(keys[5], 2 * H1, H2),
        "gru3": _bigru_params(keys[6], 2 * H2, HIDDEN_SIZE),
        "att_w": att_w, "att_b": att_b, "fc_w": fc_w, "fc_b": fc_b,
    }


# --------------------- one-time wrapper-side layout packing ------------------
def _pad_gate_cols(w, h):
    """(..., 3h) -> (..., 3*GP): each gate block zero-padded to GP lanes."""
    parts = []
    for g in range(3):
        blk = w[..., g * h:(g + 1) * h]
        pad = [(0, 0)] * (blk.ndim - 1) + [(0, GP - h)]
        parts.append(jnp.pad(blk, pad))
    return jnp.concatenate(parts, axis=-1)


def _pad_input_rows(w, h_prev):
    """(2*h_prev, C) rows [fwd|bwd of prev layer] -> (2*HP, C) matching padded acts."""
    f = jnp.pad(w[:h_prev], ((0, HP - h_prev), (0, 0)))
    b = jnp.pad(w[h_prev:], ((0, HP - h_prev), (0, 0)))
    return jnp.concatenate([f, b], axis=0)


def _pack_layer(dir_params, h, h_prev):
    (wif, whf, bif, bhf), (wib, whb, bib, bhb) = dir_params

    def w_ih_pad(w):
        wp = _pad_gate_cols(w, h)
        return wp if h_prev is None else _pad_input_rows(wp, h_prev)

    def w_hh_pad(w):
        return jnp.pad(_pad_gate_cols(w, h), ((0, HP - h), (0, 0)))   # (HP, G3)

    wih = jnp.concatenate([w_ih_pad(wif), w_ih_pad(wib)], axis=1)     # (rows, GG)
    zeros = jnp.zeros((HP, G3), jnp.float32)
    whh = jnp.concatenate(
        [jnp.concatenate([w_hh_pad(whf), zeros], axis=1),
         jnp.concatenate([zeros, w_hh_pad(whb)], axis=1)], axis=0)    # (2*HP, GG)
    w_slab = jnp.concatenate([wih, whh], axis=0).astype(jnp.bfloat16)

    def b_gi(bi, bh):   # fold r/z part of b_hh into the input-projection bias
        bh_rz = jnp.concatenate([bh[:, :2 * h], jnp.zeros((1, h), jnp.float32)], axis=1)
        return _pad_gate_cols(bi + bh_rz, h)

    def b_hn(bh):       # only the n-gate b_hh stays on the recurrent side
        return _pad_gate_cols(
            jnp.concatenate([jnp.zeros((1, 2 * h), jnp.float32), bh[:, 2 * h:]], axis=1), h)

    bgi = jnp.concatenate([b_gi(bif, bhf), b_gi(bib, bhb)], axis=1)   # (1, GG)
    bhn = jnp.concatenate([b_hn(bhf), b_hn(bhb)], axis=1)             # (1, GG)
    return w_slab, jnp.concatenate([bgi, bhn], axis=0)                # (2, GG) f32


def _pad_split_feat(v, h3):
    """(2*h3,) feature vector -> (2*HP,) matching the padded [fwd|bwd] act layout."""
    return jnp.concatenate([jnp.pad(v[:h3], (0, HP - h3)),
                            jnp.pad(v[h3:], (0, HP - h3))])


def pack_params(params):
    F = 2 * HIDDEN_SIZE
    w1, b1 = _pack_layer(params["gru1"], H1, None)
    w2, b2 = _pack_layer(params["gru2"], H2, H1)
    w3, b3 = _pack_layer(params["gru3"], HIDDEN_SIZE, H2)
    attfc = jnp.stack([
        _pad_split_feat(params["att_w"], HIDDEN_SIZE),
        _pad_split_feat(params["fc_w"][:F], HIDDEN_SIZE),
        jnp.pad(params["fc_w"][F:], (0, 2 * HP - 2)),
    ], axis=0)                                                        # (3, 2*HP) f32
    scal = jnp.concatenate([params["att_b"], params["fc_b"]])         # (L+1,) f32
    table = jnp.pad(params["embedding"],
                    ((0, V_PAD - MAX_FEATURES), (0, 0))).astype(jnp.bfloat16)
    return {"table": table, "w1": w1, "b1": b1, "w2": w2, "b2": b2,
            "w3": w3, "b3": b3, "attfc": attfc, "scal": scal}


# --------------------------------- forward -----------------------------------
def model_forward(packed, token_ids, f_feats):
    B, L = token_ids.shape
    # Time-major token layout with batch padded to one sublane group.
    tok_pad = jnp.pad(token_ids.astype(jnp.int32), ((0, B_PAD - B), (0, 0)))   # (Bp, L)
    tok_tm = jnp.transpose(tok_pad, (1, 0)).reshape(L * B_PAD, 1)
    f_pad = jnp.pad(f_feats.astype(jnp.float32),
                    ((0, B_PAD - B), (0, 2 * HP - f_feats.shape[1])))

    out = pl.pallas_call(
        fused_forward_kernel,
        out_shape=jax.ShapeDtypeStruct((B_PAD, GP), jnp.float32),
        in_specs=[pl.BlockSpec(memory_space=pltpu.MemorySpace.VMEM)] * 10
                 + [pl.BlockSpec(memory_space=pltpu.MemorySpace.SMEM)],
        out_specs=pl.BlockSpec(memory_space=pltpu.MemorySpace.VMEM),
        scratch_shapes=[
            pltpu.VMEM((L * B_PAD, GG), jnp.float32),       # gi (input projections)
            pltpu.VMEM((L * B_PAD, 2 * HP), jnp.float32),   # padded bi-GRU activations
        ],
    )(
        tok_tm, packed["table"], f_pad,
        packed["w1"], packed["b1"], packed["w2"], packed["b2"],
        packed["w3"], packed["b3"], packed["attfc"], packed["scal"],
    )
    return out[:B, 0:1]


if __name__ == "__main__":
    key = jax.random.PRNGKey(0)
    k_p, k_tok, k_f = jax.random.split(key, 3)
    params = init_params(k_p)
    packed = pack_params(params)                                        # one-time plumbing
    tokens = jax.random.randint(k_tok, (BATCH, MAXLEN), 0, MAX_FEATURES)   # x[0]
    f_feats = jax.random.normal(k_f, (BATCH, 2), dtype=jnp.float32)        # x[1]

    out = jax.jit(model_forward)(packed, tokens, f_feats)
    out = jax.block_until_ready(out)
    assert out.shape == (BATCH, 1) and out.dtype == jnp.float32
    print("KERNEL_OK")
</pallas_src>

<mosaic_0001>
module attributes {stable_mosaic.version = 11 : i64} {
  func.func @fused_forward_kernel(%arg0: memref<64x1xi32, #tpu.memory_space<vmem>>, %arg1: memref<128x32xbf16, #tpu.memory_space<vmem>>, %arg2: memref<8x256xf32, #tpu.memory_space<vmem>>, %arg3: memref<288x768xbf16, #tpu.memory_space<vmem>>, %arg4: memref<2x768xf32, #tpu.memory_space<vmem>>, %arg5: memref<512x768xbf16, #tpu.memory_space<vmem>>, %arg6: memref<2x768xf32, #tpu.memory_space<vmem>>, %arg7: memref<512x768xbf16, #tpu.memory_space<vmem>>, %arg8: memref<2x768xf32, #tpu.memory_space<vmem>>, %arg9: memref<3x256xf32, #tpu.memory_space<vmem>>, %arg10: memref<9xf32, #tpu.memory_space<smem>>, %arg11: memref<8x128xf32, #tpu.memory_space<vmem>>, %arg12: memref<64x768xf32, #tpu.memory_space<vmem>>, %arg13: memref<64x256xf32, #tpu.memory_space<vmem>>) attributes {dimension_semantics = [], scalar_prefetch = 0 : i64, scratch_operands = 2 : i64, tpu.core_type = #tpu.core_type<tc>} {
    %c0 = arith.constant 0 : index
    %c0_0 = arith.constant 0 : index
    %0 = vector.load %arg0[%c0, %c0_0] : memref<64x1xi32, #tpu.memory_space<vmem>>, vector<64x1xi32>
    %1 = tpu.iota {dimensions = array<i32: 1>} : vector<64x128xi32>
    %2 = vector.broadcast %0 : vector<64x1xi32> to vector<64x128xi32>
    %3 = arith.cmpi eq, %1, %2 : vector<64x128xi32>
    %cst = arith.constant 1.000000e+00 : f32
    %cst_1 = arith.constant 0.000000e+00 : f32
    %4 = vector.broadcast %cst : f32 to vector<64x128xf32>
    %5 = vector.broadcast %cst_1 : f32 to vector<64x128xf32>
    %6 = arith.select %3, %4, %5 : vector<64x128xi1>, vector<64x128xf32>
    %7 = arith.truncf %6 : vector<64x128xf32> to vector<64x128xbf16>
    %c0_2 = arith.constant 0 : index
    %c0_3 = arith.constant 0 : index
    %8 = vector.load %arg1[%c0_2, %c0_3] : memref<128x32xbf16, #tpu.memory_space<vmem>>, vector<128x32xbf16>
    %cst_4 = arith.constant dense<0.000000e+00> : vector<64x32xf32>
    %9 = tpu.matmul %7, %8, %cst_4 {dimension_numbers = #tpu.dot_dimension_numbers<[1], [0], [0], [1], [0, 0, 1, 1], [], []>} : vector<64x128xbf16>, vector<128x32xbf16>, vector<64x32xf32> -> vector<64x32xf32>
    %10 = arith.truncf %9 : vector<64x32xf32> to vector<64x32xbf16>
    %c0_5 = arith.constant 0 : index
    %c0_6 = arith.constant 0 : index
    %11 = vector.load %arg3[%c0_5, %c0_6] : memref<288x768xbf16, #tpu.memory_space<vmem>>, vector<32x768xbf16>
    %c32 = arith.constant 32 : index
    %c0_7 = arith.constant 0 : index
    %12 = vector.load %arg3[%c32, %c0_7] : memref<288x768xbf16, #tpu.memory_space<vmem>>, vector<256x768xbf16>
    %c0_8 = arith.constant 0 : index
    %c0_9 = arith.constant 0 : index
    %13 = vector.load %arg4[%c0_8, %c0_9] : memref<2x768xf32, #tpu.memory_space<vmem>>, vector<1x768xf32>
    %c1 = arith.constant 1 : index
    %c0_10 = arith.constant 0 : index
    %14 = vector.load %arg4[%c1, %c0_10] : memref<2x768xf32, #tpu.memory_space<vmem>>, vector<1x768xf32>
    %cst_11 = arith.constant dense<0.000000e+00> : vector<64x768xf32>
    %15 = tpu.matmul %10, %11, %cst_11 {dimension_numbers = #tpu.dot_dimension_numbers<[1], [0], [0], [1], [0, 0, 1, 1], [], []>} : vector<64x32xbf16>, vector<32x768xbf16>, vector<64x768xf32> -> vector<64x768xf32>
    %16 = vector.broadcast %13 : vector<1x768xf32> to vector<64x768xf32>
    %17 = arith.addf %15, %16 : vector<64x768xf32>
    %c0_12 = arith.constant 0 : index
    %c0_13 = arith.constant 0 : index
    %18 = vector.load %arg12[%c0_12, %c0_13] : memref<64x768xf32, #tpu.memory_space<vmem>>, vector<64x768xf32>
    tpu.vector_store %arg12[%c0_12, %c0_13], %17 {strides = array<i32>} : memref<64x768xf32, #tpu.memory_space<vmem>>, vector<64x768xf32>,
    %cst_14 = arith.constant 0.000000e+00 : f32
    %19 = vector.broadcast %cst_14 : f32 to vector<8x128xf32>
    %cst_15 = arith.constant 0.000000e+00 : f32
    %20 = vector.broadcast %cst_15 : f32 to vector<8x128xf32>
    %21 = tpu.concatenate %19, %20 in 1 : vector<8x128xf32>, vector<8x128xf32> -> vector<8x256xf32>
    %22 = arith.truncf %21 : vector<8x256xf32> to vector<8x256xbf16>
    %cst_16 = arith.constant dense<0.000000e+00> : vector<8x768xf32>
    %23 = tpu.matmul %22, %12, %cst_16 {dimension_numbers = #tpu.dot_dimension_numbers<[1], [0], [0], [1], [0, 0, 1, 1], [], []>} : vector<8x256xbf16>, vector<256x768xbf16>, vector<8x768xf32> -> vector<8x768xf32>
    %24 = vector.broadcast %14 : vector<1x768xf32> to vector<8x768xf32>
    %25 = arith.addf %23, %24 : vector<8x768xf32>
    %c0_17 = arith.constant 0 : index
    %c0_18 = arith.constant 0 : index
    %26 = vector.load %arg12[%c0_17, %c0_18] : memref<64x768xf32, #tpu.memory_space<vmem>>, vector<8x384xf32>
    %c56 = arith.constant 56 : index
    %c384 = arith.constant 384 : index
    %27 = vector.load %arg12[%c56, %c384] : memref<64x768xf32, #tpu.memory_space<vmem>>, vector<8x384xf32>
    %28 = vector.extract_strided_slice %26 {offsets = [0, 0], sizes = [8, 256], strides = [1, 1]} : vector<8x384xf32> to vector<8x256xf32>
    %29 = vector.extract_strided_slice %25 {offsets = [0, 0], sizes = [8, 256], strides = [1, 1]} : vector<8x768xf32> to vector<8x256xf32>
    %30 = arith.addf %28, %29 : vector<8x256xf32>
    %31 = arith.negf %30 : vector<8x256xf32>
    %32 = math.exp %31 : vector<8x256xf32>
    %cst_19 = arith.constant 1.000000e+00 : f32
    %33 = vector.broadcast %cst_19 : f32 to vector<8x256xf32>
    %34 = arith.addf %33, %32 : vector<8x256xf32>
    %35 = arith.divf %33, %34 : vector<8x256xf32>
    %36 = vector.extract_strided_slice %26 {offsets = [0, 256], sizes = [8, 128], strides = [1, 1]} : vector<8x384xf32> to vector<8x128xf32>
    %37 = vector.extract_strided_slice %35 {offsets = [0, 0], sizes = [8, 128], strides = [1, 1]} : vector<8x256xf32> to vector<8x128xf32>
    %38 = vector.extract_strided_slice %25 {offsets = [0, 256], sizes = [8, 128], strides = [1, 1]} : vector<8x768xf32> to vector<8x128xf32>
    %39 = arith.mulf %37, %38 : vector<8x128xf32>
    %40 = arith.addf %36, %39 : vector<8x128xf32>
    %41 = math.tanh %40 : vector<8x128xf32>
    %42 = vector.extract_strided_slice %35 {offsets = [0, 128], sizes = [8, 128], strides = [1, 1]} : vector<8x256xf32> to vector<8x128xf32>
    %cst_20 = arith.constant 1.000000e+00 : f32
    %43 = vector.broadcast %cst_20 : f32 to vector<8x128xf32>
    %44 = arith.subf %43, %42 : vector<8x128xf32>
    %45 = arith.mulf %44, %41 : vector<8x128xf32>
    %46 = arith.mulf %42, %19 : vector<8x128xf32>
    %47 = arith.addf %45, %46 : vector<8x128xf32>
    %48 = vector.extract_strided_slice %27 {offsets = [0, 0], sizes = [8, 256], strides = [1, 1]} : vector<8x384xf32> to vector<8x256xf32>
    %49 = vector.extract_strided_slice %25 {offsets = [0, 384], sizes = [8, 256], strides = [1, 1]} : vector<8x768xf32> to vector<8x256xf32>
    %50 = arith.addf %48, %49 : vector<8x256xf32>
    %51 = arith.negf %50 : vector<8x256xf32>
    %52 = math.exp %51 : vector<8x256xf32>
    %cst_21 = arith.constant 1.000000e+00 : f32
    %53 = vector.broadcast %cst_21 : f32 to vector<8x256xf32>
    %54 = arith.addf %53, %52 : vector<8x256xf32>
    %55 = arith.divf %53, %54 : vector<8x256xf32>
    %56 = vector.extract_strided_slice %27 {offsets = [0, 256], sizes = [8, 128], strides = [1, 1]} : vector<8x384xf32> to vector<8x128xf32>
    %57 = vector.extract_strided_slice %55 {offsets = [0, 0], sizes = [8, 128], strides = [1, 1]} : vector<8x256xf32> to vector<8x128xf32>
    %58 = vector.extract_strided_slice %25 {offsets = [0, 640], sizes = [8, 128], strides = [1, 1]} : vector<8x768xf32> to vector<8x128xf32>
    %59 = arith.mulf %57, %58 : vector<8x128xf32>
    %60 = arith.addf %56, %59 : vector<8x128xf32>
    %61 = math.tanh %60 : vector<8x128xf32>
    %62 = vector.extract_strided_slice %55 {offsets = [0, 128], sizes = [8, 128], strides = [1, 1]} : vector<8x256xf32> to vector<8x128xf32>
    %cst_22 = arith.constant 1.000000e+00 : f32
    %63 = vector.broadcast %cst_22 : f32 to vector<8x128xf32>
    %64 = arith.subf %63, %62 : vector<8x128xf32>
    %65 = arith.mulf %64, %61 : vector<8x128xf32>
    %66 = arith.mulf %62, %20 : vector<8x128xf32>
    %67 = arith.addf %65, %66 : vector<8x128xf32>
    %c0_23 = arith.constant 0 : index
    %c0_24 = arith.constant 0 : index
    %68 = vector.load %arg13[%c0_23, %c0_24] : memref<64x256xf32, #tpu.memory_space<vmem>>, vector<8x128xf32>
    tpu.vector_store %arg13[%c0_23, %c0_24], %47 {strides = array<i32>} : memref<64x256xf32, #tpu.memory_space<vmem>>, vector<8x128xf32>,
    %c56_25 = arith.constant 56 : index
    %c128 = arith.constant 128 : index
    %69 = vector.load %arg13[%c56_25, %c128] : memref<64x256xf32, #tpu.memory_space<vmem>>, vector<8x128xf32>
    tpu.vector_store %arg13[%c56_25, %c128], %67 {strides = array<i32>} : memref<64x256xf32, #tpu.memory_space<vmem>>, vector<8x128xf32>,
    %70 = tpu.concatenate %47, %67 in 1 : vector<8x128xf32>, vector<8x128xf32> -> vector<8x256xf32>
    %71 = arith.truncf %70 : vector<8x256xf32> to vector<8x256xbf16>
    %cst_26 = arith.constant dense<0.000000e+00> : vector<8x768xf32>
    %72 = tpu.matmul %71, %12, %cst_26 {dimension_numbers = #tpu.dot_dimension_numbers<[1], [0], [0], [1], [0, 0, 1, 1], [], []>} : vector<8x256xbf16>, vector<256x768xbf16>, vector<8x768xf32> -> vector<8x768xf32>
    %73 = vector.broadcast %14 : vector<1x768xf32> to vector<8x768xf32>
    %74 = arith.addf %72, %73 : vector<8x768xf32>
    %c8 = arith.constant 8 : index
    %c0_27 = arith.constant 0 : index
    %75 = vector.load %arg12[%c8, %c0_27] : memref<64x768xf32, #tpu.memory_space<vmem>>, vector<8x384xf32>
    %c48 = arith.constant 48 : index
    %c384_28 = arith.constant 384 : index
    %76 = vector.load %arg12[%c48, %c384_28] : memref<64x768xf32, #tpu.memory_space<vmem>>, vector<8x384xf32>
    %77 = vector.extract_strided_slice %75 {offsets = [0, 0], sizes = [8, 256], strides = [1, 1]} : vector<8x384xf32> to vector<8x256xf32>
    %78 = vector.extract_strided_slice %74 {offsets = [0, 0], sizes = [8, 256], strides = [1, 1]} : vector<8x768xf32> to vector<8x256xf32>
    %79 = arith.addf %77, %78 : vector<8x256xf32>
    %80 = arith.negf %79 : vector<8x256xf32>
    %81 = math.exp %80 : vector<8x256xf32>
    %cst_29 = arith.constant 1.000000e+00 : f32
    %82 = vector.broadcast %cst_29 : f32 to vector<8x256xf32>
    %83 = arith.addf %82, %81 : vector<8x256xf32>
    %84 = arith.divf %82, %83 : vector<8x256xf32>
    %85 = vector.extract_strided_slice %75 {offsets = [0, 256], sizes = [8, 128], strides = [1, 1]} : vector<8x384xf32> to vector<8x128xf32>
    %86 = vector.extract_strided_slice %84 {offsets = [0, 0], sizes = [8, 128], strides = [1, 1]} : vector<8x256xf32> to vector<8x128xf32>
    %87 = vector.extract_strided_slice %74 {offsets = [0, 256], sizes = [8, 128], strides = [1, 1]} : vector<8x768xf32> to vector<8x128xf32>
    %88 = arith.mulf %86, %87 : vector<8x128xf32>
    %89 = arith.addf %85, %88 : vector<8x128xf32>
    %90 = math.tanh %89 : vector<8x128xf32>
    %91 = vector.extract_strided_slice %84 {offsets = [0, 128], sizes = [8, 128], strides = [1, 1]} : vector<8x256xf32> to vector<8x128xf32>
    %cst_30 = arith.constant 1.000000e+00 : f32
    %92 = vector.broadcast %cst_30 : f32 to vector<8x128xf32>
    %93 = arith.subf %92, %91 : vector<8x128xf32>
    %94 = arith.mulf %93, %90 : vector<8x128xf32>
    %95 = arith.mulf %91, %47 : vector<8x128xf32>
    %96 = arith.addf %94, %95 : vector<8x128xf32>
    %97 = vector.extract_strided_slice %76 {offsets = [0, 0], sizes = [8, 256], strides = [1, 1]} : vector<8x384xf32> to vector<8x256xf32>
    %98 = vector.extract_strided_slice %74 {offsets = [0, 384], sizes = [8, 256], strides = [1, 1]} : vector<8x768xf32> to vector<8x256xf32>
    %99 = arith.addf %97, %98 : vector<8x256xf32>
    %100 = arith.negf %99 : vector<8x256xf32>
    %101 = math.exp %100 : vector<8x256xf32>
    %cst_31 = arith.constant 1.000000e+00 : f32
    %102 = vector.broadcast %cst_31 : f32 to vector<8x256xf32>
    %103 = arith.addf %102, %101 : vector<8x256xf32>
    %104 = arith.divf %102, %103 : vector<8x256xf32>
    %105 = vector.extract_strided_slice %76 {offsets = [0, 256], sizes = [8, 128], strides = [1, 1]} : vector<8x384xf32> to vector<8x128xf32>
    %106 = vector.extract_strided_slice %104 {offsets = [0, 0], sizes = [8, 128], strides = [1, 1]} : vector<8x256xf32> to vector<8x128xf32>
    %107 = vector.extract_strided_slice %74 {offsets = [0, 640], sizes = [8, 128], strides = [1, 1]} : vector<8x768xf32> to vector<8x128xf32>
    %108 = arith.mulf %106, %107 : vector<8x128xf32>
    %109 = arith.addf %105, %108 : vector<8x128xf32>
    %110 = math.tanh %109 : vector<8x128xf32>
    %111 = vector.extract_strided_slice %104 {offsets = [0, 128], sizes = [8, 128], strides = [1, 1]} : vector<8x256xf32> to vector<8x128xf32>
    %cst_32 = arith.constant 1.000000e+00 : f32
    %112 = vector.broadcast %cst_32 : f32 to vector<8x128xf32>
    %113 = arith.subf %112, %111 : vector<8x128xf32>
    %114 = arith.mulf %113, %110 : vector<8x128xf32>
    %115 = arith.mulf %111, %67 : vector<8x128xf32>
    %116 = arith.addf %114, %115 : vector<8x128xf32>
    %c8_33 = arith.constant 8 : index
    %c0_34 = arith.constant 0 : index
    %117 = vector.load %arg13[%c8_33, %c0_34] : memref<64x256xf32, #tpu.memory_space<vmem>>, vector<8x128xf32>
    tpu.vector_store %arg13[%c8_33, %c0_34], %96 {strides = array<i32>} : memref<64x256xf32, #tpu.memory_space<vmem>>, vector<8x128xf32>,
    %c48_35 = arith.constant 48 : index
    %c128_36 = arith.constant 128 : index
    %118 = vector.load %arg13[%c48_35, %c128_36] : memref<64x256xf32, #tpu.memory_space<vmem>>, vector<8x128xf32>
    tpu.vector_store %arg13[%c48_35, %c128_36], %116 {strides = array<i32>} : memref<64x256xf32, #tpu.memory_space<vmem>>, vector<8x128xf32>,
    %119 = tpu.concatenate %96, %116 in 1 : vector<8x128xf32>, vector<8x128xf32> -> vector<8x256xf32>
    %120 = arith.truncf %119 : vector<8x256xf32> to vector<8x256xbf16>
    %cst_37 = arith.constant dense<0.000000e+00> : vector<8x768xf32>
    %121 = tpu.matmul %120, %12, %cst_37 {dimension_numbers = #tpu.dot_dimension_numbers<[1], [0], [0], [1], [0, 0, 1, 1], [], []>} : vector<8x256xbf16>, vector<256x768xbf16>, vector<8x768xf32> -> vector<8x768xf32>
    %122 = vector.broadcast %14 : vector<1x768xf32> to vector<8x768xf32>
    %123 = arith.addf %121, %122 : vector<8x768xf32>
    %c16 = arith.constant 16 : index
    %c0_38 = arith.constant 0 : index
    %124 = vector.load %arg12[%c16, %c0_38] : memref<64x768xf32, #tpu.memory_space<vmem>>, vector<8x384xf32>
    %c40 = arith.constant 40 : index
    %c384_39 = arith.constant 384 : index
    %125 = vector.load %arg12[%c40, %c384_39] : memref<64x768xf32, #tpu.memory_space<vmem>>, vector<8x384xf32>
    %126 = vector.extract_strided_slice %124 {offsets = [0, 0], sizes = [8, 256], strides = [1, 1]} : vector<8x384xf32> to vector<8x256xf32>
    %127 = vector.extract_strided_slice %123 {offsets = [0, 0], sizes = [8, 256], strides = [1, 1]} : vector<8x768xf32> to vector<8x256xf32>
    %128 = arith.addf %126, %127 : vector<8x256xf32>
    %129 = arith.negf %128 : vector<8x256xf32>
    %130 = math.exp %129 : vector<8x256xf32>
    %cst_40 = arith.constant 1.000000e+00 : f32
    %131 = vector.broadcast %cst_40 : f32 to vector<8x256xf32>
    %132 = arith.addf %131, %130 : vector<8x256xf32>
    %133 = arith.divf %131, %132 : vector<8x256xf32>
    %134 = vector.extract_strided_slice %124 {offsets = [0, 256], sizes = [8, 128], strides = [1, 1]} : vector<8x384xf32> to vector<8x128xf32>
    %135 = vector.extract_strided_slice %133 {offsets = [0, 0], sizes = [8, 128], strides = [1, 1]} : vector<8x256xf32> to vector<8x128xf32>
    %136 = vector.extract_strided_slice %123 {offsets = [0, 256], sizes = [8, 128], strides = [1, 1]} : vector<8x768xf32> to vector<8x128xf32>
    %137 = arith.mulf %135, %136 : vector<8x128xf32>
    %138 = arith.addf %134, %137 : vector<8x128xf32>
    %139 = math.tanh %138 : vector<8x128xf32>
    %140 = vector.extract_strided_slice %133 {offsets = [0, 128], sizes = [8, 128], strides = [1, 1]} : vector<8x256xf32> to vector<8x128xf32>
    %cst_41 = arith.constant 1.000000e+00 : f32
    %141 = vector.broadcast %cst_41 : f32 to vector<8x128xf32>
    %142 = arith.subf %141, %140 : vector<8x128xf32>
    %143 = arith.mulf %142, %139 : vector<8x128xf32>
    %144 = arith.mulf %140, %96 : vector<8x128xf32>
    %145 = arith.addf %143, %144 : vector<8x128xf32>
    %146 = vector.extract_strided_slice %125 {offsets = [0, 0], sizes = [8, 256], strides = [1, 1]} : vector<8x384xf32> to vector<8x256xf32>
    %147 = vector.extract_strided_slice %123 {offsets = [0, 384], sizes = [8, 256], strides = [1, 1]} : vector<8x768xf32> to vector<8x256xf32>
    %148 = arith.addf %146, %147 : vector<8x256xf32>
    %149 = arith.negf %148 : vector<8x256xf32>
    %150 = math.exp %149 : vector<8x256xf32>
    %cst_42 = arith.constant 1.000000e+00 : f32
    %151 = vector.broadcast %cst_42 : f32 to vector<8x256xf32>
    %152 = arith.addf %151, %150 : vector<8x256xf32>
    %153 = arith.divf %151, %152 : vector<8x256xf32>
    %154 = vector.extract_strided_slice %125 {offsets = [0, 256], sizes = [8, 128], strides = [1, 1]} : vector<8x384xf32> to vector<8x128xf32>
    %155 = vector.extract_strided_slice %153 {offsets = [0, 0], sizes = [8, 128], strides = [1, 1]} : vector<8x256xf32> to vector<8x128xf32>
    %156 = vector.extract_strided_slice %123 {offsets = [0, 640], sizes = [8, 128], strides = [1, 1]} : vector<8x768xf32> to vector<8x128xf32>
    %157 = arith.mulf %155, %156 : vector<8x128xf32>
    %158 = arith.addf %154, %157 : vector<8x128xf32>
    %159 = math.tanh %158 : vector<8x128xf32>
    %160 = vector.extract_strided_slice %153 {offsets = [0, 128], sizes = [8, 128], strides = [1, 1]} : vector<8x256xf32> to vector<8x128xf32>
    %cst_43 = arith.constant 1.000000e+00 : f32
    %161 = vector.broadcast %cst_43 : f32 to vector<8x128xf32>
    %162 = arith.subf %161, %160 : vector<8x128xf32>
    %163 = arith.mulf %162, %159 : vector<8x128xf32>
    %164 = arith.mulf %160, %116 : vector<8x128xf32>
    %165 = arith.addf %163, %164 : vector<8x128xf32>
    %c16_44 = arith.constant 16 : index
    %c0_45 = arith.constant 0 : index
    %166 = vector.load %arg13[%c16_44, %c0_45] : memref<64x256xf32, #tpu.memory_space<vmem>>, vector<8x128xf32>
    tpu.vector_store %arg13[%c16_44, %c0_45], %145 {strides = array<i32>} : memref<64x256xf32, #tpu.memory_space<vmem>>, vector<8x128xf32>,
    %c40_46 = arith.constant 40 : index
    %c128_47 = arith.constant 128 : index
    %167 = vector.load %arg13[%c40_46, %c128_47] : memref<64x256xf32, #tpu.memory_space<vmem>>, vector<8x128xf32>
    tpu.vector_store %arg13[%c40_46, %c128_47], %165 {strides = array<i32>} : memref<64x256xf32, #tpu.memory_space<vmem>>, vector<8x128xf32>,
    %168 = tpu.concatenate %145, %165 in 1 : vector<8x128xf32>, vector<8x128xf32> -> vector<8x256xf32>
    %169 = arith.truncf %168 : vector<8x256xf32> to vector<8x256xbf16>
    %cst_48 = arith.constant dense<0.000000e+00> : vector<8x768xf32>
    %170 = tpu.matmul %169, %12, %cst_48 {dimension_numbers = #tpu.dot_dimension_numbers<[1], [0], [0], [1], [0, 0, 1, 1], [], []>} : vector<8x256xbf16>, vector<256x768xbf16>, vector<8x768xf32> -> vector<8x768xf32>
    %171 = vector.broadcast %14 : vector<1x768xf32> to vector<8x768xf32>
    %172 = arith.addf %170, %171 : vector<8x768xf32>
    %c24 = arith.constant 24 : index
    %c0_49 = arith.constant 0 : index
    %173 = vector.load %arg12[%c24, %c0_49] : memref<64x768xf32, #tpu.memory_space<vmem>>, vector<8x384xf32>
    %c32_50 = arith.constant 32 : index
    %c384_51 = arith.constant 384 : index
    %174 = vector.load %arg12[%c32_50, %c384_51] : memref<64x768xf32, #tpu.memory_space<vmem>>, vector<8x384xf32>
    %175 = vector.extract_strided_slice %173 {offsets = [0, 0], sizes = [8, 256], strides = [1, 1]} : vector<8x384xf32> to vector<8x256xf32>
    %176 = vector.extract_strided_slice %172 {offsets = [0, 0], sizes = [8, 256], strides = [1, 1]} : vector<8x768xf32> to vector<8x256xf32>
    %177 = arith.addf %175, %176 : vector<8x256xf32>
    %178 = arith.negf %177 : vector<8x256xf32>
    %179 = math.exp %178 : vector<8x256xf32>
    %cst_52 = arith.constant 1.000000e+00 : f32
    %180 = vector.broadcast %cst_52 : f32 to vector<8x256xf32>
    %181 = arith.addf %180, %179 : vector<8x256xf32>
    %182 = arith.divf %180, %181 : vector<8x256xf32>
    %183 = vector.extract_strided_slice %173 {offsets = [0, 256], sizes = [8, 128], strides = [1, 1]} : vector<8x384xf32> to vector<8x128xf32>
    %184 = vector.extract_strided_slice %182 {offsets = [0, 0], sizes = [8, 128], strides = [1, 1]} : vector<8x256xf32> to vector<8x128xf32>
    %185 = vector.extract_strided_slice %172 {offsets = [0, 256], sizes = [8, 128], strides = [1, 1]} : vector<8x768xf32> to vector<8x128xf32>
    %186 = arith.mulf %184, %185 : vector<8x128xf32>
    %187 = arith.addf %183, %186 : vector<8x128xf32>
    %188 = math.tanh %187 : vector<8x128xf32>
    %189 = vector.extract_strided_slice %182 {offsets = [0, 128], sizes = [8, 128], strides = [1, 1]} : vector<8x256xf32> to vector<8x128xf32>
    %cst_53 = arith.constant 1.000000e+00 : f32
    %190 = vector.broadcast %cst_53 : f32 to vector<8x128xf32>
    %191 = arith.subf %190, %189 : vector<8x128xf32>
    %192 = arith.mulf %191, %188 : vector<8x128xf32>
    %193 = arith.mulf %189, %145 : vector<8x128xf32>
    %194 = arith.addf %192, %193 : vector<8x128xf32>
    %195 = vector.extract_strided_slice %174 {offsets = [0, 0], sizes = [8, 256], strides = [1, 1]} : vector<8x384xf32> to vector<8x256xf32>
    %196 = vector.extract_strided_slice %172 {offsets = [0, 384], sizes = [8, 256], strides = [1, 1]} : vector<8x768xf32> to vector<8x256xf32>
    %197 = arith.addf %195, %196 : vector<8x256xf32>
    %198 = arith.negf %197 : vector<8x256xf32>
    %199 = math.exp %198 : vector<8x256xf32>
    %cst_54 = arith.constant 1.000000e+00 : f32
    %200 = vector.broadcast %cst_54 : f32 to vector<8x256xf32>
    %201 = arith.addf %200, %199 : vector<8x256xf32>
    %202 = arith.divf %200, %201 : vector<8x256xf32>
    %203 = vector.extract_strided_slice %174 {offsets = [0, 256], sizes = [8, 128], strides = [1, 1]} : vector<8x384xf32> to vector<8x128xf32>
    %204 = vector.extract_strided_slice %202 {offsets = [0, 0], sizes = [8, 128], strides = [1, 1]} : vector<8x256xf32> to vector<8x128xf32>
    %205 = vector.extract_strided_slice %172 {offsets = [0, 640], sizes = [8, 128], strides = [1, 1]} : vector<8x768xf32> to vector<8x128xf32>
    %206 = arith.mulf %204, %205 : vector<8x128xf32>
    %207 = arith.addf %203, %206 : vector<8x128xf32>
    %208 = math.tanh %207 : vector<8x128xf32>
    %209 = vector.extract_strided_slice %202 {offsets = [0, 128], sizes = [8, 128], strides = [1, 1]} : vector<8x256xf32> to vector<8x128xf32>
    %cst_55 = arith.constant 1.000000e+00 : f32
    %210 = vector.broadcast %cst_55 : f32 to vector<8x128xf32>
    %211 = arith.subf %210, %209 : vector<8x128xf32>
    %212 = arith.mulf %211, %208 : vector<8x128xf32>
    %213 = arith.mulf %209, %165 : vector<8x128xf32>
    %214 = arith.addf %212, %213 : vector<8x128xf32>
    %c24_56 = arith.constant 24 : index
    %c0_57 = arith.constant 0 : index
    %215 = vector.load %arg13[%c24_56, %c0_57] : memref<64x256xf32, #tpu.memory_space<vmem>>, vector<8x128xf32>
    tpu.vector_store %arg13[%c24_56, %c0_57], %194 {strides = array<i32>} : memref<64x256xf32, #tpu.memory_space<vmem>>, vector<8x128xf32>,
    %c32_58 = arith.constant 32 : index
    %c128_59 = arith.constant 128 : index
    %216 = vector.load %arg13[%c32_58, %c128_59] : memref<64x256xf32, #tpu.memory_space<vmem>>, vector<8x128xf32>
    tpu.vector_store %arg13[%c32_58, %c128_59], %214 {strides = array<i32>} : memref<64x256xf32, #tpu.memory_space<vmem>>, vector<8x128xf32>,
    %217 = tpu.concatenate %194, %214 in 1 : vector<8x128xf32>, vector<8x128xf32> -> vector<8x256xf32>
    %218 = arith.truncf %217 : vector<8x256xf32> to vector<8x256xbf16>
    %cst_60 = arith.constant dense<0.000000e+00> : vector<8x768xf32>
    %219 = tpu.matmul %218, %12, %cst_60 {dimension_numbers = #tpu.dot_dimension_numbers<[1], [0], [0], [1], [0, 0, 1, 1], [], []>} : vector<8x256xbf16>, vector<256x768xbf16>, vector<8x768xf32> -> vector<8x768xf32>
    %220 = vector.broadcast %14 : vector<1x768xf32> to vector<8x768xf32>
    %221 = arith.addf %219, %220 : vector<8x768xf32>
    %c32_61 = arith.constant 32 : index
    %c0_62 = arith.constant 0 : index
    %222 = vector.load %arg12[%c32_61, %c0_62] : memref<64x768xf32, #tpu.memory_space<vmem>>, vector<8x384xf32>
    %c24_63 = arith.constant 24 : index
    %c384_64 = arith.constant 384 : index
    %223 = vector.load %arg12[%c24_63, %c384_64] : memref<64x768xf32, #tpu.memory_space<vmem>>, vector<8x384xf32>
    %224 = vector.extract_strided_slice %222 {offsets = [0, 0], sizes = [8, 256], strides = [1, 1]} : vector<8x384xf32> to vector<8x256xf32>
    %225 = vector.extract_strided_slice %221 {offsets = [0, 0], sizes = [8, 256], strides = [1, 1]} : vector<8x768xf32> to vector<8x256xf32>
    %226 = arith.addf %224, %225 : vector<8x256xf32>
    %227 = arith.negf %226 : vector<8x256xf32>
    %228 = math.exp %227 : vector<8x256xf32>
    %cst_65 = arith.constant 1.000000e+00 : f32
    %229 = vector.broadcast %cst_65 : f32 to vector<8x256xf32>
    %230 = arith.addf %229, %228 : vector<8x256xf32>
    %231 = arith.divf %229, %230 : vector<8x256xf32>
    %232 = vector.extract_strided_slice %222 {offsets = [0, 256], sizes = [8, 128], strides = [1, 1]} : vector<8x384xf32> to vector<8x128xf32>
    %233 = vector.extract_strided_slice %231 {offsets = [0, 0], sizes = [8, 128], strides = [1, 1]} : vector<8x256xf32> to vector<8x128xf32>
    %234 = vector.extract_strided_slice %221 {offsets = [0, 256], sizes = [8, 128], strides = [1, 1]} : vector<8x768xf32> to vector<8x128xf32>
    %235 = arith.mulf %233, %234 : vector<8x128xf32>
    %236 = arith.addf %232, %235 : vector<8x128xf32>
    %237 = math.tanh %236 : vector<8x128xf32>
    %238 = vector.extract_strided_slice %231 {offsets = [0, 128], sizes = [8, 128], strides = [1, 1]} : vector<8x256xf32> to vector<8x128xf32>
    %cst_66 = arith.constant 1.000000e+00 : f32
    %239 = vector.broadcast %cst_66 : f32 to vector<8x128xf32>
    %240 = arith.subf %239, %238 : vector<8x128xf32>
    %241 = arith.mulf %240, %237 : vector<8x128xf32>
    %242 = arith.mulf %238, %194 : vector<8x128xf32>
    %243 = arith.addf %241, %242 : vector<8x128xf32>
    %244 = vector.extract_strided_slice %223 {offsets = [0, 0], sizes = [8, 256], strides = [1, 1]} : vector<8x384xf32> to vector<8x256xf32>
    %245 = vector.extract_strided_slice %221 {offsets = [0, 384], sizes = [8, 256], strides = [1, 1]} : vector<8x768xf32> to vector<8x256xf32>
    %246 = arith.addf %244, %245 : vector<8x256xf32>
    %247 = arith.negf %246 : vector<8x256xf32>
    %248 = math.exp %247 : vector<8x256xf32>
    %cst_67 = arith.constant 1.000000e+00 : f32
    %249 = vector.broadcast %cst_67 : f32 to vector<8x256xf32>
    %250 = arith.addf %249, %248 : vector<8x256xf32>
    %251 = arith.divf %249, %250 : vector<8x256xf32>
    %252 = vector.extract_strided_slice %223 {offsets = [0, 256], sizes = [8, 128], strides = [1, 1]} : vector<8x384xf32> to vector<8x128xf32>
    %253 = vector.extract_strided_slice %251 {offsets = [0, 0], sizes = [8, 128], strides = [1, 1]} : vector<8x256xf32> to vector<8x128xf32>
    %254 = vector.extract_strided_slice %221 {offsets = [0, 640], sizes = [8, 128], strides = [1, 1]} : vector<8x768xf32> to vector<8x128xf32>
    %255 = arith.mulf %253, %254 : vector<8x128xf32>
    %256 = arith.addf %252, %255 : vector<8x128xf32>
    %257 = math.tanh %256 : vector<8x128xf32>
    %258 = vector.extract_strided_slice %251 {offsets = [0, 128], sizes = [8, 128], strides = [1, 1]} : vector<8x256xf32> to vector<8x128xf32>
    %cst_68 = arith.constant 1.000000e+00 : f32
    %259 = vector.broadcast %cst_68 : f32 to vector<8x128xf32>
    %260 = arith.subf %259, %258 : vector<8x128xf32>
    %261 = arith.mulf %260, %257 : vector<8x128xf32>
    %262 = arith.mulf %258, %214 : vector<8x128xf32>
    %263 = arith.addf %261, %262 : vector<8x128xf32>
    %c32_69 = arith.constant 32 : index
    %c0_70 = arith.constant 0 : index
    %264 = vector.load %arg13[%c32_69, %c0_70] : memref<64x256xf32, #tpu.memory_space<vmem>>, vector<8x128xf32>
    tpu.vector_store %arg13[%c32_69, %c0_70], %243 {strides = array<i32>} : memref<64x256xf32, #tpu.memory_space<vmem>>, vector<8x128xf32>,
    %c24_71 = arith.constant 24 : index
    %c128_72 = arith.constant 128 : index
    %265 = vector.load %arg13[%c24_71, %c128_72] : memref<64x256xf32, #tpu.memory_space<vmem>>, vector<8x128xf32>
    tpu.vector_store %arg13[%c24_71, %c128_72], %263 {strides = array<i32>} : memref<64x256xf32, #tpu.memory_space<vmem>>, vector<8x128xf32>,
    %266 = tpu.concatenate %243, %263 in 1 : vector<8x128xf32>, vector<8x128xf32> -> vector<8x256xf32>
    %267 = arith.truncf %266 : vector<8x256xf32> to vector<8x256xbf16>
    %cst_73 = arith.constant dense<0.000000e+00> : vector<8x768xf32>
    %268 = tpu.matmul %267, %12, %cst_73 {dimension_numbers = #tpu.dot_dimension_numbers<[1], [0], [0], [1], [0, 0, 1, 1], [], []>} : vector<8x256xbf16>, vector<256x768xbf16>, vector<8x768xf32> -> vector<8x768xf32>
    %269 = vector.broadcast %14 : vector<1x768xf32> to vector<8x768xf32>
    %270 = arith.addf %268, %269 : vector<8x768xf32>
    %c40_74 = arith.constant 40 : index
    %c0_75 = arith.constant 0 : index
    %271 = vector.load %arg12[%c40_74, %c0_75] : memref<64x768xf32, #tpu.memory_space<vmem>>, vector<8x384xf32>
    %c16_76 = arith.constant 16 : index
    %c384_77 = arith.constant 384 : index
    %272 = vector.load %arg12[%c16_76, %c384_77] : memref<64x768xf32, #tpu.memory_space<vmem>>, vector<8x384xf32>
    %273 = vector.extract_strided_slice %271 {offsets = [0, 0], sizes = [8, 256], strides = [1, 1]} : vector<8x384xf32> to vector<8x256xf32>
    %274 = vector.extract_strided_slice %270 {offsets = [0, 0], sizes = [8, 256], strides = [1, 1]} : vector<8x768xf32> to vector<8x256xf32>
    %275 = arith.addf %273, %274 : vector<8x256xf32>
    %276 = arith.negf %275 : vector<8x256xf32>
    %277 = math.exp %276 : vector<8x256xf32>
    %cst_78 = arith.constant 1.000000e+00 : f32
    %278 = vector.broadcast %cst_78 : f32 to vector<8x256xf32>
    %279 = arith.addf %278, %277 : vector<8x256xf32>
    %280 = arith.divf %278, %279 : vector<8x256xf32>
    %281 = vector.extract_strided_slice %271 {offsets = [0, 256], sizes = [8, 128], strides = [1, 1]} : vector<8x384xf32> to vector<8x128xf32>
    %282 = vector.extract_strided_slice %280 {offsets = [0, 0], sizes = [8, 128], strides = [1, 1]} : vector<8x256xf32> to vector<8x128xf32>
    %283 = vector.extract_strided_slice %270 {offsets = [0, 256], sizes = [8, 128], strides = [1, 1]} : vector<8x768xf32> to vector<8x128xf32>
    %284 = arith.mulf %282, %283 : vector<8x128xf32>
    %285 = arith.addf %281, %284 : vector<8x128xf32>
    %286 = math.tanh %285 : vector<8x128xf32>
    %287 = vector.extract_strided_slice %280 {offsets = [0, 128], sizes = [8, 128], strides = [1, 1]} : vector<8x256xf32> to vector<8x128xf32>
    %cst_79 = arith.constant 1.000000e+00 : f32
    %288 = vector.broadcast %cst_79 : f32 to vector<8x128xf32>
    %289 = arith.subf %288, %287 : vector<8x128xf32>
    %290 = arith.mulf %289, %286 : vector<8x128xf32>
    %291 = arith.mulf %287, %243 : vector<8x128xf32>
    %292 = arith.addf %290, %291 : vector<8x128xf32>
    %293 = vector.extract_strided_slice %272 {offsets = [0, 0], sizes = [8, 256], strides = [1, 1]} : vector<8x384xf32> to vector<8x256xf32>
    %294 = vector.extract_strided_slice %270 {offsets = [0, 384], sizes = [8, 256], strides = [1, 1]} : vector<8x768xf32> to vector<8x256xf32>
    %295 = arith.addf %293, %294 : vector<8x256xf32>
    %296 = arith.negf %295 : vector<8x256xf32>
    %297 = math.exp %296 : vector<8x256xf32>
    %cst_80 = arith.constant 1.000000e+00 : f32
    %298 = vector.broadcast %cst_80 : f32 to vector<8x256xf32>
    %299 = arith.addf %298, %297 : vector<8x256xf32>
    %300 = arith.divf %298, %299 : vector<8x256xf32>
    %301 = vector.extract_strided_slice %272 {offsets = [0, 256], sizes = [8, 128], strides = [1, 1]} : vector<8x384xf32> to vector<8x128xf32>
    %302 = vector.extract_strided_slice %300 {offsets = [0, 0], sizes = [8, 128], strides = [1, 1]} : vector<8x256xf32> to vector<8x128xf32>
    %303 = vector.extract_strided_slice %270 {offsets = [0, 640], sizes = [8, 128], strides = [1, 1]} : vector<8x768xf32> to vector<8x128xf32>
    %304 = arith.mulf %302, %303 : vector<8x128xf32>
    %305 = arith.addf %301, %304 : vector<8x128xf32>
    %306 = math.tanh %305 : vector<8x128xf32>
    %307 = vector.extract_strided_slice %300 {offsets = [0, 128], sizes = [8, 128], strides = [1, 1]} : vector<8x256xf32> to vector<8x128xf32>
    %cst_81 = arith.constant 1.000000e+00 : f32
    %308 = vector.broadcast %cst_81 : f32 to vector<8x128xf32>
    %309 = arith.subf %308, %307 : vector<8x128xf32>
    %310 = arith.mulf %309, %306 : vector<8x128xf32>
    %311 = arith.mulf %307, %263 : vector<8x128xf32>
    %312 = arith.addf %310, %311 : vector<8x128xf32>
    %c40_82 = arith.constant 40 : index
    %c0_83 = arith.constant 0 : index
    %313 = vector.load %arg13[%c40_82, %c0_83] : memref<64x256xf32, #tpu.memory_space<vmem>>, vector<8x128xf32>
    tpu.vector_store %arg13[%c40_82, %c0_83], %292 {strides = array<i32>} : memref<64x256xf32, #tpu.memory_space<vmem>>, vector<8x128xf32>,
    %c16_84 = arith.constant 16 : index
    %c128_85 = arith.constant 128 : index
    %314 = vector.load %arg13[%c16_84, %c128_85] : memref<64x256xf32, #tpu.memory_space<vmem>>, vector<8x128xf32>
    tpu.vector_store %arg13[%c16_84, %c128_85], %312 {strides = array<i32>} : memref<64x256xf32, #tpu.memory_space<vmem>>, vector<8x128xf32>,
    %315 = tpu.concatenate %292, %312 in 1 : vector<8x128xf32>, vector<8x128xf32> -> vector<8x256xf32>
    %316 = arith.truncf %315 : vector<8x256xf32> to vector<8x256xbf16>
    %cst_86 = arith.constant dense<0.000000e+00> : vector<8x768xf32>
    %317 = tpu.matmul %316, %12, %cst_86 {dimension_numbers = #tpu.dot_dimension_numbers<[1], [0], [0], [1], [0, 0, 1, 1], [], []>} : vector<8x256xbf16>, vector<256x768xbf16>, vector<8x768xf32> -> vector<8x768xf32>
    %318 = vector.broadcast %14 : vector<1x768xf32> to vector<8x768xf32>
    %319 = arith.addf %317, %318 : vector<8x768xf32>
    %c48_87 = arith.constant 48 : index
    %c0_88 = arith.constant 0 : index
    %320 = vector.load %arg12[%c48_87, %c0_88] : memref<64x768xf32, #tpu.memory_space<vmem>>, vector<8x384xf32>
    %c8_89 = arith.constant 8 : index
    %c384_90 = arith.constant 384 : index
    %321 = vector.load %arg12[%c8_89, %c384_90] : memref<64x768xf32, #tpu.memory_space<vmem>>, vector<8x384xf32>
    %322 = vector.extract_strided_slice %320 {offsets = [0, 0], sizes = [8, 256], strides = [1, 1]} : vector<8x384xf32> to vector<8x256xf32>
    %323 = vector.extract_strided_slice %319 {offsets = [0, 0], sizes = [8, 256], strides = [1, 1]} : vector<8x768xf32> to vector<8x256xf32>
    %324 = arith.addf %322, %323 : vector<8x256xf32>
    %325 = arith.negf %324 : vector<8x256xf32>
    %326 = math.exp %325 : vector<8x256xf32>
    %cst_91 = arith.constant 1.000000e+00 : f32
    %327 = vector.broadcast %cst_91 : f32 to vector<8x256xf32>
    %328 = arith.addf %327, %326 : vector<8x256xf32>
    %329 = arith.divf %327, %328 : vector<8x256xf32>
    %330 = vector.extract_strided_slice %320 {offsets = [0, 256], sizes = [8, 128], strides = [1, 1]} : vector<8x384xf32> to vector<8x128xf32>
    %331 = vector.extract_strided_slice %329 {offsets = [0, 0], sizes = [8, 128], strides = [1, 1]} : vector<8x256xf32> to vector<8x128xf32>
    %332 = vector.extract_strided_slice %319 {offsets = [0, 256], sizes = [8, 128], strides = [1, 1]} : vector<8x768xf32> to vector<8x128xf32>
    %333 = arith.mulf %331, %332 : vector<8x128xf32>
    %334 = arith.addf %330, %333 : vector<8x128xf32>
    %335 = math.tanh %334 : vector<8x128xf32>
    %336 = vector.extract_strided_slice %329 {offsets = [0, 128], sizes = [8, 128], strides = [1, 1]} : vector<8x256xf32> to vector<8x128xf32>
    %cst_92 = arith.constant 1.000000e+00 : f32
    %337 = vector.broadcast %cst_92 : f32 to vector<8x128xf32>
    %338 = arith.subf %337, %336 : vector<8x128xf32>
    %339 = arith.mulf %338, %335 : vector<8x128xf32>
    %340 = arith.mulf %336, %292 : vector<8x128xf32>
    %341 = arith.addf %339, %340 : vector<8x128xf32>
    %342 = vector.extract_strided_slice %321 {offsets = [0, 0], sizes = [8, 256], strides = [1, 1]} : vector<8x384xf32> to vector<8x256xf32>
    %343 = vector.extract_strided_slice %319 {offsets = [0, 384], sizes = [8, 256], strides = [1, 1]} : vector<8x768xf32> to vector<8x256xf32>
    %344 = arith.addf %342, %343 : vector<8x256xf32>
    %345 = arith.negf %344 : vector<8x256xf32>
    %346 = math.exp %345 : vector<8x256xf32>
    %cst_93 = arith.constant 1.000000e+00 : f32
    %347 = vector.broadcast %cst_93 : f32 to vector<8x256xf32>
    %348 = arith.addf %347, %346 : vector<8x256xf32>
    %349 = arith.divf %347, %348 : vector<8x256xf32>
    %350 = vector.extract_strided_slice %321 {offsets = [0, 256], sizes = [8, 128], strides = [1, 1]} : vector<8x384xf32> to vector<8x128xf32>
    %351 = vector.extract_strided_slice %349 {offsets = [0, 0], sizes = [8, 128], strides = [1, 1]} : vector<8x256xf32> to vector<8x128xf32>
    %352 = vector.extract_strided_slice %319 {offsets = [0, 640], sizes = [8, 128], strides = [1, 1]} : vector<8x768xf32> to vector<8x128xf32>
    %353 = arith.mulf %351, %352 : vector<8x128xf32>
    %354 = arith.addf %350, %353 : vector<8x128xf32>
    %355 = math.tanh %354 : vector<8x128xf32>
    %356 = vector.extract_strided_slice %349 {offsets = [0, 128], sizes = [8, 128], strides = [1, 1]} : vector<8x256xf32> to vector<8x128xf32>
    %cst_94 = arith.constant 1.000000e+00 : f32
    %357 = vector.broadcast %cst_94 : f32 to vector<8x128xf32>
    %358 = arith.subf %357, %356 : vector<8x128xf32>
    %359 = arith.mulf %358, %355 : vector<8x128xf32>
    %360 = arith.mulf %356, %312 : vector<8x128xf32>
    %361 = arith.addf %359, %360 : vector<8x128xf32>
    %c48_95 = arith.constant 48 : index
    %c0_96 = arith.constant 0 : index
    %362 = vector.load %arg13[%c48_95, %c0_96] : memref<64x256xf32, #tpu.memory_space<vmem>>, vector<8x128xf32>
    tpu.vector_store %arg13[%c48_95, %c0_96], %341 {strides = array<i32>} : memref<64x256xf32, #tpu.memory_space<vmem>>, vector<8x128xf32>,
    %c8_97 = arith.constant 8 : index
    %c128_98 = arith.constant 128 : index
    %363 = vector.load %arg13[%c8_97, %c128_98] : memref<64x256xf32, #tpu.memory_space<vmem>>, vector<8x128xf32>
    tpu.vector_store %arg13[%c8_97, %c128_98], %361 {strides = array<i32>} : memref<64x256xf32, #tpu.memory_space<vmem>>, vector<8x128xf32>,
    %364 = tpu.concatenate %341, %361 in 1 : vector<8x128xf32>, vector<8x128xf32> -> vector<8x256xf32>
    %365 = arith.truncf %364 : vector<8x256xf32> to vector<8x256xbf16>
    %cst_99 = arith.constant dense<0.000000e+00> : vector<8x768xf32>
    %366 = tpu.matmul %365, %12, %cst_99 {dimension_numbers = #tpu.dot_dimension_numbers<[1], [0], [0], [1], [0, 0, 1, 1], [], []>} : vector<8x256xbf16>, vector<256x768xbf16>, vector<8x768xf32> -> vector<8x768xf32>
    %367 = vector.broadcast %14 : vector<1x768xf32> to vector<8x768xf32>
    %368 = arith.addf %366, %367 : vector<8x768xf32>
    %c56_100 = arith.constant 56 : index
    %c0_101 = arith.constant 0 : index
    %369 = vector.load %arg12[%c56_100, %c0_101] : memref<64x768xf32, #tpu.memory_space<vmem>>, vector<8x384xf32>
    %c0_102 = arith.constant 0 : index
    %c384_103 = arith.constant 384 : index
    %370 = vector.load %arg12[%c0_102, %c384_103] : memref<64x768xf32, #tpu.memory_space<vmem>>, vector<8x384xf32>
    %371 = vector.extract_strided_slice %369 {offsets = [0, 0], sizes = [8, 256], strides = [1, 1]} : vector<8x384xf32> to vector<8x256xf32>
    %372 = vector.extract_strided_slice %368 {offsets = [0, 0], sizes = [8, 256], strides = [1, 1]} : vector<8x768xf32> to vector<8x256xf32>
    %373 = arith.addf %371, %372 : vector<8x256xf32>
    %374 = arith.negf %373 : vector<8x256xf32>
    %375 = math.exp %374 : vector<8x256xf32>
    %cst_104 = arith.constant 1.000000e+00 : f32
    %376 = vector.broadcast %cst_104 : f32 to vector<8x256xf32>
    %377 = arith.addf %376, %375 : vector<8x256xf32>
    %378 = arith.divf %376, %377 : vector<8x256xf32>
    %379 = vector.extract_strided_slice %369 {offsets = [0, 256], sizes = [8, 128], strides = [1, 1]} : vector<8x384xf32> to vector<8x128xf32>
    %380 = vector.extract_strided_slice %378 {offsets = [0, 0], sizes = [8, 128], strides = [1, 1]} : vector<8x256xf32> to vector<8x128xf32>
    %381 = vector.extract_strided_slice %368 {offsets = [0, 256], sizes = [8, 128], strides = [1, 1]} : vector<8x768xf32> to vector<8x128xf32>
    %382 = arith.mulf %380, %381 : vector<8x128xf32>
    %383 = arith.addf %379, %382 : vector<8x128xf32>
    %384 = math.tanh %383 : vector<8x128xf32>
    %385 = vector.extract_strided_slice %378 {offsets = [0, 128], sizes = [8, 128], strides = [1, 1]} : vector<8x256xf32> to vector<8x128xf32>
    %cst_105 = arith.constant 1.000000e+00 : f32
    %386 = vector.broadcast %cst_105 : f32 to vector<8x128xf32>
    %387 = arith.subf %386, %385 : vector<8x128xf32>
    %388 = arith.mulf %387, %384 : vector<8x128xf32>
    %389 = arith.mulf %385, %341 : vector<8x128xf32>
    %390 = arith.addf %388, %389 : vector<8x128xf32>
    %391 = vector.extract_strided_slice %370 {offsets = [0, 0], sizes = [8, 256], strides = [1, 1]} : vector<8x384xf32> to vector<8x256xf32>
    %392 = vector.extract_strided_slice %368 {offsets = [0, 384], sizes = [8, 256], strides = [1, 1]} : vector<8x768xf32> to vector<8x256xf32>
    %393 = arith.addf %391, %392 : vector<8x256xf32>
    %394 = arith.negf %393 : vector<8x256xf32>
    %395 = math.exp %394 : vector<8x256xf32>
    %cst_106 = arith.constant 1.000000e+00 : f32
    %396 = vector.broadcast %cst_106 : f32 to vector<8x256xf32>
    %397 = arith.addf %396, %395 : vector<8x256xf32>
    %398 = arith.divf %396, %397 : vector<8x256xf32>
    %399 = vector.extract_strided_slice %370 {offsets = [0, 256], sizes = [8, 128], strides = [1, 1]} : vector<8x384xf32> to vector<8x128xf32>
    %400 = vector.extract_strided_slice %398 {offsets = [0, 0], sizes = [8, 128], strides = [1, 1]} : vector<8x256xf32> to vector<8x128xf32>
    %401 = vector.extract_strided_slice %368 {offsets = [0, 640], sizes = [8, 128], strides = [1, 1]} : vector<8x768xf32> to vector<8x128xf32>
    %402 = arith.mulf %400, %401 : vector<8x128xf32>
    %403 = arith.addf %399, %402 : vector<8x128xf32>
    %404 = math.tanh %403 : vector<8x128xf32>
    %405 = vector.extract_strided_slice %398 {offsets = [0, 128], sizes = [8, 128], strides = [1, 1]} : vector<8x256xf32> to vector<8x128xf32>
    %cst_107 = arith.constant 1.000000e+00 : f32
    %406 = vector.broadcast %cst_107 : f32 to vector<8x128xf32>
    %407 = arith.subf %406, %405 : vector<8x128xf32>
    %408 = arith.mulf %407, %404 : vector<8x128xf32>
    %409 = arith.mulf %405, %361 : vector<8x128xf32>
    %410 = arith.addf %408, %409 : vector<8x128xf32>
    %c56_108 = arith.constant 56 : index
    %c0_109 = arith.constant 0 : index
    %411 = vector.load %arg13[%c56_108, %c0_109] : memref<64x256xf32, #tpu.memory_space<vmem>>, vector<8x128xf32>
    tpu.vector_store %arg13[%c56_108, %c0_109], %390 {strides = array<i32>} : memref<64x256xf32, #tpu.memory_space<vmem>>, vector<8x128xf32>,
    %c0_110 = arith.constant 0 : index
    %c128_111 = arith.constant 128 : index
    %412 = vector.load %arg13[%c0_110, %c128_111] : memref<64x256xf32, #tpu.memory_space<vmem>>, vector<8x128xf32>
    tpu.vector_store %arg13[%c0_110, %c128_111], %410 {strides = array<i32>} : memref<64x256xf32, #tpu.memory_space<vmem>>, vector<8x128xf32>,
    %c0_112 = arith.constant 0 : index
    %c0_113 = arith.constant 0 : index
    %413 = vector.load %arg13[%c0_112, %c0_113] : memref<64x256xf32, #tpu.memory_space<vmem>>, vector<64x256xf32>
    %414 = arith.truncf %413 : vector<64x256xf32> to vector<64x256xbf16>
    %c0_114 = arith.constant 0 : index
    %c0_115 = arith.constant 0 : index
    %415 = vector.load %arg5[%c0_114, %c0_115] : memref<512x768xbf16, #tpu.memory_space<vmem>>, vector<256x768xbf16>
    %c256 = arith.constant 256 : index
    %c0_116 = arith.constant 0 : index
    %416 = vector.load %arg5[%c256, %c0_116] : memref<512x768xbf16, #tpu.memory_space<vmem>>, vector<256x768xbf16>
    %c0_117 = arith.constant 0 : index
    %c0_118 = arith.constant 0 : index
    %417 = vector.load %arg6[%c0_117, %c0_118] : memref<2x768xf32, #tpu.memory_space<vmem>>, vector<1x768xf32>
    %c1_119 = arith.constant 1 : index
    %c0_120 = arith.constant 0 : index
    %418 = vector.load %arg6[%c1_119, %c0_120] : memref<2x768xf32, #tpu.memory_space<vmem>>, vector<1x768xf32>
    %cst_121 = arith.constant dense<0.000000e+00> : vector<64x768xf32>
    %419 = tpu.matmul %414, %415, %cst_121 {dimension_numbers = #tpu.dot_dimension_numbers<[1], [0], [0], [1], [0, 0, 1, 1], [], []>} : vector<64x256xbf16>, vector<256x768xbf16>, vector<64x768xf32> -> vector<64x768xf32>
    %420 = vector.broadcast %417 : vector<1x768xf32> to vector<64x768xf32>
    %421 = arith.addf %419, %420 : vector<64x768xf32>
    %c0_122 = arith.constant 0 : index
    %c0_123 = arith.constant 0 : index
    %422 = vector.load %arg12[%c0_122, %c0_123] : memref<64x768xf32, #tpu.memory_space<vmem>>, vector<64x768xf32>
    tpu.vector_store %arg12[%c0_122, %c0_123], %421 {strides = array<i32>} : memref<64x768xf32, #tpu.memory_space<vmem>>, vector<64x768xf32>,
    %cst_124 = arith.constant 0.000000e+00 : f32
    %423 = vector.broadcast %cst_124 : f32 to vector<8x128xf32>
    %cst_125 = arith.constant 0.000000e+00 : f32
    %424 = vector.broadcast %cst_125 : f32 to vector<8x128xf32>
    %425 = tpu.concatenate %423, %424 in 1 : vector<8x128xf32>, vector<8x128xf32> -> vector<8x256xf32>
    %426 = arith.truncf %425 : vector<8x256xf32> to vector<8x256xbf16>
    %cst_126 = arith.constant dense<0.000000e+00> : vector<8x768xf32>
    %427 = tpu.matmul %426, %416, %cst_126 {dimension_numbers = #tpu.dot_dimension_numbers<[1], [0], [0], [1], [0, 0, 1, 1], [], []>} : vector<8x256xbf16>, vector<256x768xbf16>, vector<8x768xf32> -> vector<8x768xf32>
    %428 = vector.broadcast %418 : vector<1x768xf32> to vector<8x768xf32>
    %429 = arith.addf %427, %428 : vector<8x768xf32>
    %c0_127 = arith.constant 0 : index
    %c0_128 = arith.constant 0 : index
    %430 = vector.load %arg12[%c0_127, %c0_128] : memref<64x768xf32, #tpu.memory_space<vmem>>, vector<8x384xf32>
    %c56_129 = arith.constant 56 : index
    %c384_130 = arith.constant 384 : index
    %431 = vector.load %arg12[%c56_129, %c384_130] : memref<64x768xf32, #tpu.memory_space<vmem>>, vector<8x384xf32>
    %432 = vector.extract_strided_slice %430 {offsets = [0, 0], sizes = [8, 256], strides = [1, 1]} : vector<8x384xf32> to vector<8x256xf32>
    %433 = vector.extract_strided_slice %429 {offsets = [0, 0], sizes = [8, 256], strides = [1, 1]} : vector<8x768xf32> to vector<8x256xf32>
    %434 = arith.addf %432, %433 : vector<8x256xf32>
    %435 = arith.negf %434 : vector<8x256xf32>
    %436 = math.exp %435 : vector<8x256xf32>
    %cst_131 = arith.constant 1.000000e+00 : f32
    %437 = vector.broadcast %cst_131 : f32 to vector<8x256xf32>
    %438 = arith.addf %437, %436 : vector<8x256xf32>
    %439 = arith.divf %437, %438 : vector<8x256xf32>
    %440 = vector.extract_strided_slice %430 {offsets = [0, 256], sizes = [8, 128], strides = [1, 1]} : vector<8x384xf32> to vector<8x128xf32>
    %441 = vector.extract_strided_slice %439 {offsets = [0, 0], sizes = [8, 128], strides = [1, 1]} : vector<8x256xf32> to vector<8x128xf32>
    %442 = vector.extract_strided_slice %429 {offsets = [0, 256], sizes = [8, 128], strides = [1, 1]} : vector<8x768xf32> to vector<8x128xf32>
    %443 = arith.mulf %441, %442 : vector<8x128xf32>
    %444 = arith.addf %440, %443 : vector<8x128xf32>
    %445 = math.tanh %444 : vector<8x128xf32>
    %446 = vector.extract_strided_slice %439 {offsets = [0, 128], sizes = [8, 128], strides = [1, 1]} : vector<8x256xf32> to vector<8x128xf32>
    %cst_132 = arith.constant 1.000000e+00 : f32
    %447 = vector.broadcast %cst_132 : f32 to vector<8x128xf32>
    %448 = arith.subf %447, %446 : vector<8x128xf32>
    %449 = arith.mulf %448, %445 : vector<8x128xf32>
    %450 = arith.mulf %446, %423 : vector<8x128xf32>
    %451 = arith.addf %449, %450 : vector<8x128xf32>
    %452 = vector.extract_strided_slice %431 {offsets = [0, 0], sizes = [8, 256], strides = [1, 1]} : vector<8x384xf32> to vector<8x256xf32>
    %453 = vector.extract_strided_slice %429 {offsets = [0, 384], sizes = [8, 256], strides = [1, 1]} : vector<8x768xf32> to vector<8x256xf32>
    %454 = arith.addf %452, %453 : vector<8x256xf32>
    %455 = arith.negf %454 : vector<8x256xf32>
    %456 = math.exp %455 : vector<8x256xf32>
    %cst_133 = arith.constant 1.000000e+00 : f32
    %457 = vector.broadcast %cst_133 : f32 to vector<8x256xf32>
    %458 = arith.addf %457, %456 : vector<8x256xf32>
    %459 = arith.divf %457, %458 : vector<8x256xf32>
    %460 = vector.extract_strided_slice %431 {offsets = [0, 256], sizes = [8, 128], strides = [1, 1]} : vector<8x384xf32> to vector<8x128xf32>
    %461 = vector.extract_strided_slice %459 {offsets = [0, 0], sizes = [8, 128], strides = [1, 1]} : vector<8x256xf32> to vector<8x128xf32>
    %462 = vector.extract_strided_slice %429 {offsets = [0, 640], sizes = [8, 128], strides = [1, 1]} : vector<8x768xf32> to vector<8x128xf32>
    %463 = arith.mulf %461, %462 : vector<8x128xf32>
    %464 = arith.addf %460, %463 : vector<8x128xf32>
    %465 = math.tanh %464 : vector<8x128xf32>
    %466 = vector.extract_strided_slice %459 {offsets = [0, 128], sizes = [8, 128], strides = [1, 1]} : vector<8x256xf32> to vector<8x128xf32>
    %cst_134 = arith.constant 1.000000e+00 : f32
    %467 = vector.broadcast %cst_134 : f32 to vector<8x128xf32>
    %468 = arith.subf %467, %466 : vector<8x128xf32>
    %469 = arith.mulf %468, %465 : vector<8x128xf32>
    %470 = arith.mulf %466, %424 : vector<8x128xf32>
    %471 = arith.addf %469, %470 : vector<8x128xf32>
    %c0_135 = arith.constant 0 : index
    %c0_136 = arith.constant 0 : index
    %472 = vector.load %arg13[%c0_135, %c0_136] : memref<64x256xf32, #tpu.memory_space<vmem>>, vector<8x128xf32>
    tpu.vector_store %arg13[%c0_135, %c0_136], %451 {strides = array<i32>} : memref<64x256xf32, #tpu.memory_space<vmem>>, vector<8x128xf32>,
    %c56_137 = arith.constant 56 : index
    %c128_138 = arith.constant 128 : index
    %473 = vector.load %arg13[%c56_137, %c128_138] : memref<64x256xf32, #tpu.memory_space<vmem>>, vector<8x128xf32>
    tpu.vector_store %arg13[%c56_137, %c128_138], %471 {strides = array<i32>} : memref<64x256xf32, #tpu.memory_space<vmem>>, vector<8x128xf32>,
    %474 = tpu.concatenate %451, %471 in 1 : vector<8x128xf32>, vector<8x128xf32> -> vector<8x256xf32>
    %475 = arith.truncf %474 : vector<8x256xf32> to vector<8x256xbf16>
    %cst_139 = arith.constant dense<0.000000e+00> : vector<8x768xf32>
    %476 = tpu.matmul %475, %416, %cst_139 {dimension_numbers = #tpu.dot_dimension_numbers<[1], [0], [0], [1], [0, 0, 1, 1], [], []>} : vector<8x256xbf16>, vector<256x768xbf16>, vector<8x768xf32> -> vector<8x768xf32>
    %477 = vector.broadcast %418 : vector<1x768xf32> to vector<8x768xf32>
    %478 = arith.addf %476, %477 : vector<8x768xf32>
    %c8_140 = arith.constant 8 : index
    %c0_141 = arith.constant 0 : index
    %479 = vector.load %arg12[%c8_140, %c0_141] : memref<64x768xf32, #tpu.memory_space<vmem>>, vector<8x384xf32>
    %c48_142 = arith.constant 48 : index
    %c384_143 = arith.constant 384 : index
    %480 = vector.load %arg12[%c48_142, %c384_143] : memref<64x768xf32, #tpu.memory_space<vmem>>, vector<8x384xf32>
    %481 = vector.extract_strided_slice %479 {offsets = [0, 0], sizes = [8, 256], strides = [1, 1]} : vector<8x384xf32> to vector<8x256xf32>
    %482 = vector.extract_strided_slice %478 {offsets = [0, 0], sizes = [8, 256], strides = [1, 1]} : vector<8x768xf32> to vector<8x256xf32>
    %483 = arith.addf %481, %482 : vector<8x256xf32>
    %484 = arith.negf %483 : vector<8x256xf32>
    %485 = math.exp %484 : vector<8x256xf32>
    %cst_144 = arith.constant 1.000000e+00 : f32
    %486 = vector.broadcast %cst_144 : f32 to vector<8x256xf32>
    %487 = arith.addf %486, %485 : vector<8x256xf32>
    %488 = arith.divf %486, %487 : vector<8x256xf32>
    %489 = vector.extract_strided_slice %479 {offsets = [0, 256], sizes = [8, 128], strides = [1, 1]} : vector<8x384xf32> to vector<8x128xf32>
    %490 = vector.extract_strided_slice %488 {offsets = [0, 0], sizes = [8, 128], strides = [1, 1]} : vector<8x256xf32> to vector<8x128xf32>
    %491 = vector.extract_strided_slice %478 {offsets = [0, 256], sizes = [8, 128], strides = [1, 1]} : vector<8x768xf32> to vector<8x128xf32>
    %492 = arith.mulf %490, %491 : vector<8x128xf32>
    %493 = arith.addf %489, %492 : vector<8x128xf32>
    %494 = math.tanh %493 : vector<8x128xf32>
    %495 = vector.extract_strided_slice %488 {offsets = [0, 128], sizes = [8, 128], strides = [1, 1]} : vector<8x256xf32> to vector<8x128xf32>
    %cst_145 = arith.constant 1.000000e+00 : f32
    %496 = vector.broadcast %cst_145 : f32 to vector<8x128xf32>
    %497 = arith.subf %496, %495 : vector<8x128xf32>
    %498 = arith.mulf %497, %494 : vector<8x128xf32>
    %499 = arith.mulf %495, %451 : vector<8x128xf32>
    %500 = arith.addf %498, %499 : vector<8x128xf32>
    %501 = vector.extract_strided_slice %480 {offsets = [0, 0], sizes = [8, 256], strides = [1, 1]} : vector<8x384xf32> to vector<8x256xf32>
    %502 = vector.extract_strided_slice %478 {offsets = [0, 384], sizes = [8, 256], strides = [1, 1]} : vector<8x768xf32> to vector<8x256xf32>
    %503 = arith.addf %501, %502 : vector<8x256xf32>
    %504 = arith.negf %503 : vector<8x256xf32>
    %505 = math.exp %504 : vector<8x256xf32>
    %cst_146 = arith.constant 1.000000e+00 : f32
    %506 = vector.broadcast %cst_146 : f32 to vector<8x256xf32>
    %507 = arith.addf %506, %505 : vector<8x256xf32>
    %508 = arith.divf %506, %507 : vector<8x256xf32>
    %509 = vector.extract_strided_slice %480 {offsets = [0, 256], sizes = [8, 128], strides = [1, 1]} : vector<8x384xf32> to vector<8x128xf32>
    %510 = vector.extract_strided_slice %508 {offsets = [0, 0], sizes = [8, 128], strides = [1, 1]} : vector<8x256xf32> to vector<8x128xf32>
    %511 = vector.extract_strided_slice %478 {offsets = [0, 640], sizes = [8, 128], strides = [1, 1]} : vector<8x768xf32> to vector<8x128xf32>
    %512 = arith.mulf %510, %511 : vector<8x128xf32>
    %513 = arith.addf %509, %512 : vector<8x128xf32>
    %514 = math.tanh %513 : vector<8x128xf32>
    %515 = vector.extract_strided_slice %508 {offsets = [0, 128], sizes = [8, 128], strides = [1, 1]} : vector<8x256xf32> to vector<8x128xf32>
    %cst_147 = arith.constant 1.000000e+00 : f32
    %516 = vector.broadcast %cst_147 : f32 to vector<8x128xf32>
    %517 = arith.subf %516, %515 : vector<8x128xf32>
    %518 = arith.mulf %517, %514 : vector<8x128xf32>
    %519 = arith.mulf %515, %471 : vector<8x128xf32>
    %520 = arith.addf %518, %519 : vector<8x128xf32>
    %c8_148 = arith.constant 8 : index
    %c0_149 = arith.constant 0 : index
    %521 = vector.load %arg13[%c8_148, %c0_149] : memref<64x256xf32, #tpu.memory_space<vmem>>, vector<8x128xf32>
    tpu.vector_store %arg13[%c8_148, %c0_149], %500 {strides = array<i32>} : memref<64x256xf32, #tpu.memory_space<vmem>>, vector<8x128xf32>,
    %c48_150 = arith.constant 48 : index
    %c128_151 = arith.constant 128 : index
    %522 = vector.load %arg13[%c48_150, %c128_151] : memref<64x256xf32, #tpu.memory_space<vmem>>, vector<8x128xf32>
    tpu.vector_store %arg13[%c48_150, %c128_151], %520 {strides = array<i32>} : memref<64x256xf32, #tpu.memory_space<vmem>>, vector<8x128xf32>,
    %523 = tpu.concatenate %500, %520 in 1 : vector<8x128xf32>, vector<8x128xf32> -> vector<8x256xf32>
    %524 = arith.truncf %523 : vector<8x256xf32> to vector<8x256xbf16>
    %cst_152 = arith.constant dense<0.000000e+00> : vector<8x768xf32>
    %525 = tpu.matmul %524, %416, %cst_152 {dimension_numbers = #tpu.dot_dimension_numbers<[1], [0], [0], [1], [0, 0, 1, 1], [], []>} : vector<8x256xbf16>, vector<256x768xbf16>, vector<8x768xf32> -> vector<8x768xf32>
    %526 = vector.broadcast %418 : vector<1x768xf32> to vector<8x768xf32>
    %527 = arith.addf %525, %526 : vector<8x768xf32>
    %c16_153 = arith.constant 16 : index
    %c0_154 = arith.constant 0 : index
    %528 = vector.load %arg12[%c16_153, %c0_154] : memref<64x768xf32, #tpu.memory_space<vmem>>, vector<8x384xf32>
    %c40_155 = arith.constant 40 : index
    %c384_156 = arith.constant 384 : index
    %529 = vector.load %arg12[%c40_155, %c384_156] : memref<64x768xf32, #tpu.memory_space<vmem>>, vector<8x384xf32>
    %530 = vector.extract_strided_slice %528 {offsets = [0, 0], sizes = [8, 256], strides = [1, 1]} : vector<8x384xf32> to vector<8x256xf32>
    %531 = vector.extract_strided_slice %527 {offsets = [0, 0], sizes = [8, 256], strides = [1, 1]} : vector<8x768xf32> to vector<8x256xf32>
    %532 = arith.addf %530, %531 : vector<8x256xf32>
    %533 = arith.negf %532 : vector<8x256xf32>
    %534 = math.exp %533 : vector<8x256xf32>
    %cst_157 = arith.constant 1.000000e+00 : f32
    %535 = vector.broadcast %cst_157 : f32 to vector<8x256xf32>
    %536 = arith.addf %535, %534 : vector<8x256xf32>
    %537 = arith.divf %535, %536 : vector<8x256xf32>
    %538 = vector.extract_strided_slice %528 {offsets = [0, 256], sizes = [8, 128], strides = [1, 1]} : vector<8x384xf32> to vector<8x128xf32>
    %539 = vector.extract_strided_slice %537 {offsets = [0, 0], sizes = [8, 128], strides = [1, 1]} : vector<8x256xf32> to vector<8x128xf32>
    %540 = vector.extract_strided_slice %527 {offsets = [0, 256], sizes = [8, 128], strides = [1, 1]} : vector<8x768xf32> to vector<8x128xf32>
    %541 = arith.mulf %539, %540 : vector<8x128xf32>
    %542 = arith.addf %538, %541 : vector<8x128xf32>
    %543 = math.tanh %542 : vector<8x128xf32>
    %544 = vector.extract_strided_slice %537 {offsets = [0, 128], sizes = [8, 128], strides = [1, 1]} : vector<8x256xf32> to vector<8x128xf32>
    %cst_158 = arith.constant 1.000000e+00 : f32
    %545 = vector.broadcast %cst_158 : f32 to vector<8x128xf32>
    %546 = arith.subf %545, %544 : vector<8x128xf32>
    %547 = arith.mulf %546, %543 : vector<8x128xf32>
    %548 = arith.mulf %544, %500 : vector<8x128xf32>
    %549 = arith.addf %547, %548 : vector<8x128xf32>
    %550 = vector.extract_strided_slice %529 {offsets = [0, 0], sizes = [8, 256], strides = [1, 1]} : vector<8x384xf32> to vector<8x256xf32>
    %551 = vector.extract_strided_slice %527 {offsets = [0, 384], sizes = [8, 256], strides = [1, 1]} : vector<8x768xf32> to vector<8x256xf32>
    %552 = arith.addf %550, %551 : vector<8x256xf32>
    %553 = arith.negf %552 : vector<8x256xf32>
    %554 = math.exp %553 : vector<8x256xf32>
    %cst_159 = arith.constant 1.000000e+00 : f32
    %555 = vector.broadcast %cst_159 : f32 to vector<8x256xf32>
    %556 = arith.addf %555, %554 : vector<8x256xf32>
    %557 = arith.divf %555, %556 : vector<8x256xf32>
    %558 = vector.extract_strided_slice %529 {offsets = [0, 256], sizes = [8, 128], strides = [1, 1]} : vector<8x384xf32> to vector<8x128xf32>
    %559 = vector.extract_strided_slice %557 {offsets = [0, 0], sizes = [8, 128], strides = [1, 1]} : vector<8x256xf32> to vector<8x128xf32>
    %560 = vector.extract_strided_slice %527 {offsets = [0, 640], sizes = [8, 128], strides = [1, 1]} : vector<8x768xf32> to vector<8x128xf32>
    %561 = arith.mulf %559, %560 : vector<8x128xf32>
    %562 = arith.addf %558, %561 : vector<8x128xf32>
    %563 = math.tanh %562 : vector<8x128xf32>
    %564 = vector.extract_strided_slice %557 {offsets = [0, 128], sizes = [8, 128], strides = [1, 1]} : vector<8x256xf32> to vector<8x128xf32>
    %cst_160 = arith.constant 1.000000e+00 : f32
    %565 = vector.broadcast %cst_160 : f32 to vector<8x128xf32>
    %566 = arith.subf %565, %564 : vector<8x128xf32>
    %567 = arith.mulf %566, %563 : vector<8x128xf32>
    %568 = arith.mulf %564, %520 : vector<8x128xf32>
    %569 = arith.addf %567, %568 : vector<8x128xf32>
    %c16_161 = arith.constant 16 : index
    %c0_162 = arith.constant 0 : index
    %570 = vector.load %arg13[%c16_161, %c0_162] : memref<64x256xf32, #tpu.memory_space<vmem>>, vector<8x128xf32>
    tpu.vector_store %arg13[%c16_161, %c0_162], %549 {strides = array<i32>} : memref<64x256xf32, #tpu.memory_space<vmem>>, vector<8x128xf32>,
    %c40_163 = arith.constant 40 : index
    %c128_164 = arith.constant 128 : index
    %571 = vector.load %arg13[%c40_163, %c128_164] : memref<64x256xf32, #tpu.memory_space<vmem>>, vector<8x128xf32>
    tpu.vector_store %arg13[%c40_163, %c128_164], %569 {strides = array<i32>} : memref<64x256xf32, #tpu.memory_space<vmem>>, vector<8x128xf32>,
    %572 = tpu.concatenate %549, %569 in 1 : vector<8x128xf32>, vector<8x128xf32> -> vector<8x256xf32>
    %573 = arith.truncf %572 : vector<8x256xf32> to vector<8x256xbf16>
    %cst_165 = arith.constant dense<0.000000e+00> : vector<8x768xf32>
    %574 = tpu.matmul %573, %416, %cst_165 {dimension_numbers = #tpu.dot_dimension_numbers<[1], [0], [0], [1], [0, 0, 1, 1], [], []>} : vector<8x256xbf16>, vector<256x768xbf16>, vector<8x768xf32> -> vector<8x768xf32>
    %575 = vector.broadcast %418 : vector<1x768xf32> to vector<8x768xf32>
    %576 = arith.addf %574, %575 : vector<8x768xf32>
    %c24_166 = arith.constant 24 : index
    %c0_167 = arith.constant 0 : index
    %577 = vector.load %arg12[%c24_166, %c0_167] : memref<64x768xf32, #tpu.memory_space<vmem>>, vector<8x384xf32>
    %c32_168 = arith.constant 32 : index
    %c384_169 = arith.constant 384 : index
    %578 = vector.load %arg12[%c32_168, %c384_169] : memref<64x768xf32, #tpu.memory_space<vmem>>, vector<8x384xf32>
    %579 = vector.extract_strided_slice %577 {offsets = [0, 0], sizes = [8, 256], strides = [1, 1]} : vector<8x384xf32> to vector<8x256xf32>
    %580 = vector.extract_strided_slice %576 {offsets = [0, 0], sizes = [8, 256], strides = [1, 1]} : vector<8x768xf32> to vector<8x256xf32>
    %581 = arith.addf %579, %580 : vector<8x256xf32>
    %582 = arith.negf %581 : vector<8x256xf32>
    %583 = math.exp %582 : vector<8x256xf32>
    %cst_170 = arith.constant 1.000000e+00 : f32
    %584 = vector.broadcast %cst_170 : f32 to vector<8x256xf32>
    %585 = arith.addf %584, %583 : vector<8x256xf32>
    %586 = arith.divf %584, %585 : vector<8x256xf32>
    %587 = vector.extract_strided_slice %577 {offsets = [0, 256], sizes = [8, 128], strides = [1, 1]} : vector<8x384xf32> to vector<8x128xf32>
    %588 = vector.extract_strided_slice %586 {offsets = [0, 0], sizes = [8, 128], strides = [1, 1]} : vector<8x256xf32> to vector<8x128xf32>
    %589 = vector.extract_strided_slice %576 {offsets = [0, 256], sizes = [8, 128], strides = [1, 1]} : vector<8x768xf32> to vector<8x128xf32>
    %590 = arith.mulf %588, %589 : vector<8x128xf32>
    %591 = arith.addf %587, %590 : vector<8x128xf32>
    %592 = math.tanh %591 : vector<8x128xf32>
    %593 = vector.extract_strided_slice %586 {offsets = [0, 128], sizes = [8, 128], strides = [1, 1]} : vector<8x256xf32> to vector<8x128xf32>
    %cst_171 = arith.constant 1.000000e+00 : f32
    %594 = vector.broadcast %cst_171 : f32 to vector<8x128xf32>
    %595 = arith.subf %594, %593 : vector<8x128xf32>
    %596 = arith.mulf %595, %592 : vector<8x128xf32>
    %597 = arith.mulf %593, %549 : vector<8x128xf32>
    %598 = arith.addf %596, %597 : vector<8x128xf32>
    %599 = vector.extract_strided_slice %578 {offsets = [0, 0], sizes = [8, 256], strides = [1, 1]} : vector<8x384xf32> to vector<8x256xf32>
    %600 = vector.extract_strided_slice %576 {offsets = [0, 384], sizes = [8, 256], strides = [1, 1]} : vector<8x768xf32> to vector<8x256xf32>
    %601 = arith.addf %599, %600 : vector<8x256xf32>
    %602 = arith.negf %601 : vector<8x256xf32>
    %603 = math.exp %602 : vector<8x256xf32>
    %cst_172 = arith.constant 1.000000e+00 : f32
    %604 = vector.broadcast %cst_172 : f32 to vector<8x256xf32>
    %605 = arith.addf %604, %603 : vector<8x256xf32>
    %606 = arith.divf %604, %605 : vector<8x256xf32>
    %607 = vector.extract_strided_slice %578 {offsets = [0, 256], sizes = [8, 128], strides = [1, 1]} : vector<8x384xf32> to vector<8x128xf32>
    %608 = vector.extract_strided_slice %606 {offsets = [0, 0], sizes = [8, 128], strides = [1, 1]} : vector<8x256xf32> to vector<8x128xf32>
    %609 = vector.extract_strided_slice %576 {offsets = [0, 640], sizes = [8, 128], strides = [1, 1]} : vector<8x768xf32> to vector<8x128xf32>
    %610 = arith.mulf %608, %609 : vector<8x128xf32>
    %611 = arith.addf %607, %610 : vector<8x128xf32>
    %612 = math.tanh %611 : vector<8x128xf32>
    %613 = vector.extract_strided_slice %606 {offsets = [0, 128], sizes = [8, 128], strides = [1, 1]} : vector<8x256xf32> to vector<8x128xf32>
    %cst_173 = arith.constant 1.000000e+00 : f32
    %614 = vector.broadcast %cst_173 : f32 to vector<8x128xf32>
    %615 = arith.subf %614, %613 : vector<8x128xf32>
    %616 = arith.mulf %615, %612 : vector<8x128xf32>
    %617 = arith.mulf %613, %569 : vector<8x128xf32>
    %618 = arith.addf %616, %617 : vector<8x128xf32>
    %c24_174 = arith.constant 24 : index
    %c0_175 = arith.constant 0 : index
    %619 = vector.load %arg13[%c24_174, %c0_175] : memref<64x256xf32, #tpu.memory_space<vmem>>, vector<8x128xf32>
    tpu.vector_store %arg13[%c24_174, %c0_175], %598 {strides = array<i32>} : memref<64x256xf32, #tpu.memory_space<vmem>>, vector<8x128xf32>,
    %c32_176 = arith.constant 32 : index
    %c128_177 = arith.constant 128 : index
    %620 = vector.load %arg13[%c32_176, %c128_177] : memref<64x256xf32, #tpu.memory_space<vmem>>, vector<8x128xf32>
    tpu.vector_store %arg13[%c32_176, %c128_177], %618 {strides = array<i32>} : memref<64x256xf32, #tpu.memory_space<vmem>>, vector<8x128xf32>,
    %621 = tpu.concatenate %598, %618 in 1 : vector<8x128xf32>, vector<8x128xf32> -> vector<8x256xf32>
    %622 = arith.truncf %621 : vector<8x256xf32> to vector<8x256xbf16>
    %cst_178 = arith.constant dense<0.000000e+00> : vector<8x768xf32>
    %623 = tpu.matmul %622, %416, %cst_178 {dimension_numbers = #tpu.dot_dimension_numbers<[1], [0], [0], [1], [0, 0, 1, 1], [], []>} : vector<8x256xbf16>, vector<256x768xbf16>, vector<8x768xf32> -> vector<8x768xf32>
    %624 = vector.broadcast %418 : vector<1x768xf32> to vector<8x768xf32>
    %625 = arith.addf %623, %624 : vector<8x768xf32>
    %c32_179 = arith.constant 32 : index
    %c0_180 = arith.constant 0 : index
    %626 = vector.load %arg12[%c32_179, %c0_180] : memref<64x768xf32, #tpu.memory_space<vmem>>, vector<8x384xf32>
    %c24_181 = arith.constant 24 : index
    %c384_182 = arith.constant 384 : index
    %627 = vector.load %arg12[%c24_181, %c384_182] : memref<64x768xf32, #tpu.memory_space<vmem>>, vector<8x384xf32>
    %628 = vector.extract_strided_slice %626 {offsets = [0, 0], sizes = [8, 256], strides = [1, 1]} : vector<8x384xf32> to vector<8x256xf32>
    %629 = vector.extract_strided_slice %625 {offsets = [0, 0], sizes = [8, 256], strides = [1, 1]} : vector<8x768xf32> to vector<8x256xf32>
    %630 = arith.addf %628, %629 : vector<8x256xf32>
    %631 = arith.negf %630 : vector<8x256xf32>
    %632 = math.exp %631 : vector<8x256xf32>
    %cst_183 = arith.constant 1.000000e+00 : f32
    %633 = vector.broadcast %cst_183 : f32 to vector<8x256xf32>
    %634 = arith.addf %633, %632 : vector<8x256xf32>
    %635 = arith.divf %633, %634 : vector<8x256xf32>
    %636 = vector.extract_strided_slice %626 {offsets = [0, 256], sizes = [8, 128], strides = [1, 1]} : vector<8x384xf32> to vector<8x128xf32>
    %637 = vector.extract_strided_slice %635 {offsets = [0, 0], sizes = [8, 128], strides = [1, 1]} : vector<8x256xf32> to vector<8x128xf32>
    %638 = vector.extract_strided_slice %625 {offsets = [0, 256], sizes = [8, 128], strides = [1, 1]} : vector<8x768xf32> to vector<8x128xf32>
    %639 = arith.mulf %637, %638 : vector<8x128xf32>
    %640 = arith.addf %636, %639 : vector<8x128xf32>
    %641 = math.tanh %640 : vector<8x128xf32>
    %642 = vector.extract_strided_slice %635 {offsets = [0, 128], sizes = [8, 128], strides = [1, 1]} : vector<8x256xf32> to vector<8x128xf32>
    %cst_184 = arith.constant 1.000000e+00 : f32
    %643 = vector.broadcast %cst_184 : f32 to vector<8x128xf32>
    %644 = arith.subf %643, %642 : vector<8x128xf32>
    %645 = arith.mulf %644, %641 : vector<8x128xf32>
    %646 = arith.mulf %642, %598 : vector<8x128xf32>
    %647 = arith.addf %645, %646 : vector<8x128xf32>
    %648 = vector.extract_strided_slice %627 {offsets = [0, 0], sizes = [8, 256], strides = [1, 1]} : vector<8x384xf32> to vector<8x256xf32>
    %649 = vector.extract_strided_slice %625 {offsets = [0, 384], sizes = [8, 256], strides = [1, 1]} : vector<8x768xf32> to vector<8x256xf32>
    %650 = arith.addf %648, %649 : vector<8x256xf32>
    %651 = arith.negf %650 : vector<8x256xf32>
    %652 = math.exp %651 : vector<8x256xf32>
    %cst_185 = arith.constant 1.000000e+00 : f32
    %653 = vector.broadcast %cst_185 : f32 to vector<8x256xf32>
    %654 = arith.addf %653, %652 : vector<8x256xf32>
    %655 = arith.divf %653, %654 : vector<8x256xf32>
    %656 = vector.extract_strided_slice %627 {offsets = [0, 256], sizes = [8, 128], strides = [1, 1]} : vector<8x384xf32> to vector<8x128xf32>
    %657 = vector.extract_strided_slice %655 {offsets = [0, 0], sizes = [8, 128], strides = [1, 1]} : vector<8x256xf32> to vector<8x128xf32>
    %658 = vector.extract_strided_slice %625 {offsets = [0, 640], sizes = [8, 128], strides = [1, 1]} : vector<8x768xf32> to vector<8x128xf32>
    %659 = arith.mulf %657, %658 : vector<8x128xf32>
    %660 = arith.addf %656, %659 : vector<8x128xf32>
    %661 = math.tanh %660 : vector<8x128xf32>
    %662 = vector.extract_strided_slice %655 {offsets = [0, 128], sizes = [8, 128], strides = [1, 1]} : vector<8x256xf32> to vector<8x128xf32>
    %cst_186 = arith.constant 1.000000e+00 : f32
    %663 = vector.broadcast %cst_186 : f32 to vector<8x128xf32>
    %664 = arith.subf %663, %662 : vector<8x128xf32>
    %665 = arith.mulf %664, %661 : vector<8x128xf32>
    %666 = arith.mulf %662, %618 : vector<8x128xf32>
    %667 = arith.addf %665, %666 : vector<8x128xf32>
    %c32_187 = arith.constant 32 : index
    %c0_188 = arith.constant 0 : index
    %668 = vector.load %arg13[%c32_187, %c0_188] : memref<64x256xf32, #tpu.memory_space<vmem>>, vector<8x128xf32>
    tpu.vector_store %arg13[%c32_187, %c0_188], %647 {strides = array<i32>} : memref<64x256xf32, #tpu.memory_space<vmem>>, vector<8x128xf32>,
    %c24_189 = arith.constant 24 : index
    %c128_190 = arith.constant 128 : index
    %669 = vector.load %arg13[%c24_189, %c128_190] : memref<64x256xf32, #tpu.memory_space<vmem>>, vector<8x128xf32>
    tpu.vector_store %arg13[%c24_189, %c128_190], %667 {strides = array<i32>} : memref<64x256xf32, #tpu.memory_space<vmem>>, vector<8x128xf32>,
    %670 = tpu.concatenate %647, %667 in 1 : vector<8x128xf32>, vector<8x128xf32> -> vector<8x256xf32>
    %671 = arith.truncf %670 : vector<8x256xf32> to vector<8x256xbf16>
    %cst_191 = arith.constant dense<0.000000e+00> : vector<8x768xf32>
    %672 = tpu.matmul %671, %416, %cst_191 {dimension_numbers = #tpu.dot_dimension_numbers<[1], [0], [0], [1], [0, 0, 1, 1], [], []>} : vector<8x256xbf16>, vector<256x768xbf16>, vector<8x768xf32> -> vector<8x768xf32>
    %673 = vector.broadcast %418 : vector<1x768xf32> to vector<8x768xf32>
    %674 = arith.addf %672, %673 : vector<8x768xf32>
    %c40_192 = arith.constant 40 : index
    %c0_193 = arith.constant 0 : index
    %675 = vector.load %arg12[%c40_192, %c0_193] : memref<64x768xf32, #tpu.memory_space<vmem>>, vector<8x384xf32>
    %c16_194 = arith.constant 16 : index
    %c384_195 = arith.constant 384 : index
    %676 = vector.load %arg12[%c16_194, %c384_195] : memref<64x768xf32, #tpu.memory_space<vmem>>, vector<8x384xf32>
    %677 = vector.extract_strided_slice %675 {offsets = [0, 0], sizes = [8, 256], strides = [1, 1]} : vector<8x384xf32> to vector<8x256xf32>
    %678 = vector.extract_strided_slice %674 {offsets = [0, 0], sizes = [8, 256], strides = [1, 1]} : vector<8x768xf32> to vector<8x256xf32>
    %679 = arith.addf %677, %678 : vector<8x256xf32>
    %680 = arith.negf %679 : vector<8x256xf32>
    %681 = math.exp %680 : vector<8x256xf32>
    %cst_196 = arith.constant 1.000000e+00 : f32
    %682 = vector.broadcast %cst_196 : f32 to vector<8x256xf32>
    %683 = arith.addf %682, %681 : vector<8x256xf32>
    %684 = arith.divf %682, %683 : vector<8x256xf32>
    %685 = vector.extract_strided_slice %675 {offsets = [0, 256], sizes = [8, 128], strides = [1, 1]} : vector<8x384xf32> to vector<8x128xf32>
    %686 = vector.extract_strided_slice %684 {offsets = [0, 0], sizes = [8, 128], strides = [1, 1]} : vector<8x256xf32> to vector<8x128xf32>
    %687 = vector.extract_strided_slice %674 {offsets = [0, 256], sizes = [8, 128], strides = [1, 1]} : vector<8x768xf32> to vector<8x128xf32>
    %688 = arith.mulf %686, %687 : vector<8x128xf32>
    %689 = arith.addf %685, %688 : vector<8x128xf32>
    %690 = math.tanh %689 : vector<8x128xf32>
    %691 = vector.extract_strided_slice %684 {offsets = [0, 128], sizes = [8, 128], strides = [1, 1]} : vector<8x256xf32> to vector<8x128xf32>
    %cst_197 = arith.constant 1.000000e+00 : f32
    %692 = vector.broadcast %cst_197 : f32 to vector<8x128xf32>
    %693 = arith.subf %692, %691 : vector<8x128xf32>
    %694 = arith.mulf %693, %690 : vector<8x128xf32>
    %695 = arith.mulf %691, %647 : vector<8x128xf32>
    %696 = arith.addf %694, %695 : vector<8x128xf32>
    %697 = vector.extract_strided_slice %676 {offsets = [0, 0], sizes = [8, 256], strides = [1, 1]} : vector<8x384xf32> to vector<8x256xf32>
    %698 = vector.extract_strided_slice %674 {offsets = [0, 384], sizes = [8, 256], strides = [1, 1]} : vector<8x768xf32> to vector<8x256xf32>
    %699 = arith.addf %697, %698 : vector<8x256xf32>
    %700 = arith.negf %699 : vector<8x256xf32>
    %701 = math.exp %700 : vector<8x256xf32>
    %cst_198 = arith.constant 1.000000e+00 : f32
    %702 = vector.broadcast %cst_198 : f32 to vector<8x256xf32>
    %703 = arith.addf %702, %701 : vector<8x256xf32>
    %704 = arith.divf %702, %703 : vector<8x256xf32>
    %705 = vector.extract_strided_slice %676 {offsets = [0, 256], sizes = [8, 128], strides = [1, 1]} : vector<8x384xf32> to vector<8x128xf32>
    %706 = vector.extract_strided_slice %704 {offsets = [0, 0], sizes = [8, 128], strides = [1, 1]} : vector<8x256xf32> to vector<8x128xf32>
    %707 = vector.extract_strided_slice %674 {offsets = [0, 640], sizes = [8, 128], strides = [1, 1]} : vector<8x768xf32> to vector<8x128xf32>
    %708 = arith.mulf %706, %707 : vector<8x128xf32>
    %709 = arith.addf %705, %708 : vector<8x128xf32>
    %710 = math.tanh %709 : vector<8x128xf32>
    %711 = vector.extract_strided_slice %704 {offsets = [0, 128], sizes = [8, 128], strides = [1, 1]} : vector<8x256xf32> to vector<8x128xf32>
    %cst_199 = arith.constant 1.000000e+00 : f32
    %712 = vector.broadcast %cst_199 : f32 to vector<8x128xf32>
    %713 = arith.subf %712, %711 : vector<8x128xf32>
    %714 = arith.mulf %713, %710 : vector<8x128xf32>
    %715 = arith.mulf %711, %667 : vector<8x128xf32>
    %716 = arith.addf %714, %715 : vector<8x128xf32>
    %c40_200 = arith.constant 40 : index
    %c0_201 = arith.constant 0 : index
    %717 = vector.load %arg13[%c40_200, %c0_201] : memref<64x256xf32, #tpu.memory_space<vmem>>, vector<8x128xf32>
    tpu.vector_store %arg13[%c40_200, %c0_201], %696 {strides = array<i32>} : memref<64x256xf32, #tpu.memory_space<vmem>>, vector<8x128xf32>,
    %c16_202 = arith.constant 16 : index
    %c128_203 = arith.constant 128 : index
    %718 = vector.load %arg13[%c16_202, %c128_203] : memref<64x256xf32, #tpu.memory_space<vmem>>, vector<8x128xf32>
    tpu.vector_store %arg13[%c16_202, %c128_203], %716 {strides = array<i32>} : memref<64x256xf32, #tpu.memory_space<vmem>>, vector<8x128xf32>,
    %719 = tpu.concatenate %696, %716 in 1 : vector<8x128xf32>, vector<8x128xf32> -> vector<8x256xf32>
    %720 = arith.truncf %719 : vector<8x256xf32> to vector<8x256xbf16>
    %cst_204 = arith.constant dense<0.000000e+00> : vector<8x768xf32>
    %721 = tpu.matmul %720, %416, %cst_204 {dimension_numbers = #tpu.dot_dimension_numbers<[1], [0], [0], [1], [0, 0, 1, 1], [], []>} : vector<8x256xbf16>, vector<256x768xbf16>, vector<8x768xf32> -> vector<8x768xf32>
    %722 = vector.broadcast %418 : vector<1x768xf32> to vector<8x768xf32>
    %723 = arith.addf %721, %722 : vector<8x768xf32>
    %c48_205 = arith.constant 48 : index
    %c0_206 = arith.constant 0 : index
    %724 = vector.load %arg12[%c48_205, %c0_206] : memref<64x768xf32, #tpu.memory_space<vmem>>, vector<8x384xf32>
    %c8_207 = arith.constant 8 : index
    %c384_208 = arith.constant 384 : index
    %725 = vector.load %arg12[%c8_207, %c384_208] : memref<64x768xf32, #tpu.memory_space<vmem>>, vector<8x384xf32>
    %726 = vector.extract_strided_slice %724 {offsets = [0, 0], sizes = [8, 256], strides = [1, 1]} : vector<8x384xf32> to vector<8x256xf32>
    %727 = vector.extract_strided_slice %723 {offsets = [0, 0], sizes = [8, 256], strides = [1, 1]} : vector<8x768xf32> to vector<8x256xf32>
    %728 = arith.addf %726, %727 : vector<8x256xf32>
    %729 = arith.negf %728 : vector<8x256xf32>
    %730 = math.exp %729 : vector<8x256xf32>
    %cst_209 = arith.constant 1.000000e+00 : f32
    %731 = vector.broadcast %cst_209 : f32 to vector<8x256xf32>
    %732 = arith.addf %731, %730 : vector<8x256xf32>
    %733 = arith.divf %731, %732 : vector<8x256xf32>
    %734 = vector.extract_strided_slice %724 {offsets = [0, 256], sizes = [8, 128], strides = [1, 1]} : vector<8x384xf32> to vector<8x128xf32>
    %735 = vector.extract_strided_slice %733 {offsets = [0, 0], sizes = [8, 128], strides = [1, 1]} : vector<8x256xf32> to vector<8x128xf32>
    %736 = vector.extract_strided_slice %723 {offsets = [0, 256], sizes = [8, 128], strides = [1, 1]} : vector<8x768xf32> to vector<8x128xf32>
    %737 = arith.mulf %735, %736 : vector<8x128xf32>
    %738 = arith.addf %734, %737 : vector<8x128xf32>
    %739 = math.tanh %738 : vector<8x128xf32>
    %740 = vector.extract_strided_slice %733 {offsets = [0, 128], sizes = [8, 128], strides = [1, 1]} : vector<8x256xf32> to vector<8x128xf32>
    %cst_210 = arith.constant 1.000000e+00 : f32
    %741 = vector.broadcast %cst_210 : f32 to vector<8x128xf32>
    %742 = arith.subf %741, %740 : vector<8x128xf32>
    %743 = arith.mulf %742, %739 : vector<8x128xf32>
    %744 = arith.mulf %740, %696 : vector<8x128xf32>
    %745 = arith.addf %743, %744 : vector<8x128xf32>
    %746 = vector.extract_strided_slice %725 {offsets = [0, 0], sizes = [8, 256], strides = [1, 1]} : vector<8x384xf32> to vector<8x256xf32>
    %747 = vector.extract_strided_slice %723 {offsets = [0, 384], sizes = [8, 256], strides = [1, 1]} : vector<8x768xf32> to vector<8x256xf32>
    %748 = arith.addf %746, %747 : vector<8x256xf32>
    %749 = arith.negf %748 : vector<8x256xf32>
    %750 = math.exp %749 : vector<8x256xf32>
    %cst_211 = arith.constant 1.000000e+00 : f32
    %751 = vector.broadcast %cst_211 : f32 to vector<8x256xf32>
    %752 = arith.addf %751, %750 : vector<8x256xf32>
    %753 = arith.divf %751, %752 : vector<8x256xf32>
    %754 = vector.extract_strided_slice %725 {offsets = [0, 256], sizes = [8, 128], strides = [1, 1]} : vector<8x384xf32> to vector<8x128xf32>
    %755 = vector.extract_strided_slice %753 {offsets = [0, 0], sizes = [8, 128], strides = [1, 1]} : vector<8x256xf32> to vector<8x128xf32>
    %756 = vector.extract_strided_slice %723 {offsets = [0, 640], sizes = [8, 128], strides = [1, 1]} : vector<8x768xf32> to vector<8x128xf32>
    %757 = arith.mulf %755, %756 : vector<8x128xf32>
    %758 = arith.addf %754, %757 : vector<8x128xf32>
    %759 = math.tanh %758 : vector<8x128xf32>
    %760 = vector.extract_strided_slice %753 {offsets = [0, 128], sizes = [8, 128], strides = [1, 1]} : vector<8x256xf32> to vector<8x128xf32>
    %cst_212 = arith.constant 1.000000e+00 : f32
    %761 = vector.broadcast %cst_212 : f32 to vector<8x128xf32>
    %762 = arith.subf %761, %760 : vector<8x128xf32>
    %763 = arith.mulf %762, %759 : vector<8x128xf32>
    %764 = arith.mulf %760, %716 : vector<8x128xf32>
    %765 = arith.addf %763, %764 : vector<8x128xf32>
    %c48_213 = arith.constant 48 : index
    %c0_214 = arith.constant 0 : index
    %766 = vector.load %arg13[%c48_213, %c0_214] : memref<64x256xf32, #tpu.memory_space<vmem>>, vector<8x128xf32>
    tpu.vector_store %arg13[%c48_213, %c0_214], %745 {strides = array<i32>} : memref<64x256xf32, #tpu.memory_space<vmem>>, vector<8x128xf32>,
    %c8_215 = arith.constant 8 : index
    %c128_216 = arith.constant 128 : index
    %767 = vector.load %arg13[%c8_215, %c128_216] : memref<64x256xf32, #tpu.memory_space<vmem>>, vector<8x128xf32>
    tpu.vector_store %arg13[%c8_215, %c128_216], %765 {strides = array<i32>} : memref<64x256xf32, #tpu.memory_space<vmem>>, vector<8x128xf32>,
    %768 = tpu.concatenate %745, %765 in 1 : vector<8x128xf32>, vector<8x128xf32> -> vector<8x256xf32>
    %769 = arith.truncf %768 : vector<8x256xf32> to vector<8x256xbf16>
    %cst_217 = arith.constant dense<0.000000e+00> : vector<8x768xf32>
    %770 = tpu.matmul %769, %416, %cst_217 {dimension_numbers = #tpu.dot_dimension_numbers<[1], [0], [0], [1], [0, 0, 1, 1], [], []>} : vector<8x256xbf16>, vector<256x768xbf16>, vector<8x768xf32> -> vector<8x768xf32>
    %771 = vector.broadcast %418 : vector<1x768xf32> to vector<8x768xf32>
    %772 = arith.addf %770, %771 : vector<8x768xf32>
    %c56_218 = arith.constant 56 : index
    %c0_219 = arith.constant 0 : index
    %773 = vector.load %arg12[%c56_218, %c0_219] : memref<64x768xf32, #tpu.memory_space<vmem>>, vector<8x384xf32>
    %c0_220 = arith.constant 0 : index
    %c384_221 = arith.constant 384 : index
    %774 = vector.load %arg12[%c0_220, %c384_221] : memref<64x768xf32, #tpu.memory_space<vmem>>, vector<8x384xf32>
    %775 = vector.extract_strided_slice %773 {offsets = [0, 0], sizes = [8, 256], strides = [1, 1]} : vector<8x384xf32> to vector<8x256xf32>
    %776 = vector.extract_strided_slice %772 {offsets = [0, 0], sizes = [8, 256], strides = [1, 1]} : vector<8x768xf32> to vector<8x256xf32>
    %777 = arith.addf %775, %776 : vector<8x256xf32>
    %778 = arith.negf %777 : vector<8x256xf32>
    %779 = math.exp %778 : vector<8x256xf32>
    %cst_222 = arith.constant 1.000000e+00 : f32
    %780 = vector.broadcast %cst_222 : f32 to vector<8x256xf32>
    %781 = arith.addf %780, %779 : vector<8x256xf32>
    %782 = arith.divf %780, %781 : vector<8x256xf32>
    %783 = vector.extract_strided_slice %773 {offsets = [0, 256], sizes = [8, 128], strides = [1, 1]} : vector<8x384xf32> to vector<8x128xf32>
    %784 = vector.extract_strided_slice %782 {offsets = [0, 0], sizes = [8, 128], strides = [1, 1]} : vector<8x256xf32> to vector<8x128xf32>
    %785 = vector.extract_strided_slice %772 {offsets = [0, 256], sizes = [8, 128], strides = [1, 1]} : vector<8x768xf32> to vector<8x128xf32>
    %786 = arith.mulf %784, %785 : vector<8x128xf32>
    %787 = arith.addf %783, %786 : vector<8x128xf32>
    %788 = math.tanh %787 : vector<8x128xf32>
    %789 = vector.extract_strided_slice %782 {offsets = [0, 128], sizes = [8, 128], strides = [1, 1]} : vector<8x256xf32> to vector<8x128xf32>
    %cst_223 = arith.constant 1.000000e+00 : f32
    %790 = vector.broadcast %cst_223 : f32 to vector<8x128xf32>
    %791 = arith.subf %790, %789 : vector<8x128xf32>
    %792 = arith.mulf %791, %788 : vector<8x128xf32>
    %793 = arith.mulf %789, %745 : vector<8x128xf32>
    %794 = arith.addf %792, %793 : vector<8x128xf32>
    %795 = vector.extract_strided_slice %774 {offsets = [0, 0], sizes = [8, 256], strides = [1, 1]} : vector<8x384xf32> to vector<8x256xf32>
    %796 = vector.extract_strided_slice %772 {offsets = [0, 384], sizes = [8, 256], strides = [1, 1]} : vector<8x768xf32> to vector<8x256xf32>
    %797 = arith.addf %795, %796 : vector<8x256xf32>
    %798 = arith.negf %797 : vector<8x256xf32>
    %799 = math.exp %798 : vector<8x256xf32>
    %cst_224 = arith.constant 1.000000e+00 : f32
    %800 = vector.broadcast %cst_224 : f32 to vector<8x256xf32>
    %801 = arith.addf %800, %799 : vector<8x256xf32>
    %802 = arith.divf %800, %801 : vector<8x256xf32>
    %803 = vector.extract_strided_slice %774 {offsets = [0, 256], sizes = [8, 128], strides = [1, 1]} : vector<8x384xf32> to vector<8x128xf32>
    %804 = vector.extract_strided_slice %802 {offsets = [0, 0], sizes = [8, 128], strides = [1, 1]} : vector<8x256xf32> to vector<8x128xf32>
    %805 = vector.extract_strided_slice %772 {offsets = [0, 640], sizes = [8, 128], strides = [1, 1]} : vector<8x768xf32> to vector<8x128xf32>
    %806 = arith.mulf %804, %805 : vector<8x128xf32>
    %807 = arith.addf %803, %806 : vector<8x128xf32>
    %808 = math.tanh %807 : vector<8x128xf32>
    %809 = vector.extract_strided_slice %802 {offsets = [0, 128], sizes = [8, 128], strides = [1, 1]} : vector<8x256xf32> to vector<8x128xf32>
    %cst_225 = arith.constant 1.000000e+00 : f32
    %810 = vector.broadcast %cst_225 : f32 to vector<8x128xf32>
    %811 = arith.subf %810, %809 : vector<8x128xf32>
    %812 = arith.mulf %811, %808 : vector<8x128xf32>
    %813 = arith.mulf %809, %765 : vector<8x128xf32>
    %814 = arith.addf %812, %813 : vector<8x128xf32>
    %c56_226 = arith.constant 56 : index
    %c0_227 = arith.constant 0 : index
    %815 = vector.load %arg13[%c56_226, %c0_227] : memref<64x256xf32, #tpu.memory_space<vmem>>, vector<8x128xf32>
    tpu.vector_store %arg13[%c56_226, %c0_227], %794 {strides = array<i32>} : memref<64x256xf32, #tpu.memory_space<vmem>>, vector<8x128xf32>,
    %c0_228 = arith.constant 0 : index
    %c128_229 = arith.constant 128 : index
    %816 = vector.load %arg13[%c0_228, %c128_229] : memref<64x256xf32, #tpu.memory_space<vmem>>, vector<8x128xf32>
    tpu.vector_store %arg13[%c0_228, %c128_229], %814 {strides = array<i32>} : memref<64x256xf32, #tpu.memory_space<vmem>>, vector<8x128xf32>,
    %c0_230 = arith.constant 0 : index
    %c0_231 = arith.constant 0 : index
    %817 = vector.load %arg13[%c0_230, %c0_231] : memref<64x256xf32, #tpu.memory_space<vmem>>, vector<64x256xf32>
    %818 = arith.truncf %817 : vector<64x256xf32> to vector<64x256xbf16>
    %c0_232 = arith.constant 0 : index
    %c0_233 = arith.constant 0 : index
    %819 = vector.load %arg7[%c0_232, %c0_233] : memref<512x768xbf16, #tpu.memory_space<vmem>>, vector<256x768xbf16>
    %c256_234 = arith.constant 256 : index
    %c0_235 = arith.constant 0 : index
    %820 = vector.load %arg7[%c256_234, %c0_235] : memref<512x768xbf16, #tpu.memory_space<vmem>>, vector<256x768xbf16>
    %c0_236 = arith.constant 0 : index
    %c0_237 = arith.constant 0 : index
    %821 = vector.load %arg8[%c0_236, %c0_237] : memref<2x768xf32, #tpu.memory_space<vmem>>, vector<1x768xf32>
    %c1_238 = arith.constant 1 : index
    %c0_239 = arith.constant 0 : index
    %822 = vector.load %arg8[%c1_238, %c0_239] : memref<2x768xf32, #tpu.memory_space<vmem>>, vector<1x768xf32>
    %cst_240 = arith.constant dense<0.000000e+00> : vector<64x768xf32>
    %823 = tpu.matmul %818, %819, %cst_240 {dimension_numbers = #tpu.dot_dimension_numbers<[1], [0], [0], [1], [0, 0, 1, 1], [], []>} : vector<64x256xbf16>, vector<256x768xbf16>, vector<64x768xf32> -> vector<64x768xf32>
    %824 = vector.broadcast %821 : vector<1x768xf32> to vector<64x768xf32>
    %825 = arith.addf %823, %824 : vector<64x768xf32>
    %c0_241 = arith.constant 0 : index
    %c0_242 = arith.constant 0 : index
    %826 = vector.load %arg12[%c0_241, %c0_242] : memref<64x768xf32, #tpu.memory_space<vmem>>, vector<64x768xf32>
    tpu.vector_store %arg12[%c0_241, %c0_242], %825 {strides = array<i32>} : memref<64x768xf32, #tpu.memory_space<vmem>>, vector<64x768xf32>,
    %cst_243 = arith.constant 0.000000e+00 : f32
    %827 = vector.broadcast %cst_243 : f32 to vector<8x128xf32>
    %cst_244 = arith.constant 0.000000e+00 : f32
    %828 = vector.broadcast %cst_244 : f32 to vector<8x128xf32>
    %829 = tpu.concatenate %827, %828 in 1 : vector<8x128xf32>, vector<8x128xf32> -> vector<8x256xf32>
    %830 = arith.truncf %829 : vector<8x256xf32> to vector<8x256xbf16>
    %cst_245 = arith.constant dense<0.000000e+00> : vector<8x768xf32>
    %831 = tpu.matmul %830, %820, %cst_245 {dimension_numbers = #tpu.dot_dimension_numbers<[1], [0], [0], [1], [0, 0, 1, 1], [], []>} : vector<8x256xbf16>, vector<256x768xbf16>, vector<8x768xf32> -> vector<8x768xf32>
    %832 = vector.broadcast %822 : vector<1x768xf32> to vector<8x768xf32>
    %833 = arith.addf %831, %832 : vector<8x768xf32>
    %c0_246 = arith.constant 0 : index
    %c0_247 = arith.constant 0 : index
    %834 = vector.load %arg12[%c0_246, %c0_247] : memref<64x768xf32, #tpu.memory_space<vmem>>, vector<8x384xf32>
    %c56_248 = arith.constant 56 : index
    %c384_249 = arith.constant 384 : index
    %835 = vector.load %arg12[%c56_248, %c384_249] : memref<64x768xf32, #tpu.memory_space<vmem>>, vector<8x384xf32>
    %836 = vector.extract_strided_slice %834 {offsets = [0, 0], sizes = [8, 256], strides = [1, 1]} : vector<8x384xf32> to vector<8x256xf32>
    %837 = vector.extract_strided_slice %833 {offsets = [0, 0], sizes = [8, 256], strides = [1, 1]} : vector<8x768xf32> to vector<8x256xf32>
    %838 = arith.addf %836, %837 : vector<8x256xf32>
    %839 = arith.negf %838 : vector<8x256xf32>
    %840 = math.exp %839 : vector<8x256xf32>
    %cst_250 = arith.constant 1.000000e+00 : f32
    %841 = vector.broadcast %cst_250 : f32 to vector<8x256xf32>
    %842 = arith.addf %841, %840 : vector<8x256xf32>
    %843 = arith.divf %841, %842 : vector<8x256xf32>
    %844 = vector.extract_strided_slice %834 {offsets = [0, 256], sizes = [8, 128], strides = [1, 1]} : vector<8x384xf32> to vector<8x128xf32>
    %845 = vector.extract_strided_slice %843 {offsets = [0, 0], sizes = [8, 128], strides = [1, 1]} : vector<8x256xf32> to vector<8x128xf32>
    %846 = vector.extract_strided_slice %833 {offsets = [0, 256], sizes = [8, 128], strides = [1, 1]} : vector<8x768xf32> to vector<8x128xf32>
    %847 = arith.mulf %845, %846 : vector<8x128xf32>
    %848 = arith.addf %844, %847 : vector<8x128xf32>
    %849 = math.tanh %848 : vector<8x128xf32>
    %850 = vector.extract_strided_slice %843 {offsets = [0, 128], sizes = [8, 128], strides = [1, 1]} : vector<8x256xf32> to vector<8x128xf32>
    %cst_251 = arith.constant 1.000000e+00 : f32
    %851 = vector.broadcast %cst_251 : f32 to vector<8x128xf32>
    %852 = arith.subf %851, %850 : vector<8x128xf32>
    %853 = arith.mulf %852, %849 : vector<8x128xf32>
    %854 = arith.mulf %850, %827 : vector<8x128xf32>
    %855 = arith.addf %853, %854 : vector<8x128xf32>
    %856 = vector.extract_strided_slice %835 {offsets = [0, 0], sizes = [8, 256], strides = [1, 1]} : vector<8x384xf32> to vector<8x256xf32>
    %857 = vector.extract_strided_slice %833 {offsets = [0, 384], sizes = [8, 256], strides = [1, 1]} : vector<8x768xf32> to vector<8x256xf32>
    %858 = arith.addf %856, %857 : vector<8x256xf32>
    %859 = arith.negf %858 : vector<8x256xf32>
    %860 = math.exp %859 : vector<8x256xf32>
    %cst_252 = arith.constant 1.000000e+00 : f32
    %861 = vector.broadcast %cst_252 : f32 to vector<8x256xf32>
    %862 = arith.addf %861, %860 : vector<8x256xf32>
    %863 = arith.divf %861, %862 : vector<8x256xf32>
    %864 = vector.extract_strided_slice %835 {offsets = [0, 256], sizes = [8, 128], strides = [1, 1]} : vector<8x384xf32> to vector<8x128xf32>
    %865 = vector.extract_strided_slice %863 {offsets = [0, 0], sizes = [8, 128], strides = [1, 1]} : vector<8x256xf32> to vector<8x128xf32>
    %866 = vector.extract_strided_slice %833 {offsets = [0, 640], sizes = [8, 128], strides = [1, 1]} : vector<8x768xf32> to vector<8x128xf32>
    %867 = arith.mulf %865, %866 : vector<8x128xf32>
    %868 = arith.addf %864, %867 : vector<8x128xf32>
    %869 = math.tanh %868 : vector<8x128xf32>
    %870 = vector.extract_strided_slice %863 {offsets = [0, 128], sizes = [8, 128], strides = [1, 1]} : vector<8x256xf32> to vector<8x128xf32>
    %cst_253 = arith.constant 1.000000e+00 : f32
    %871 = vector.broadcast %cst_253 : f32 to vector<8x128xf32>
    %872 = arith.subf %871, %870 : vector<8x128xf32>
    %873 = arith.mulf %872, %869 : vector<8x128xf32>
    %874 = arith.mulf %870, %828 : vector<8x128xf32>
    %875 = arith.addf %873, %874 : vector<8x128xf32>
    %c0_254 = arith.constant 0 : index
    %c0_255 = arith.constant 0 : index
    %876 = vector.load %arg13[%c0_254, %c0_255] : memref<64x256xf32, #tpu.memory_space<vmem>>, vector<8x128xf32>
    tpu.vector_store %arg13[%c0_254, %c0_255], %855 {strides = array<i32>} : memref<64x256xf32, #tpu.memory_space<vmem>>, vector<8x128xf32>,
    %c56_256 = arith.constant 56 : index
    %c128_257 = arith.constant 128 : index
    %877 = vector.load %arg13[%c56_256, %c128_257] : memref<64x256xf32, #tpu.memory_space<vmem>>, vector<8x128xf32>
    tpu.vector_store %arg13[%c56_256, %c128_257], %875 {strides = array<i32>} : memref<64x256xf32, #tpu.memory_space<vmem>>, vector<8x128xf32>,
    %878 = tpu.concatenate %855, %875 in 1 : vector<8x128xf32>, vector<8x128xf32> -> vector<8x256xf32>
    %879 = arith.truncf %878 : vector<8x256xf32> to vector<8x256xbf16>
    %cst_258 = arith.constant dense<0.000000e+00> : vector<8x768xf32>
    %880 = tpu.matmul %879, %820, %cst_258 {dimension_numbers = #tpu.dot_dimension_numbers<[1], [0], [0], [1], [0, 0, 1, 1], [], []>} : vector<8x256xbf16>, vector<256x768xbf16>, vector<8x768xf32> -> vector<8x768xf32>
    %881 = vector.broadcast %822 : vector<1x768xf32> to vector<8x768xf32>
    %882 = arith.addf %880, %881 : vector<8x768xf32>
    %c8_259 = arith.constant 8 : index
    %c0_260 = arith.constant 0 : index
    %883 = vector.load %arg12[%c8_259, %c0_260] : memref<64x768xf32, #tpu.memory_space<vmem>>, vector<8x384xf32>
    %c48_261 = arith.constant 48 : index
    %c384_262 = arith.constant 384 : index
    %884 = vector.load %arg12[%c48_261, %c384_262] : memref<64x768xf32, #tpu.memory_space<vmem>>, vector<8x384xf32>
    %885 = vector.extract_strided_slice %883 {offsets = [0, 0], sizes = [8, 256], strides = [1, 1]} : vector<8x384xf32> to vector<8x256xf32>
    %886 = vector.extract_strided_slice %882 {offsets = [0, 0], sizes = [8, 256], strides = [1, 1]} : vector<8x768xf32> to vector<8x256xf32>
    %887 = arith.addf %885, %886 : vector<8x256xf32>
    %888 = arith.negf %887 : vector<8x256xf32>
    %889 = math.exp %888 : vector<8x256xf32>
    %cst_263 = arith.constant 1.000000e+00 : f32
    %890 = vector.broadcast %cst_263 : f32 to vector<8x256xf32>
    %891 = arith.addf %890, %889 : vector<8x256xf32>
    %892 = arith.divf %890, %891 : vector<8x256xf32>
    %893 = vector.extract_strided_slice %883 {offsets = [0, 256], sizes = [8, 128], strides = [1, 1]} : vector<8x384xf32> to vector<8x128xf32>
    %894 = vector.extract_strided_slice %892 {offsets = [0, 0], sizes = [8, 128], strides = [1, 1]} : vector<8x256xf32> to vector<8x128xf32>
    %895 = vector.extract_strided_slice %882 {offsets = [0, 256], sizes = [8, 128], strides = [1, 1]} : vector<8x768xf32> to vector<8x128xf32>
    %896 = arith.mulf %894, %895 : vector<8x128xf32>
    %897 = arith.addf %893, %896 : vector<8x128xf32>
    %898 = math.tanh %897 : vector<8x128xf32>
    %899 = vector.extract_strided_slice %892 {offsets = [0, 128], sizes = [8, 128], strides = [1, 1]} : vector<8x256xf32> to vector<8x128xf32>
    %cst_264 = arith.constant 1.000000e+00 : f32
    %900 = vector.broadcast %cst_264 : f32 to vector<8x128xf32>
    %901 = arith.subf %900, %899 : vector<8x128xf32>
    %902 = arith.mulf %901, %898 : vector<8x128xf32>
    %903 = arith.mulf %899, %855 : vector<8x128xf32>
    %904 = arith.addf %902, %903 : vector<8x128xf32>
    %905 = vector.extract_strided_slice %884 {offsets = [0, 0], sizes = [8, 256], strides = [1, 1]} : vector<8x384xf32> to vector<8x256xf32>
    %906 = vector.extract_strided_slice %882 {offsets = [0, 384], sizes = [8, 256], strides = [1, 1]} : vector<8x768xf32> to vector<8x256xf32>
    %907 = arith.addf %905, %906 : vector<8x256xf32>
    %908 = arith.negf %907 : vector<8x256xf32>
    %909 = math.exp %908 : vector<8x256xf32>
    %cst_265 = arith.constant 1.000000e+00 : f32
    %910 = vector.broadcast %cst_265 : f32 to vector<8x256xf32>
    %911 = arith.addf %910, %909 : vector<8x256xf32>
    %912 = arith.divf %910, %911 : vector<8x256xf32>
    %913 = vector.extract_strided_slice %884 {offsets = [0, 256], sizes = [8, 128], strides = [1, 1]} : vector<8x384xf32> to vector<8x128xf32>
    %914 = vector.extract_strided_slice %912 {offsets = [0, 0], sizes = [8, 128], strides = [1, 1]} : vector<8x256xf32> to vector<8x128xf32>
    %915 = vector.extract_strided_slice %882 {offsets = [0, 640], sizes = [8, 128], strides = [1, 1]} : vector<8x768xf32> to vector<8x128xf32>
    %916 = arith.mulf %914, %915 : vector<8x128xf32>
    %917 = arith.addf %913, %916 : vector<8x128xf32>
    %918 = math.tanh %917 : vector<8x128xf32>
    %919 = vector.extract_strided_slice %912 {offsets = [0, 128], sizes = [8, 128], strides = [1, 1]} : vector<8x256xf32> to vector<8x128xf32>
    %cst_266 = arith.constant 1.000000e+00 : f32
    %920 = vector.broadcast %cst_266 : f32 to vector<8x128xf32>
    %921 = arith.subf %920, %919 : vector<8x128xf32>
    %922 = arith.mulf %921, %918 : vector<8x128xf32>
    %923 = arith.mulf %919, %875 : vector<8x128xf32>
    %924 = arith.addf %922, %923 : vector<8x128xf32>
    %c8_267 = arith.constant 8 : index
    %c0_268 = arith.constant 0 : index
    %925 = vector.load %arg13[%c8_267, %c0_268] : memref<64x256xf32, #tpu.memory_space<vmem>>, vector<8x128xf32>
    tpu.vector_store %arg13[%c8_267, %c0_268], %904 {strides = array<i32>} : memref<64x256xf32, #tpu.memory_space<vmem>>, vector<8x128xf32>,
    %c48_269 = arith.constant 48 : index
    %c128_270 = arith.constant 128 : index
    %926 = vector.load %arg13[%c48_269, %c128_270] : memref<64x256xf32, #tpu.memory_space<vmem>>, vector<8x128xf32>
    tpu.vector_store %arg13[%c48_269, %c128_270], %924 {strides = array<i32>} : memref<64x256xf32, #tpu.memory_space<vmem>>, vector<8x128xf32>,
    %927 = tpu.concatenate %904, %924 in 1 : vector<8x128xf32>, vector<8x128xf32> -> vector<8x256xf32>
    %928 = arith.truncf %927 : vector<8x256xf32> to vector<8x256xbf16>
    %cst_271 = arith.constant dense<0.000000e+00> : vector<8x768xf32>
    %929 = tpu.matmul %928, %820, %cst_271 {dimension_numbers = #tpu.dot_dimension_numbers<[1], [0], [0], [1], [0, 0, 1, 1], [], []>} : vector<8x256xbf16>, vector<256x768xbf16>, vector<8x768xf32> -> vector<8x768xf32>
    %930 = vector.broadcast %822 : vector<1x768xf32> to vector<8x768xf32>
    %931 = arith.addf %929, %930 : vector<8x768xf32>
    %c16_272 = arith.constant 16 : index
    %c0_273 = arith.constant 0 : index
    %932 = vector.load %arg12[%c16_272, %c0_273] : memref<64x768xf32, #tpu.memory_space<vmem>>, vector<8x384xf32>
    %c40_274 = arith.constant 40 : index
    %c384_275 = arith.constant 384 : index
    %933 = vector.load %arg12[%c40_274, %c384_275] : memref<64x768xf32, #tpu.memory_space<vmem>>, vector<8x384xf32>
    %934 = vector.extract_strided_slice %932 {offsets = [0, 0], sizes = [8, 256], strides = [1, 1]} : vector<8x384xf32> to vector<8x256xf32>
    %935 = vector.extract_strided_slice %931 {offsets = [0, 0], sizes = [8, 256], strides = [1, 1]} : vector<8x768xf32> to vector<8x256xf32>
    %936 = arith.addf %934, %935 : vector<8x256xf32>
    %937 = arith.negf %936 : vector<8x256xf32>
    %938 = math.exp %937 : vector<8x256xf32>
    %cst_276 = arith.constant 1.000000e+00 : f32
    %939 = vector.broadcast %cst_276 : f32 to vector<8x256xf32>
    %940 = arith.addf %939, %938 : vector<8x256xf32>
    %941 = arith.divf %939, %940 : vector<8x256xf32>
    %942 = vector.extract_strided_slice %932 {offsets = [0, 256], sizes = [8, 128], strides = [1, 1]} : vector<8x384xf32> to vector<8x128xf32>
    %943 = vector.extract_strided_slice %941 {offsets = [0, 0], sizes = [8, 128], strides = [1, 1]} : vector<8x256xf32> to vector<8x128xf32>
    %944 = vector.extract_strided_slice %931 {offsets = [0, 256], sizes = [8, 128], strides = [1, 1]} : vector<8x768xf32> to vector<8x128xf32>
    %945 = arith.mulf %943, %944 : vector<8x128xf32>
    %946 = arith.addf %942, %945 : vector<8x128xf32>
    %947 = math.tanh %946 : vector<8x128xf32>
    %948 = vector.extract_strided_slice %941 {offsets = [0, 128], sizes = [8, 128], strides = [1, 1]} : vector<8x256xf32> to vector<8x128xf32>
    %cst_277 = arith.constant 1.000000e+00 : f32
    %949 = vector.broadcast %cst_277 : f32 to vector<8x128xf32>
    %950 = arith.subf %949, %948 : vector<8x128xf32>
    %951 = arith.mulf %950, %947 : vector<8x128xf32>
    %952 = arith.mulf %948, %904 : vector<8x128xf32>
    %953 = arith.addf %951, %952 : vector<8x128xf32>
    %954 = vector.extract_strided_slice %933 {offsets = [0, 0], sizes = [8, 256], strides = [1, 1]} : vector<8x384xf32> to vector<8x256xf32>
    %955 = vector.extract_strided_slice %931 {offsets = [0, 384], sizes = [8, 256], strides = [1, 1]} : vector<8x768xf32> to vector<8x256xf32>
    %956 = arith.addf %954, %955 : vector<8x256xf32>
    %957 = arith.negf %956 : vector<8x256xf32>
    %958 = math.exp %957 : vector<8x256xf32>
    %cst_278 = arith.constant 1.000000e+00 : f32
    %959 = vector.broadcast %cst_278 : f32 to vector<8x256xf32>
    %960 = arith.addf %959, %958 : vector<8x256xf32>
    %961 = arith.divf %959, %960 : vector<8x256xf32>
    %962 = vector.extract_strided_slice %933 {offsets = [0, 256], sizes = [8, 128], strides = [1, 1]} : vector<8x384xf32> to vector<8x128xf32>
    %963 = vector.extract_strided_slice %961 {offsets = [0, 0], sizes = [8, 128], strides = [1, 1]} : vector<8x256xf32> to vector<8x128xf32>
    %964 = vector.extract_strided_slice %931 {offsets = [0, 640], sizes = [8, 128], strides = [1, 1]} : vector<8x768xf32> to vector<8x128xf32>
    %965 = arith.mulf %963, %964 : vector<8x128xf32>
    %966 = arith.addf %962, %965 : vector<8x128xf32>
    %967 = math.tanh %966 : vector<8x128xf32>
    %968 = vector.extract_strided_slice %961 {offsets = [0, 128], sizes = [8, 128], strides = [1, 1]} : vector<8x256xf32> to vector<8x128xf32>
    %cst_279 = arith.constant 1.000000e+00 : f32
    %969 = vector.broadcast %cst_279 : f32 to vector<8x128xf32>
    %970 = arith.subf %969, %968 : vector<8x128xf32>
    %971 = arith.mulf %970, %967 : vector<8x128xf32>
    %972 = arith.mulf %968, %924 : vector<8x128xf32>
    %973 = arith.addf %971, %972 : vector<8x128xf32>
    %c16_280 = arith.constant 16 : index
    %c0_281 = arith.constant 0 : index
    %974 = vector.load %arg13[%c16_280, %c0_281] : memref<64x256xf32, #tpu.memory_space<vmem>>, vector<8x128xf32>
    tpu.vector_store %arg13[%c16_280, %c0_281], %953 {strides = array<i32>} : memref<64x256xf32, #tpu.memory_space<vmem>>, vector<8x128xf32>,
    %c40_282 = arith.constant 40 : index
    %c128_283 = arith.constant 128 : index
    %975 = vector.load %arg13[%c40_282, %c128_283] : memref<64x256xf32, #tpu.memory_space<vmem>>, vector<8x128xf32>
    tpu.vector_store %arg13[%c40_282, %c128_283], %973 {strides = array<i32>} : memref<64x256xf32, #tpu.memory_space<vmem>>, vector<8x128xf32>,
    %976 = tpu.concatenate %953, %973 in 1 : vector<8x128xf32>, vector<8x128xf32> -> vector<8x256xf32>
    %977 = arith.truncf %976 : vector<8x256xf32> to vector<8x256xbf16>
    %cst_284 = arith.constant dense<0.000000e+00> : vector<8x768xf32>
    %978 = tpu.matmul %977, %820, %cst_284 {dimension_numbers = #tpu.dot_dimension_numbers<[1], [0], [0], [1], [0, 0, 1, 1], [], []>} : vector<8x256xbf16>, vector<256x768xbf16>, vector<8x768xf32> -> vector<8x768xf32>
    %979 = vector.broadcast %822 : vector<1x768xf32> to vector<8x768xf32>
    %980 = arith.addf %978, %979 : vector<8x768xf32>
    %c24_285 = arith.constant 24 : index
    %c0_286 = arith.constant 0 : index
    %981 = vector.load %arg12[%c24_285, %c0_286] : memref<64x768xf32, #tpu.memory_space<vmem>>, vector<8x384xf32>
    %c32_287 = arith.constant 32 : index
    %c384_288 = arith.constant 384 : index
    %982 = vector.load %arg12[%c32_287, %c384_288] : memref<64x768xf32, #tpu.memory_space<vmem>>, vector<8x384xf32>
    %983 = vector.extract_strided_slice %981 {offsets = [0, 0], sizes = [8, 256], strides = [1, 1]} : vector<8x384xf32> to vector<8x256xf32>
    %984 = vector.extract_strided_slice %980 {offsets = [0, 0], sizes = [8, 256], strides = [1, 1]} : vector<8x768xf32> to vector<8x256xf32>
    %985 = arith.addf %983, %984 : vector<8x256xf32>
    %986 = arith.negf %985 : vector<8x256xf32>
    %987 = math.exp %986 : vector<8x256xf32>
    %cst_289 = arith.constant 1.000000e+00 : f32
    %988 = vector.broadcast %cst_289 : f32 to vector<8x256xf32>
    %989 = arith.addf %988, %987 : vector<8x256xf32>
    %990 = arith.divf %988, %989 : vector<8x256xf32>
    %991 = vector.extract_strided_slice %981 {offsets = [0, 256], sizes = [8, 128], strides = [1, 1]} : vector<8x384xf32> to vector<8x128xf32>
    %992 = vector.extract_strided_slice %990 {offsets = [0, 0], sizes = [8, 128], strides = [1, 1]} : vector<8x256xf32> to vector<8x128xf32>
    %993 = vector.extract_strided_slice %980 {offsets = [0, 256], sizes = [8, 128], strides = [1, 1]} : vector<8x768xf32> to vector<8x128xf32>
    %994 = arith.mulf %992, %993 : vector<8x128xf32>
    %995 = arith.addf %991, %994 : vector<8x128xf32>
    %996 = math.tanh %995 : vector<8x128xf32>
    %997 = vector.extract_strided_slice %990 {offsets = [0, 128], sizes = [8, 128], strides = [1, 1]} : vector<8x256xf32> to vector<8x128xf32>
    %cst_290 = arith.constant 1.000000e+00 : f32
    %998 = vector.broadcast %cst_290 : f32 to vector<8x128xf32>
    %999 = arith.subf %998, %997 : vector<8x128xf32>
    %1000 = arith.mulf %999, %996 : vector<8x128xf32>
    %1001 = arith.mulf %997, %953 : vector<8x128xf32>
    %1002 = arith.addf %1000, %1001 : vector<8x128xf32>
    %1003 = vector.extract_strided_slice %982 {offsets = [0, 0], sizes = [8, 256], strides = [1, 1]} : vector<8x384xf32> to vector<8x256xf32>
    %1004 = vector.extract_strided_slice %980 {offsets = [0, 384], sizes = [8, 256], strides = [1, 1]} : vector<8x768xf32> to vector<8x256xf32>
    %1005 = arith.addf %1003, %1004 : vector<8x256xf32>
    %1006 = arith.negf %1005 : vector<8x256xf32>
    %1007 = math.exp %1006 : vector<8x256xf32>
    %cst_291 = arith.constant 1.000000e+00 : f32
    %1008 = vector.broadcast %cst_291 : f32 to vector<8x256xf32>
    %1009 = arith.addf %1008, %1007 : vector<8x256xf32>
    %1010 = arith.divf %1008, %1009 : vector<8x256xf32>
    %1011 = vector.extract_strided_slice %982 {offsets = [0, 256], sizes = [8, 128], strides = [1, 1]} : vector<8x384xf32> to vector<8x128xf32>
    %1012 = vector.extract_strided_slice %1010 {offsets = [0, 0], sizes = [8, 128], strides = [1, 1]} : vector<8x256xf32> to vector<8x128xf32>
    %1013 = vector.extract_strided_slice %980 {offsets = [0, 640], sizes = [8, 128], strides = [1, 1]} : vector<8x768xf32> to vector<8x128xf32>
    %1014 = arith.mulf %1012, %1013 : vector<8x128xf32>
    %1015 = arith.addf %1011, %1014 : vector<8x128xf32>
    %1016 = math.tanh %1015 : vector<8x128xf32>
    %1017 = vector.extract_strided_slice %1010 {offsets = [0, 128], sizes = [8, 128], strides = [1, 1]} : vector<8x256xf32> to vector<8x128xf32>
    %cst_292 = arith.constant 1.000000e+00 : f32
    %1018 = vector.broadcast %cst_292 : f32 to vector<8x128xf32>
    %1019 = arith.subf %1018, %1017 : vector<8x128xf32>
    %1020 = arith.mulf %1019, %1016 : vector<8x128xf32>
    %1021 = arith.mulf %1017, %973 : vector<8x128xf32>
    %1022 = arith.addf %1020, %1021 : vector<8x128xf32>
    %c24_293 = arith.constant 24 : index
    %c0_294 = arith.constant 0 : index
    %1023 = vector.load %arg13[%c24_293, %c0_294] : memref<64x256xf32, #tpu.memory_space<vmem>>, vector<8x128xf32>
    tpu.vector_store %arg13[%c24_293, %c0_294], %1002 {strides = array<i32>} : memref<64x256xf32, #tpu.memory_space<vmem>>, vector<8x128xf32>,
    %c32_295 = arith.constant 32 : index
    %c128_296 = arith.constant 128 : index
    %1024 = vector.load %arg13[%c32_295, %c128_296] : memref<64x256xf32, #tpu.memory_space<vmem>>, vector<8x128xf32>
    tpu.vector_store %arg13[%c32_295, %c128_296], %1022 {strides = array<i32>} : memref<64x256xf32, #tpu.memory_space<vmem>>, vector<8x128xf32>,
    %1025 = tpu.concatenate %1002, %1022 in 1 : vector<8x128xf32>, vector<8x128xf32> -> vector<8x256xf32>
    %1026 = arith.truncf %1025 : vector<8x256xf32> to vector<8x256xbf16>
    %cst_297 = arith.constant dense<0.000000e+00> : vector<8x768xf32>
    %1027 = tpu.matmul %1026, %820, %cst_297 {dimension_numbers = #tpu.dot_dimension_numbers<[1], [0], [0], [1], [0, 0, 1, 1], [], []>} : vector<8x256xbf16>, vector<256x768xbf16>, vector<8x768xf32> -> vector<8x768xf32>
    %1028 = vector.broadcast %822 : vector<1x768xf32> to vector<8x768xf32>
    %1029 = arith.addf %1027, %1028 : vector<8x768xf32>
    %c32_298 = arith.constant 32 : index
    %c0_299 = arith.constant 0 : index
    %1030 = vector.load %arg12[%c32_298, %c0_299] : memref<64x768xf32, #tpu.memory_space<vmem>>, vector<8x384xf32>
    %c24_300 = arith.constant 24 : index
    %c384_301 = arith.constant 384 : index
    %1031 = vector.load %arg12[%c24_300, %c384_301] : memref<64x768xf32, #tpu.memory_space<vmem>>, vector<8x384xf32>
    %1032 = vector.extract_strided_slice %1030 {offsets = [0, 0], sizes = [8, 256], strides = [1, 1]} : vector<8x384xf32> to vector<8x256xf32>
    %1033 = vector.extract_strided_slice %1029 {offsets = [0, 0], sizes = [8, 256], strides = [1, 1]} : vector<8x768xf32> to vector<8x256xf32>
    %1034 = arith.addf %1032, %1033 : vector<8x256xf32>
    %1035 = arith.negf %1034 : vector<8x256xf32>
    %1036 = math.exp %1035 : vector<8x256xf32>
    %cst_302 = arith.constant 1.000000e+00 : f32
    %1037 = vector.broadcast %cst_302 : f32 to vector<8x256xf32>
    %1038 = arith.addf %1037, %1036 : vector<8x256xf32>
    %1039 = arith.divf %1037, %1038 : vector<8x256xf32>
    %1040 = vector.extract_strided_slice %1030 {offsets = [0, 256], sizes = [8, 128], strides = [1, 1]} : vector<8x384xf32> to vector<8x128xf32>
    %1041 = vector.extract_strided_slice %1039 {offsets = [0, 0], sizes = [8, 128], strides = [1, 1]} : vector<8x256xf32> to vector<8x128xf32>
    %1042 = vector.extract_strided_slice %1029 {offsets = [0, 256], sizes = [8, 128], strides = [1, 1]} : vector<8x768xf32> to vector<8x128xf32>
    %1043 = arith.mulf %1041, %1042 : vector<8x128xf32>
    %1044 = arith.addf %1040, %1043 : vector<8x128xf32>
    %1045 = math.tanh %1044 : vector<8x128xf32>
    %1046 = vector.extract_strided_slice %1039 {offsets = [0, 128], sizes = [8, 128], strides = [1, 1]} : vector<8x256xf32> to vector<8x128xf32>
    %cst_303 = arith.constant 1.000000e+00 : f32
    %1047 = vector.broadcast %cst_303 : f32 to vector<8x128xf32>
    %1048 = arith.subf %1047, %1046 : vector<8x128xf32>
    %1049 = arith.mulf %1048, %1045 : vector<8x128xf32>
    %1050 = arith.mulf %1046, %1002 : vector<8x128xf32>
    %1051 = arith.addf %1049, %1050 : vector<8x128xf32>
    %1052 = vector.extract_strided_slice %1031 {offsets = [0, 0], sizes = [8, 256], strides = [1, 1]} : vector<8x384xf32> to vector<8x256xf32>
    %1053 = vector.extract_strided_slice %1029 {offsets = [0, 384], sizes = [8, 256], strides = [1, 1]} : vector<8x768xf32> to vector<8x256xf32>
    %1054 = arith.addf %1052, %1053 : vector<8x256xf32>
    %1055 = arith.negf %1054 : vector<8x256xf32>
    %1056 = math.exp %1055 : vector<8x256xf32>
    %cst_304 = arith.constant 1.000000e+00 : f32
    %1057 = vector.broadcast %cst_304 : f32 to vector<8x256xf32>
    %1058 = arith.addf %1057, %1056 : vector<8x256xf32>
    %1059 = arith.divf %1057, %1058 : vector<8x256xf32>
    %1060 = vector.extract_strided_slice %1031 {offsets = [0, 256], sizes = [8, 128], strides = [1, 1]} : vector<8x384xf32> to vector<8x128xf32>
    %1061 = vector.extract_strided_slice %1059 {offsets = [0, 0], sizes = [8, 128], strides = [1, 1]} : vector<8x256xf32> to vector<8x128xf32>
    %1062 = vector.extract_strided_slice %1029 {offsets = [0, 640], sizes = [8, 128], strides = [1, 1]} : vector<8x768xf32> to vector<8x128xf32>
    %1063 = arith.mulf %1061, %1062 : vector<8x128xf32>
    %1064 = arith.addf %1060, %1063 : vector<8x128xf32>
    %1065 = math.tanh %1064 : vector<8x128xf32>
    %1066 = vector.extract_strided_slice %1059 {offsets = [0, 128], sizes = [8, 128], strides = [1, 1]} : vector<8x256xf32> to vector<8x128xf32>
    %cst_305 = arith.constant 1.000000e+00 : f32
    %1067 = vector.broadcast %cst_305 : f32 to vector<8x128xf32>
    %1068 = arith.subf %1067, %1066 : vector<8x128xf32>
    %1069 = arith.mulf %1068, %1065 : vector<8x128xf32>
    %1070 = arith.mulf %1066, %1022 : vector<8x128xf32>
    %1071 = arith.addf %1069, %1070 : vector<8x128xf32>
    %c32_306 = arith.constant 32 : index
    %c0_307 = arith.constant 0 : index
    %1072 = vector.load %arg13[%c32_306, %c0_307] : memref<64x256xf32, #tpu.memory_space<vmem>>, vector<8x128xf32>
    tpu.vector_store %arg13[%c32_306, %c0_307], %1051 {strides = array<i32>} : memref<64x256xf32, #tpu.memory_space<vmem>>, vector<8x128xf32>,
    %c24_308 = arith.constant 24 : index
    %c128_309 = arith.constant 128 : index
    %1073 = vector.load %arg13[%c24_308, %c128_309] : memref<64x256xf32, #tpu.memory_space<vmem>>, vector<8x128xf32>
    tpu.vector_store %arg13[%c24_308, %c128_309], %1071 {strides = array<i32>} : memref<64x256xf32, #tpu.memory_space<vmem>>, vector<8x128xf32>,
    %1074 = tpu.concatenate %1051, %1071 in 1 : vector<8x128xf32>, vector<8x128xf32> -> vector<8x256xf32>
    %1075 = arith.truncf %1074 : vector<8x256xf32> to vector<8x256xbf16>
    %cst_310 = arith.constant dense<0.000000e+00> : vector<8x768xf32>
    %1076 = tpu.matmul %1075, %820, %cst_310 {dimension_numbers = #tpu.dot_dimension_numbers<[1], [0], [0], [1], [0, 0, 1, 1], [], []>} : vector<8x256xbf16>, vector<256x768xbf16>, vector<8x768xf32> -> vector<8x768xf32>
    %1077 = vector.broadcast %822 : vector<1x768xf32> to vector<8x768xf32>
    %1078 = arith.addf %1076, %1077 : vector<8x768xf32>
    %c40_311 = arith.constant 40 : index
    %c0_312 = arith.constant 0 : index
    %1079 = vector.load %arg12[%c40_311, %c0_312] : memref<64x768xf32, #tpu.memory_space<vmem>>, vector<8x384xf32>
    %c16_313 = arith.constant 16 : index
    %c384_314 = arith.constant 384 : index
    %1080 = vector.load %arg12[%c16_313, %c384_314] : memref<64x768xf32, #tpu.memory_space<vmem>>, vector<8x384xf32>
    %1081 = vector.extract_strided_slice %1079 {offsets = [0, 0], sizes = [8, 256], strides = [1, 1]} : vector<8x384xf32> to vector<8x256xf32>
    %1082 = vector.extract_strided_slice %1078 {offsets = [0, 0], sizes = [8, 256], strides = [1, 1]} : vector<8x768xf32> to vector<8x256xf32>
    %1083 = arith.addf %1081, %1082 : vector<8x256xf32>
    %1084 = arith.negf %1083 : vector<8x256xf32>
    %1085 = math.exp %1084 : vector<8x256xf32>
    %cst_315 = arith.constant 1.000000e+00 : f32
    %1086 = vector.broadcast %cst_315 : f32 to vector<8x256xf32>
    %1087 = arith.addf %1086, %1085 : vector<8x256xf32>
    %1088 = arith.divf %1086, %1087 : vector<8x256xf32>
    %1089 = vector.extract_strided_slice %1079 {offsets = [0, 256], sizes = [8, 128], strides = [1, 1]} : vector<8x384xf32> to vector<8x128xf32>
    %1090 = vector.extract_strided_slice %1088 {offsets = [0, 0], sizes = [8, 128], strides = [1, 1]} : vector<8x256xf32> to vector<8x128xf32>
    %1091 = vector.extract_strided_slice %1078 {offsets = [0, 256], sizes = [8, 128], strides = [1, 1]} : vector<8x768xf32> to vector<8x128xf32>
    %1092 = arith.mulf %1090, %1091 : vector<8x128xf32>
    %1093 = arith.addf %1089, %1092 : vector<8x128xf32>
    %1094 = math.tanh %1093 : vector<8x128xf32>
    %1095 = vector.extract_strided_slice %1088 {offsets = [0, 128], sizes = [8, 128], strides = [1, 1]} : vector<8x256xf32> to vector<8x128xf32>
    %cst_316 = arith.constant 1.000000e+00 : f32
    %1096 = vector.broadcast %cst_316 : f32 to vector<8x128xf32>
    %1097 = arith.subf %1096, %1095 : vector<8x128xf32>
    %1098 = arith.mulf %1097, %1094 : vector<8x128xf32>
    %1099 = arith.mulf %1095, %1051 : vector<8x128xf32>
    %1100 = arith.addf %1098, %1099 : vector<8x128xf32>
    %1101 = vector.extract_strided_slice %1080 {offsets = [0, 0], sizes = [8, 256], strides = [1, 1]} : vector<8x384xf32> to vector<8x256xf32>
    %1102 = vector.extract_strided_slice %1078 {offsets = [0, 384], sizes = [8, 256], strides = [1, 1]} : vector<8x768xf32> to vector<8x256xf32>
    %1103 = arith.addf %1101, %1102 : vector<8x256xf32>
    %1104 = arith.negf %1103 : vector<8x256xf32>
    %1105 = math.exp %1104 : vector<8x256xf32>
    %cst_317 = arith.constant 1.000000e+00 : f32
    %1106 = vector.broadcast %cst_317 : f32 to vector<8x256xf32>
    %1107 = arith.addf %1106, %1105 : vector<8x256xf32>
    %1108 = arith.divf %1106, %1107 : vector<8x256xf32>
    %1109 = vector.extract_strided_slice %1080 {offsets = [0, 256], sizes = [8, 128], strides = [1, 1]} : vector<8x384xf32> to vector<8x128xf32>
    %1110 = vector.extract_strided_slice %1108 {offsets = [0, 0], sizes = [8, 128], strides = [1, 1]} : vector<8x256xf32> to vector<8x128xf32>
    %1111 = vector.extract_strided_slice %1078 {offsets = [0, 640], sizes = [8, 128], strides = [1, 1]} : vector<8x768xf32> to vector<8x128xf32>
    %1112 = arith.mulf %1110, %1111 : vector<8x128xf32>
    %1113 = arith.addf %1109, %1112 : vector<8x128xf32>
    %1114 = math.tanh %1113 : vector<8x128xf32>
    %1115 = vector.extract_strided_slice %1108 {offsets = [0, 128], sizes = [8, 128], strides = [1, 1]} : vector<8x256xf32> to vector<8x128xf32>
    %cst_318 = arith.constant 1.000000e+00 : f32
    %1116 = vector.broadcast %cst_318 : f32 to vector<8x128xf32>
    %1117 = arith.subf %1116, %1115 : vector<8x128xf32>
    %1118 = arith.mulf %1117, %1114 : vector<8x128xf32>
    %1119 = arith.mulf %1115, %1071 : vector<8x128xf32>
    %1120 = arith.addf %1118, %1119 : vector<8x128xf32>
    %c40_319 = arith.constant 40 : index
    %c0_320 = arith.constant 0 : index
    %1121 = vector.load %arg13[%c40_319, %c0_320] : memref<64x256xf32, #tpu.memory_space<vmem>>, vector<8x128xf32>
    tpu.vector_store %arg13[%c40_319, %c0_320], %1100 {strides = array<i32>} : memref<64x256xf32, #tpu.memory_space<vmem>>, vector<8x128xf32>,
    %c16_321 = arith.constant 16 : index
    %c128_322 = arith.constant 128 : index
    %1122 = vector.load %arg13[%c16_321, %c128_322] : memref<64x256xf32, #tpu.memory_space<vmem>>, vector<8x128xf32>
    tpu.vector_store %arg13[%c16_321, %c128_322], %1120 {strides = array<i32>} : memref<64x256xf32, #tpu.memory_space<vmem>>, vector<8x128xf32>,
    %1123 = tpu.concatenate %1100, %1120 in 1 : vector<8x128xf32>, vector<8x128xf32> -> vector<8x256xf32>
    %1124 = arith.truncf %1123 : vector<8x256xf32> to vector<8x256xbf16>
    %cst_323 = arith.constant dense<0.000000e+00> : vector<8x768xf32>
    %1125 = tpu.matmul %1124, %820, %cst_323 {dimension_numbers = #tpu.dot_dimension_numbers<[1], [0], [0], [1], [0, 0, 1, 1], [], []>} : vector<8x256xbf16>, vector<256x768xbf16>, vector<8x768xf32> -> vector<8x768xf32>
    %1126 = vector.broadcast %822 : vector<1x768xf32> to vector<8x768xf32>
    %1127 = arith.addf %1125, %1126 : vector<8x768xf32>
    %c48_324 = arith.constant 48 : index
    %c0_325 = arith.constant 0 : index
    %1128 = vector.load %arg12[%c48_324, %c0_325] : memref<64x768xf32, #tpu.memory_space<vmem>>, vector<8x384xf32>
    %c8_326 = arith.constant 8 : index
    %c384_327 = arith.constant 384 : index
    %1129 = vector.load %arg12[%c8_326, %c384_327] : memref<64x768xf32, #tpu.memory_space<vmem>>, vector<8x384xf32>
    %1130 = vector.extract_strided_slice %1128 {offsets = [0, 0], sizes = [8, 256], strides = [1, 1]} : vector<8x384xf32> to vector<8x256xf32>
    %1131 = vector.extract_strided_slice %1127 {offsets = [0, 0], sizes = [8, 256], strides = [1, 1]} : vector<8x768xf32> to vector<8x256xf32>
    %1132 = arith.addf %1130, %1131 : vector<8x256xf32>
    %1133 = arith.negf %1132 : vector<8x256xf32>
    %1134 = math.exp %1133 : vector<8x256xf32>
    %cst_328 = arith.constant 1.000000e+00 : f32
    %1135 = vector.broadcast %cst_328 : f32 to vector<8x256xf32>
    %1136 = arith.addf %1135, %1134 : vector<8x256xf32>
    %1137 = arith.divf %1135, %1136 : vector<8x256xf32>
    %1138 = vector.extract_strided_slice %1128 {offsets = [0, 256], sizes = [8, 128], strides = [1, 1]} : vector<8x384xf32> to vector<8x128xf32>
    %1139 = vector.extract_strided_slice %1137 {offsets = [0, 0], sizes = [8, 128], strides = [1, 1]} : vector<8x256xf32> to vector<8x128xf32>
    %1140 = vector.extract_strided_slice %1127 {offsets = [0, 256], sizes = [8, 128], strides = [1, 1]} : vector<8x768xf32> to vector<8x128xf32>
    %1141 = arith.mulf %1139, %1140 : vector<8x128xf32>
    %1142 = arith.addf %1138, %1141 : vector<8x128xf32>
    %1143 = math.tanh %1142 : vector<8x128xf32>
    %1144 = vector.extract_strided_slice %1137 {offsets = [0, 128], sizes = [8, 128], strides = [1, 1]} : vector<8x256xf32> to vector<8x128xf32>
    %cst_329 = arith.constant 1.000000e+00 : f32
    %1145 = vector.broadcast %cst_329 : f32 to vector<8x128xf32>
    %1146 = arith.subf %1145, %1144 : vector<8x128xf32>
    %1147 = arith.mulf %1146, %1143 : vector<8x128xf32>
    %1148 = arith.mulf %1144, %1100 : vector<8x128xf32>
    %1149 = arith.addf %1147, %1148 : vector<8x128xf32>
    %1150 = vector.extract_strided_slice %1129 {offsets = [0, 0], sizes = [8, 256], strides = [1, 1]} : vector<8x384xf32> to vector<8x256xf32>
    %1151 = vector.extract_strided_slice %1127 {offsets = [0, 384], sizes = [8, 256], strides = [1, 1]} : vector<8x768xf32> to vector<8x256xf32>
    %1152 = arith.addf %1150, %1151 : vector<8x256xf32>
    %1153 = arith.negf %1152 : vector<8x256xf32>
    %1154 = math.exp %1153 : vector<8x256xf32>
    %cst_330 = arith.constant 1.000000e+00 : f32
    %1155 = vector.broadcast %cst_330 : f32 to vector<8x256xf32>
    %1156 = arith.addf %1155, %1154 : vector<8x256xf32>
    %1157 = arith.divf %1155, %1156 : vector<8x256xf32>
    %1158 = vector.extract_strided_slice %1129 {offsets = [0, 256], sizes = [8, 128], strides = [1, 1]} : vector<8x384xf32> to vector<8x128xf32>
    %1159 = vector.extract_strided_slice %1157 {offsets = [0, 0], sizes = [8, 128], strides = [1, 1]} : vector<8x256xf32> to vector<8x128xf32>
    %1160 = vector.extract_strided_slice %1127 {offsets = [0, 640], sizes = [8, 128], strides = [1, 1]} : vector<8x768xf32> to vector<8x128xf32>
    %1161 = arith.mulf %1159, %1160 : vector<8x128xf32>
    %1162 = arith.addf %1158, %1161 : vector<8x128xf32>
    %1163 = math.tanh %1162 : vector<8x128xf32>
    %1164 = vector.extract_strided_slice %1157 {offsets = [0, 128], sizes = [8, 128], strides = [1, 1]} : vector<8x256xf32> to vector<8x128xf32>
    %cst_331 = arith.constant 1.000000e+00 : f32
    %1165 = vector.broadcast %cst_331 : f32 to vector<8x128xf32>
    %1166 = arith.subf %1165, %1164 : vector<8x128xf32>
    %1167 = arith.mulf %1166, %1163 : vector<8x128xf32>
    %1168 = arith.mulf %1164, %1120 : vector<8x128xf32>
    %1169 = arith.addf %1167, %1168 : vector<8x128xf32>
    %c48_332 = arith.constant 48 : index
    %c0_333 = arith.constant 0 : index
    %1170 = vector.load %arg13[%c48_332, %c0_333] : memref<64x256xf32, #tpu.memory_space<vmem>>, vector<8x128xf32>
    tpu.vector_store %arg13[%c48_332, %c0_333], %1149 {strides = array<i32>} : memref<64x256xf32, #tpu.memory_space<vmem>>, vector<8x128xf32>,
    %c8_334 = arith.constant 8 : index
    %c128_335 = arith.constant 128 : index
    %1171 = vector.load %arg13[%c8_334, %c128_335] : memref<64x256xf32, #tpu.memory_space<vmem>>, vector<8x128xf32>
    tpu.vector_store %arg13[%c8_334, %c128_335], %1169 {strides = array<i32>} : memref<64x256xf32, #tpu.memory_space<vmem>>, vector<8x128xf32>,
    %1172 = tpu.concatenate %1149, %1169 in 1 : vector<8x128xf32>, vector<8x128xf32> -> vector<8x256xf32>
    %1173 = arith.truncf %1172 : vector<8x256xf32> to vector<8x256xbf16>
    %cst_336 = arith.constant dense<0.000000e+00> : vector<8x768xf32>
    %1174 = tpu.matmul %1173, %820, %cst_336 {dimension_numbers = #tpu.dot_dimension_numbers<[1], [0], [0], [1], [0, 0, 1, 1], [], []>} : vector<8x256xbf16>, vector<256x768xbf16>, vector<8x768xf32> -> vector<8x768xf32>
    %1175 = vector.broadcast %822 : vector<1x768xf32> to vector<8x768xf32>
    %1176 = arith.addf %1174, %1175 : vector<8x768xf32>
    %c56_337 = arith.constant 56 : index
    %c0_338 = arith.constant 0 : index
    %1177 = vector.load %arg12[%c56_337, %c0_338] : memref<64x768xf32, #tpu.memory_space<vmem>>, vector<8x384xf32>
    %c0_339 = arith.constant 0 : index
    %c384_340 = arith.constant 384 : index
    %1178 = vector.load %arg12[%c0_339, %c384_340] : memref<64x768xf32, #tpu.memory_space<vmem>>, vector<8x384xf32>
    %1179 = vector.extract_strided_slice %1177 {offsets = [0, 0], sizes = [8, 256], strides = [1, 1]} : vector<8x384xf32> to vector<8x256xf32>
    %1180 = vector.extract_strided_slice %1176 {offsets = [0, 0], sizes = [8, 256], strides = [1, 1]} : vector<8x768xf32> to vector<8x256xf32>
    %1181 = arith.addf %1179, %1180 : vector<8x256xf32>
    %1182 = arith.negf %1181 : vector<8x256xf32>
    %1183 = math.exp %1182 : vector<8x256xf32>
    %cst_341 = arith.constant 1.000000e+00 : f32
    %1184 = vector.broadcast %cst_341 : f32 to vector<8x256xf32>
    %1185 = arith.addf %1184, %1183 : vector<8x256xf32>
    %1186 = arith.divf %1184, %1185 : vector<8x256xf32>
    %1187 = vector.extract_strided_slice %1177 {offsets = [0, 256], sizes = [8, 128], strides = [1, 1]} : vector<8x384xf32> to vector<8x128xf32>
    %1188 = vector.extract_strided_slice %1186 {offsets = [0, 0], sizes = [8, 128], strides = [1, 1]} : vector<8x256xf32> to vector<8x128xf32>
    %1189 = vector.extract_strided_slice %1176 {offsets = [0, 256], sizes = [8, 128], strides = [1, 1]} : vector<8x768xf32> to vector<8x128xf32>
    %1190 = arith.mulf %1188, %1189 : vector<8x128xf32>
    %1191 = arith.addf %1187, %1190 : vector<8x128xf32>
    %1192 = math.tanh %1191 : vector<8x128xf32>
    %1193 = vector.extract_strided_slice %1186 {offsets = [0, 128], sizes = [8, 128], strides = [1, 1]} : vector<8x256xf32> to vector<8x128xf32>
    %cst_342 = arith.constant 1.000000e+00 : f32
    %1194 = vector.broadcast %cst_342 : f32 to vector<8x128xf32>
    %1195 = arith.subf %1194, %1193 : vector<8x128xf32>
    %1196 = arith.mulf %1195, %1192 : vector<8x128xf32>
    %1197 = arith.mulf %1193, %1149 : vector<8x128xf32>
    %1198 = arith.addf %1196, %1197 : vector<8x128xf32>
    %1199 = vector.extract_strided_slice %1178 {offsets = [0, 0], sizes = [8, 256], strides = [1, 1]} : vector<8x384xf32> to vector<8x256xf32>
    %1200 = vector.extract_strided_slice %1176 {offsets = [0, 384], sizes = [8, 256], strides = [1, 1]} : vector<8x768xf32> to vector<8x256xf32>
    %1201 = arith.addf %1199, %1200 : vector<8x256xf32>
    %1202 = arith.negf %1201 : vector<8x256xf32>
    %1203 = math.exp %1202 : vector<8x256xf32>
    %cst_343 = arith.constant 1.000000e+00 : f32
    %1204 = vector.broadcast %cst_343 : f32 to vector<8x256xf32>
    %1205 = arith.addf %1204, %1203 : vector<8x256xf32>
    %1206 = arith.divf %1204, %1205 : vector<8x256xf32>
    %1207 = vector.extract_strided_slice %1178 {offsets = [0, 256], sizes = [8, 128], strides = [1, 1]} : vector<8x384xf32> to vector<8x128xf32>
    %1208 = vector.extract_strided_slice %1206 {offsets = [0, 0], sizes = [8, 128], strides = [1, 1]} : vector<8x256xf32> to vector<8x128xf32>
    %1209 = vector.extract_strided_slice %1176 {offsets = [0, 640], sizes = [8, 128], strides = [1, 1]} : vector<8x768xf32> to vector<8x128xf32>
    %1210 = arith.mulf %1208, %1209 : vector<8x128xf32>
    %1211 = arith.addf %1207, %1210 : vector<8x128xf32>
    %1212 = math.tanh %1211 : vector<8x128xf32>
    %1213 = vector.extract_strided_slice %1206 {offsets = [0, 128], sizes = [8, 128], strides = [1, 1]} : vector<8x256xf32> to vector<8x128xf32>
    %cst_344 = arith.constant 1.000000e+00 : f32
    %1214 = vector.broadcast %cst_344 : f32 to vector<8x128xf32>
    %1215 = arith.subf %1214, %1213 : vector<8x128xf32>
    %1216 = arith.mulf %1215, %1212 : vector<8x128xf32>
    %1217 = arith.mulf %1213, %1169 : vector<8x128xf32>
    %1218 = arith.addf %1216, %1217 : vector<8x128xf32>
    %c56_345 = arith.constant 56 : index
    %c0_346 = arith.constant 0 : index
    %1219 = vector.load %arg13[%c56_345, %c0_346] : memref<64x256xf32, #tpu.memory_space<vmem>>, vector<8x128xf32>
    tpu.vector_store %arg13[%c56_345, %c0_346], %1198 {strides = array<i32>} : memref<64x256xf32, #tpu.memory_space<vmem>>, vector<8x128xf32>,
    %c0_347 = arith.constant 0 : index
    %c128_348 = arith.constant 128 : index
    %1220 = vector.load %arg13[%c0_347, %c128_348] : memref<64x256xf32, #tpu.memory_space<vmem>>, vector<8x128xf32>
    tpu.vector_store %arg13[%c0_347, %c128_348], %1218 {strides = array<i32>} : memref<64x256xf32, #tpu.memory_space<vmem>>, vector<8x128xf32>,
    %c0_349 = arith.constant 0 : index
    %c0_350 = arith.constant 0 : index
    %1221 = vector.load %arg9[%c0_349, %c0_350] : memref<3x256xf32, #tpu.memory_space<vmem>>, vector<1x256xf32>
    %c1_351 = arith.constant 1 : index
    %c0_352 = arith.constant 0 : index
    %1222 = vector.load %arg9[%c1_351, %c0_352] : memref<3x256xf32, #tpu.memory_space<vmem>>, vector<1x256xf32>
    %c2 = arith.constant 2 : index
    %c0_353 = arith.constant 0 : index
    %1223 = vector.load %arg9[%c2, %c0_353] : memref<3x256xf32, #tpu.memory_space<vmem>>, vector<1x256xf32>
    %cst_354 = arith.constant 0.000000e+00 : f32
    %1224 = vector.broadcast %cst_354 : f32 to vector<8x1xf32>
    %cst_355 = arith.constant 0.000000e+00 : f32
    %1225 = vector.broadcast %cst_355 : f32 to vector<8x256xf32>
    %c0_356 = arith.constant 0 : index
    %c0_357 = arith.constant 0 : index
    %1226 = vector.load %arg13[%c0_356, %c0_357] : memref<64x256xf32, #tpu.memory_space<vmem>>, vector<8x256xf32>
    %1227 = vector.broadcast %1221 : vector<1x256xf32> to vector<8x256xf32>
    %1228 = arith.mulf %1226, %1227 : vector<8x256xf32>
    %cst_358 = arith.constant dense<0.000000e+00> : vector<8xf32>
    %1229 = vector.multi_reduction <add>, %1228, %cst_358 [1] : vector<8x256xf32> to vector<8xf32>
    %1230 = vector.shape_cast %1229 : vector<8xf32> to vector<8x1xf32>
    %c0_359 = arith.constant 0 : index
    %1231 = memref.load %arg10[%c0_359] : memref<9xf32, #tpu.memory_space<smem>>
    %1232 = vector.broadcast %1231 : f32 to vector<8x1xf32>
    %1233 = arith.addf %1230, %1232 : vector<8x1xf32>
    %1234 = math.tanh %1233 : vector<8x1xf32>
    %1235 = math.exp %1234 : vector<8x1xf32>
    %1236 = arith.addf %1224, %1235 : vector<8x1xf32>
    %1237 = vector.broadcast %1235 : vector<8x1xf32> to vector<8x256xf32>
    %1238 = arith.mulf %1226, %1237 : vector<8x256xf32>
    %1239 = arith.addf %1225, %1238 : vector<8x256xf32>
    %c8_360 = arith.constant 8 : index
    %c0_361 = arith.constant 0 : index
    %1240 = vector.load %arg13[%c8_360, %c0_361] : memref<64x256xf32, #tpu.memory_space<vmem>>, vector<8x256xf32>
    %1241 = vector.broadcast %1221 : vector<1x256xf32> to vector<8x256xf32>
    %1242 = arith.mulf %1240, %1241 : vector<8x256xf32>
    %cst_362 = arith.constant dense<0.000000e+00> : vector<8xf32>
    %1243 = vector.multi_reduction <add>, %1242, %cst_362 [1] : vector<8x256xf32> to vector<8xf32>
    %1244 = vector.shape_cast %1243 : vector<8xf32> to vector<8x1xf32>
    %c1_363 = arith.constant 1 : index
    %1245 = memref.load %arg10[%c1_363] : memref<9xf32, #tpu.memory_space<smem>>
    %1246 = vector.broadcast %1245 : f32 to vector<8x1xf32>
    %1247 = arith.addf %1244, %1246 : vector<8x1xf32>
    %1248 = math.tanh %1247 : vector<8x1xf32>
    %1249 = math.exp %1248 : vector<8x1xf32>
    %1250 = arith.addf %1236, %1249 : vector<8x1xf32>
    %1251 = vector.broadcast %1249 : vector<8x1xf32> to vector<8x256xf32>
    %1252 = arith.mulf %1240, %1251 : vector<8x256xf32>
    %1253 = arith.addf %1239, %1252 : vector<8x256xf32>
    %c16_364 = arith.constant 16 : index
    %c0_365 = arith.constant 0 : index
    %1254 = vector.load %arg13[%c16_364, %c0_365] : memref<64x256xf32, #tpu.memory_space<vmem>>, vector<8x256xf32>
    %1255 = vector.broadcast %1221 : vector<1x256xf32> to vector<8x256xf32>
    %1256 = arith.mulf %1254, %1255 : vector<8x256xf32>
    %cst_366 = arith.constant dense<0.000000e+00> : vector<8xf32>
    %1257 = vector.multi_reduction <add>, %1256, %cst_366 [1] : vector<8x256xf32> to vector<8xf32>
    %1258 = vector.shape_cast %1257 : vector<8xf32> to vector<8x1xf32>
    %c2_367 = arith.constant 2 : index
    %1259 = memref.load %arg10[%c2_367] : memref<9xf32, #tpu.memory_space<smem>>
    %1260 = vector.broadcast %1259 : f32 to vector<8x1xf32>
    %1261 = arith.addf %1258, %1260 : vector<8x1xf32>
    %1262 = math.tanh %1261 : vector<8x1xf32>
    %1263 = math.exp %1262 : vector<8x1xf32>
    %1264 = arith.addf %1250, %1263 : vector<8x1xf32>
    %1265 = vector.broadcast %1263 : vector<8x1xf32> to vector<8x256xf32>
    %1266 = arith.mulf %1254, %1265 : vector<8x256xf32>
    %1267 = arith.addf %1253, %1266 : vector<8x256xf32>
    %c24_368 = arith.constant 24 : index
    %c0_369 = arith.constant 0 : index
    %1268 = vector.load %arg13[%c24_368, %c0_369] : memref<64x256xf32, #tpu.memory_space<vmem>>, vector<8x256xf32>
    %1269 = vector.broadcast %1221 : vector<1x256xf32> to vector<8x256xf32>
    %1270 = arith.mulf %1268, %1269 : vector<8x256xf32>
    %cst_370 = arith.constant dense<0.000000e+00> : vector<8xf32>
    %1271 = vector.multi_reduction <add>, %1270, %cst_370 [1] : vector<8x256xf32> to vector<8xf32>
    %1272 = vector.shape_cast %1271 : vector<8xf32> to vector<8x1xf32>
    %c3 = arith.constant 3 : index
    %1273 = memref.load %arg10[%c3] : memref<9xf32, #tpu.memory_space<smem>>
    %1274 = vector.broadcast %1273 : f32 to vector<8x1xf32>
    %1275 = arith.addf %1272, %1274 : vector<8x1xf32>
    %1276 = math.tanh %1275 : vector<8x1xf32>
    %1277 = math.exp %1276 : vector<8x1xf32>
    %1278 = arith.addf %1264, %1277 : vector<8x1xf32>
    %1279 = vector.broadcast %1277 : vector<8x1xf32> to vector<8x256xf32>
    %1280 = arith.mulf %1268, %1279 : vector<8x256xf32>
    %1281 = arith.addf %1267, %1280 : vector<8x256xf32>
    %c32_371 = arith.constant 32 : index
    %c0_372 = arith.constant 0 : index
    %1282 = vector.load %arg13[%c32_371, %c0_372] : memref<64x256xf32, #tpu.memory_space<vmem>>, vector<8x256xf32>
    %1283 = vector.broadcast %1221 : vector<1x256xf32> to vector<8x256xf32>
    %1284 = arith.mulf %1282, %1283 : vector<8x256xf32>
    %cst_373 = arith.constant dense<0.000000e+00> : vector<8xf32>
    %1285 = vector.multi_reduction <add>, %1284, %cst_373 [1] : vector<8x256xf32> to vector<8xf32>
    %1286 = vector.shape_cast %1285 : vector<8xf32> to vector<8x1xf32>
    %c4 = arith.constant 4 : index
    %1287 = memref.load %arg10[%c4] : memref<9xf32, #tpu.memory_space<smem>>
    %1288 = vector.broadcast %1287 : f32 to vector<8x1xf32>
    %1289 = arith.addf %1286, %1288 : vector<8x1xf32>
    %1290 = math.tanh %1289 : vector<8x1xf32>
    %1291 = math.exp %1290 : vector<8x1xf32>
    %1292 = arith.addf %1278, %1291 : vector<8x1xf32>
    %1293 = vector.broadcast %1291 : vector<8x1xf32> to vector<8x256xf32>
    %1294 = arith.mulf %1282, %1293 : vector<8x256xf32>
    %1295 = arith.addf %1281, %1294 : vector<8x256xf32>
    %c40_374 = arith.constant 40 : index
    %c0_375 = arith.constant 0 : index
    %1296 = vector.load %arg13[%c40_374, %c0_375] : memref<64x256xf32, #tpu.memory_space<vmem>>, vector<8x256xf32>
    %1297 = vector.broadcast %1221 : vector<1x256xf32> to vector<8x256xf32>
    %1298 = arith.mulf %1296, %1297 : vector<8x256xf32>
    %cst_376 = arith.constant dense<0.000000e+00> : vector<8xf32>
    %1299 = vector.multi_reduction <add>, %1298, %cst_376 [1] : vector<8x256xf32> to vector<8xf32>
    %1300 = vector.shape_cast %1299 : vector<8xf32> to vector<8x1xf32>
    %c5 = arith.constant 5 : index
    %1301 = memref.load %arg10[%c5] : memref<9xf32, #tpu.memory_space<smem>>
    %1302 = vector.broadcast %1301 : f32 to vector<8x1xf32>
    %1303 = arith.addf %1300, %1302 : vector<8x1xf32>
    %1304 = math.tanh %1303 : vector<8x1xf32>
    %1305 = math.exp %1304 : vector<8x1xf32>
    %1306 = arith.addf %1292, %1305 : vector<8x1xf32>
    %1307 = vector.broadcast %1305 : vector<8x1xf32> to vector<8x256xf32>
    %1308 = arith.mulf %1296, %1307 : vector<8x256xf32>
    %1309 = arith.addf %1295, %1308 : vector<8x256xf32>
    %c48_377 = arith.constant 48 : index
    %c0_378 = arith.constant 0 : index
    %1310 = vector.load %arg13[%c48_377, %c0_378] : memref<64x256xf32, #tpu.memory_space<vmem>>, vector<8x256xf32>
    %1311 = vector.broadcast %1221 : vector<1x256xf32> to vector<8x256xf32>
    %1312 = arith.mulf %1310, %1311 : vector<8x256xf32>
    %cst_379 = arith.constant dense<0.000000e+00> : vector<8xf32>
    %1313 = vector.multi_reduction <add>, %1312, %cst_379 [1] : vector<8x256xf32> to vector<8xf32>
    %1314 = vector.shape_cast %1313 : vector<8xf32> to vector<8x1xf32>
    %c6 = arith.constant 6 : index
    %1315 = memref.load %arg10[%c6] : memref<9xf32, #tpu.memory_space<smem>>
    %1316 = vector.broadcast %1315 : f32 to vector<8x1xf32>
    %1317 = arith.addf %1314, %1316 : vector<8x1xf32>
    %1318 = math.tanh %1317 : vector<8x1xf32>
    %1319 = math.exp %1318 : vector<8x1xf32>
    %1320 = arith.addf %1306, %1319 : vector<8x1xf32>
    %1321 = vector.broadcast %1319 : vector<8x1xf32> to vector<8x256xf32>
    %1322 = arith.mulf %1310, %1321 : vector<8x256xf32>
    %1323 = arith.addf %1309, %1322 : vector<8x256xf32>
    %c56_380 = arith.constant 56 : index
    %c0_381 = arith.constant 0 : index
    %1324 = vector.load %arg13[%c56_380, %c0_381] : memref<64x256xf32, #tpu.memory_space<vmem>>, vector<8x256xf32>
    %1325 = vector.broadcast %1221 : vector<1x256xf32> to vector<8x256xf32>
    %1326 = arith.mulf %1324, %1325 : vector<8x256xf32>
    %cst_382 = arith.constant dense<0.000000e+00> : vector<8xf32>
    %1327 = vector.multi_reduction <add>, %1326, %cst_382 [1] : vector<8x256xf32> to vector<8xf32>
    %1328 = vector.shape_cast %1327 : vector<8xf32> to vector<8x1xf32>
    %c7 = arith.constant 7 : index
    %1329 = memref.load %arg10[%c7] : memref<9xf32, #tpu.memory_space<smem>>
    %1330 = vector.broadcast %1329 : f32 to vector<8x1xf32>
    %1331 = arith.addf %1328, %1330 : vector<8x1xf32>
    %1332 = math.tanh %1331 : vector<8x1xf32>
    %1333 = math.exp %1332 : vector<8x1xf32>
    %1334 = arith.addf %1320, %1333 : vector<8x1xf32>
    %1335 = vector.broadcast %1333 : vector<8x1xf32> to vector<8x256xf32>
    %1336 = arith.mulf %1324, %1335 : vector<8x256xf32>
    %1337 = arith.addf %1323, %1336 : vector<8x256xf32>
    %cst_383 = arith.constant 1.000000e-10 : f32
    %1338 = vector.broadcast %cst_383 : f32 to vector<8x1xf32>
    %1339 = arith.addf %1334, %1338 : vector<8x1xf32>
    %cst_384 = arith.constant 1.000000e+00 : f32
    %1340 = vector.broadcast %cst_384 : f32 to vector<8x1xf32>
    %1341 = arith.divf %1340, %1339 : vector<8x1xf32>
    %1342 = vector.broadcast %1341 : vector<8x1xf32> to vector<8x256xf32>
    %1343 = arith.mulf %1337, %1342 : vector<8x256xf32>
    %1344 = vector.broadcast %1222 : vector<1x256xf32> to vector<8x256xf32>
    %1345 = arith.mulf %1343, %1344 : vector<8x256xf32>
    %cst_385 = arith.constant dense<0.000000e+00> : vector<8xf32>
    %1346 = vector.multi_reduction <add>, %1345, %cst_385 [1] : vector<8x256xf32> to vector<8xf32>
    %1347 = vector.shape_cast %1346 : vector<8xf32> to vector<8x1xf32>
    %c0_386 = arith.constant 0 : index
    %c0_387 = arith.constant 0 : index
    %1348 = vector.load %arg2[%c0_386, %c0_387] : memref<8x256xf32, #tpu.memory_space<vmem>>, vector<8x256xf32>
    %1349 = vector.broadcast %1223 : vector<1x256xf32> to vector<8x256xf32>
    %1350 = arith.mulf %1348, %1349 : vector<8x256xf32>
    %cst_388 = arith.constant dense<0.000000e+00> : vector<8xf32>
    %1351 = vector.multi_reduction <add>, %1350, %cst_388 [1] : vector<8x256xf32> to vector<8xf32>
    %1352 = vector.shape_cast %1351 : vector<8xf32> to vector<8x1xf32>
    %1353 = arith.addf %1347, %1352 : vector<8x1xf32>
    %c8_389 = arith.constant 8 : index
    %1354 = memref.load %arg10[%c8_389] : memref<9xf32, #tpu.memory_space<smem>>
    %1355 = vector.broadcast %1354 : f32 to vector<8x1xf32>
    %1356 = arith.addf %1353, %1355 : vector<8x1xf32>
    %1357 = vector.shape_cast %1356 : vector<8x1xf32> to vector<8x1xf32>
    %1358 = vector.broadcast %1357 : vector<8x1xf32> to vector<8x128xf32>
    %c0_390 = arith.constant 0 : index
    %c0_391 = arith.constant 0 : index
    %1359 = vector.load %arg11[%c0_390, %c0_391] : memref<8x128xf32, #tpu.memory_space<vmem>>, vector<8x128xf32>
    tpu.vector_store %arg11[%c0_390, %c0_391], %1358 {strides = array<i32>} : memref<8x128xf32, #tpu.memory_space<vmem>>, vector<8x128xf32>,
    return
  }
}

</mosaic_0001>

<llo_original>
// kernel: model_forward.1
$region0: #{model_forward.1}
  #allocation0 [shape = 'u32[]', space=smem, size = 0x4, offset = 0x4, fixed_abs, tag = 'smem constant byte address 0x4 - core index']
  #allocation1 [shape = 'u32[144,128]{1,0:T(1,128)}', space=vmem, size = 0x12000, scoped, tag = 'internal scratch']
  #allocation2 [shape = 'f32[64,768]{1,0:T(8,128)}', space=vmem, size = 0x30000, scoped, tag = 'scratch operand']
  #allocation3 [shape = 'f32[64,256]{1,0:T(8,128)}', space=vmem, size = 0x10000, scoped, tag = 'scratch operand']
  %s0 = inlined_call_operand.vmem [shape: s32[64,1], index: 0, kind: input, shape index: {}]
  %s1 = inlined_call_operand.vmem [shape: bf16[128,32], index: 1, kind: input, shape index: {}]
  %s2 = inlined_call_operand.vmem [shape: f32[8,256], index: 2, kind: input, shape index: {}]
  %s3 = inlined_call_operand.hbm [shape: bf16[288,768], index: 3, kind: input, shape index: {}]
  %s4 = inlined_call_operand.vmem [shape: f32[2,768], index: 4, kind: input, shape index: {}]
  %s5 = inlined_call_operand.hbm [shape: bf16[512,768], index: 5, kind: input, shape index: {}]
  %s6 = inlined_call_operand.vmem [shape: f32[2,768], index: 6, kind: input, shape index: {}]
  %s7 = inlined_call_operand.hbm [shape: bf16[512,768], index: 7, kind: input, shape index: {}]
  %s8 = inlined_call_operand.vmem [shape: f32[2,768], index: 8, kind: input, shape index: {}]
  %s9 = inlined_call_operand.vmem [shape: f32[3,256], index: 9, kind: input, shape index: {}]
  %s10 = inlined_call_operand.vmem [shape: f32[9], index: 10, kind: input, shape index: {}]
  %s11 = inlined_call_operand.vmem [shape: f32[8,128], index: 11, kind: output, shape index: {}]
  %s12 = sld [smem:[#allocation0]]
  $region70: #{model_forward.1} parent=0
    _
  %s14 = ssub.s32 1, %s12
  %s15 = scalar_select 0, %s14, %s12
  $region1: #{model_forward.1} parent=0
    #allocation4 [shape = 'u8[442368]{0}', space=vmem, size = 0x6c000, scoped, tag = 'input window, operand 3, single buffered']
    #allocation5 [shape = 's32[1]{0}', space=sflag, size = 0x4, scoped, tag = 'scoped memory for model_forward.1']
    #allocation6 [shape = 's32[1]{0}', space=sflag, size = 0x4, scoped, tag = 'scoped memory for model_forward.1']
    #allocation7 [shape = 'u8[786432]{0}', space=vmem, size = 0xc0000, scoped, tag = 'input window, operand 5, single buffered']
    #allocation8 [shape = 's32[1]{0}', space=sflag, size = 0x4, scoped, tag = 'scoped memory for model_forward.1']
    #allocation9 [shape = 'u8[786432]{0}', space=vmem, size = 0xc0000, scoped, tag = 'input window, operand 7, single buffered']
    #allocation10 [shape = 'u8[512]{0}', space=smem, size = 0x200, scoped, tag = 'input window, operand 10, single buffered']
    %16 = vsyncpa [#allocation5], 0
    %17 = vsyncpa [#allocation8], 0
    %18 = vsyncpa [#allocation6], 0
    // Predicated region
    $region2: #{model_forward.1} parent=1 // pred_check
      _
    $region3: #{model_forward.1} parent=1 // pred_check_branch
      %20 = sbr.rel (0) target = $region5
    $region4: #{model_forward.1} parent=1 // pred_region
      _
    $region5: #{model_forward.1} parent=1 // pred_fallthru
      _
    // Predicated region
    $region6: #{model_forward.1} parent=1 // pred_check
      _
    $region7: #{model_forward.1} parent=1 // pred_check_branch
      %22 = sbr.rel (0) target = $region9
    $region8: #{model_forward.1} parent=1 // pred_region
      _
    $region9: #{model_forward.1} parent=1 // pred_fallthru
      _
    // Predicated region
    $region10: #{model_forward.1} parent=1 // pred_check
      _
    $region11: #{model_forward.1} parent=1 // pred_check_branch
      %24 = sbr.rel (0) target = $region13
    $region12: #{model_forward.1} parent=1 // pred_region
      _
    $region13: #{model_forward.1} parent=1 // pred_fallthru
      _
    // Predicated region
    $region14: #{model_forward.1} parent=1 // pred_check
      _
    $region15: #{model_forward.1} parent=1 // pred_check_branch
      %26 = sbr.rel (0) target = $region17
    $region16: #{model_forward.1} parent=1 // pred_region
      %s28 = ssub.s32 13824, 13824
      %29 = vsyncadd [#allocation5], %s28
      %s30 = sshll.u32 [#allocation4], 4
      %s31 = int_to_ptr.vmem [resolvable:$true] %s30
      %36 = dma.hbm_to_vmem [thread:$0]  %s3, 13824, %s31, [#allocation5], 384, 384, 24
    $region17: #{model_forward.1} parent=1 // pred_fallthru
      _
    // Predicated region
    $region18: #{model_forward.1} parent=1 // pred_check
      _
    $region19: #{model_forward.1} parent=1 // pred_check_branch
      %38 = sbr.rel (0) target = $region21
    $region20: #{model_forward.1} parent=1 // pred_region
      _
    $region21: #{model_forward.1} parent=1 // pred_fallthru
      _
    // Predicated region
    $region22: #{model_forward.1} parent=1 // pred_check
      _
    $region23: #{model_forward.1} parent=1 // pred_check_branch
      %40 = sbr.rel (0) target = $region25
    $region24: #{model_forward.1} parent=1 // pred_region
      %s42 = ssub.s32 24576, 24576
      %43 = vsyncadd [#allocation8], %s42
      %s44 = sshll.u32 [#allocation7], 4
      %s45 = int_to_ptr.vmem [resolvable:$true] %s44
      %50 = dma.hbm_to_vmem [thread:$0]  %s5, 24576, %s45, [#allocation8], 384, 384, 24
    $region25: #{model_forward.1} parent=1 // pred_fallthru
      _
    // Predicated region
    $region26: #{model_forward.1} parent=1 // pred_check
      _
    $region27: #{model_forward.1} parent=1 // pred_check_branch
      %52 = sbr.rel (0) target = $region29
    $region28: #{model_forward.1} parent=1 // pred_region
      _
    $region29: #{model_forward.1} parent=1 // pred_fallthru
      _
    // Predicated region
    $region30: #{model_forward.1} parent=1 // pred_check
      _
    $region31: #{model_forward.1} parent=1 // pred_check_branch
      %54 = sbr.rel (0) target = $region33
    $region32: #{model_forward.1} parent=1 // pred_region
      %s56 = ssub.s32 24576, 24576
      %57 = vsyncadd [#allocation8], %s56
      %s58 = sshll.u32 [#allocation9], 4
      %s59 = int_to_ptr.vmem [resolvable:$true] %s58
      %64 = dma.hbm_to_vmem [thread:$0]  %s7, 24576, %s59, [#allocation8], 384, 384, 24
    $region33: #{model_forward.1} parent=1 // pred_fallthru
      _
    // Predicated region
    $region34: #{model_forward.1} parent=1 // pred_check
      _
    $region35: #{model_forward.1} parent=1 // pred_check_branch
      %66 = sbr.rel (0) target = $region37
    $region36: #{model_forward.1} parent=1 // pred_region
      _
    $region37: #{model_forward.1} parent=1 // pred_fallthru
      _
    // Predicated region
    $region38: #{model_forward.1} parent=1 // pred_check
      _
    $region39: #{model_forward.1} parent=1 // pred_check_branch
      %68 = sbr.rel (0) target = $region41
    $region40: #{model_forward.1} parent=1 // pred_region
      _
    $region41: #{model_forward.1} parent=1 // pred_fallthru
      _
    // Predicated region
    $region42: #{model_forward.1} parent=1 // pred_check
      _
    $region43: #{model_forward.1} parent=1 // pred_check_branch
      %70 = sbr.rel (0) target = $region45
    $region44: #{model_forward.1} parent=1 // pred_region
      %s72 = ssub.s32 16, 16
      %73 = vsyncadd [#allocation6], %s72
      %s75 = sshll.u32 %s10, 4
      %s76 = int_to_ptr.vmem [resolvable:$true] %s75
      %78 = dma.vmem_to_smem %s76, 16, [#allocation10], [#allocation6]
    $region45: #{model_forward.1} parent=1 // pred_fallthru
      _
    // Predicated region
    $region46: #{model_forward.1} parent=1 // pred_check
      _
    $region47: #{model_forward.1} parent=1 // pred_check_branch
      %80 = sbr.rel (0) target = $region49
    $region48: #{model_forward.1} parent=1 // pred_region
      %81 = dma.done [#allocation5], 13824
    $region49: #{model_forward.1} parent=1 // pred_fallthru
      _
    // Predicated region
    $region50: #{model_forward.1} parent=1 // pred_check
      _
    $region51: #{model_forward.1} parent=1 // pred_check_branch
      %83 = sbr.rel (0) target = $region53
    $region52: #{model_forward.1} parent=1 // pred_region
      %84 = dma.done [#allocation8], 24576
    $region53: #{model_forward.1} parent=1 // pred_fallthru
      _
    // Predicated region
    $region54: #{model_forward.1} parent=1 // pred_check
      _
    $region55: #{model_forward.1} parent=1 // pred_check_branch
      %86 = sbr.rel (0) target = $region57
    $region56: #{model_forward.1} parent=1 // pred_region
      %87 = dma.done [#allocation8], 24576
    $region57: #{model_forward.1} parent=1 // pred_fallthru
      _
    // Predicated region
    $region58: #{model_forward.1} parent=1 // pred_check
      _
    $region59: #{model_forward.1} parent=1 // pred_check_branch
      %89 = sbr.rel (0) target = $region61
    $region60: #{model_forward.1} parent=1 // pred_region
      %90 = dma.done [#allocation6], 16
    $region61: #{model_forward.1} parent=1 // pred_fallthru
      _
    %91 = sfence
    %v93 = vld [vmem:[%s0] sm:$0xff]
    %v94 = vld [vmem:[%s0 + $0x8] sm:$0xff]
    %v95 = vld [vmem:[%s0 + $0x10] sm:$0xff]
    %v96 = vld [vmem:[%s0 + $0x18] sm:$0xff]
    %v97 = vld [vmem:[%s0 + $0x20] sm:$0xff]
    %v98 = vld [vmem:[%s0 + $0x28] sm:$0xff]
    %v99 = vld [vmem:[%s0 + $0x30] sm:$0xff]
    %v100 = vld [vmem:[%s0 + $0x38] sm:$0xff]
    %v101 = vlaneseq
    %v102 = vand.u32 %v101, 127
    %103 = vset.pattern.permute.xlu0 0
    %104 = vperm.xlu0 %103, %v93
    %v105 = vpop.permute.xlu0 %104
    %106 = vset.pattern.permute.xlu0 0
    %107 = vperm.xlu0 %106, %v94
    %v108 = vpop.permute.xlu0 %107
    %109 = vset.pattern.permute.xlu0 0
    %110 = vperm.xlu0 %109, %v95
    %v111 = vpop.permute.xlu0 %110
    %112 = vset.pattern.permute.xlu0 0
    %113 = vperm.xlu0 %112, %v96
    %v114 = vpop.permute.xlu0 %113
    %115 = vset.pattern.permute.xlu0 0
    %116 = vperm.xlu0 %115, %v97
    %v117 = vpop.permute.xlu0 %116
    %118 = vset.pattern.permute.xlu0 0
    %119 = vperm.xlu0 %118, %v98
    %v120 = vpop.permute.xlu0 %119
    %121 = vset.pattern.permute.xlu0 0
    %122 = vperm.xlu0 %121, %v99
    %v123 = vpop.permute.xlu0 %122
    %124 = vset.pattern.permute.xlu0 0
    %125 = vperm.xlu0 %124, %v100
    %v126 = vpop.permute.xlu0 %125
    %vm127 = vcmp.eq.s32.totalorder %v102, %v105
    %vm128 = vcmp.eq.s32.totalorder %v102, %v108
    %vm129 = vcmp.eq.s32.totalorder %v102, %v111
    %vm130 = vcmp.eq.s32.totalorder %v102, %v114
    %vm131 = vcmp.eq.s32.totalorder %v102, %v117
    %vm132 = vcmp.eq.s32.totalorder %v102, %v120
    %vm133 = vcmp.eq.s32.totalorder %v102, %v123
    %vm134 = vcmp.eq.s32.totalorder %v102, %v126
    %v135 = vsel %vm127, 1.0, 0.0
    %v136 = vsel %vm128, 1.0, 0.0
    %v137 = vsel %vm129, 1.0, 0.0
    %v138 = vsel %vm130, 1.0, 0.0
    %v139 = vsel %vm131, 1.0, 0.0
    %v140 = vsel %vm132, 1.0, 0.0
    %v141 = vsel %vm133, 1.0, 0.0
    %v142 = vsel %vm134, 1.0, 0.0
    %v143 = vpack.c.bf16 %v136, %v135
    %v144 = vpack.c.bf16 %v138, %v137
    %v145 = vpack.c.bf16 %v140, %v139
    %v146 = vpack.c.bf16 %v142, %v141
    %v147 = vld [vmem:[%s1] sm:$0xf]
    %v148 = vld [vmem:[%s1 + $0x4] sm:$0xf]
    %v149 = vld [vmem:[%s1 + $0x8] sm:$0xf]
    %v150 = vld [vmem:[%s1 + $0xc] sm:$0xf]
    %v151 = vld [vmem:[%s1 + $0x10] sm:$0xf]
    %v152 = vld [vmem:[%s1 + $0x14] sm:$0xf]
    %v153 = vld [vmem:[%s1 + $0x18] sm:$0xf]
    %v154 = vld [vmem:[%s1 + $0x1c] sm:$0xf]
    %v155 = vld [vmem:[%s1 + $0x20] sm:$0xf]
    %v156 = vld [vmem:[%s1 + $0x24] sm:$0xf]
    %v157 = vld [vmem:[%s1 + $0x28] sm:$0xf]
    %v158 = vld [vmem:[%s1 + $0x2c] sm:$0xf]
    %v159 = vld [vmem:[%s1 + $0x30] sm:$0xf]
    %v160 = vld [vmem:[%s1 + $0x34] sm:$0xf]
    %v161 = vld [vmem:[%s1 + $0x38] sm:$0xf]
    %v162 = vld [vmem:[%s1 + $0x3c] sm:$0xf]
    %v179 = vunpack.c.l.b16 %v147
    %v180 = vunpack.c.l.b16 %v148
    %v181 = vunpack.c.l.b16 %v149
    %v182 = vunpack.c.l.b16 %v150
    %v183 = vunpack.c.l.b16 %v151
    %v184 = vunpack.c.l.b16 %v152
    %v185 = vunpack.c.l.b16 %v153
    %v186 = vunpack.c.l.b16 %v154
    %v187 = vunpack.c.l.b16 %v155
    %v188 = vunpack.c.l.b16 %v156
    %v189 = vunpack.c.l.b16 %v157
    %v190 = vunpack.c.l.b16 %v158
    %v191 = vunpack.c.l.b16 %v159
    %v192 = vunpack.c.l.b16 %v160
    %v193 = vunpack.c.l.b16 %v161
    %v194 = vunpack.c.l.b16 %v162
    %v195 = vpack.c.b16 %v180, %v179
    %v196 = vpack.c.b16 %v182, %v181
    %v197 = vpack.c.b16 %v184, %v183
    %v198 = vpack.c.b16 %v186, %v185
    %v199 = vpack.c.b16 %v188, %v187
    %v200 = vpack.c.b16 %v190, %v189
    %v201 = vpack.c.b16 %v192, %v191
    %v202 = vpack.c.b16 %v194, %v193
    %211 = vmatprep.subr.bf16.mxu0 0
    %212 = vmatpush1.bf16.msra.mxu0 %v195
    %213 = vmatprep.subr.bf16.mxu0 0
    %214 = vmatpush1.bf16.msra.mxu0 %v196
    %215 = vmatprep.subr.bf16.mxu0 0
    %216 = vmatpush1.bf16.msra.mxu0 %v197
    %217 = vmatprep.subr.bf16.mxu0 0
    %218 = vmatpush1.bf16.msra.mxu0 %v198
    %219 = vmatprep.subr.bf16.mxu0 0
    %220 = vmatpush1.bf16.msra.mxu0 %v199
    %221 = vmatprep.subr.bf16.mxu0 0
    %222 = vmatpush1.bf16.msra.mxu0 %v200
    %223 = vmatprep.subr.bf16.mxu0 0
    %224 = vmatpush1.bf16.msra.mxu0 %v201
    %225 = vmatprep.subr.bf16.mxu0 0
    %226 = vmatpush1.bf16.msra.mxu0 %v202
    %227 = vmatprep.subr.bf16.mxu0 0
    %228 = vmatpush1.bf16.msra.mxu0 0
    %229 = vmatprep.subr.bf16.mxu0 0
    %230 = vmatpush1.bf16.msra.mxu0 0
    %231 = vmatprep.subr.bf16.mxu0 0
    %232 = vmatpush1.bf16.msra.mxu0 0
    %233 = vmatprep.subr.bf16.mxu0 0
    %234 = vmatpush1.bf16.msra.mxu0 0
    %235 = vmatprep.subr.bf16.mxu0 0
    %236 = vmatpush1.bf16.msra.mxu0 0
    %237 = vmatprep.subr.bf16.mxu0 0
    %238 = vmatpush1.bf16.msra.mxu0 0
    %239 = vmatprep.subr.bf16.mxu0 0
    %240 = vmatpush1.bf16.msra.mxu0 0
    %241 = vmatprep.subr.bf16.mxu0 0
    %242 = vmatpush1.bf16.msra.mxu0 0
    %243 = vmatprep.mubr.bf16.mxu0 0
    %244 = vmatmul.mubr.bf16.gmra.mrb[0].mxu0 %v143
    %v245 = vpop.f32.mrb[0].mxu0
    %v246 = vadd.f32 0.0, %v245
    %v247 = vpop.f32.mrb[0].mxu0
    %v248 = vpop.f32.mrb[0].mxu0
    %v249 = vadd.f32 0.0, %v248
    %v250 = vpop.f32.mrb[0].mxu0
    %251 = vmatprep.mubr.bf16.mxu0 0
    %252 = vmatmul.mubr.bf16.gmra.mrb[0].mxu0 %v144
    %v253 = vpop.f32.mrb[0].mxu0
    %v254 = vadd.f32 0.0, %v253
    %v255 = vpop.f32.mrb[0].mxu0
    %v256 = vpop.f32.mrb[0].mxu0
    %v257 = vadd.f32 0.0, %v256
    %v258 = vpop.f32.mrb[0].mxu0
    %259 = vmatprep.mubr.bf16.mxu0 0
    %260 = vmatmul.mubr.bf16.gmra.mrb[0].mxu0 %v145
    %v261 = vpop.f32.mrb[0].mxu0
    %v262 = vadd.f32 0.0, %v261
    %v263 = vpop.f32.mrb[0].mxu0
    %v264 = vpop.f32.mrb[0].mxu0
    %v265 = vadd.f32 0.0, %v264
    %v266 = vpop.f32.mrb[0].mxu0
    %267 = vmatprep.mubr.bf16.mxu0 0
    %268 = vmatmul.mubr.bf16.gmra.mrb[0].mxu0 %v146
    %v269 = vpop.f32.mrb[0].mxu0
    %v270 = vadd.f32 0.0, %v269
    %v271 = vpop.f32.mrb[0].mxu0
    %v272 = vpop.f32.mrb[0].mxu0
    %v273 = vadd.f32 0.0, %v272
    %v274 = vpop.f32.mrb[0].mxu0
    %275 = vdwg.mxu0
    %v276 = vpack.c.bf16 %v249, %v246
    %v277 = vpack.c.bf16 %v257, %v254
    %v278 = vpack.c.bf16 %v265, %v262
    %v279 = vpack.c.bf16 %v273, %v270
    %v280 = vld [vmem:[#allocation4] sm:$0xff]
    %v281 = vld [vmem:[#allocation4 + $0x8] sm:$0xff]
    %v282 = vld [vmem:[#allocation4 + $0x10] sm:$0xff]
    %v283 = vld [vmem:[#allocation4 + $0x18] sm:$0xff]
    %v284 = vld [vmem:[#allocation4 + $0x20] sm:$0xff]
    %v285 = vld [vmem:[#allocation4 + $0x28] sm:$0xff]
    %v286 = vld [vmem:[#allocation4 + $0x30] sm:$0xff]
    %v287 = vld [vmem:[#allocation4 + $0x38] sm:$0xff]
    %v288 = vld [vmem:[#allocation4 + $0x40] sm:$0xff]
    %v289 = vld [vmem:[#allocation4 + $0x48] sm:$0xff]
    %v290 = vld [vmem:[#allocation4 + $0x50] sm:$0xff]
    %v291 = vld [vmem:[#allocation4 + $0x58] sm:$0xff]
    %v292 = vld [vmem:[#allocation4 + $0x60] sm:$0xff]
    %v293 = vld [vmem:[#allocation4 + $0x68] sm:$0xff]
    %v294 = vld [vmem:[#allocation4 + $0x70] sm:$0xff]
    %v295 = vld [vmem:[#allocation4 + $0x78] sm:$0xff]
    %v296 = vld [vmem:[#allocation4 + $0x80] sm:$0xff]
    %v297 = vld [vmem:[#allocation4 + $0x88] sm:$0xff]
    %v298 = vld [vmem:[#allocation4 + $0x90] sm:$0xff]
    %v299 = vld [vmem:[#allocation4 + $0x98] sm:$0xff]
    %v300 = vld [vmem:[#allocation4 + $0xa0] sm:$0xff]
    %v301 = vld [vmem:[#allocation4 + $0xa8] sm:$0xff]
    %v302 = vld [vmem:[#allocation4 + $0xb0] sm:$0xff]
    %v303 = vld [vmem:[#allocation4 + $0xb8] sm:$0xff]
    %v304 = vld [vmem:[#allocation4 + $0xc0] sm:$0xff]
    %v305 = vld [vmem:[#allocation4 + $0xc8] sm:$0xff]
    %v306 = vld [vmem:[#allocation4 + $0xd0] sm:$0xff]
    %v307 = vld [vmem:[#allocation4 + $0xd8] sm:$0xff]
    %v308 = vld [vmem:[#allocation4 + $0xe0] sm:$0xff]
    %v309 = vld [vmem:[#allocation4 + $0xe8] sm:$0xff]
    %v310 = vld [vmem:[#allocation4 + $0xf0] sm:$0xff]
    %v311 = vld [vmem:[#allocation4 + $0xf8] sm:$0xff]
    %v312 = vld [vmem:[#allocation4 + $0x100] sm:$0xff]
    %v313 = vld [vmem:[#allocation4 + $0x108] sm:$0xff]
    %v314 = vld [vmem:[#allocation4 + $0x110] sm:$0xff]
    %v315 = vld [vmem:[#allocation4 + $0x118] sm:$0xff]
    %v316 = vld [vmem:[#allocation4 + $0x120] sm:$0xff]
    %v317 = vld [vmem:[#allocation4 + $0x128] sm:$0xff]
    %v318 = vld [vmem:[#allocation4 + $0x130] sm:$0xff]
    %v319 = vld [vmem:[#allocation4 + $0x138] sm:$0xff]
    %v320 = vld [vmem:[#allocation4 + $0x140] sm:$0xff]
    %v321 = vld [vmem:[#allocation4 + $0x148] sm:$0xff]
    %v322 = vld [vmem:[#allocation4 + $0x150] sm:$0xff]
    %v323 = vld [vmem:[#allocation4 + $0x158] sm:$0xff]
    %v324 = vld [vmem:[#allocation4 + $0x160] sm:$0xff]
    %v325 = vld [vmem:[#allocation4 + $0x168] sm:$0xff]
    %v326 = vld [vmem:[#allocation4 + $0x170] sm:$0xff]
    %v327 = vld [vmem:[#allocation4 + $0x178] sm:$0xff]
    %v328 = vld [vmem:[#allocation4 + $0x180] sm:$0xff]
    %v329 = vld [vmem:[#allocation4 + $0x188] sm:$0xff]
    %v330 = vld [vmem:[#allocation4 + $0x190] sm:$0xff]
    %v331 = vld [vmem:[#allocation4 + $0x198] sm:$0xff]
    %v332 = vld [vmem:[#allocation4 + $0x1a0] sm:$0xff]
    %v333 = vld [vmem:[#allocation4 + $0x1a8] sm:$0xff]
    %v334 = vld [vmem:[#allocation4 + $0x1b0] sm:$0xff]
    %v335 = vld [vmem:[#allocation4 + $0x1b8] sm:$0xff]
    %v336 = vld [vmem:[#allocation4 + $0x1c0] sm:$0xff]
    %v337 = vld [vmem:[#allocation4 + $0x1c8] sm:$0xff]
    %v338 = vld [vmem:[#allocation4 + $0x1d0] sm:$0xff]
    %v339 = vld [vmem:[#allocation4 + $0x1d8] sm:$0xff]
    %v340 = vld [vmem:[#allocation4 + $0x1e0] sm:$0xff]
    %v341 = vld [vmem:[#allocation4 + $0x1e8] sm:$0xff]
    %v342 = vld [vmem:[#allocation4 + $0x1f0] sm:$0xff]
    %v343 = vld [vmem:[#allocation4 + $0x1f8] sm:$0xff]
    %v344 = vld [vmem:[#allocation4 + $0x200] sm:$0xff]
    %v345 = vld [vmem:[#allocation4 + $0x208] sm:$0xff]
    %v346 = vld [vmem:[#allocation4 + $0x210] sm:$0xff]
    %v347 = vld [vmem:[#allocation4 + $0x218] sm:$0xff]
    %v348 = vld [vmem:[#allocation4 + $0x220] sm:$0xff]
    %v349 = vld [vmem:[#allocation4 + $0x228] sm:$0xff]
    %v350 = vld [vmem:[#allocation4 + $0x230] sm:$0xff]
    %v351 = vld [vmem:[#allocation4 + $0x238] sm:$0xff]
    %v352 = vld [vmem:[#allocation4 + $0x240] sm:$0xff]
    %v353 = vld [vmem:[#allocation4 + $0x248] sm:$0xff]
    %v354 = vld [vmem:[#allocation4 + $0x250] sm:$0xff]
    %v355 = vld [vmem:[#allocation4 + $0x258] sm:$0xff]
    %v356 = vld [vmem:[#allocation4 + $0x260] sm:$0xff]
    %v357 = vld [vmem:[#allocation4 + $0x268] sm:$0xff]
    %v358 = vld [vmem:[#allocation4 + $0x270] sm:$0xff]
    %v359 = vld [vmem:[#allocation4 + $0x278] sm:$0xff]
    %v360 = vld [vmem:[#allocation4 + $0x280] sm:$0xff]
    %v361 = vld [vmem:[#allocation4 + $0x288] sm:$0xff]
    %v362 = vld [vmem:[#allocation4 + $0x290] sm:$0xff]
    %v363 = vld [vmem:[#allocation4 + $0x298] sm:$0xff]
    %v364 = vld [vmem:[#allocation4 + $0x2a0] sm:$0xff]
    %v365 = vld [vmem:[#allocation4 + $0x2a8] sm:$0xff]
    %v366 = vld [vmem:[#allocation4 + $0x2b0] sm:$0xff]
    %v367 = vld [vmem:[#allocation4 + $0x2b8] sm:$0xff]
    %v368 = vld [vmem:[#allocation4 + $0x2c0] sm:$0xff]
    %v369 = vld [vmem:[#allocation4 + $0x2c8] sm:$0xff]
    %v370 = vld [vmem:[#allocation4 + $0x2d0] sm:$0xff]
    %v371 = vld [vmem:[#allocation4 + $0x2d8] sm:$0xff]
    %v372 = vld [vmem:[#allocation4 + $0x2e0] sm:$0xff]
    %v373 = vld [vmem:[#allocation4 + $0x2e8] sm:$0xff]
    %v374 = vld [vmem:[#allocation4 + $0x2f0] sm:$0xff]
    %v375 = vld [vmem:[#allocation4 + $0x2f8] sm:$0xff]
    %v376 = vld [vmem:[#allocation4 + $0x300] sm:$0xff]
    %v377 = vld [vmem:[#allocation4 + $0x308] sm:$0xff]
    %v378 = vld [vmem:[#allocation4 + $0x310] sm:$0xff]
    %v379 = vld [vmem:[#allocation4 + $0x318] sm:$0xff]
    %v380 = vld [vmem:[#allocation4 + $0x320] sm:$0xff]
    %v381 = vld [vmem:[#allocation4 + $0x328] sm:$0xff]
    %v382 = vld [vmem:[#allocation4 + $0x330] sm:$0xff]
    %v383 = vld [vmem:[#allocation4 + $0x338] sm:$0xff]
    %v384 = vld [vmem:[#allocation4 + $0x340] sm:$0xff]
    %v385 = vld [vmem:[#allocation4 + $0x348] sm:$0xff]
    %v386 = vld [vmem:[#allocation4 + $0x350] sm:$0xff]
    %v387 = vld [vmem:[#allocation4 + $0x358] sm:$0xff]
    %v388 = vld [vmem:[%s4] ss:$2 sm:$0x3f]
    %s389 = scalar_lea.vmem %s4, 1
    %v390 = vld [vmem:[%s389] ss:$2 sm:$0x3f]
    %v392 = vlaneseq
    %v393 = vshrl.u32 %v392, 7
    %v394 = vsub.s32 0, %v393
    %v395 = vrot.slane %v388, %v394
    %v396 = vlaneseq
    %v397 = vshrl.u32 %v396, 7
    %v398 = vsub.s32 1, %v397
    %v399 = vrot.slane %v388, %v398
    %v400 = vlaneseq
    %v401 = vshrl.u32 %v400, 7
    %v402 = vsub.s32 2, %v401
    %v403 = vrot.slane %v388, %v402
    %v404 = vlaneseq
    %v405 = vshrl.u32 %v404, 7
    %v406 = vsub.s32 3, %v405
    %v407 = vrot.slane %v388, %v406
    %v408 = vlaneseq
    %v409 = vshrl.u32 %v408, 7
    %v410 = vsub.s32 4, %v409
    %v411 = vrot.slane %v388, %v410
    %v412 = vlaneseq
    %v413 = vshrl.u32 %v412, 7
    %v414 = vsub.s32 5, %v413
    %v415 = vrot.slane %v388, %v414
    %v434 = vunpack.c.l.b16 %v280
    %v435 = vunpack.c.h.b16 %v280
    %v436 = vunpack.c.l.b16 %v281
    %v437 = vunpack.c.h.b16 %v281
    %v438 = vunpack.c.l.b16 %v282
    %v439 = vunpack.c.h.b16 %v282
    %v440 = vunpack.c.l.b16 %v283
    %v441 = vunpack.c.h.b16 %v283
    %v442 = vunpack.c.l.b16 %v284
    %v443 = vunpack.c.h.b16 %v284
    %v444 = vunpack.c.l.b16 %v285
    %v445 = vunpack.c.h.b16 %v285
    %v446 = vunpack.c.l.b16 %v286
    %v447 = vunpack.c.h.b16 %v286
    %v448 = vunpack.c.l.b16 %v287
    %v449 = vunpack.c.h.b16 %v287
    %v450 = vunpack.c.l.b16 %v288
    %v451 = vunpack.c.h.b16 %v288
    %v452 = vunpack.c.l.b16 %v289
    %v453 = vunpack.c.h.b16 %v289
    %v454 = vunpack.c.l.b16 %v290
    %v455 = vunpack.c.h.b16 %v290
    %v456 = vunpack.c.l.b16 %v291
    %v457 = vunpack.c.h.b16 %v291
    %v458 = vpack.c.b16 %v440, %v434
    %v459 = vpack.c.b16 %v441, %v435
    %v460 = vpack.c.b16 %v442, %v436
    %v461 = vpack.c.b16 %v443, %v437
    %v462 = vpack.c.b16 %v444, %v438
    %v463 = vpack.c.b16 %v445, %v439
    %v464 = vpack.c.b16 %v452, %v446
    %v465 = vpack.c.b16 %v453, %v447
    %v466 = vpack.c.b16 %v454, %v448
    %v467 = vpack.c.b16 %v455, %v449
    %v468 = vpack.c.b16 %v456, %v450
    %v469 = vpack.c.b16 %v457, %v451
    %vm482 = vcmask 261120
    %v484 = vsel %vm482, %v276, 0
    %v487 = vsel %vm482, %v277, 0
    %v490 = vsel %vm482, %v278, 0
    %v493 = vsel %vm482, %v279, 0
    %495 = vmatprep.subr.bf16.mxu0 %v459
    %496 = vmatpush1.bf16.msra.mxu0 %v458
    %497 = vmatprep.subr.bf16.mxu0 %v465
    %498 = vmatpush1.bf16.msra.mxu0 %v464
    %499 = vmatprep.subr.bf16.mxu0 0
    %500 = vmatpush1.bf16.msra.mxu0 0
    %501 = vmatprep.subr.bf16.mxu0 0
    %502 = vmatpush1.bf16.msra.mxu0 0
    %503 = vmatprep.subr.bf16.mxu0 0
    %504 = vmatpush1.bf16.msra.mxu0 0
    %505 = vmatprep.subr.bf16.mxu0 0
    %506 = vmatpush1.bf16.msra.mxu0 0
    %507 = vmatprep.subr.bf16.mxu0 0
    %508 = vmatpush1.bf16.msra.mxu0 0
    %509 = vmatprep.subr.bf16.mxu0 0
    %510 = vmatpush1.bf16.msra.mxu0 0
    %511 = vmatprep.subr.bf16.mxu0 0
    %512 = vmatpush1.bf16.msra.mxu0 0
    %513 = vmatprep.subr.bf16.mxu0 0
    %514 = vmatpush1.bf16.msra.mxu0 0
    %515 = vmatprep.subr.bf16.mxu0 0
    %516 = vmatpush1.bf16.msra.mxu0 0
    %517 = vmatprep.subr.bf16.mxu0 0
    %518 = vmatpush1.bf16.msra.mxu0 0
    %519 = vmatprep.subr.bf16.mxu0 0
    %520 = vmatpush1.bf16.msra.mxu0 0
    %521 = vmatprep.subr.bf16.mxu0 0
    %522 = vmatpush1.bf16.msra.mxu0 0
    %523 = vmatprep.subr.bf16.mxu0 0
    %524 = vmatpush1.bf16.msra.mxu0 0
    %525 = vmatprep.subr.bf16.mxu0 0
    %526 = vmatpush1.bf16.msra.mxu0 0
    %527 = vmatprep.mubr.bf16.mxu0 0
    %528 = vmatmul.mubr.bf16.gmra.mrb[0].mxu0 %v484
    %v529 = vpop.f32.mrb[0].mxu0
    %v530 = vadd.f32 %v395, %v529
    %v531 = vpop.f32.mrb[0].mxu0
    %v532 = vadd.f32 %v399, %v531
    %v533 = vpop.f32.mrb[0].mxu0
    %v534 = vadd.f32 %v395, %v533
    %v535 = vpop.f32.mrb[0].mxu0
    %v536 = vadd.f32 %v399, %v535
    %537 = vmatprep.mubr.bf16.mxu0 0
    %538 = vmatmul.mubr.bf16.gmra.mrb[0].mxu0 %v487
    %v539 = vpop.f32.mrb[0].mxu0
    %v540 = vadd.f32 %v395, %v539
    %v541 = vpop.f32.mrb[0].mxu0
    %v542 = vadd.f32 %v399, %v541
    %v543 = vpop.f32.mrb[0].mxu0
    %v544 = vadd.f32 %v395, %v543
    %v545 = vpop.f32.mrb[0].mxu0
    %v546 = vadd.f32 %v399, %v545
    %547 = vmatprep.mubr.bf16.mxu0 0
    %548 = vmatmul.mubr.bf16.gmra.mrb[0].mxu0 %v490
    %v549 = vpop.f32.mrb[0].mxu0
    %v550 = vadd.f32 %v395, %v549
    %v551 = vpop.f32.mrb[0].mxu0
    %v552 = vadd.f32 %v399, %v551
    %v553 = vpop.f32.mrb[0].mxu0
    %v554 = vadd.f32 %v395, %v553
    %v555 = vpop.f32.mrb[0].mxu0
    %v556 = vadd.f32 %v399, %v555
    %557 = vmatprep.mubr.bf16.mxu0 0
    %558 = vmatmul.mubr.bf16.gmra.mrb[0].mxu0 %v493
    %v559 = vpop.f32.mrb[0].mxu0
    %v560 = vadd.f32 %v395, %v559
    %v561 = vpop.f32.mrb[0].mxu0
    %v562 = vadd.f32 %v399, %v561
    %v563 = vpop.f32.mrb[0].mxu0
    %v564 = vadd.f32 %v395, %v563
    %v565 = vpop.f32.mrb[0].mxu0
    %v566 = vadd.f32 %v399, %v565
    %567 = vdwg.mxu0
    %568 = vmatprep.subr.bf16.mxu0 %v461
    %569 = vmatpush1.bf16.msra.mxu0 %v460
    %570 = vmatprep.subr.bf16.mxu0 %v467
    %571 = vmatpush1.bf16.msra.mxu0 %v466
    %572 = vmatprep.subr.bf16.mxu0 0
    %573 = vmatpush1.bf16.msra.mxu0 0
    %574 = vmatprep.subr.bf16.mxu0 0
    %575 = vmatpush1.bf16.msra.mxu0 0
    %576 = vmatprep.subr.bf16.mxu0 0
    %577 = vmatpush1.bf16.msra.mxu0 0
    %578 = vmatprep.subr.bf16.mxu0 0
    %579 = vmatpush1.bf16.msra.mxu0 0
    %580 = vmatprep.subr.bf16.mxu0 0
    %581 = vmatpush1.bf16.msra.mxu0 0
    %582 = vmatprep.subr.bf16.mxu0 0
    %583 = vmatpush1.bf16.msra.mxu0 0
    %584 = vmatprep.subr.bf16.mxu0 0
    %585 = vmatpush1.bf16.msra.mxu0 0
    %586 = vmatprep.subr.bf16.mxu0 0
    %587 = vmatpush1.bf16.msra.mxu0 0
    %588 = vmatprep.subr.bf16.mxu0 0
    %589 = vmatpush1.bf16.msra.mxu0 0
    %590 = vmatprep.subr.bf16.mxu0 0
    %591 = vmatpush1.bf16.msra.mxu0 0
    %592 = vmatprep.subr.bf16.mxu0 0
    %593 = vmatpush1.bf16.msra.mxu0 0
    %594 = vmatprep.subr.bf16.mxu0 0
    %595 = vmatpush1.bf16.msra.mxu0 0
    %596 = vmatprep.subr.bf16.mxu0 0
    %597 = vmatpush1.bf16.msra.mxu0 0
    %598 = vmatprep.subr.bf16.mxu0 0
    %599 = vmatpush1.bf16.msra.mxu0 0
    %600 = vmatprep.mubr.bf16.mxu0 0
    %601 = vmatmul.mubr.bf16.gmra.mrb[0].mxu0 %v484
    %v602 = vpop.f32.mrb[0].mxu0
    %v603 = vadd.f32 %v403, %v602
    %v604 = vpop.f32.mrb[0].mxu0
    %v605 = vadd.f32 %v407, %v604
    %v606 = vpop.f32.mrb[0].mxu0
    %v607 = vadd.f32 %v403, %v606
    %v608 = vpop.f32.mrb[0].mxu0
    %v609 = vadd.f32 %v407, %v608
    %610 = vmatprep.mubr.bf16.mxu0 0
    %611 = vmatmul.mubr.bf16.gmra.mrb[0].mxu0 %v487
    %v612 = vpop.f32.mrb[0].mxu0
    %v613 = vadd.f32 %v403, %v612
    %v614 = vpop.f32.mrb[0].mxu0
    %v615 = vadd.f32 %v407, %v614
    %v616 = vpop.f32.mrb[0].mxu0
    %v617 = vadd.f32 %v403, %v616
    %v618 = vpop.f32.mrb[0].mxu0
    %v619 = vadd.f32 %v407, %v618
    %620 = vmatprep.mubr.bf16.mxu0 0
    %621 = vmatmul.mubr.bf16.gmra.mrb[0].mxu0 %v490
    %v622 = vpop.f32.mrb[0].mxu0
    %v623 = vadd.f32 %v403, %v622
    %v624 = vpop.f32.mrb[0].mxu0
    %v625 = vadd.f32 %v407, %v624
    %v626 = vpop.f32.mrb[0].mxu0
    %v627 = vadd.f32 %v403, %v626
    %v628 = vpop.f32.mrb[0].mxu0
    %v629 = vadd.f32 %v407, %v628
    %630 = vmatprep.mubr.bf16.mxu0 0
    %631 = vmatmul.mubr.bf16.gmra.mrb[0].mxu0 %v493
    %v632 = vpop.f32.mrb[0].mxu0
    %v633 = vadd.f32 %v403, %v632
    %v634 = vpop.f32.mrb[0].mxu0
    %v635 = vadd.f32 %v407, %v634
    %v636 = vpop.f32.mrb[0].mxu0
    %v637 = vadd.f32 %v403, %v636
    %v638 = vpop.f32.mrb[0].mxu0
    %v639 = vadd.f32 %v407, %v638
    %640 = vdwg.mxu0
    %641 = vmatprep.subr.bf16.mxu0 %v463
    %642 = vmatpush1.bf16.msra.mxu0 %v462
    %643 = vmatprep.subr.bf16.mxu0 %v469
    %644 = vmatpush1.bf16.msra.mxu0 %v468
    %645 = vmatprep.subr.bf16.mxu0 0
    %646 = vmatpush1.bf16.msra.mxu0 0
    %647 = vmatprep.subr.bf16.mxu0 0
    %648 = vmatpush1.bf16.msra.mxu0 0
    %649 = vmatprep.subr.bf16.mxu0 0
    %650 = vmatpush1.bf16.msra.mxu0 0
    %651 = vmatprep.subr.bf16.mxu0 0
    %652 = vmatpush1.bf16.msra.mxu0 0
    %653 = vmatprep.subr.bf16.mxu0 0
    %654 = vmatpush1.bf16.msra.mxu0 0
    %655 = vmatprep.subr.bf16.mxu0 0
    %656 = vmatpush1.bf16.msra.mxu0 0
    %657 = vmatprep.subr.bf16.mxu0 0
    %658 = vmatpush1.bf16.msra.mxu0 0
    %659 = vmatprep.subr.bf16.mxu0 0
    %660 = vmatpush1.bf16.msra.mxu0 0
    %661 = vmatprep.subr.bf16.mxu0 0
    %662 = vmatpush1.bf16.msra.mxu0 0
    %663 = vmatprep.subr.bf16.mxu0 0
    %664 = vmatpush1.bf16.msra.mxu0 0
    %665 = vmatprep.subr.bf16.mxu0 0
    %666 = vmatpush1.bf16.msra.mxu0 0
    %667 = vmatprep.subr.bf16.mxu0 0
    %668 = vmatpush1.bf16.msra.mxu0 0
    %669 = vmatprep.subr.bf16.mxu0 0
    %670 = vmatpush1.bf16.msra.mxu0 0
    %671 = vmatprep.subr.bf16.mxu0 0
    %672 = vmatpush1.bf16.msra.mxu0 0
    %673 = vmatprep.mubr.bf16.mxu0 0
    %674 = vmatmul.mubr.bf16.gmra.mrb[0].mxu0 %v484
    %v675 = vpop.f32.mrb[0].mxu0
    %v676 = vadd.f32 %v411, %v675
    %v677 = vpop.f32.mrb[0].mxu0
    %v678 = vadd.f32 %v415, %v677
    %v679 = vpop.f32.mrb[0].mxu0
    %v680 = vadd.f32 %v411, %v679
    %v681 = vpop.f32.mrb[0].mxu0
    %v682 = vadd.f32 %v415, %v681
    %683 = vmatprep.mubr.bf16.mxu0 0
    %684 = vmatmul.mubr.bf16.gmra.mrb[0].mxu0 %v487
    %v685 = vpop.f32.mrb[0].mxu0
    %v686 = vadd.f32 %v411, %v685
    %v687 = vpop.f32.mrb[0].mxu0
    %v688 = vadd.f32 %v415, %v687
    %v689 = vpop.f32.mrb[0].mxu0
    %v690 = vadd.f32 %v411, %v689
    %v691 = vpop.f32.mrb[0].mxu0
    %v692 = vadd.f32 %v415, %v691
    %693 = vmatprep.mubr.bf16.mxu0 0
    %694 = vmatmul.mubr.bf16.gmra.mrb[0].mxu0 %v490
    %v695 = vpop.f32.mrb[0].mxu0
    %v696 = vadd.f32 %v411, %v695
    %v697 = vpop.f32.mrb[0].mxu0
    %v698 = vadd.f32 %v415, %v697
    %v699 = vpop.f32.mrb[0].mxu0
    %v700 = vadd.f32 %v411, %v699
    %v701 = vpop.f32.mrb[0].mxu0
    %v702 = vadd.f32 %v415, %v701
    %703 = vmatprep.mubr.bf16.mxu0 0
    %704 = vmatmul.mubr.bf16.gmra.mrb[0].mxu0 %v493
    %v705 = vpop.f32.mrb[0].mxu0
    %v706 = vadd.f32 %v411, %v705
    %v707 = vpop.f32.mrb[0].mxu0
    %v708 = vadd.f32 %v415, %v707
    %v709 = vpop.f32.mrb[0].mxu0
    %v710 = vadd.f32 %v411, %v709
    %v711 = vpop.f32.mrb[0].mxu0
    %v712 = vadd.f32 %v415, %v711
    %713 = vdwg.mxu0
    %714 = vst [vmem:[#allocation2] sm:$0xff] %v530
    %715 = vst [vmem:[#allocation2 + $0x8] sm:$0xff] %v532
    %716 = vst [vmem:[#allocation2 + $0x10] sm:$0xff] %v603
    %717 = vst [vmem:[#allocation2 + $0x18] sm:$0xff] %v605
    %718 = vst [vmem:[#allocation2 + $0x20] sm:$0xff] %v676
    %719 = vst [vmem:[#allocation2 + $0x28] sm:$0xff] %v678
    %720 = vst [vmem:[#allocation2 + $0x30] sm:$0xff] %v534
    %721 = vst [vmem:[#allocation2 + $0x38] sm:$0xff] %v536
    %722 = vst [vmem:[#allocation2 + $0x40] sm:$0xff] %v607
    %723 = vst [vmem:[#allocation2 + $0x48] sm:$0xff] %v609
    %724 = vst [vmem:[#allocation2 + $0x50] sm:$0xff] %v680
    %725 = vst [vmem:[#allocation2 + $0x58] sm:$0xff] %v682
    %726 = vst [vmem:[#allocation2 + $0x60] sm:$0xff] %v540
    %727 = vst [vmem:[#allocation2 + $0x68] sm:$0xff] %v542
    %728 = vst [vmem:[#allocation2 + $0x70] sm:$0xff] %v613
    %729 = vst [vmem:[#allocation2 + $0x78] sm:$0xff] %v615
    %730 = vst [vmem:[#allocation2 + $0x80] sm:$0xff] %v686
    %731 = vst [vmem:[#allocation2 + $0x88] sm:$0xff] %v688
    %732 = vst [vmem:[#allocation2 + $0x90] sm:$0xff] %v544
    %733 = vst [vmem:[#allocation2 + $0x98] sm:$0xff] %v546
    %734 = vst [vmem:[#allocation2 + $0xa0] sm:$0xff] %v617
    %735 = vst [vmem:[#allocation2 + $0xa8] sm:$0xff] %v619
    %736 = vst [vmem:[#allocation2 + $0xb0] sm:$0xff] %v690
    %737 = vst [vmem:[#allocation2 + $0xb8] sm:$0xff] %v692
    %738 = vst [vmem:[#allocation2 + $0xc0] sm:$0xff] %v550
    %739 = vst [vmem:[#allocation2 + $0xc8] sm:$0xff] %v552
    %740 = vst [vmem:[#allocation2 + $0xd0] sm:$0xff] %v623
    %741 = vst [vmem:[#allocation2 + $0xd8] sm:$0xff] %v625
    %742 = vst [vmem:[#allocation2 + $0xe0] sm:$0xff] %v696
    %743 = vst [vmem:[#allocation2 + $0xe8] sm:$0xff] %v698
    %744 = vst [vmem:[#allocation2 + $0xf0] sm:$0xff] %v554
    %745 = vst [vmem:[#allocation2 + $0xf8] sm:$0xff] %v556
    %746 = vst [vmem:[#allocation2 + $0x100] sm:$0xff] %v627
    %747 = vst [vmem:[#allocation2 + $0x108] sm:$0xff] %v629
    %748 = vst [vmem:[#allocation2 + $0x110] sm:$0xff] %v700
    %749 = vst [vmem:[#allocation2 + $0x118] sm:$0xff] %v702
    %750 = vst [vmem:[#allocation2 + $0x120] sm:$0xff] %v560
    %751 = vst [vmem:[#allocation2 + $0x128] sm:$0xff] %v562
    %752 = vst [vmem:[#allocation2 + $0x130] sm:$0xff] %v633
    %753 = vst [vmem:[#allocation2 + $0x138] sm:$0xff] %v635
    %754 = vst [vmem:[#allocation2 + $0x140] sm:$0xff] %v706
    %755 = vst [vmem:[#allocation2 + $0x148] sm:$0xff] %v708
    %756 = vst [vmem:[#allocation2 + $0x150] sm:$0xff] %v564
    %757 = vst [vmem:[#allocation2 + $0x158] sm:$0xff] %v566
    %758 = vst [vmem:[#allocation2 + $0x160] sm:$0xff] %v637
    %759 = vst [vmem:[#allocation2 + $0x168] sm:$0xff] %v639
    %760 = vst [vmem:[#allocation2 + $0x170] sm:$0xff] %v710
    %761 = vst [vmem:[#allocation2 + $0x178] sm:$0xff] %v712
    %v762 = vpack.c.bf16 0.0, 0.0
    %v764 = vlaneseq
    %v765 = vshrl.u32 %v764, 7
    %v766 = vsub.s32 0, %v765
    %v767 = vrot.slane %v390, %v766
    %v768 = vlaneseq
    %v769 = vshrl.u32 %v768, 7
    %v770 = vsub.s32 1, %v769
    %v771 = vrot.slane %v390, %v770
    %v772 = vlaneseq
    %v773 = vshrl.u32 %v772, 7
    %v774 = vsub.s32 2, %v773
    %v775 = vrot.slane %v390, %v774
    %v776 = vlaneseq
    %v777 = vshrl.u32 %v776, 7
    %v778 = vsub.s32 3, %v777
    %v779 = vrot.slane %v390, %v778
    %v780 = vlaneseq
    %v781 = vshrl.u32 %v780, 7
    %v782 = vsub.s32 4, %v781
    %v783 = vrot.slane %v390, %v782
    %v784 = vlaneseq
    %v785 = vshrl.u32 %v784, 7
    %v786 = vsub.s32 5, %v785
    %v787 = vrot.slane %v390, %v786
    %v890 = vunpack.c.l.b16 %v292
    %v891 = vunpack.c.h.b16 %v292
    %v892 = vunpack.c.l.b16 %v293
    %v893 = vunpack.c.h.b16 %v293
    %v894 = vunpack.c.l.b16 %v294
    %v895 = vunpack.c.h.b16 %v294
    %v896 = vunpack.c.l.b16 %v295
    %v897 = vunpack.c.h.b16 %v295
    %v898 = vunpack.c.l.b16 %v296
    %v899 = vunpack.c.h.b16 %v296
    %v900 = vunpack.c.l.b16 %v297
    %v901 = vunpack.c.h.b16 %v297
    %v902 = vunpack.c.l.b16 %v298
    %v903 = vunpack.c.h.b16 %v298
    %v904 = vunpack.c.l.b16 %v299
    %v905 = vunpack.c.h.b16 %v299
    %v906 = vunpack.c.l.b16 %v300
    %v907 = vunpack.c.h.b16 %v300
    %v908 = vunpack.c.l.b16 %v301
    %v909 = vunpack.c.h.b16 %v301
    %v910 = vunpack.c.l.b16 %v302
    %v911 = vunpack.c.h.b16 %v302
    %v912 = vunpack.c.l.b16 %v303
    %v913 = vunpack.c.h.b16 %v303
    %v914 = vunpack.c.l.b16 %v304
    %v915 = vunpack.c.h.b16 %v304
    %v916 = vunpack.c.l.b16 %v305
    %v917 = vunpack.c.h.b16 %v305
    %v918 = vunpack.c.l.b16 %v306
    %v919 = vunpack.c.h.b16 %v306
    %v920 = vunpack.c.l.b16 %v307
    %v921 = vunpack.c.h.b16 %v307
    %v922 = vunpack.c.l.b16 %v308
    %v923 = vunpack.c.h.b16 %v308
    %v924 = vunpack.c.l.b16 %v309
    %v925 = vunpack.c.h.b16 %v309
    %v926 = vunpack.c.l.b16 %v310
    %v927 = vunpack.c.h.b16 %v310
    %v928 = vunpack.c.l.b16 %v311
    %v929 = vunpack.c.h.b16 %v311
    %v930 = vunpack.c.l.b16 %v312
    %v931 = vunpack.c.h.b16 %v312
    %v932 = vunpack.c.l.b16 %v313
    %v933 = vunpack.c.h.b16 %v313
    %v934 = vunpack.c.l.b16 %v314
    %v935 = vunpack.c.h.b16 %v314
    %v936 = vunpack.c.l.b16 %v315
    %v937 = vunpack.c.h.b16 %v315
    %v938 = vunpack.c.l.b16 %v316
    %v939 = vunpack.c.h.b16 %v316
    %v940 = vunpack.c.l.b16 %v317
    %v941 = vunpack.c.h.b16 %v317
    %v942 = vunpack.c.l.b16 %v318
    %v943 = vunpack.c.h.b16 %v318
    %v944 = vunpack.c.l.b16 %v319
    %v945 = vunpack.c.h.b16 %v319
    %v946 = vunpack.c.l.b16 %v320
    %v947 = vunpack.c.h.b16 %v320
    %v948 = vunpack.c.l.b16 %v321
    %v949 = vunpack.c.h.b16 %v321
    %v950 = vunpack.c.l.b16 %v322
    %v951 = vunpack.c.h.b16 %v322
    %v952 = vunpack.c.l.b16 %v323
    %v953 = vunpack.c.h.b16 %v323
    %v954 = vunpack.c.l.b16 %v324
    %v955 = vunpack.c.h.b16 %v324
    %v956 = vunpack.c.l.b16 %v325
    %v957 = vunpack.c.h.b16 %v325
    %v958 = vunpack.c.l.b16 %v326
    %v959 = vunpack.c.h.b16 %v326
    %v960 = vunpack.c.l.b16 %v327
    %v961 = vunpack.c.h.b16 %v327
    %v962 = vunpack.c.l.b16 %v328
    %v963 = vunpack.c.h.b16 %v328
    %v964 = vunpack.c.l.b16 %v329
    %v965 = vunpack.c.h.b16 %v329
    %v966 = vunpack.c.l.b16 %v330
    %v967 = vunpack.c.h.b16 %v330
    %v968 = vunpack.c.l.b16 %v331
    %v969 = vunpack.c.h.b16 %v331
    %v970 = vunpack.c.l.b16 %v332
    %v971 = vunpack.c.h.b16 %v332
    %v972 = vunpack.c.l.b16 %v333
    %v973 = vunpack.c.h.b16 %v333
    %v974 = vunpack.c.l.b16 %v334
    %v975 = vunpack.c.h.b16 %v334
    %v976 = vunpack.c.l.b16 %v335
    %v977 = vunpack.c.h.b16 %v335
    %v978 = vunpack.c.l.b16 %v336
    %v979 = vunpack.c.h.b16 %v336
    %v980 = vunpack.c.l.b16 %v337
    %v981 = vunpack.c.h.b16 %v337
    %v982 = vunpack.c.l.b16 %v338
    %v983 = vunpack.c.h.b16 %v338
    %v984 = vunpack.c.l.b16 %v339
    %v985 = vunpack.c.h.b16 %v339
    %v986 = vunpack.c.l.b16 %v340
    %v987 = vunpack.c.h.b16 %v340
    %v988 = vunpack.c.l.b16 %v341
    %v989 = vunpack.c.h.b16 %v341
    %v990 = vunpack.c.l.b16 %v342
    %v991 = vunpack.c.h.b16 %v342
    %v992 = vunpack.c.l.b16 %v343
    %v993 = vunpack.c.h.b16 %v343
    %v994 = vunpack.c.l.b16 %v344
    %v995 = vunpack.c.h.b16 %v344
    %v996 = vunpack.c.l.b16 %v345
    %v997 = vunpack.c.h.b16 %v345
    %v998 = vunpack.c.l.b16 %v346
    %v999 = vunpack.c.h.b16 %v346
    %v1000 = vunpack.c.l.b16 %v347
    %v1001 = vunpack.c.h.b16 %v347
    %v1002 = vunpack.c.l.b16 %v348
    %v1003 = vunpack.c.h.b16 %v348
    %v1004 = vunpack.c.l.b16 %v349
    %v1005 = vunpack.c.h.b16 %v349
    %v1006 = vunpack.c.l.b16 %v350
    %v1007 = vunpack.c.h.b16 %v350
    %v1008 = vunpack.c.l.b16 %v351
    %v1009 = vunpack.c.h.b16 %v351
    %v1010 = vunpack.c.l.b16 %v352
    %v1011 = vunpack.c.h.b16 %v352
    %v1012 = vunpack.c.l.b16 %v353
    %v1013 = vunpack.c.h.b16 %v353
    %v1014 = vunpack.c.l.b16 %v354
    %v1015 = vunpack.c.h.b16 %v354
    %v1016 = vunpack.c.l.b16 %v355
    %v1017 = vunpack.c.h.b16 %v355
    %v1018 = vunpack.c.l.b16 %v356
    %v1019 = vunpack.c.h.b16 %v356
    %v1020 = vunpack.c.l.b16 %v357
    %v1021 = vunpack.c.h.b16 %v357
    %v1022 = vunpack.c.l.b16 %v358
    %v1023 = vunpack.c.h.b16 %v358
    %v1024 = vunpack.c.l.b16 %v359
    %v1025 = vunpack.c.h.b16 %v359
    %v1026 = vunpack.c.l.b16 %v360
    %v1027 = vunpack.c.h.b16 %v360
    %v1028 = vunpack.c.l.b16 %v361
    %v1029 = vunpack.c.h.b16 %v361
    %v1030 = vunpack.c.l.b16 %v362
    %v1031 = vunpack.c.h.b16 %v362
    %v1032 = vunpack.c.l.b16 %v363
    %v1033 = vunpack.c.h.b16 %v363
    %v1034 = vunpack.c.l.b16 %v364
    %v1035 = vunpack.c.h.b16 %v364
    %v1036 = vunpack.c.l.b16 %v365
    %v1037 = vunpack.c.h.b16 %v365
    %v1038 = vunpack.c.l.b16 %v366
    %v1039 = vunpack.c.h.b16 %v366
    %v1040 = vunpack.c.l.b16 %v367
    %v1041 = vunpack.c.h.b16 %v367
    %v1042 = vunpack.c.l.b16 %v368
    %v1043 = vunpack.c.h.b16 %v368
    %v1044 = vunpack.c.l.b16 %v369
    %v1045 = vunpack.c.h.b16 %v369
    %v1046 = vunpack.c.l.b16 %v370
    %v1047 = vunpack.c.h.b16 %v370
    %v1048 = vunpack.c.l.b16 %v371
    %v1049 = vunpack.c.h.b16 %v371
    %v1050 = vunpack.c.l.b16 %v372
    %v1051 = vunpack.c.h.b16 %v372
    %v1052 = vunpack.c.l.b16 %v373
    %v1053 = vunpack.c.h.b16 %v373
    %v1054 = vunpack.c.l.b16 %v374
    %v1055 = vunpack.c.h.b16 %v374
    %v1056 = vunpack.c.l.b16 %v375
    %v1057 = vunpack.c.h.b16 %v375
    %v1058 = vunpack.c.l.b16 %v376
    %v1059 = vunpack.c.h.b16 %v376
    %v1060 = vunpack.c.l.b16 %v377
    %v1061 = vunpack.c.h.b16 %v377
    %v1062 = vunpack.c.l.b16 %v378
    %v1063 = vunpack.c.h.b16 %v378
    %v1064 = vunpack.c.l.b16 %v379
    %v1065 = vunpack.c.h.b16 %v379
    %v1066 = vunpack.c.l.b16 %v380
    %v1067 = vunpack.c.h.b16 %v380
    %v1068 = vunpack.c.l.b16 %v381
    %v1069 = vunpack.c.h.b16 %v381
    %v1070 = vunpack.c.l.b16 %v382
    %v1071 = vunpack.c.h.b16 %v382
    %v1072 = vunpack.c.l.b16 %v383
    %v1073 = vunpack.c.h.b16 %v383
    %v1074 = vunpack.c.l.b16 %v384
    %v1075 = vunpack.c.h.b16 %v384
    %v1076 = vunpack.c.l.b16 %v385
    %v1077 = vunpack.c.h.b16 %v385
    %v1078 = vunpack.c.l.b16 %v386
    %v1079 = vunpack.c.h.b16 %v386
    %v1080 = vunpack.c.l.b16 %v387
    %v1081 = vunpack.c.h.b16 %v387
    %v1082 = vpack.c.b16 %v896, %v890
    %v1083 = vpack.c.b16 %v897, %v891
    %v1084 = vpack.c.b16 %v898, %v892
    %v1085 = vpack.c.b16 %v899, %v893
    %v1086 = vpack.c.b16 %v900, %v894
    %v1087 = vpack.c.b16 %v901, %v895
    %v1088 = vpack.c.b16 %v908, %v902
    %v1089 = vpack.c.b16 %v909, %v903
    %v1090 = vpack.c.b16 %v910, %v904
    %v1091 = vpack.c.b16 %v911, %v905
    %v1092 = vpack.c.b16 %v912, %v906
    %v1093 = vpack.c.b16 %v913, %v907
    %v1094 = vpack.c.b16 %v920, %v914
    %v1095 = vpack.c.b16 %v921, %v915
    %v1096 = vpack.c.b16 %v922, %v916
    %v1097 = vpack.c.b16 %v923, %v917
    %v1098 = vpack.c.b16 %v924, %v918
    %v1099 = vpack.c.b16 %v925, %v919
    %v1100 = vpack.c.b16 %v932, %v926
    %v1101 = vpack.c.b16 %v933, %v927
    %v1102 = vpack.c.b16 %v934, %v928
    %v1103 = vpack.c.b16 %v935, %v929
    %v1104 = vpack.c.b16 %v936, %v930
    %v1105 = vpack.c.b16 %v937, %v931
    %v1106 = vpack.c.b16 %v944, %v938
    %v1107 = vpack.c.b16 %v945, %v939
    %v1108 = vpack.c.b16 %v946, %v940
    %v1109 = vpack.c.b16 %v947, %v941
    %v1110 = vpack.c.b16 %v948, %v942
    %v1111 = vpack.c.b16 %v949, %v943
    %v1112 = vpack.c.b16 %v956, %v950
    %v1113 = vpack.c.b16 %v957, %v951
    %v1114 = vpack.c.b16 %v958, %v952
    %v1115 = vpack.c.b16 %v959, %v953
    %v1116 = vpack.c.b16 %v960, %v954
    %v1117 = vpack.c.b16 %v961, %v955
    %v1118 = vpack.c.b16 %v968, %v962
    %v1119 = vpack.c.b16 %v969, %v963
    %v1120 = vpack.c.b16 %v970, %v964
    %v1121 = vpack.c.b16 %v971, %v965
    %v1122 = vpack.c.b16 %v972, %v966
    %v1123 = vpack.c.b16 %v973, %v967
    %v1124 = vpack.c.b16 %v980, %v974
    %v1125 = vpack.c.b16 %v981, %v975
    %v1126 = vpack.c.b16 %v982, %v976
    %v1127 = vpack.c.b16 %v983, %v977
    %v1128 = vpack.c.b16 %v984, %v978
    %v1129 = vpack.c.b16 %v985, %v979
    %v1130 = vpack.c.b16 %v992, %v986
    %v1131 = vpack.c.b16 %v993, %v987
    %v1132 = vpack.c.b16 %v994, %v988
    %v1133 = vpack.c.b16 %v995, %v989
    %v1134 = vpack.c.b16 %v996, %v990
    %v1135 = vpack.c.b16 %v997, %v991
    %v1136 = vpack.c.b16 %v1004, %v998
    %v1137 = vpack.c.b16 %v1005, %v999
    %v1138 = vpack.c.b16 %v1006, %v1000
    %v1139 = vpack.c.b16 %v1007, %v1001
    %v1140 = vpack.c.b16 %v1008, %v1002
    %v1141 = vpack.c.b16 %v1009, %v1003
    %v1142 = vpack.c.b16 %v1016, %v1010
    %v1143 = vpack.c.b16 %v1017, %v1011
    %v1144 = vpack.c.b16 %v1018, %v1012
    %v1145 = vpack.c.b16 %v1019, %v1013
    %v1146 = vpack.c.b16 %v1020, %v1014
    %v1147 = vpack.c.b16 %v1021, %v1015
    %v1148 = vpack.c.b16 %v1028, %v1022
    %v1149 = vpack.c.b16 %v1029, %v1023
    %v1150 = vpack.c.b16 %v1030, %v1024
    %v1151 = vpack.c.b16 %v1031, %v1025
    %v1152 = vpack.c.b16 %v1032, %v1026
    %v1153 = vpack.c.b16 %v1033, %v1027
    %v1154 = vpack.c.b16 %v1040, %v1034
    %v1155 = vpack.c.b16 %v1041, %v1035
    %v1156 = vpack.c.b16 %v1042, %v1036
    %v1157 = vpack.c.b16 %v1043, %v1037
    %v1158 = vpack.c.b16 %v1044, %v1038
    %v1159 = vpack.c.b16 %v1045, %v1039
    %v1160 = vpack.c.b16 %v1052, %v1046
    %v1161 = vpack.c.b16 %v1053, %v1047
    %v1162 = vpack.c.b16 %v1054, %v1048
    %v1163 = vpack.c.b16 %v1055, %v1049
    %v1164 = vpack.c.b16 %v1056, %v1050
    %v1165 = vpack.c.b16 %v1057, %v1051
    %v1166 = vpack.c.b16 %v1064, %v1058
    %v1167 = vpack.c.b16 %v1065, %v1059
    %v1168 = vpack.c.b16 %v1066, %v1060
    %v1169 = vpack.c.b16 %v1067, %v1061
    %v1170 = vpack.c.b16 %v1068, %v1062
    %v1171 = vpack.c.b16 %v1069, %v1063
    %v1172 = vpack.c.b16 %v1076, %v1070
    %v1173 = vpack.c.b16 %v1077, %v1071
    %v1174 = vpack.c.b16 %v1078, %v1072
    %v1175 = vpack.c.b16 %v1079, %v1073
    %v1176 = vpack.c.b16 %v1080, %v1074
    %v1177 = vpack.c.b16 %v1081, %v1075
    %1274 = vmatprep.subr.bf16.mxu0 %v1083
    %1275 = vmatpush1.bf16.msra.mxu0 %v1082
    %1276 = vmatprep.subr.bf16.mxu0 %v1089
    %1277 = vmatpush1.bf16.msra.mxu0 %v1088
    %1278 = vmatprep.subr.bf16.mxu0 %v1095
    %1279 = vmatpush1.bf16.msra.mxu0 %v1094
    %1280 = vmatprep.subr.bf16.mxu0 %v1101
    %1281 = vmatpush1.bf16.msra.mxu0 %v1100
    %1282 = vmatprep.subr.bf16.mxu0 %v1107
    %1283 = vmatpush1.bf16.msra.mxu0 %v1106
    %1284 = vmatprep.subr.bf16.mxu0 %v1113
    %1285 = vmatpush1.bf16.msra.mxu0 %v1112
    %1286 = vmatprep.subr.bf16.mxu0 %v1119
    %1287 = vmatpush1.bf16.msra.mxu0 %v1118
    %1288 = vmatprep.subr.bf16.mxu0 %v1125
    %1289 = vmatpush1.bf16.msra.mxu0 %v1124
    %1290 = vmatprep.subr.bf16.mxu0 %v1131
    %1291 = vmatpush1.bf16.msra.mxu0 %v1130
    %1292 = vmatprep.subr.bf16.mxu0 %v1137
    %1293 = vmatpush1.bf16.msra.mxu0 %v1136
    %1294 = vmatprep.subr.bf16.mxu0 %v1143
    %1295 = vmatpush1.bf16.msra.mxu0 %v1142
    %1296 = vmatprep.subr.bf16.mxu0 %v1149
    %1297 = vmatpush1.bf16.msra.mxu0 %v1148
    %1298 = vmatprep.subr.bf16.mxu0 %v1155
    %1299 = vmatpush1.bf16.msra.mxu0 %v1154
    %1300 = vmatprep.subr.bf16.mxu0 %v1161
    %1301 = vmatpush1.bf16.msra.mxu0 %v1160
    %1302 = vmatprep.subr.bf16.mxu0 %v1167
    %1303 = vmatpush1.bf16.msra.mxu0 %v1166
    %1304 = vmatprep.subr.bf16.mxu0 %v1173
    %1305 = vmatpush1.bf16.msra.mxu0 %v1172
    %1306 = vmatprep.mubr.bf16.mxu0 %v762
    %1307 = vmatmul.mubr.bf16.gmra.mrb[0].mxu0 %v762
    %v1308 = vpop.f32.mrb[0].mxu0
    %v1309 = vadd.f32 %v767, %v1308
    %v1310 = vpop.f32.mrb[0].mxu0
    %v1311 = vadd.f32 %v771, %v1310
    %v1312 = vpop.f32.mrb[0].mxu0
    %v1313 = vpop.f32.mrb[0].mxu0
    %1314 = vdwg.mxu0
    %1315 = vmatprep.subr.bf16.mxu0 %v1085
    %1316 = vmatpush1.bf16.msra.mxu0 %v1084
    %1317 = vmatprep.subr.bf16.mxu0 %v1091
    %1318 = vmatpush1.bf16.msra.mxu0 %v1090
    %1319 = vmatprep.subr.bf16.mxu0 %v1097
    %1320 = vmatpush1.bf16.msra.mxu0 %v1096
    %1321 = vmatprep.subr.bf16.mxu0 %v1103
    %1322 = vmatpush1.bf16.msra.mxu0 %v1102
    %1323 = vmatprep.subr.bf16.mxu0 %v1109
    %1324 = vmatpush1.bf16.msra.mxu0 %v1108
    %1325 = vmatprep.subr.bf16.mxu0 %v1115
    %1326 = vmatpush1.bf16.msra.mxu0 %v1114
    %1327 = vmatprep.subr.bf16.mxu0 %v1121
    %1328 = vmatpush1.bf16.msra.mxu0 %v1120
    %1329 = vmatprep.subr.bf16.mxu0 %v1127
    %1330 = vmatpush1.bf16.msra.mxu0 %v1126
    %1331 = vmatprep.subr.bf16.mxu0 %v1133
    %1332 = vmatpush1.bf16.msra.mxu0 %v1132
    %1333 = vmatprep.subr.bf16.mxu0 %v1139
    %1334 = vmatpush1.bf16.msra.mxu0 %v1138
    %1335 = vmatprep.subr.bf16.mxu0 %v1145
    %1336 = vmatpush1.bf16.msra.mxu0 %v1144
    %1337 = vmatprep.subr.bf16.mxu0 %v1151
    %1338 = vmatpush1.bf16.msra.mxu0 %v1150
    %1339 = vmatprep.subr.bf16.mxu0 %v1157
    %1340 = vmatpush1.bf16.msra.mxu0 %v1156
    %1341 = vmatprep.subr.bf16.mxu0 %v1163
    %1342 = vmatpush1.bf16.msra.mxu0 %v1162
    %1343 = vmatprep.subr.bf16.mxu0 %v1169
    %1344 = vmatpush1.bf16.msra.mxu0 %v1168
    %1345 = vmatprep.subr.bf16.mxu0 %v1175
    %1346 = vmatpush1.bf16.msra.mxu0 %v1174
    %1347 = vmatprep.mubr.bf16.mxu0 %v762
    %1348 = vmatmul.mubr.bf16.gmra.mrb[0].mxu0 %v762
    %v1349 = vpop.f32.mrb[0].mxu0
    %v1350 = vadd.f32 %v775, %v1349
    %v1351 = vpop.f32.mrb[0].mxu0
    %v1352 = vadd.f32 %v779, %v1351
    %v1353 = vpop.f32.mrb[0].mxu0
    %v1354 = vpop.f32.mrb[0].mxu0
    %1355 = vdwg.mxu0
    %1356 = vmatprep.subr.bf16.mxu0 %v1087
    %1357 = vmatpush1.bf16.msra.mxu0 %v1086
    %1358 = vmatprep.subr.bf16.mxu0 %v1093
    %1359 = vmatpush1.bf16.msra.mxu0 %v1092
    %1360 = vmatprep.subr.bf16.mxu0 %v1099
    %1361 = vmatpush1.bf16.msra.mxu0 %v1098
    %1362 = vmatprep.subr.bf16.mxu0 %v1105
    %1363 = vmatpush1.bf16.msra.mxu0 %v1104
    %1364 = vmatprep.subr.bf16.mxu0 %v1111
    %1365 = vmatpush1.bf16.msra.mxu0 %v1110
    %1366 = vmatprep.subr.bf16.mxu0 %v1117
    %1367 = vmatpush1.bf16.msra.mxu0 %v1116
    %1368 = vmatprep.subr.bf16.mxu0 %v1123
    %1369 = vmatpush1.bf16.msra.mxu0 %v1122
    %1370 = vmatprep.subr.bf16.mxu0 %v1129
    %1371 = vmatpush1.bf16.msra.mxu0 %v1128
    %1372 = vmatprep.subr.bf16.mxu0 %v1135
    %1373 = vmatpush1.bf16.msra.mxu0 %v1134
    %1374 = vmatprep.subr.bf16.mxu0 %v1141
    %1375 = vmatpush1.bf16.msra.mxu0 %v1140
    %1376 = vmatprep.subr.bf16.mxu0 %v1147
    %1377 = vmatpush1.bf16.msra.mxu0 %v1146
    %1378 = vmatprep.subr.bf16.mxu0 %v1153
    %1379 = vmatpush1.bf16.msra.mxu0 %v1152
    %1380 = vmatprep.subr.bf16.mxu0 %v1159
    %1381 = vmatpush1.bf16.msra.mxu0 %v1158
    %1382 = vmatprep.subr.bf16.mxu0 %v1165
    %1383 = vmatpush1.bf16.msra.mxu0 %v1164
    %1384 = vmatprep.subr.bf16.mxu0 %v1171
    %1385 = vmatpush1.bf16.msra.mxu0 %v1170
    %1386 = vmatprep.subr.bf16.mxu0 %v1177
    %1387 = vmatpush1.bf16.msra.mxu0 %v1176
    %1388 = vmatprep.mubr.bf16.mxu0 %v762
    %1389 = vmatmul.mubr.bf16.gmra.mrb[0].mxu0 %v762
    %v1390 = vpop.f32.mrb[0].mxu0
    %v1391 = vadd.f32 %v783, %v1390
    %v1392 = vpop.f32.mrb[0].mxu0
    %v1393 = vadd.f32 %v787, %v1392
    %v1394 = vpop.f32.mrb[0].mxu0
    %v1395 = vpop.f32.mrb[0].mxu0
    %1396 = vdwg.mxu0
    %v1397 = vld [vmem:[#allocation2] sm:$0xff]
    %v1398 = vld [vmem:[#allocation2 + $0x8] sm:$0xff]
    %v1399 = vld [vmem:[#allocation2 + $0x10] sm:$0xff]
    %v1400 = vld [vmem:[#allocation2 + $0x168] sm:$0xff]
    %v1401 = vld [vmem:[#allocation2 + $0x170] sm:$0xff]
    %v1402 = vld [vmem:[#allocation2 + $0x178] sm:$0xff]
    %v1403 = vadd.f32 %v1397, %v1309
    %v1404 = vadd.f32 %v1398, %v1311
    %v1405 = vxor.u32 %v1403, 2147483648
    %v1406 = vxor.u32 %v1404, 2147483648
    %v1407 = vmul.f32 %v1405, 1.442695
    %v1408 = vpow.pop %v1407
    %v1409 = vmul.f32 %v1406, 1.442695
    %v1410 = vpow.pop %v1409
    %v1411 = vadd.f32 %v1408, 1.0
    %v1412 = vadd.f32 %v1410, 1.0
    %v1413 = vrcp.pop %v1411
    %v1414 = vmul.f32 1.0, %v1413
    %v1415 = vrcp.pop %v1412
    %v1416 = vmul.f32 1.0, %v1415
    %v1417 = vmul.f32 %v1414, %v1350
    %v1418 = vadd.f32 %v1399, %v1417
    %v1419 = vtanh.pop %v1418
    %v1420 = vsub.f32 1.0, %v1416
    %v1421 = vmul.f32 %v1420, %v1419
    %v1422 = vmul.f32 %v1416, 0.0
    %v1423 = vadd.f32 %v1421, %v1422
    %v1424 = vadd.f32 %v1400, %v1352
    %v1425 = vadd.f32 %v1401, %v1391
    %v1426 = vxor.u32 %v1424, 2147483648
    %v1427 = vxor.u32 %v1425, 2147483648
    %v1428 = vmul.f32 %v1426, 1.442695
    %v1429 = vpow.pop %v1428
    %v1430 = vmul.f32 %v1427, 1.442695
    %v1431 = vpow.pop %v1430
    %v1432 = vadd.f32 %v1429, 1.0
    %v1433 = vadd.f32 %v1431, 1.0
    %v1434 = vrcp.pop %v1432
    %v1435 = vmul.f32 1.0, %v1434
    %v1436 = vrcp.pop %v1433
    %v1437 = vmul.f32 1.0, %v1436
    %v1438 = vmul.f32 %v1435, %v1393
    %v1439 = vadd.f32 %v1402, %v1438
    %v1440 = vtanh.pop %v1439
    %v1441 = vsub.f32 1.0, %v1437
    %v1442 = vmul.f32 %v1441, %v1440
    %v1443 = vmul.f32 %v1437, 0.0
    %v1444 = vadd.f32 %v1442, %v1443
    %1445 = vst [vmem:[#allocation3] sm:$0xff] %v1423
    %1446 = vst [vmem:[#allocation3 + $0x78] sm:$0xff] %v1444
    %v1447 = vpack.c.bf16 %v1423, %v1423
    %v1448 = vpack.c.bf16 %v1444, %v1444
    %1449 = vmatprep.subr.bf16.mxu0 %v1083
    %1450 = vmatpush1.bf16.msra.mxu0 %v1082
    %1451 = vmatprep.subr.bf16.mxu0 %v1089
    %1452 = vmatpush1.bf16.msra.mxu0 %v1088
    %1453 = vmatprep.subr.bf16.mxu0 %v1095
    %1454 = vmatpush1.bf16.msra.mxu0 %v1094
    %1455 = vmatprep.subr.bf16.mxu0 %v1101
    %1456 = vmatpush1.bf16.msra.mxu0 %v1100
    %1457 = vmatprep.subr.bf16.mxu0 %v1107
    %1458 = vmatpush1.bf16.msra.mxu0 %v1106
    %1459 = vmatprep.subr.bf16.mxu0 %v1113
    %1460 = vmatpush1.bf16.msra.mxu0 %v1112
    %1461 = vmatprep.subr.bf16.mxu0 %v1119
    %1462 = vmatpush1.bf16.msra.mxu0 %v1118
    %1463 = vmatprep.subr.bf16.mxu0 %v1125
    %1464 = vmatpush1.bf16.msra.mxu0 %v1124
    %1465 = vmatprep.subr.bf16.mxu0 %v1131
    %1466 = vmatpush1.bf16.msra.mxu0 %v1130
    %1467 = vmatprep.subr.bf16.mxu0 %v1137
    %1468 = vmatpush1.bf16.msra.mxu0 %v1136
    %1469 = vmatprep.subr.bf16.mxu0 %v1143
    %1470 = vmatpush1.bf16.msra.mxu0 %v1142
    %1471 = vmatprep.subr.bf16.mxu0 %v1149
    %1472 = vmatpush1.bf16.msra.mxu0 %v1148
    %1473 = vmatprep.subr.bf16.mxu0 %v1155
    %1474 = vmatpush1.bf16.msra.mxu0 %v1154
    %1475 = vmatprep.subr.bf16.mxu0 %v1161
    %1476 = vmatpush1.bf16.msra.mxu0 %v1160
    %1477 = vmatprep.subr.bf16.mxu0 %v1167
    %1478 = vmatpush1.bf16.msra.mxu0 %v1166
    %1479 = vmatprep.subr.bf16.mxu0 %v1173
    %1480 = vmatpush1.bf16.msra.mxu0 %v1172
    %1481 = vmatprep.mubr.bf16.mxu0 %v1448
    %1482 = vmatmul.mubr.bf16.gmra.mrb[0].mxu0 %v1447
    %v1483 = vpop.f32.mrb[0].mxu0
    %v1484 = vadd.f32 %v767, %v1483
    %v1485 = vpop.f32.mrb[0].mxu0
    %v1486 = vadd.f32 %v771, %v1485
    %v1487 = vpop.f32.mrb[0].mxu0
    %v1488 = vpop.f32.mrb[0].mxu0
    %1489 = vdwg.mxu0
    %1490 = vmatprep.subr.bf16.mxu0 %v1085
    %1491 = vmatpush1.bf16.msra.mxu0 %v1084
    %1492 = vmatprep.subr.bf16.mxu0 %v1091
    %1493 = vmatpush1.bf16.msra.mxu0 %v1090
    %1494 = vmatprep.subr.bf16.mxu0 %v1097
    %1495 = vmatpush1.bf16.msra.mxu0 %v1096
    %1496 = vmatprep.subr.bf16.mxu0 %v1103
    %1497 = vmatpush1.bf16.msra.mxu0 %v1102
    %1498 = vmatprep.subr.bf16.mxu0 %v1109
    %1499 = vmatpush1.bf16.msra.mxu0 %v1108
    %1500 = vmatprep.subr.bf16.mxu0 %v1115
    %1501 = vmatpush1.bf16.msra.mxu0 %v1114
    %1502 = vmatprep.subr.bf16.mxu0 %v1121
    %1503 = vmatpush1.bf16.msra.mxu0 %v1120
    %1504 = vmatprep.subr.bf16.mxu0 %v1127
    %1505 = vmatpush1.bf16.msra.mxu0 %v1126
    %1506 = vmatprep.subr.bf16.mxu0 %v1133
    %1507 = vmatpush1.bf16.msra.mxu0 %v1132
    %1508 = vmatprep.subr.bf16.mxu0 %v1139
    %1509 = vmatpush1.bf16.msra.mxu0 %v1138
    %1510 = vmatprep.subr.bf16.mxu0 %v1145
    %1511 = vmatpush1.bf16.msra.mxu0 %v1144
    %1512 = vmatprep.subr.bf16.mxu0 %v1151
    %1513 = vmatpush1.bf16.msra.mxu0 %v1150
    %1514 = vmatprep.subr.bf16.mxu0 %v1157
    %1515 = vmatpush1.bf16.msra.mxu0 %v1156
    %1516 = vmatprep.subr.bf16.mxu0 %v1163
    %1517 = vmatpush1.bf16.msra.mxu0 %v1162
    %1518 = vmatprep.subr.bf16.mxu0 %v1169
    %1519 = vmatpush1.bf16.msra.mxu0 %v1168
    %1520 = vmatprep.subr.bf16.mxu0 %v1175
    %1521 = vmatpush1.bf16.msra.mxu0 %v1174
    %1522 = vmatprep.mubr.bf16.mxu0 %v1448
    %1523 = vmatmul.mubr.bf16.gmra.mrb[0].mxu0 %v1447
    %v1524 = vpop.f32.mrb[0].mxu0
    %v1525 = vadd.f32 %v775, %v1524
    %v1526 = vpop.f32.mrb[0].mxu0
    %v1527 = vadd.f32 %v779, %v1526
    %v1528 = vpop.f32.mrb[0].mxu0
    %v1529 = vpop.f32.mrb[0].mxu0
    %1530 = vdwg.mxu0
    %1531 = vmatprep.subr.bf16.mxu0 %v1087
    %1532 = vmatpush1.bf16.msra.mxu0 %v1086
    %1533 = vmatprep.subr.bf16.mxu0 %v1093
    %1534 = vmatpush1.bf16.msra.mxu0 %v1092
    %1535 = vmatprep.subr.bf16.mxu0 %v1099
    %1536 = vmatpush1.bf16.msra.mxu0 %v1098
    %1537 = vmatprep.subr.bf16.mxu0 %v1105
    %1538 = vmatpush1.bf16.msra.mxu0 %v1104
    %1539 = vmatprep.subr.bf16.mxu0 %v1111
    %1540 = vmatpush1.bf16.msra.mxu0 %v1110
    %1541 = vmatprep.subr.bf16.mxu0 %v1117
    %1542 = vmatpush1.bf16.msra.mxu0 %v1116
    %1543 = vmatprep.subr.bf16.mxu0 %v1123
    %1544 = vmatpush1.bf16.msra.mxu0 %v1122
    %1545 = vmatprep.subr.bf16.mxu0 %v1129
    %1546 = vmatpush1.bf16.msra.mxu0 %v1128
    %1547 = vmatprep.subr.bf16.mxu0 %v1135
    %1548 = vmatpush1.bf16.msra.mxu0 %v1134
    %1549 = vmatprep.subr.bf16.mxu0 %v1141
    %1550 = vmatpush1.bf16.msra.mxu0 %v1140
    %1551 = vmatprep.subr.bf16.mxu0 %v1147
    %1552 = vmatpush1.bf16.msra.mxu0 %v1146
    %1553 = vmatprep.subr.bf16.mxu0 %v1153
    %1554 = vmatpush1.bf16.msra.mxu0 %v1152
    %1555 = vmatprep.subr.bf16.mxu0 %v1159
    %1556 = vmatpush1.bf16.msra.mxu0 %v1158
    %1557 = vmatprep.subr.bf16.mxu0 %v1165
    %1558 = vmatpush1.bf16.msra.mxu0 %v1164
    %1559 = vmatprep.subr.bf16.mxu0 %v1171
    %1560 = vmatpush1.bf16.msra.mxu0 %v1170
    %1561 = vmatprep.subr.bf16.mxu0 %v1177
    %1562 = vmatpush1.bf16.msra.mxu0 %v1176
    %1563 = vmatprep.mubr.bf16.mxu0 %v1448
    %1564 = vmatmul.mubr.bf16.gmra.mrb[0].mxu0 %v1447
    %v1565 = vpop.f32.mrb[0].mxu0
    %v1566 = vadd.f32 %v783, %v1565
    %v1567 = vpop.f32.mrb[0].mxu0
    %v1568 = vadd.f32 %v787, %v1567
    %v1569 = vpop.f32.mrb[0].mxu0
    %v1570 = vpop.f32.mrb[0].mxu0
    %1571 = vdwg.mxu0
    %v1572 = vld [vmem:[#allocation2 + $0x30] sm:$0xff]
    %v1573 = vld [vmem:[#allocation2 + $0x38] sm:$0xff]
    %v1574 = vld [vmem:[#allocation2 + $0x40] sm:$0xff]
    %v1575 = vld [vmem:[#allocation2 + $0x138] sm:$0xff]
    %v1576 = vld [vmem:[#allocation2 + $0x140] sm:$0xff]
    %v1577 = vld [vmem:[#allocation2 + $0x148] sm:$0xff]
    %v1578 = vadd.f32 %v1572, %v1484
    %v1579 = vadd.f32 %v1573, %v1486
    %v1580 = vxor.u32 %v1578, 2147483648
    %v1581 = vxor.u32 %v1579, 2147483648
    %v1582 = vmul.f32 %v1580, 1.442695
    %v1583 = vpow.pop %v1582
    %v1584 = vmul.f32 %v1581, 1.442695
    %v1585 = vpow.pop %v1584
    %v1586 = vadd.f32 %v1583, 1.0
    %v1587 = vadd.f32 %v1585, 1.0
    %v1588 = vrcp.pop %v1586
    %v1589 = vmul.f32 1.0, %v1588
    %v1590 = vrcp.pop %v1587
    %v1591 = vmul.f32 1.0, %v1590
    %v1592 = vmul.f32 %v1589, %v1525
    %v1593 = vadd.f32 %v1574, %v1592
    %v1594 = vtanh.pop %v1593
    %v1595 = vsub.f32 1.0, %v1591
    %v1596 = vmul.f32 %v1595, %v1594
    %v1597 = vmul.f32 %v1591, %v1423
    %v1598 = vadd.f32 %v1596, %v1597
    %v1599 = vadd.f32 %v1575, %v1527
    %v1600 = vadd.f32 %v1576, %v1566
    %v1601 = vxor.u32 %v1599, 2147483648
    %v1602 = vxor.u32 %v1600, 2147483648
    %v1603 = vmul.f32 %v1601, 1.442695
    %v1604 = vpow.pop %v1603
    %v1605 = vmul.f32 %v1602, 1.442695
    %v1606 = vpow.pop %v1605
    %v1607 = vadd.f32 %v1604, 1.0
    %v1608 = vadd.f32 %v1606, 1.0
    %v1609 = vrcp.pop %v1607
    %v1610 = vmul.f32 1.0, %v1609
    %v1611 = vrcp.pop %v1608
    %v1612 = vmul.f32 1.0, %v1611
    %v1613 = vmul.f32 %v1610, %v1568
    %v1614 = vadd.f32 %v1577, %v1613
    %v1615 = vtanh.pop %v1614
    %v1616 = vsub.f32 1.0, %v1612
    %v1617 = vmul.f32 %v1616, %v1615
    %v1618 = vmul.f32 %v1612, %v1444
    %v1619 = vadd.f32 %v1617, %v1618
    %1620 = vst [vmem:[#allocation3 + $0x10] sm:$0xff] %v1598
    %1621 = vst [vmem:[#allocation3 + $0x68] sm:$0xff] %v1619
    %v1622 = vpack.c.bf16 %v1598, %v1598
    %v1623 = vpack.c.bf16 %v1619, %v1619
    %1624 = vmatprep.subr.bf16.mxu0 %v1083
    %1625 = vmatpush1.bf16.msra.mxu0 %v1082
    %1626 = vmatprep.subr.bf16.mxu0 %v1089
    %1627 = vmatpush1.bf16.msra.mxu0 %v1088
    %1628 = vmatprep.subr.bf16.mxu0 %v1095
    %1629 = vmatpush1.bf16.msra.mxu0 %v1094
    %1630 = vmatprep.subr.bf16.mxu0 %v1101
    %1631 = vmatpush1.bf16.msra.mxu0 %v1100
    %1632 = vmatprep.subr.bf16.mxu0 %v1107
    %1633 = vmatpush1.bf16.msra.mxu0 %v1106
    %1634 = vmatprep.subr.bf16.mxu0 %v1113
    %1635 = vmatpush1.bf16.msra.mxu0 %v1112
    %1636 = vmatprep.subr.bf16.mxu0 %v1119
    %1637 = vmatpush1.bf16.msra.mxu0 %v1118
    %1638 = vmatprep.subr.bf16.mxu0 %v1125
    %1639 = vmatpush1.bf16.msra.mxu0 %v1124
    %1640 = vmatprep.subr.bf16.mxu0 %v1131
    %1641 = vmatpush1.bf16.msra.mxu0 %v1130
    %1642 = vmatprep.subr.bf16.mxu0 %v1137
    %1643 = vmatpush1.bf16.msra.mxu0 %v1136
    %1644 = vmatprep.subr.bf16.mxu0 %v1143
    %1645 = vmatpush1.bf16.msra.mxu0 %v1142
    %1646 = vmatprep.subr.bf16.mxu0 %v1149
    %1647 = vmatpush1.bf16.msra.mxu0 %v1148
    %1648 = vmatprep.subr.bf16.mxu0 %v1155
    %1649 = vmatpush1.bf16.msra.mxu0 %v1154
    %1650 = vmatprep.subr.bf16.mxu0 %v1161
    %1651 = vmatpush1.bf16.msra.mxu0 %v1160
    %1652 = vmatprep.subr.bf16.mxu0 %v1167
    %1653 = vmatpush1.bf16.msra.mxu0 %v1166
    %1654 = vmatprep.subr.bf16.mxu0 %v1173
    %1655 = vmatpush1.bf16.msra.mxu0 %v1172
    %1656 = vmatprep.mubr.bf16.mxu0 %v1623
    %1657 = vmatmul.mubr.bf16.gmra.mrb[0].mxu0 %v1622
    %v1658 = vpop.f32.mrb[0].mxu0
    %v1659 = vadd.f32 %v767, %v1658
    %v1660 = vpop.f32.mrb[0].mxu0
    %v1661 = vadd.f32 %v771, %v1660
    %v1662 = vpop.f32.mrb[0].mxu0
    %v1663 = vpop.f32.mrb[0].mxu0
    %1664 = vdwg.mxu0
    %1665 = vmatprep.subr.bf16.mxu0 %v1085
    %1666 = vmatpush1.bf16.msra.mxu0 %v1084
    %1667 = vmatprep.subr.bf16.mxu0 %v1091
    %1668 = vmatpush1.bf16.msra.mxu0 %v1090
    %1669 = vmatprep.subr.bf16.mxu0 %v1097
    %1670 = vmatpush1.bf16.msra.mxu0 %v1096
    %1671 = vmatprep.subr.bf16.mxu0 %v1103
    %1672 = vmatpush1.bf16.msra.mxu0 %v1102
    %1673 = vmatprep.subr.bf16.mxu0 %v1109
    %1674 = vmatpush1.bf16.msra.mxu0 %v1108
    %1675 = vmatprep.subr.bf16.mxu0 %v1115
    %1676 = vmatpush1.bf16.msra.mxu0 %v1114
    %1677 = vmatprep.subr.bf16.mxu0 %v1121
    %1678 = vmatpush1.bf16.msra.mxu0 %v1120
    %1679 = vmatprep.subr.bf16.mxu0 %v1127
    %1680 = vmatpush1.bf16.msra.mxu0 %v1126
    %1681 = vmatprep.subr.bf16.mxu0 %v1133
    %1682 = vmatpush1.bf16.msra.mxu0 %v1132
    %1683 = vmatprep.subr.bf16.mxu0 %v1139
    %1684 = vmatpush1.bf16.msra.mxu0 %v1138
    %1685 = vmatprep.subr.bf16.mxu0 %v1145
    %1686 = vmatpush1.bf16.msra.mxu0 %v1144
    %1687 = vmatprep.subr.bf16.mxu0 %v1151
    %1688 = vmatpush1.bf16.msra.mxu0 %v1150
    %1689 = vmatprep.subr.bf16.mxu0 %v1157
    %1690 = vmatpush1.bf16.msra.mxu0 %v1156
    %1691 = vmatprep.subr.bf16.mxu0 %v1163
    %1692 = vmatpush1.bf16.msra.mxu0 %v1162
    %1693 = vmatprep.subr.bf16.mxu0 %v1169
    %1694 = vmatpush1.bf16.msra.mxu0 %v1168
    %1695 = vmatprep.subr.bf16.mxu0 %v1175
    %1696 = vmatpush1.bf16.msra.mxu0 %v1174
    %1697 = vmatprep.mubr.bf16.mxu0 %v1623
    %1698 = vmatmul.mubr.bf16.gmra.mrb[0].mxu0 %v1622
    %v1699 = vpop.f32.mrb[0].mxu0
    %v1700 = vadd.f32 %v775, %v1699
    %v1701 = vpop.f32.mrb[0].mxu0
    %v1702 = vadd.f32 %v779, %v1701
    %v1703 = vpop.f32.mrb[0].mxu0
    %v1704 = vpop.f32.mrb[0].mxu0
    %1705 = vdwg.mxu0
    %1706 = vmatprep.subr.bf16.mxu0 %v1087
    %1707 = vmatpush1.bf16.msra.mxu0 %v1086
    %1708 = vmatprep.subr.bf16.mxu0 %v1093
    %1709 = vmatpush1.bf16.msra.mxu0 %v1092
    %1710 = vmatprep.subr.bf16.mxu0 %v1099
    %1711 = vmatpush1.bf16.msra.mxu0 %v1098
    %1712 = vmatprep.subr.bf16.mxu0 %v1105
    %1713 = vmatpush1.bf16.msra.mxu0 %v1104
    %1714 = vmatprep.subr.bf16.mxu0 %v1111
    %1715 = vmatpush1.bf16.msra.mxu0 %v1110
    %1716 = vmatprep.subr.bf16.mxu0 %v1117
    %1717 = vmatpush1.bf16.msra.mxu0 %v1116
    %1718 = vmatprep.subr.bf16.mxu0 %v1123
    %1719 = vmatpush1.bf16.msra.mxu0 %v1122
    %1720 = vmatprep.subr.bf16.mxu0 %v1129
    %1721 = vmatpush1.bf16.msra.mxu0 %v1128
    %1722 = vmatprep.subr.bf16.mxu0 %v1135
    %1723 = vmatpush1.bf16.msra.mxu0 %v1134
    %1724 = vmatprep.subr.bf16.mxu0 %v1141
    %1725 = vmatpush1.bf16.msra.mxu0 %v1140
    %1726 = vmatprep.subr.bf16.mxu0 %v1147
    %1727 = vmatpush1.bf16.msra.mxu0 %v1146
    %1728 = vmatprep.subr.bf16.mxu0 %v1153
    %1729 = vmatpush1.bf16.msra.mxu0 %v1152
    %1730 = vmatprep.subr.bf16.mxu0 %v1159
    %1731 = vmatpush1.bf16.msra.mxu0 %v1158
    %1732 = vmatprep.subr.bf16.mxu0 %v1165
    %1733 = vmatpush1.bf16.msra.mxu0 %v1164
    %1734 = vmatprep.subr.bf16.mxu0 %v1171
    %1735 = vmatpush1.bf16.msra.mxu0 %v1170
    %1736 = vmatprep.subr.bf16.mxu0 %v1177
    %1737 = vmatpush1.bf16.msra.mxu0 %v1176
    %1738 = vmatprep.mubr.bf16.mxu0 %v1623
    %1739 = vmatmul.mubr.bf16.gmra.mrb[0].mxu0 %v1622
    %v1740 = vpop.f32.mrb[0].mxu0
    %v1741 = vadd.f32 %v783, %v1740
    %v1742 = vpop.f32.mrb[0].mxu0
    %v1743 = vadd.f32 %v787, %v1742
    %v1744 = vpop.f32.mrb[0].mxu0
    %v1745 = vpop.f32.mrb[0].mxu0
    %1746 = vdwg.mxu0
    %v1747 = vld [vmem:[#allocation2 + $0x60] sm:$0xff]
    %v1748 = vld [vmem:[#allocation2 + $0x68] sm:$0xff]
    %v1749 = vld [vmem:[#allocation2 + $0x70] sm:$0xff]
    %v1750 = vld [vmem:[#allocation2 + $0x108] sm:$0xff]
    %v1751 = vld [vmem:[#allocation2 + $0x110] sm:$0xff]
    %v1752 = vld [vmem:[#allocation2 + $0x118] sm:$0xff]
    %v1753 = vadd.f32 %v1747, %v1659
    %v1754 = vadd.f32 %v1748, %v1661
    %v1755 = vxor.u32 %v1753, 2147483648
    %v1756 = vxor.u32 %v1754, 2147483648
    %v1757 = vmul.f32 %v1755, 1.442695
    %v1758 = vpow.pop %v1757
    %v1759 = vmul.f32 %v1756, 1.442695
    %v1760 = vpow.pop %v1759
    %v1761 = vadd.f32 %v1758, 1.0
    %v1762 = vadd.f32 %v1760, 1.0
    %v1763 = vrcp.pop %v1761
    %v1764 = vmul.f32 1.0, %v1763
    %v1765 = vrcp.pop %v1762
    %v1766 = vmul.f32 1.0, %v1765
    %v1767 = vmul.f32 %v1764, %v1700
    %v1768 = vadd.f32 %v1749, %v1767
    %v1769 = vtanh.pop %v1768
    %v1770 = vsub.f32 1.0, %v1766
    %v1771 = vmul.f32 %v1770, %v1769
    %v1772 = vmul.f32 %v1766, %v1598
    %v1773 = vadd.f32 %v1771, %v1772
    %v1774 = vadd.f32 %v1750, %v1702
    %v1775 = vadd.f32 %v1751, %v1741
    %v1776 = vxor.u32 %v1774, 2147483648
    %v1777 = vxor.u32 %v1775, 2147483648
    %v1778 = vmul.f32 %v1776, 1.442695
    %v1779 = vpow.pop %v1778
    %v1780 = vmul.f32 %v1777, 1.442695
    %v1781 = vpow.pop %v1780
    %v1782 = vadd.f32 %v1779, 1.0
    %v1783 = vadd.f32 %v1781, 1.0
    %v1784 = vrcp.pop %v1782
    %v1785 = vmul.f32 1.0, %v1784
    %v1786 = vrcp.pop %v1783
    %v1787 = vmul.f32 1.0, %v1786
    %v1788 = vmul.f32 %v1785, %v1743
    %v1789 = vadd.f32 %v1752, %v1788
    %v1790 = vtanh.pop %v1789
    %v1791 = vsub.f32 1.0, %v1787
    %v1792 = vmul.f32 %v1791, %v1790
    %v1793 = vmul.f32 %v1787, %v1619
    %v1794 = vadd.f32 %v1792, %v1793
    %1795 = vst [vmem:[#allocation3 + $0x20] sm:$0xff] %v1773
    %1796 = vst [vmem:[#allocation3 + $0x58] sm:$0xff] %v1794
    %v1797 = vpack.c.bf16 %v1773, %v1773
    %v1798 = vpack.c.bf16 %v1794, %v1794
    %1799 = vmatprep.subr.bf16.mxu0 %v1083
    %1800 = vmatpush1.bf16.msra.mxu0 %v1082
    %1801 = vmatprep.subr.bf16.mxu0 %v1089
    %1802 = vmatpush1.bf16.msra.mxu0 %v1088
    %1803 = vmatprep.subr.bf16.mxu0 %v1095
    %1804 = vmatpush1.bf16.msra.mxu0 %v1094
    %1805 = vmatprep.subr.bf16.mxu0 %v1101
    %1806 = vmatpush1.bf16.msra.mxu0 %v1100
    %1807 = vmatprep.subr.bf16.mxu0 %v1107
    %1808 = vmatpush1.bf16.msra.mxu0 %v1106
    %1809 = vmatprep.subr.bf16.mxu0 %v1113
    %1810 = vmatpush1.bf16.msra.mxu0 %v1112
    %1811 = vmatprep.subr.bf16.mxu0 %v1119
    %1812 = vmatpush1.bf16.msra.mxu0 %v1118
    %1813 = vmatprep.subr.bf16.mxu0 %v1125
    %1814 = vmatpush1.bf16.msra.mxu0 %v1124
    %1815 = vmatprep.subr.bf16.mxu0 %v1131
    %1816 = vmatpush1.bf16.msra.mxu0 %v1130
    %1817 = vmatprep.subr.bf16.mxu0 %v1137
    %1818 = vmatpush1.bf16.msra.mxu0 %v1136
    %1819 = vmatprep.subr.bf16.mxu0 %v1143
    %1820 = vmatpush1.bf16.msra.mxu0 %v1142
    %1821 = vmatprep.subr.bf16.mxu0 %v1149
    %1822 = vmatpush1.bf16.msra.mxu0 %v1148
    %1823 = vmatprep.subr.bf16.mxu0 %v1155
    %1824 = vmatpush1.bf16.msra.mxu0 %v1154
    %1825 = vmatprep.subr.bf16.mxu0 %v1161
    %1826 = vmatpush1.bf16.msra.mxu0 %v1160
    %1827 = vmatprep.subr.bf16.mxu0 %v1167
    %1828 = vmatpush1.bf16.msra.mxu0 %v1166
    %1829 = vmatprep.subr.bf16.mxu0 %v1173
    %1830 = vmatpush1.bf16.msra.mxu0 %v1172
    %1831 = vmatprep.mubr.bf16.mxu0 %v1798
    %1832 = vmatmul.mubr.bf16.gmra.mrb[0].mxu0 %v1797
    %v1833 = vpop.f32.mrb[0].mxu0
    %v1834 = vadd.f32 %v767, %v1833
    %v1835 = vpop.f32.mrb[0].mxu0
    %v1836 = vadd.f32 %v771, %v1835
    %v1837 = vpop.f32.mrb[0].mxu0
    %v1838 = vpop.f32.mrb[0].mxu0
    %1839 = vdwg.mxu0
    %1840 = vmatprep.subr.bf16.mxu0 %v1085
    %1841 = vmatpush1.bf16.msra.mxu0 %v1084
    %1842 = vmatprep.subr.bf16.mxu0 %v1091
    %1843 = vmatpush1.bf16.msra.mxu0 %v1090
    %1844 = vmatprep.subr.bf16.mxu0 %v1097
    %1845 = vmatpush1.bf16.msra.mxu0 %v1096
    %1846 = vmatprep.subr.bf16.mxu0 %v1103
    %1847 = vmatpush1.bf16.msra.mxu0 %v1102
    %1848 = vmatprep.subr.bf16.mxu0 %v1109
    %1849 = vmatpush1.bf16.msra.mxu0 %v1108
    %1850 = vmatprep.subr.bf16.mxu0 %v1115
    %1851 = vmatpush1.bf16.msra.mxu0 %v1114
    %1852 = vmatprep.subr.bf16.mxu0 %v1121
    %1853 = vmatpush1.bf16.msra.mxu0 %v1120
    %1854 = vmatprep.subr.bf16.mxu0 %v1127
    %1855 = vmatpush1.bf16.msra.mxu0 %v1126
    %1856 = vmatprep.subr.bf16.mxu0 %v1133
    %1857 = vmatpush1.bf16.msra.mxu0 %v1132
    %1858 = vmatprep.subr.bf16.mxu0 %v1139
    %1859 = vmatpush1.bf16.msra.mxu0 %v1138
    %1860 = vmatprep.subr.bf16.mxu0 %v1145
    %1861 = vmatpush1.bf16.msra.mxu0 %v1144
    %1862 = vmatprep.subr.bf16.mxu0 %v1151
    %1863 = vmatpush1.bf16.msra.mxu0 %v1150
    %1864 = vmatprep.subr.bf16.mxu0 %v1157
    %1865 = vmatpush1.bf16.msra.mxu0 %v1156
    %1866 = vmatprep.subr.bf16.mxu0 %v1163
    %1867 = vmatpush1.bf16.msra.mxu0 %v1162
    %1868 = vmatprep.subr.bf16.mxu0 %v1169
    %1869 = vmatpush1.bf16.msra.mxu0 %v1168
    %1870 = vmatprep.subr.bf16.mxu0 %v1175
    %1871 = vmatpush1.bf16.msra.mxu0 %v1174
    %1872 = vmatprep.mubr.bf16.mxu0 %v1798
    %1873 = vmatmul.mubr.bf16.gmra.mrb[0].mxu0 %v1797
    %v1874 = vpop.f32.mrb[0].mxu0
    %v1875 = vadd.f32 %v775, %v1874
    %v1876 = vpop.f32.mrb[0].mxu0
    %v1877 = vadd.f32 %v779, %v1876
    %v1878 = vpop.f32.mrb[0].mxu0
    %v1879 = vpop.f32.mrb[0].mxu0
    %1880 = vdwg.mxu0
    %1881 = vmatprep.subr.bf16.mxu0 %v1087
    %1882 = vmatpush1.bf16.msra.mxu0 %v1086
    %1883 = vmatprep.subr.bf16.mxu0 %v1093
    %1884 = vmatpush1.bf16.msra.mxu0 %v1092
    %1885 = vmatprep.subr.bf16.mxu0 %v1099
    %1886 = vmatpush1.bf16.msra.mxu0 %v1098
    %1887 = vmatprep.subr.bf16.mxu0 %v1105
    %1888 = vmatpush1.bf16.msra.mxu0 %v1104
    %1889 = vmatprep.subr.bf16.mxu0 %v1111
    %1890 = vmatpush1.bf16.msra.mxu0 %v1110
    %1891 = vmatprep.subr.bf16.mxu0 %v1117
    %1892 = vmatpush1.bf16.msra.mxu0 %v1116
    %1893 = vmatprep.subr.bf16.mxu0 %v1123
    %1894 = vmatpush1.bf16.msra.mxu0 %v1122
    %1895 = vmatprep.subr.bf16.mxu0 %v1129
    %1896 = vmatpush1.bf16.msra.mxu0 %v1128
    %1897 = vmatprep.subr.bf16.mxu0 %v1135
    %1898 = vmatpush1.bf16.msra.mxu0 %v1134
    %1899 = vmatprep.subr.bf16.mxu0 %v1141
    %1900 = vmatpush1.bf16.msra.mxu0 %v1140
    %1901 = vmatprep.subr.bf16.mxu0 %v1147
    %1902 = vmatpush1.bf16.msra.mxu0 %v1146
    %1903 = vmatprep.subr.bf16.mxu0 %v1153
    %1904 = vmatpush1.bf16.msra.mxu0 %v1152
    %1905 = vmatprep.subr.bf16.mxu0 %v1159
    %1906 = vmatpush1.bf16.msra.mxu0 %v1158
    %1907 = vmatprep.subr.bf16.mxu0 %v1165
    %1908 = vmatpush1.bf16.msra.mxu0 %v1164
    %1909 = vmatprep.subr.bf16.mxu0 %v1171
    %1910 = vmatpush1.bf16.msra.mxu0 %v1170
    %1911 = vmatprep.subr.bf16.mxu0 %v1177
    %1912 = vmatpush1.bf16.msra.mxu0 %v1176
    %1913 = vmatprep.mubr.bf16.mxu0 %v1798
    %1914 = vmatmul.mubr.bf16.gmra.mrb[0].mxu0 %v1797
    %v1915 = vpop.f32.mrb[0].mxu0
    %v1916 = vadd.f32 %v783, %v1915
    %v1917 = vpop.f32.mrb[0].mxu0
    %v1918 = vadd.f32 %v787, %v1917
    %v1919 = vpop.f32.mrb[0].mxu0
    %v1920 = vpop.f32.mrb[0].mxu0
    %1921 = vdwg.mxu0
    %v1922 = vld [vmem:[#allocation2 + $0x90] sm:$0xff]
    %v1923 = vld [vmem:[#allocation2 + $0x98] sm:$0xff]
    %v1924 = vld [vmem:[#allocation2 + $0xa0] sm:$0xff]
    %v1925 = vld [vmem:[#allocation2 + $0xd8] sm:$0xff]
    %v1926 = vld [vmem:[#allocation2 + $0xe0] sm:$0xff]
    %v1927 = vld [vmem:[#allocation2 + $0xe8] sm:$0xff]
    %v1928 = vadd.f32 %v1922, %v1834
    %v1929 = vadd.f32 %v1923, %v1836
    %v1930 = vxor.u32 %v1928, 2147483648
    %v1931 = vxor.u32 %v1929, 2147483648
    %v1932 = vmul.f32 %v1930, 1.442695
    %v1933 = vpow.pop %v1932
    %v1934 = vmul.f32 %v1931, 1.442695
    %v1935 = vpow.pop %v1934
    %v1936 = vadd.f32 %v1933, 1.0
    %v1937 = vadd.f32 %v1935, 1.0
    %v1938 = vrcp.pop %v1936
    %v1939 = vmul.f32 1.0, %v1938
    %v1940 = vrcp.pop %v1937
    %v1941 = vmul.f32 1.0, %v1940
    %v1942 = vmul.f32 %v1939, %v1875
    %v1943 = vadd.f32 %v1924, %v1942
    %v1944 = vtanh.pop %v1943
    %v1945 = vsub.f32 1.0, %v1941
    %v1946 = vmul.f32 %v1945, %v1944
    %v1947 = vmul.f32 %v1941, %v1773
    %v1948 = vadd.f32 %v1946, %v1947
    %v1949 = vadd.f32 %v1925, %v1877
    %v1950 = vadd.f32 %v1926, %v1916
    %v1951 = vxor.u32 %v1949, 2147483648
    %v1952 = vxor.u32 %v1950, 2147483648
    %v1953 = vmul.f32 %v1951, 1.442695
    %v1954 = vpow.pop %v1953
    %v1955 = vmul.f32 %v1952, 1.442695
    %v1956 = vpow.pop %v1955
    %v1957 = vadd.f32 %v1954, 1.0
    %v1958 = vadd.f32 %v1956, 1.0
    %v1959 = vrcp.pop %v1957
    %v1960 = vmul.f32 1.0, %v1959
    %v1961 = vrcp.pop %v1958
    %v1962 = vmul.f32 1.0, %v1961
    %v1963 = vmul.f32 %v1960, %v1918
    %v1964 = vadd.f32 %v1927, %v1963
    %v1965 = vtanh.pop %v1964
    %v1966 = vsub.f32 1.0, %v1962
    %v1967 = vmul.f32 %v1966, %v1965
    %v1968 = vmul.f32 %v1962, %v1794
    %v1969 = vadd.f32 %v1967, %v1968
    %1970 = vst [vmem:[#allocation3 + $0x30] sm:$0xff] %v1948
    %1971 = vst [vmem:[#allocation3 + $0x48] sm:$0xff] %v1969
    %v1972 = vpack.c.bf16 %v1948, %v1948
    %v1973 = vpack.c.bf16 %v1969, %v1969
    %1974 = vmatprep.subr.bf16.mxu0 %v1083
    %1975 = vmatpush1.bf16.msra.mxu0 %v1082
    %1976 = vmatprep.subr.bf16.mxu0 %v1089
    %1977 = vmatpush1.bf16.msra.mxu0 %v1088
    %1978 = vmatprep.subr.bf16.mxu0 %v1095
    %1979 = vmatpush1.bf16.msra.mxu0 %v1094
    %1980 = vmatprep.subr.bf16.mxu0 %v1101
    %1981 = vmatpush1.bf16.msra.mxu0 %v1100
    %1982 = vmatprep.subr.bf16.mxu0 %v1107
    %1983 = vmatpush1.bf16.msra.mxu0 %v1106
    %1984 = vmatprep.subr.bf16.mxu0 %v1113
    %1985 = vmatpush1.bf16.msra.mxu0 %v1112
    %1986 = vmatprep.subr.bf16.mxu0 %v1119
    %1987 = vmatpush1.bf16.msra.mxu0 %v1118
    %1988 = vmatprep.subr.bf16.mxu0 %v1125
    %1989 = vmatpush1.bf16.msra.mxu0 %v1124
    %1990 = vmatprep.subr.bf16.mxu0 %v1131
    %1991 = vmatpush1.bf16.msra.mxu0 %v1130
    %1992 = vmatprep.subr.bf16.mxu0 %v1137
    %1993 = vmatpush1.bf16.msra.mxu0 %v1136
    %1994 = vmatprep.subr.bf16.mxu0 %v1143
    %1995 = vmatpush1.bf16.msra.mxu0 %v1142
    %1996 = vmatprep.subr.bf16.mxu0 %v1149
    %1997 = vmatpush1.bf16.msra.mxu0 %v1148
    %1998 = vmatprep.subr.bf16.mxu0 %v1155
    %1999 = vmatpush1.bf16.msra.mxu0 %v1154
    %2000 = vmatprep.subr.bf16.mxu0 %v1161
    %2001 = vmatpush1.bf16.msra.mxu0 %v1160
    %2002 = vmatprep.subr.bf16.mxu0 %v1167
    %2003 = vmatpush1.bf16.msra.mxu0 %v1166
    %2004 = vmatprep.subr.bf16.mxu0 %v1173
    %2005 = vmatpush1.bf16.msra.mxu0 %v1172
    %2006 = vmatprep.mubr.bf16.mxu0 %v1973
    %2007 = vmatmul.mubr.bf16.gmra.mrb[0].mxu0 %v1972
    %v2008 = vpop.f32.mrb[0].mxu0
    %v2009 = vadd.f32 %v767, %v2008
    %v2010 = vpop.f32.mrb[0].mxu0
    %v2011 = vadd.f32 %v771, %v2010
    %v2012 = vpop.f32.mrb[0].mxu0
    %v2013 = vpop.f32.mrb[0].mxu0
    %2014 = vdwg.mxu0
    %2015 = vmatprep.subr.bf16.mxu0 %v1085
    %2016 = vmatpush1.bf16.msra.mxu0 %v1084
    %2017 = vmatprep.subr.bf16.mxu0 %v1091
    %2018 = vmatpush1.bf16.msra.mxu0 %v1090
    %2019 = vmatprep.subr.bf16.mxu0 %v1097
    %2020 = vmatpush1.bf16.msra.mxu0 %v1096
    %2021 = vmatprep.subr.bf16.mxu0 %v1103
    %2022 = vmatpush1.bf16.msra.mxu0 %v1102
    %2023 = vmatprep.subr.bf16.mxu0 %v1109
    %2024 = vmatpush1.bf16.msra.mxu0 %v1108
    %2025 = vmatprep.subr.bf16.mxu0 %v1115
    %2026 = vmatpush1.bf16.msra.mxu0 %v1114
    %2027 = vmatprep.subr.bf16.mxu0 %v1121
    %2028 = vmatpush1.bf16.msra.mxu0 %v1120
    %2029 = vmatprep.subr.bf16.mxu0 %v1127
    %2030 = vmatpush1.bf16.msra.mxu0 %v1126
    %2031 = vmatprep.subr.bf16.mxu0 %v1133
    %2032 = vmatpush1.bf16.msra.mxu0 %v1132
    %2033 = vmatprep.subr.bf16.mxu0 %v1139
    %2034 = vmatpush1.bf16.msra.mxu0 %v1138
    %2035 = vmatprep.subr.bf16.mxu0 %v1145
    %2036 = vmatpush1.bf16.msra.mxu0 %v1144
    %2037 = vmatprep.subr.bf16.mxu0 %v1151
    %2038 = vmatpush1.bf16.msra.mxu0 %v1150
    %2039 = vmatprep.subr.bf16.mxu0 %v1157
    %2040 = vmatpush1.bf16.msra.mxu0 %v1156
    %2041 = vmatprep.subr.bf16.mxu0 %v1163
    %2042 = vmatpush1.bf16.msra.mxu0 %v1162
    %2043 = vmatprep.subr.bf16.mxu0 %v1169
    %2044 = vmatpush1.bf16.msra.mxu0 %v1168
    %2045 = vmatprep.subr.bf16.mxu0 %v1175
    %2046 = vmatpush1.bf16.msra.mxu0 %v1174
    %2047 = vmatprep.mubr.bf16.mxu0 %v1973
    %2048 = vmatmul.mubr.bf16.gmra.mrb[0].mxu0 %v1972
    %v2049 = vpop.f32.mrb[0].mxu0
    %v2050 = vadd.f32 %v775, %v2049
    %v2051 = vpop.f32.mrb[0].mxu0
    %v2052 = vadd.f32 %v779, %v2051
    %v2053 = vpop.f32.mrb[0].mxu0
    %v2054 = vpop.f32.mrb[0].mxu0
    %2055 = vdwg.mxu0
    %2056 = vmatprep.subr.bf16.mxu0 %v1087
    %2057 = vmatpush1.bf16.msra.mxu0 %v1086
    %2058 = vmatprep.subr.bf16.mxu0 %v1093
    %2059 = vmatpush1.bf16.msra.mxu0 %v1092
    %2060 = vmatprep.subr.bf16.mxu0 %v1099
    %2061 = vmatpush1.bf16.msra.mxu0 %v1098
    %2062 = vmatprep.subr.bf16.mxu0 %v1105
    %2063 = vmatpush1.bf16.msra.mxu0 %v1104
    %2064 = vmatprep.subr.bf16.mxu0 %v1111
    %2065 = vmatpush1.bf16.msra.mxu0 %v1110
    %2066 = vmatprep.subr.bf16.mxu0 %v1117
    %2067 = vmatpush1.bf16.msra.mxu0 %v1116
    %2068 = vmatprep.subr.bf16.mxu0 %v1123
    %2069 = vmatpush1.bf16.msra.mxu0 %v1122
    %2070 = vmatprep.subr.bf16.mxu0 %v1129
    %2071 = vmatpush1.bf16.msra.mxu0 %v1128
    %2072 = vmatprep.subr.bf16.mxu0 %v1135
    %2073 = vmatpush1.bf16.msra.mxu0 %v1134
    %2074 = vmatprep.subr.bf16.mxu0 %v1141
    %2075 = vmatpush1.bf16.msra.mxu0 %v1140
    %2076 = vmatprep.subr.bf16.mxu0 %v1147
    %2077 = vmatpush1.bf16.msra.mxu0 %v1146
    %2078 = vmatprep.subr.bf16.mxu0 %v1153
    %2079 = vmatpush1.bf16.msra.mxu0 %v1152
    %2080 = vmatprep.subr.bf16.mxu0 %v1159
    %2081 = vmatpush1.bf16.msra.mxu0 %v1158
    %2082 = vmatprep.subr.bf16.mxu0 %v1165
    %2083 = vmatpush1.bf16.msra.mxu0 %v1164
    %2084 = vmatprep.subr.bf16.mxu0 %v1171
    %2085 = vmatpush1.bf16.msra.mxu0 %v1170
    %2086 = vmatprep.subr.bf16.mxu0 %v1177
    %2087 = vmatpush1.bf16.msra.mxu0 %v1176
    %2088 = vmatprep.mubr.bf16.mxu0 %v1973
    %2089 = vmatmul.mubr.bf16.gmra.mrb[0].mxu0 %v1972
    %v2090 = vpop.f32.mrb[0].mxu0
    %v2091 = vadd.f32 %v783, %v2090
    %v2092 = vpop.f32.mrb[0].mxu0
    %v2093 = vadd.f32 %v787, %v2092
    %v2094 = vpop.f32.mrb[0].mxu0
    %v2095 = vpop.f32.mrb[0].mxu0
    %2096 = vdwg.mxu0
    %v2097 = vld [vmem:[#allocation2 + $0xc0] sm:$0xff]
    %v2098 = vld [vmem:[#allocation2 + $0xc8] sm:$0xff]
    %v2099 = vld [vmem:[#allocation2 + $0xd0] sm:$0xff]
    %v2100 = vld [vmem:[#allocation2 + $0xa8] sm:$0xff]
    %v2101 = vld [vmem:[#allocation2 + $0xb0] sm:$0xff]
    %v2102 = vld [vmem:[#allocation2 + $0xb8] sm:$0xff]
    %v2103 = vadd.f32 %v2097, %v2009
    %v2104 = vadd.f32 %v2098, %v2011
    %v2105 = vxor.u32 %v2103, 2147483648
    %v2106 = vxor.u32 %v2104, 2147483648
    %v2107 = vmul.f32 %v2105, 1.442695
    %v2108 = vpow.pop %v2107
    %v2109 = vmul.f32 %v2106, 1.442695
    %v2110 = vpow.pop %v2109
    %v2111 = vadd.f32 %v2108, 1.0
    %v2112 = vadd.f32 %v2110, 1.0
    %v2113 = vrcp.pop %v2111
    %v2114 = vmul.f32 1.0, %v2113
    %v2115 = vrcp.pop %v2112
    %v2116 = vmul.f32 1.0, %v2115
    %v2117 = vmul.f32 %v2114, %v2050
    %v2118 = vadd.f32 %v2099, %v2117
    %v2119 = vtanh.pop %v2118
    %v2120 = vsub.f32 1.0, %v2116
    %v2121 = vmul.f32 %v2120, %v2119
    %v2122 = vmul.f32 %v2116, %v1948
    %v2123 = vadd.f32 %v2121, %v2122
    %v2124 = vadd.f32 %v2100, %v2052
    %v2125 = vadd.f32 %v2101, %v2091
    %v2126 = vxor.u32 %v2124, 2147483648
    %v2127 = vxor.u32 %v2125, 2147483648
    %v2128 = vmul.f32 %v2126, 1.442695
    %v2129 = vpow.pop %v2128
    %v2130 = vmul.f32 %v2127, 1.442695
    %v2131 = vpow.pop %v2130
    %v2132 = vadd.f32 %v2129, 1.0
    %v2133 = vadd.f32 %v2131, 1.0
    %v2134 = vrcp.pop %v2132
    %v2135 = vmul.f32 1.0, %v2134
    %v2136 = vrcp.pop %v2133
    %v2137 = vmul.f32 1.0, %v2136
    %v2138 = vmul.f32 %v2135, %v2093
    %v2139 = vadd.f32 %v2102, %v2138
    %v2140 = vtanh.pop %v2139
    %v2141 = vsub.f32 1.0, %v2137
    %v2142 = vmul.f32 %v2141, %v2140
    %v2143 = vmul.f32 %v2137, %v1969
    %v2144 = vadd.f32 %v2142, %v2143
    %2145 = vst [vmem:[#allocation3 + $0x40] sm:$0xff] %v2123
    %2146 = vst [vmem:[#allocation3 + $0x38] sm:$0xff] %v2144
    %v2147 = vpack.c.bf16 %v2123, %v2123
    %v2148 = vpack.c.bf16 %v2144, %v2144
    %2149 = vmatprep.subr.bf16.mxu0 %v1083
    %2150 = vmatpush1.bf16.msra.mxu0 %v1082
    %2151 = vmatprep.subr.bf16.mxu0 %v1089
    %2152 = vmatpush1.bf16.msra.mxu0 %v1088
    %2153 = vmatprep.subr.bf16.mxu0 %v1095
    %2154 = vmatpush1.bf16.msra.mxu0 %v1094
    %2155 = vmatprep.subr.bf16.mxu0 %v1101
    %2156 = vmatpush1.bf16.msra.mxu0 %v1100
    %2157 = vmatprep.subr.bf16.mxu0 %v1107
    %2158 = vmatpush1.bf16.msra.mxu0 %v1106
    %2159 = vmatprep.subr.bf16.mxu0 %v1113
    %2160 = vmatpush1.bf16.msra.mxu0 %v1112
    %2161 = vmatprep.subr.bf16.mxu0 %v1119
    %2162 = vmatpush1.bf16.msra.mxu0 %v1118
    %2163 = vmatprep.subr.bf16.mxu0 %v1125
    %2164 = vmatpush1.bf16.msra.mxu0 %v1124
    %2165 = vmatprep.subr.bf16.mxu0 %v1131
    %2166 = vmatpush1.bf16.msra.mxu0 %v1130
    %2167 = vmatprep.subr.bf16.mxu0 %v1137
    %2168 = vmatpush1.bf16.msra.mxu0 %v1136
    %2169 = vmatprep.subr.bf16.mxu0 %v1143
    %2170 = vmatpush1.bf16.msra.mxu0 %v1142
    %2171 = vmatprep.subr.bf16.mxu0 %v1149
    %2172 = vmatpush1.bf16.msra.mxu0 %v1148
    %2173 = vmatprep.subr.bf16.mxu0 %v1155
    %2174 = vmatpush1.bf16.msra.mxu0 %v1154
    %2175 = vmatprep.subr.bf16.mxu0 %v1161
    %2176 = vmatpush1.bf16.msra.mxu0 %v1160
    %2177 = vmatprep.subr.bf16.mxu0 %v1167
    %2178 = vmatpush1.bf16.msra.mxu0 %v1166
    %2179 = vmatprep.subr.bf16.mxu0 %v1173
    %2180 = vmatpush1.bf16.msra.mxu0 %v1172
    %2181 = vmatprep.mubr.bf16.mxu0 %v2148
    %2182 = vmatmul.mubr.bf16.gmra.mrb[0].mxu0 %v2147
    %v2183 = vpop.f32.mrb[0].mxu0
    %v2184 = vadd.f32 %v767, %v2183
    %v2185 = vpop.f32.mrb[0].mxu0
    %v2186 = vadd.f32 %v771, %v2185
    %v2187 = vpop.f32.mrb[0].mxu0
    %v2188 = vpop.f32.mrb[0].mxu0
    %2189 = vdwg.mxu0
    %2190 = vmatprep.subr.bf16.mxu0 %v1085
    %2191 = vmatpush1.bf16.msra.mxu0 %v1084
    %2192 = vmatprep.subr.bf16.mxu0 %v1091
    %2193 = vmatpush1.bf16.msra.mxu0 %v1090
    %2194 = vmatprep.subr.bf16.mxu0 %v1097
    %2195 = vmatpush1.bf16.msra.mxu0 %v1096
    %2196 = vmatprep.subr.bf16.mxu0 %v1103
    %2197 = vmatpush1.bf16.msra.mxu0 %v1102
    %2198 = vmatprep.subr.bf16.mxu0 %v1109
    %2199 = vmatpush1.bf16.msra.mxu0 %v1108
    %2200 = vmatprep.subr.bf16.mxu0 %v1115
    %2201 = vmatpush1.bf16.msra.mxu0 %v1114
    %2202 = vmatprep.subr.bf16.mxu0 %v1121
    %2203 = vmatpush1.bf16.msra.mxu0 %v1120
    %2204 = vmatprep.subr.bf16.mxu0 %v1127
    %2205 = vmatpush1.bf16.msra.mxu0 %v1126
    %2206 = vmatprep.subr.bf16.mxu0 %v1133
    %2207 = vmatpush1.bf16.msra.mxu0 %v1132
    %2208 = vmatprep.subr.bf16.mxu0 %v1139
    %2209 = vmatpush1.bf16.msra.mxu0 %v1138
    %2210 = vmatprep.subr.bf16.mxu0 %v1145
    %2211 = vmatpush1.bf16.msra.mxu0 %v1144
    %2212 = vmatprep.subr.bf16.mxu0 %v1151
    %2213 = vmatpush1.bf16.msra.mxu0 %v1150
    %2214 = vmatprep.subr.bf16.mxu0 %v1157
    %2215 = vmatpush1.bf16.msra.mxu0 %v1156
    %2216 = vmatprep.subr.bf16.mxu0 %v1163
    %2217 = vmatpush1.bf16.msra.mxu0 %v1162
    %2218 = vmatprep.subr.bf16.mxu0 %v1169
    %2219 = vmatpush1.bf16.msra.mxu0 %v1168
    %2220 = vmatprep.subr.bf16.mxu0 %v1175
    %2221 = vmatpush1.bf16.msra.mxu0 %v1174
    %2222 = vmatprep.mubr.bf16.mxu0 %v2148
    %2223 = vmatmul.mubr.bf16.gmra.mrb[0].mxu0 %v2147
    %v2224 = vpop.f32.mrb[0].mxu0
    %v2225 = vadd.f32 %v775, %v2224
    %v2226 = vpop.f32.mrb[0].mxu0
    %v2227 = vadd.f32 %v779, %v2226
    %v2228 = vpop.f32.mrb[0].mxu0
    %v2229 = vpop.f32.mrb[0].mxu0
    %2230 = vdwg.mxu0
    %2231 = vmatprep.subr.bf16.mxu0 %v1087
    %2232 = vmatpush1.bf16.msra.mxu0 %v1086
    %2233 = vmatprep.subr.bf16.mxu0 %v1093
    %2234 = vmatpush1.bf16.msra.mxu0 %v1092
    %2235 = vmatprep.subr.bf16.mxu0 %v1099
    %2236 = vmatpush1.bf16.msra.mxu0 %v1098
    %2237 = vmatprep.subr.bf16.mxu0 %v1105
    %2238 = vmatpush1.bf16.msra.mxu0 %v1104
    %2239 = vmatprep.subr.bf16.mxu0 %v1111
    %2240 = vmatpush1.bf16.msra.mxu0 %v1110
    %2241 = vmatprep.subr.bf16.mxu0 %v1117
    %2242 = vmatpush1.bf16.msra.mxu0 %v1116
    %2243 = vmatprep.subr.bf16.mxu0 %v1123
    %2244 = vmatpush1.bf16.msra.mxu0 %v1122
    %2245 = vmatprep.subr.bf16.mxu0 %v1129
    %2246 = vmatpush1.bf16.msra.mxu0 %v1128
    %2247 = vmatprep.subr.bf16.mxu0 %v1135
    %2248 = vmatpush1.bf16.msra.mxu0 %v1134
    %2249 = vmatprep.subr.bf16.mxu0 %v1141
    %2250 = vmatpush1.bf16.msra.mxu0 %v1140
    %2251 = vmatprep.subr.bf16.mxu0 %v1147
    %2252 = vmatpush1.bf16.msra.mxu0 %v1146
    %2253 = vmatprep.subr.bf16.mxu0 %v1153
    %2254 = vmatpush1.bf16.msra.mxu0 %v1152
    %2255 = vmatprep.subr.bf16.mxu0 %v1159
    %2256 = vmatpush1.bf16.msra.mxu0 %v1158
    %2257 = vmatprep.subr.bf16.mxu0 %v1165
    %2258 = vmatpush1.bf16.msra.mxu0 %v1164
    %2259 = vmatprep.subr.bf16.mxu0 %v1171
    %2260 = vmatpush1.bf16.msra.mxu0 %v1170
    %2261 = vmatprep.subr.bf16.mxu0 %v1177
    %2262 = vmatpush1.bf16.msra.mxu0 %v1176
    %2263 = vmatprep.mubr.bf16.mxu0 %v2148
    %2264 = vmatmul.mubr.bf16.gmra.mrb[0].mxu0 %v2147
    %v2265 = vpop.f32.mrb[0].mxu0
    %v2266 = vadd.f32 %v783, %v2265
    %v2267 = vpop.f32.mrb[0].mxu0
    %v2268 = vadd.f32 %v787, %v2267
    %v2269 = vpop.f32.mrb[0].mxu0
    %v2270 = vpop.f32.mrb[0].mxu0
    %2271 = vdwg.mxu0
    %v2272 = vld [vmem:[#allocation2 + $0xf0] sm:$0xff]
    %v2273 = vld [vmem:[#allocation2 + $0xf8] sm:$0xff]
    %v2274 = vld [vmem:[#allocation2 + $0x100] sm:$0xff]
    %v2275 = vld [vmem:[#allocation2 + $0x78] sm:$0xff]
    %v2276 = vld [vmem:[#allocation2 + $0x80] sm:$0xff]
    %v2277 = vld [vmem:[#allocation2 + $0x88] sm:$0xff]
    %v2278 = vadd.f32 %v2272, %v2184
    %v2279 = vadd.f32 %v2273, %v2186
    %v2280 = vxor.u32 %v2278, 2147483648
    %v2281 = vxor.u32 %v2279, 2147483648
    %v2282 = vmul.f32 %v2280, 1.442695
    %v2283 = vpow.pop %v2282
    %v2284 = vmul.f32 %v2281, 1.442695
    %v2285 = vpow.pop %v2284
    %v2286 = vadd.f32 %v2283, 1.0
    %v2287 = vadd.f32 %v2285, 1.0
    %v2288 = vrcp.pop %v2286
    %v2289 = vmul.f32 1.0, %v2288
    %v2290 = vrcp.pop %v2287
    %v2291 = vmul.f32 1.0, %v2290
    %v2292 = vmul.f32 %v2289, %v2225
    %v2293 = vadd.f32 %v2274, %v2292
    %v2294 = vtanh.pop %v2293
    %v2295 = vsub.f32 1.0, %v2291
    %v2296 = vmul.f32 %v2295, %v2294
    %v2297 = vmul.f32 %v2291, %v2123
    %v2298 = vadd.f32 %v2296, %v2297
    %v2299 = vadd.f32 %v2275, %v2227
    %v2300 = vadd.f32 %v2276, %v2266
    %v2301 = vxor.u32 %v2299, 2147483648
    %v2302 = vxor.u32 %v2300, 2147483648
    %v2303 = vmul.f32 %v2301, 1.442695
    %v2304 = vpow.pop %v2303
    %v2305 = vmul.f32 %v2302, 1.442695
    %v2306 = vpow.pop %v2305
    %v2307 = vadd.f32 %v2304, 1.0
    %v2308 = vadd.f32 %v2306, 1.0
    %v2309 = vrcp.pop %v2307
    %v2310 = vmul.f32 1.0, %v2309
    %v2311 = vrcp.pop %v2308
    %v2312 = vmul.f32 1.0, %v2311
    %v2313 = vmul.f32 %v2310, %v2268
    %v2314 = vadd.f32 %v2277, %v2313
    %v2315 = vtanh.pop %v2314
    %v2316 = vsub.f32 1.0, %v2312
    %v2317 = vmul.f32 %v2316, %v2315
    %v2318 = vmul.f32 %v2312, %v2144
    %v2319 = vadd.f32 %v2317, %v2318
    %2320 = vst [vmem:[#allocation3 + $0x50] sm:$0xff] %v2298
    %2321 = vst [vmem:[#allocation3 + $0x28] sm:$0xff] %v2319
    %v2322 = vpack.c.bf16 %v2298, %v2298
    %v2323 = vpack.c.bf16 %v2319, %v2319
    %2324 = vmatprep.subr.bf16.mxu0 %v1083
    %2325 = vmatpush1.bf16.msra.mxu0 %v1082
    %2326 = vmatprep.subr.bf16.mxu0 %v1089
    %2327 = vmatpush1.bf16.msra.mxu0 %v1088
    %2328 = vmatprep.subr.bf16.mxu0 %v1095
    %2329 = vmatpush1.bf16.msra.mxu0 %v1094
    %2330 = vmatprep.subr.bf16.mxu0 %v1101
    %2331 = vmatpush1.bf16.msra.mxu0 %v1100
    %2332 = vmatprep.subr.bf16.mxu0 %v1107
    %2333 = vmatpush1.bf16.msra.mxu0 %v1106
    %2334 = vmatprep.subr.bf16.mxu0 %v1113
    %2335 = vmatpush1.bf16.msra.mxu0 %v1112
    %2336 = vmatprep.subr.bf16.mxu0 %v1119
    %2337 = vmatpush1.bf16.msra.mxu0 %v1118
    %2338 = vmatprep.subr.bf16.mxu0 %v1125
    %2339 = vmatpush1.bf16.msra.mxu0 %v1124
    %2340 = vmatprep.subr.bf16.mxu0 %v1131
    %2341 = vmatpush1.bf16.msra.mxu0 %v1130
    %2342 = vmatprep.subr.bf16.mxu0 %v1137
    %2343 = vmatpush1.bf16.msra.mxu0 %v1136
    %2344 = vmatprep.subr.bf16.mxu0 %v1143
    %2345 = vmatpush1.bf16.msra.mxu0 %v1142
    %2346 = vmatprep.subr.bf16.mxu0 %v1149
    %2347 = vmatpush1.bf16.msra.mxu0 %v1148
    %2348 = vmatprep.subr.bf16.mxu0 %v1155
    %2349 = vmatpush1.bf16.msra.mxu0 %v1154
    %2350 = vmatprep.subr.bf16.mxu0 %v1161
    %2351 = vmatpush1.bf16.msra.mxu0 %v1160
    %2352 = vmatprep.subr.bf16.mxu0 %v1167
    %2353 = vmatpush1.bf16.msra.mxu0 %v1166
    %2354 = vmatprep.subr.bf16.mxu0 %v1173
    %2355 = vmatpush1.bf16.msra.mxu0 %v1172
    %2356 = vmatprep.mubr.bf16.mxu0 %v2323
    %2357 = vmatmul.mubr.bf16.gmra.mrb[0].mxu0 %v2322
    %v2358 = vpop.f32.mrb[0].mxu0
    %v2359 = vadd.f32 %v767, %v2358
    %v2360 = vpop.f32.mrb[0].mxu0
    %v2361 = vadd.f32 %v771, %v2360
    %v2362 = vpop.f32.mrb[0].mxu0
    %v2363 = vpop.f32.mrb[0].mxu0
    %2364 = vdwg.mxu0
    %2365 = vmatprep.subr.bf16.mxu0 %v1085
    %2366 = vmatpush1.bf16.msra.mxu0 %v1084
    %2367 = vmatprep.subr.bf16.mxu0 %v1091
    %2368 = vmatpush1.bf16.msra.mxu0 %v1090
    %2369 = vmatprep.subr.bf16.mxu0 %v1097
    %2370 = vmatpush1.bf16.msra.mxu0 %v1096
    %2371 = vmatprep.subr.bf16.mxu0 %v1103
    %2372 = vmatpush1.bf16.msra.mxu0 %v1102
    %2373 = vmatprep.subr.bf16.mxu0 %v1109
    %2374 = vmatpush1.bf16.msra.mxu0 %v1108
    %2375 = vmatprep.subr.bf16.mxu0 %v1115
    %2376 = vmatpush1.bf16.msra.mxu0 %v1114
    %2377 = vmatprep.subr.bf16.mxu0 %v1121
    %2378 = vmatpush1.bf16.msra.mxu0 %v1120
    %2379 = vmatprep.subr.bf16.mxu0 %v1127
    %2380 = vmatpush1.bf16.msra.mxu0 %v1126
    %2381 = vmatprep.subr.bf16.mxu0 %v1133
    %2382 = vmatpush1.bf16.msra.mxu0 %v1132
    %2383 = vmatprep.subr.bf16.mxu0 %v1139
    %2384 = vmatpush1.bf16.msra.mxu0 %v1138
    %2385 = vmatprep.subr.bf16.mxu0 %v1145
    %2386 = vmatpush1.bf16.msra.mxu0 %v1144
    %2387 = vmatprep.subr.bf16.mxu0 %v1151
    %2388 = vmatpush1.bf16.msra.mxu0 %v1150
    %2389 = vmatprep.subr.bf16.mxu0 %v1157
    %2390 = vmatpush1.bf16.msra.mxu0 %v1156
    %2391 = vmatprep.subr.bf16.mxu0 %v1163
    %2392 = vmatpush1.bf16.msra.mxu0 %v1162
    %2393 = vmatprep.subr.bf16.mxu0 %v1169
    %2394 = vmatpush1.bf16.msra.mxu0 %v1168
    %2395 = vmatprep.subr.bf16.mxu0 %v1175
    %2396 = vmatpush1.bf16.msra.mxu0 %v1174
    %2397 = vmatprep.mubr.bf16.mxu0 %v2323
    %2398 = vmatmul.mubr.bf16.gmra.mrb[0].mxu0 %v2322
    %v2399 = vpop.f32.mrb[0].mxu0
    %v2400 = vadd.f32 %v775, %v2399
    %v2401 = vpop.f32.mrb[0].mxu0
    %v2402 = vadd.f32 %v779, %v2401
    %v2403 = vpop.f32.mrb[0].mxu0
    %v2404 = vpop.f32.mrb[0].mxu0
    %2405 = vdwg.mxu0
    %2406 = vmatprep.subr.bf16.mxu0 %v1087
    %2407 = vmatpush1.bf16.msra.mxu0 %v1086
    %2408 = vmatprep.subr.bf16.mxu0 %v1093
    %2409 = vmatpush1.bf16.msra.mxu0 %v1092
    %2410 = vmatprep.subr.bf16.mxu0 %v1099
    %2411 = vmatpush1.bf16.msra.mxu0 %v1098
    %2412 = vmatprep.subr.bf16.mxu0 %v1105
    %2413 = vmatpush1.bf16.msra.mxu0 %v1104
    %2414 = vmatprep.subr.bf16.mxu0 %v1111
    %2415 = vmatpush1.bf16.msra.mxu0 %v1110
    %2416 = vmatprep.subr.bf16.mxu0 %v1117
    %2417 = vmatpush1.bf16.msra.mxu0 %v1116
    %2418 = vmatprep.subr.bf16.mxu0 %v1123
    %2419 = vmatpush1.bf16.msra.mxu0 %v1122
    %2420 = vmatprep.subr.bf16.mxu0 %v1129
    %2421 = vmatpush1.bf16.msra.mxu0 %v1128
    %2422 = vmatprep.subr.bf16.mxu0 %v1135
    %2423 = vmatpush1.bf16.msra.mxu0 %v1134
    %2424 = vmatprep.subr.bf16.mxu0 %v1141
    %2425 = vmatpush1.bf16.msra.mxu0 %v1140
    %2426 = vmatprep.subr.bf16.mxu0 %v1147
    %2427 = vmatpush1.bf16.msra.mxu0 %v1146
    %2428 = vmatprep.subr.bf16.mxu0 %v1153
    %2429 = vmatpush1.bf16.msra.mxu0 %v1152
    %2430 = vmatprep.subr.bf16.mxu0 %v1159
    %2431 = vmatpush1.bf16.msra.mxu0 %v1158
    %2432 = vmatprep.subr.bf16.mxu0 %v1165
    %2433 = vmatpush1.bf16.msra.mxu0 %v1164
    %2434 = vmatprep.subr.bf16.mxu0 %v1171
    %2435 = vmatpush1.bf16.msra.mxu0 %v1170
    %2436 = vmatprep.subr.bf16.mxu0 %v1177
    %2437 = vmatpush1.bf16.msra.mxu0 %v1176
    %2438 = vmatprep.mubr.bf16.mxu0 %v2323
    %2439 = vmatmul.mubr.bf16.gmra.mrb[0].mxu0 %v2322
    %v2440 = vpop.f32.mrb[0].mxu0
    %v2441 = vadd.f32 %v783, %v2440
    %v2442 = vpop.f32.mrb[0].mxu0
    %v2443 = vadd.f32 %v787, %v2442
    %v2444 = vpop.f32.mrb[0].mxu0
    %v2445 = vpop.f32.mrb[0].mxu0
    %2446 = vdwg.mxu0
    %v2447 = vld [vmem:[#allocation2 + $0x120] sm:$0xff]
    %v2448 = vld [vmem:[#allocation2 + $0x128] sm:$0xff]
    %v2449 = vld [vmem:[#allocation2 + $0x130] sm:$0xff]
    %v2450 = vld [vmem:[#allocation2 + $0x48] sm:$0xff]
    %v2451 = vld [vmem:[#allocation2 + $0x50] sm:$0xff]
    %v2452 = vld [vmem:[#allocation2 + $0x58] sm:$0xff]
    %v2453 = vadd.f32 %v2447, %v2359
    %v2454 = vadd.f32 %v2448, %v2361
    %v2455 = vxor.u32 %v2453, 2147483648
    %v2456 = vxor.u32 %v2454, 2147483648
    %v2457 = vmul.f32 %v2455, 1.442695
    %v2458 = vpow.pop %v2457
    %v2459 = vmul.f32 %v2456, 1.442695
    %v2460 = vpow.pop %v2459
    %v2461 = vadd.f32 %v2458, 1.0
    %v2462 = vadd.f32 %v2460, 1.0
    %v2463 = vrcp.pop %v2461
    %v2464 = vmul.f32 1.0, %v2463
    %v2465 = vrcp.pop %v2462
    %v2466 = vmul.f32 1.0, %v2465
    %v2467 = vmul.f32 %v2464, %v2400
    %v2468 = vadd.f32 %v2449, %v2467
    %v2469 = vtanh.pop %v2468
    %v2470 = vsub.f32 1.0, %v2466
    %v2471 = vmul.f32 %v2470, %v2469
    %v2472 = vmul.f32 %v2466, %v2298
    %v2473 = vadd.f32 %v2471, %v2472
    %v2474 = vadd.f32 %v2450, %v2402
    %v2475 = vadd.f32 %v2451, %v2441
    %v2476 = vxor.u32 %v2474, 2147483648
    %v2477 = vxor.u32 %v2475, 2147483648
    %v2478 = vmul.f32 %v2476, 1.442695
    %v2479 = vpow.pop %v2478
    %v2480 = vmul.f32 %v2477, 1.442695
    %v2481 = vpow.pop %v2480
    %v2482 = vadd.f32 %v2479, 1.0
    %v2483 = vadd.f32 %v2481, 1.0
    %v2484 = vrcp.pop %v2482
    %v2485 = vmul.f32 1.0, %v2484
    %v2486 = vrcp.pop %v2483
    %v2487 = vmul.f32 1.0, %v2486
    %v2488 = vmul.f32 %v2485, %v2443
    %v2489 = vadd.f32 %v2452, %v2488
    %v2490 = vtanh.pop %v2489
    %v2491 = vsub.f32 1.0, %v2487
    %v2492 = vmul.f32 %v2491, %v2490
    %v2493 = vmul.f32 %v2487, %v2319
    %v2494 = vadd.f32 %v2492, %v2493
    %2495 = vst [vmem:[#allocation3 + $0x60] sm:$0xff] %v2473
    %2496 = vst [vmem:[#allocation3 + $0x18] sm:$0xff] %v2494
    %v2497 = vpack.c.bf16 %v2473, %v2473
    %v2498 = vpack.c.bf16 %v2494, %v2494
    %2499 = vmatprep.subr.bf16.mxu0 %v1083
    %2500 = vmatpush1.bf16.msra.mxu0 %v1082
    %2501 = vmatprep.subr.bf16.mxu0 %v1089
    %2502 = vmatpush1.bf16.msra.mxu0 %v1088
    %2503 = vmatprep.subr.bf16.mxu0 %v1095
    %2504 = vmatpush1.bf16.msra.mxu0 %v1094
    %2505 = vmatprep.subr.bf16.mxu0 %v1101
    %2506 = vmatpush1.bf16.msra.mxu0 %v1100
    %2507 = vmatprep.subr.bf16.mxu0 %v1107
    %2508 = vmatpush1.bf16.msra.mxu0 %v1106
    %2509 = vmatprep.subr.bf16.mxu0 %v1113
    %2510 = vmatpush1.bf16.msra.mxu0 %v1112
    %2511 = vmatprep.subr.bf16.mxu0 %v1119
    %2512 = vmatpush1.bf16.msra.mxu0 %v1118
    %2513 = vmatprep.subr.bf16.mxu0 %v1125
    %2514 = vmatpush1.bf16.msra.mxu0 %v1124
    %2515 = vmatprep.subr.bf16.mxu0 %v1131
    %2516 = vmatpush1.bf16.msra.mxu0 %v1130
    %2517 = vmatprep.subr.bf16.mxu0 %v1137
    %2518 = vmatpush1.bf16.msra.mxu0 %v1136
    %2519 = vmatprep.subr.bf16.mxu0 %v1143
    %2520 = vmatpush1.bf16.msra.mxu0 %v1142
    %2521 = vmatprep.subr.bf16.mxu0 %v1149
    %2522 = vmatpush1.bf16.msra.mxu0 %v1148
    %2523 = vmatprep.subr.bf16.mxu0 %v1155
    %2524 = vmatpush1.bf16.msra.mxu0 %v1154
    %2525 = vmatprep.subr.bf16.mxu0 %v1161
    %2526 = vmatpush1.bf16.msra.mxu0 %v1160
    %2527 = vmatprep.subr.bf16.mxu0 %v1167
    %2528 = vmatpush1.bf16.msra.mxu0 %v1166
    %2529 = vmatprep.subr.bf16.mxu0 %v1173
    %2530 = vmatpush1.bf16.msra.mxu0 %v1172
    %2531 = vmatprep.mubr.bf16.mxu0 %v2498
    %2532 = vmatmul.mubr.bf16.gmra.mrb[0].mxu0 %v2497
    %v2533 = vpop.f32.mrb[0].mxu0
    %v2534 = vadd.f32 %v767, %v2533
    %v2535 = vpop.f32.mrb[0].mxu0
    %v2536 = vadd.f32 %v771, %v2535
    %v2537 = vpop.f32.mrb[0].mxu0
    %v2538 = vpop.f32.mrb[0].mxu0
    %2539 = vdwg.mxu0
    %2540 = vmatprep.subr.bf16.mxu0 %v1085
    %2541 = vmatpush1.bf16.msra.mxu0 %v1084
    %2542 = vmatprep.subr.bf16.mxu0 %v1091
    %2543 = vmatpush1.bf16.msra.mxu0 %v1090
    %2544 = vmatprep.subr.bf16.mxu0 %v1097
    %2545 = vmatpush1.bf16.msra.mxu0 %v1096
    %2546 = vmatprep.subr.bf16.mxu0 %v1103
    %2547 = vmatpush1.bf16.msra.mxu0 %v1102
    %2548 = vmatprep.subr.bf16.mxu0 %v1109
    %2549 = vmatpush1.bf16.msra.mxu0 %v1108
    %2550 = vmatprep.subr.bf16.mxu0 %v1115
    %2551 = vmatpush1.bf16.msra.mxu0 %v1114
    %2552 = vmatprep.subr.bf16.mxu0 %v1121
    %2553 = vmatpush1.bf16.msra.mxu0 %v1120
    %2554 = vmatprep.subr.bf16.mxu0 %v1127
    %2555 = vmatpush1.bf16.msra.mxu0 %v1126
    %2556 = vmatprep.subr.bf16.mxu0 %v1133
    %2557 = vmatpush1.bf16.msra.mxu0 %v1132
    %2558 = vmatprep.subr.bf16.mxu0 %v1139
    %2559 = vmatpush1.bf16.msra.mxu0 %v1138
    %2560 = vmatprep.subr.bf16.mxu0 %v1145
    %2561 = vmatpush1.bf16.msra.mxu0 %v1144
    %2562 = vmatprep.subr.bf16.mxu0 %v1151
    %2563 = vmatpush1.bf16.msra.mxu0 %v1150
    %2564 = vmatprep.subr.bf16.mxu0 %v1157
    %2565 = vmatpush1.bf16.msra.mxu0 %v1156
    %2566 = vmatprep.subr.bf16.mxu0 %v1163
    %2567 = vmatpush1.bf16.msra.mxu0 %v1162
    %2568 = vmatprep.subr.bf16.mxu0 %v1169
    %2569 = vmatpush1.bf16.msra.mxu0 %v1168
    %2570 = vmatprep.subr.bf16.mxu0 %v1175
    %2571 = vmatpush1.bf16.msra.mxu0 %v1174
    %2572 = vmatprep.mubr.bf16.mxu0 %v2498
    %2573 = vmatmul.mubr.bf16.gmra.mrb[0].mxu0 %v2497
    %v2574 = vpop.f32.mrb[0].mxu0
    %v2575 = vadd.f32 %v775, %v2574
    %v2576 = vpop.f32.mrb[0].mxu0
    %v2577 = vadd.f32 %v779, %v2576
    %v2578 = vpop.f32.mrb[0].mxu0
    %v2579 = vpop.f32.mrb[0].mxu0
    %2580 = vdwg.mxu0
    %2581 = vmatprep.subr.bf16.mxu0 %v1087
    %2582 = vmatpush1.bf16.msra.mxu0 %v1086
    %2583 = vmatprep.subr.bf16.mxu0 %v1093
    %2584 = vmatpush1.bf16.msra.mxu0 %v1092
    %2585 = vmatprep.subr.bf16.mxu0 %v1099
    %2586 = vmatpush1.bf16.msra.mxu0 %v1098
    %2587 = vmatprep.subr.bf16.mxu0 %v1105
    %2588 = vmatpush1.bf16.msra.mxu0 %v1104
    %2589 = vmatprep.subr.bf16.mxu0 %v1111
    %2590 = vmatpush1.bf16.msra.mxu0 %v1110
    %2591 = vmatprep.subr.bf16.mxu0 %v1117
    %2592 = vmatpush1.bf16.msra.mxu0 %v1116
    %2593 = vmatprep.subr.bf16.mxu0 %v1123
    %2594 = vmatpush1.bf16.msra.mxu0 %v1122
    %2595 = vmatprep.subr.bf16.mxu0 %v1129
    %2596 = vmatpush1.bf16.msra.mxu0 %v1128
    %2597 = vmatprep.subr.bf16.mxu0 %v1135
    %2598 = vmatpush1.bf16.msra.mxu0 %v1134
    %2599 = vmatprep.subr.bf16.mxu0 %v1141
    %2600 = vmatpush1.bf16.msra.mxu0 %v1140
    %2601 = vmatprep.subr.bf16.mxu0 %v1147
    %2602 = vmatpush1.bf16.msra.mxu0 %v1146
    %2603 = vmatprep.subr.bf16.mxu0 %v1153
    %2604 = vmatpush1.bf16.msra.mxu0 %v1152
    %2605 = vmatprep.subr.bf16.mxu0 %v1159
    %2606 = vmatpush1.bf16.msra.mxu0 %v1158
    %2607 = vmatprep.subr.bf16.mxu0 %v1165
    %2608 = vmatpush1.bf16.msra.mxu0 %v1164
    %2609 = vmatprep.subr.bf16.mxu0 %v1171
    %2610 = vmatpush1.bf16.msra.mxu0 %v1170
    %2611 = vmatprep.subr.bf16.mxu0 %v1177
    %2612 = vmatpush1.bf16.msra.mxu0 %v1176
    %2613 = vmatprep.mubr.bf16.mxu0 %v2498
    %2614 = vmatmul.mubr.bf16.gmra.mrb[0].mxu0 %v2497
    %v2615 = vpop.f32.mrb[0].mxu0
    %v2616 = vadd.f32 %v783, %v2615
    %v2617 = vpop.f32.mrb[0].mxu0
    %v2618 = vadd.f32 %v787, %v2617
    %v2619 = vpop.f32.mrb[0].mxu0
    %v2620 = vpop.f32.mrb[0].mxu0
    %2621 = vdwg.mxu0
    %v2622 = vld [vmem:[#allocation2 + $0x150] sm:$0xff]
    %v2623 = vld [vmem:[#allocation2 + $0x158] sm:$0xff]
    %v2624 = vld [vmem:[#allocation2 + $0x160] sm:$0xff]
    %v2625 = vld [vmem:[#allocation2 + $0x18] sm:$0xff]
    %v2626 = vld [vmem:[#allocation2 + $0x20] sm:$0xff]
    %v2627 = vld [vmem:[#allocation2 + $0x28] sm:$0xff]
    %v2628 = vadd.f32 %v2622, %v2534
    %v2629 = vadd.f32 %v2623, %v2536
    %v2630 = vxor.u32 %v2628, 2147483648
    %v2631 = vxor.u32 %v2629, 2147483648
    %v2632 = vmul.f32 %v2630, 1.442695
    %v2633 = vpow.pop %v2632
    %v2634 = vmul.f32 %v2631, 1.442695
    %v2635 = vpow.pop %v2634
    %v2636 = vadd.f32 %v2633, 1.0
    %v2637 = vadd.f32 %v2635, 1.0
    %v2638 = vrcp.pop %v2636
    %v2639 = vmul.f32 1.0, %v2638
    %v2640 = vrcp.pop %v2637
    %v2641 = vmul.f32 1.0, %v2640
    %v2642 = vmul.f32 %v2639, %v2575
    %v2643 = vadd.f32 %v2624, %v2642
    %v2644 = vtanh.pop %v2643
    %v2645 = vsub.f32 1.0, %v2641
    %v2646 = vmul.f32 %v2645, %v2644
    %v2647 = vmul.f32 %v2641, %v2473
    %v2648 = vadd.f32 %v2646, %v2647
    %v2649 = vadd.f32 %v2625, %v2577
    %v2650 = vadd.f32 %v2626, %v2616
    %v2651 = vxor.u32 %v2649, 2147483648
    %v2652 = vxor.u32 %v2650, 2147483648
    %v2653 = vmul.f32 %v2651, 1.442695
    %v2654 = vpow.pop %v2653
    %v2655 = vmul.f32 %v2652, 1.442695
    %v2656 = vpow.pop %v2655
    %v2657 = vadd.f32 %v2654, 1.0
    %v2658 = vadd.f32 %v2656, 1.0
    %v2659 = vrcp.pop %v2657
    %v2660 = vmul.f32 1.0, %v2659
    %v2661 = vrcp.pop %v2658
    %v2662 = vmul.f32 1.0, %v2661
    %v2663 = vmul.f32 %v2660, %v2618
    %v2664 = vadd.f32 %v2627, %v2663
    %v2665 = vtanh.pop %v2664
    %v2666 = vsub.f32 1.0, %v2662
    %v2667 = vmul.f32 %v2666, %v2665
    %v2668 = vmul.f32 %v2662, %v2494
    %v2669 = vadd.f32 %v2667, %v2668
    %2670 = vst [vmem:[#allocation3 + $0x70] sm:$0xff] %v2648
    %2671 = vst [vmem:[#allocation3 + $0x8] sm:$0xff] %v2669
    %v2672 = vld [vmem:[#allocation3] sm:$0xff]
    %v2673 = vld [vmem:[#allocation3 + $0x8] sm:$0xff]
    %v2674 = vld [vmem:[#allocation3 + $0x10] sm:$0xff]
    %v2675 = vld [vmem:[#allocation3 + $0x18] sm:$0xff]
    %v2676 = vld [vmem:[#allocation3 + $0x20] sm:$0xff]
    %v2677 = vld [vmem:[#allocation3 + $0x28] sm:$0xff]
    %v2678 = vld [vmem:[#allocation3 + $0x30] sm:$0xff]
    %v2679 = vld [vmem:[#allocation3 + $0x38] sm:$0xff]
    %v2680 = vld [vmem:[#allocation3 + $0x40] sm:$0xff]
    %v2681 = vld [vmem:[#allocation3 + $0x48] sm:$0xff]
    %v2682 = vld [vmem:[#allocation3 + $0x50] sm:$0xff]
    %v2683 = vld [vmem:[#allocation3 + $0x58] sm:$0xff]
    %v2684 = vld [vmem:[#allocation3 + $0x60] sm:$0xff]
    %v2685 = vld [vmem:[#allocation3 + $0x68] sm:$0xff]
    %v2686 = vld [vmem:[#allocation3 + $0x70] sm:$0xff]
    %v2687 = vld [vmem:[#allocation3 + $0x78] sm:$0xff]
    %v2688 = vpack.c.bf16 %v2674, %v2672
    %v2689 = vpack.c.bf16 %v2675, %v2673
    %v2690 = vpack.c.bf16 %v2678, %v2676
    %v2691 = vpack.c.bf16 %v2679, %v2677
    %v2692 = vpack.c.bf16 %v2682, %v2680
    %v2693 = vpack.c.bf16 %v2683, %v2681
    %v2694 = vpack.c.bf16 %v2686, %v2684
    %v2695 = vpack.c.bf16 %v2687, %v2685
    %v2696 = vld [vmem:[#allocation7] sm:$0xff]
    %v2697 = vld [vmem:[#allocation7 + $0x8] sm:$0xff]
    %v2698 = vld [vmem:[#allocation7 + $0x10] sm:$0xff]
    %v2699 = vld [vmem:[#allocation7 + $0x18] sm:$0xff]
    %v2700 = vld [vmem:[#allocation7 + $0x20] sm:$0xff]
    %v2701 = vld [vmem:[#allocation7 + $0x28] sm:$0xff]
    %v2702 = vld [vmem:[#allocation7 + $0x30] sm:$0xff]
    %v2703 = vld [vmem:[#allocation7 + $0x38] sm:$0xff]
    %v2704 = vld [vmem:[#allocation7 + $0x40] sm:$0xff]
    %v2705 = vld [vmem:[#allocation7 + $0x48] sm:$0xff]
    %v2706 = vld [vmem:[#allocation7 + $0x50] sm:$0xff]
    %v2707 = vld [vmem:[#allocation7 + $0x58] sm:$0xff]
    %v2708 = vld [vmem:[#allocation7 + $0x60] sm:$0xff]
    %v2709 = vld [vmem:[#allocation7 + $0x68] sm:$0xff]
    %v2710 = vld [vmem:[#allocation7 + $0x70] sm:$0xff]
    %v2711 = vld [vmem:[#allocation7 + $0x78] sm:$0xff]
    %v2712 = vld [vmem:[#allocation7 + $0x80] sm:$0xff]
    %v2713 = vld [vmem:[#allocation7 + $0x88] sm:$0xff]
    %v2714 = vld [vmem:[#allocation7 + $0x90] sm:$0xff]
    %v2715 = vld [vmem:[#allocation7 + $0x98] sm:$0xff]
    %v2716 = vld [vmem:[#allocation7 + $0xa0] sm:$0xff]
    %v2717 = vld [vmem:[#allocation7 + $0xa8] sm:$0xff]
    %v2718 = vld [vmem:[#allocation7 + $0xb0] sm:$0xff]
    %v2719 = vld [vmem:[#allocation7 + $0xb8] sm:$0xff]
    %v2720 = vld [vmem:[#allocation7 + $0xc0] sm:$0xff]
    %v2721 = vld [vmem:[#allocation7 + $0xc8] sm:$0xff]
    %v2722 = vld [vmem:[#allocation7 + $0xd0] sm:$0xff]
    %v2723 = vld [vmem:[#allocation7 + $0xd8] sm:$0xff]
    %v2724 = vld [vmem:[#allocation7 + $0xe0] sm:$0xff]
    %v2725 = vld [vmem:[#allocation7 + $0xe8] sm:$0xff]
    %v2726 = vld [vmem:[#allocation7 + $0xf0] sm:$0xff]
    %v2727 = vld [vmem:[#allocation7 + $0xf8] sm:$0xff]
    %v2728 = vld [vmem:[#allocation7 + $0x100] sm:$0xff]
    %v2729 = vld [vmem:[#allocation7 + $0x108] sm:$0xff]
    %v2730 = vld [vmem:[#allocation7 + $0x110] sm:$0xff]
    %v2731 = vld [vmem:[#allocation7 + $0x118] sm:$0xff]
    %v2732 = vld [vmem:[#allocation7 + $0x120] sm:$0xff]
    %v2733 = vld [vmem:[#allocation7 + $0x128] sm:$0xff]
    %v2734 = vld [vmem:[#allocation7 + $0x130] sm:$0xff]
    %v2735 = vld [vmem:[#allocation7 + $0x138] sm:$0xff]
    %v2736 = vld [vmem:[#allocation7 + $0x140] sm:$0xff]
    %v2737 = vld [vmem:[#allocation7 + $0x148] sm:$0xff]
    %v2738 = vld [vmem:[#allocation7 + $0x150] sm:$0xff]
    %v2739 = vld [vmem:[#allocation7 + $0x158] sm:$0xff]
    %v2740 = vld [vmem:[#allocation7 + $0x160] sm:$0xff]
    %v2741 = vld [vmem:[#allocation7 + $0x168] sm:$0xff]
    %v2742 = vld [vmem:[#allocation7 + $0x170] sm:$0xff]
    %v2743 = vld [vmem:[#allocation7 + $0x178] sm:$0xff]
    %v2744 = vld [vmem:[#allocation7 + $0x180] sm:$0xff]
    %v2745 = vld [vmem:[#allocation7 + $0x188] sm:$0xff]
    %v2746 = vld [vmem:[#allocation7 + $0x190] sm:$0xff]
    %v2747 = vld [vmem:[#allocation7 + $0x198] sm:$0xff]
    %v2748 = vld [vmem:[#allocation7 + $0x1a0] sm:$0xff]
    %v2749 = vld [vmem:[#allocation7 + $0x1a8] sm:$0xff]
    %v2750 = vld [vmem:[#allocation7 + $0x1b0] sm:$0xff]
    %v2751 = vld [vmem:[#allocation7 + $0x1b8] sm:$0xff]
    %v2752 = vld [vmem:[#allocation7 + $0x1c0] sm:$0xff]
    %v2753 = vld [vmem:[#allocation7 + $0x1c8] sm:$0xff]
    %v2754 = vld [vmem:[#allocation7 + $0x1d0] sm:$0xff]
    %v2755 = vld [vmem:[#allocation7 + $0x1d8] sm:$0xff]
    %v2756 = vld [vmem:[#allocation7 + $0x1e0] sm:$0xff]
    %v2757 = vld [vmem:[#allocation7 + $0x1e8] sm:$0xff]
    %v2758 = vld [vmem:[#allocation7 + $0x1f0] sm:$0xff]
    %v2759 = vld [vmem:[#allocation7 + $0x1f8] sm:$0xff]
    %v2760 = vld [vmem:[#allocation7 + $0x200] sm:$0xff]
    %v2761 = vld [vmem:[#allocation7 + $0x208] sm:$0xff]
    %v2762 = vld [vmem:[#allocation7 + $0x210] sm:$0xff]
    %v2763 = vld [vmem:[#allocation7 + $0x218] sm:$0xff]
    %v2764 = vld [vmem:[#allocation7 + $0x220] sm:$0xff]
    %v2765 = vld [vmem:[#allocation7 + $0x228] sm:$0xff]
    %v2766 = vld [vmem:[#allocation7 + $0x230] sm:$0xff]
    %v2767 = vld [vmem:[#allocation7 + $0x238] sm:$0xff]
    %v2768 = vld [vmem:[#allocation7 + $0x240] sm:$0xff]
    %v2769 = vld [vmem:[#allocation7 + $0x248] sm:$0xff]
    %v2770 = vld [vmem:[#allocation7 + $0x250] sm:$0xff]
    %v2771 = vld [vmem:[#allocation7 + $0x258] sm:$0xff]
    %v2772 = vld [vmem:[#allocation7 + $0x260] sm:$0xff]
    %v2773 = vld [vmem:[#allocation7 + $0x268] sm:$0xff]
    %v2774 = vld [vmem:[#allocation7 + $0x270] sm:$0xff]
    %v2775 = vld [vmem:[#allocation7 + $0x278] sm:$0xff]
    %v2776 = vld [vmem:[#allocation7 + $0x280] sm:$0xff]
    %v2777 = vld [vmem:[#allocation7 + $0x288] sm:$0xff]
    %v2778 = vld [vmem:[#allocation7 + $0x290] sm:$0xff]
    %v2779 = vld [vmem:[#allocation7 + $0x298] sm:$0xff]
    %v2780 = vld [vmem:[#allocation7 + $0x2a0] sm:$0xff]
    %v2781 = vld [vmem:[#allocation7 + $0x2a8] sm:$0xff]
    %v2782 = vld [vmem:[#allocation7 + $0x2b0] sm:$0xff]
    %v2783 = vld [vmem:[#allocation7 + $0x2b8] sm:$0xff]
    %v2784 = vld [vmem:[#allocation7 + $0x2c0] sm:$0xff]
    %v2785 = vld [vmem:[#allocation7 + $0x2c8] sm:$0xff]
    %v2786 = vld [vmem:[#allocation7 + $0x2d0] sm:$0xff]
    %v2787 = vld [vmem:[#allocation7 + $0x2d8] sm:$0xff]
    %v2788 = vld [vmem:[#allocation7 + $0x2e0] sm:$0xff]
    %v2789 = vld [vmem:[#allocation7 + $0x2e8] sm:$0xff]
    %v2790 = vld [vmem:[#allocation7 + $0x2f0] sm:$0xff]
    %v2791 = vld [vmem:[#allocation7 + $0x2f8] sm:$0xff]
    %v2792 = vld [vmem:[#allocation7 + $0x300] sm:$0xff]
    %v2793 = vld [vmem:[#allocation7 + $0x308] sm:$0xff]
    %v2794 = vld [vmem:[#allocation7 + $0x310] sm:$0xff]
    %v2795 = vld [vmem:[#allocation7 + $0x318] sm:$0xff]
    %v2796 = vld [vmem:[#allocation7 + $0x320] sm:$0xff]
    %v2797 = vld [vmem:[#allocation7 + $0x328] sm:$0xff]
    %v2798 = vld [vmem:[#allocation7 + $0x330] sm:$0xff]
    %v2799 = vld [vmem:[#allocation7 + $0x338] sm:$0xff]
    %v2800 = vld [vmem:[#allocation7 + $0x340] sm:$0xff]
    %v2801 = vld [vmem:[#allocation7 + $0x348] sm:$0xff]
    %v2802 = vld [vmem:[#allocation7 + $0x350] sm:$0xff]
    %v2803 = vld [vmem:[#allocation7 + $0x358] sm:$0xff]
    %v2804 = vld [vmem:[#allocation7 + $0x360] sm:$0xff]
    %v2805 = vld [vmem:[#allocation7 + $0x368] sm:$0xff]
    %v2806 = vld [vmem:[#allocation7 + $0x370] sm:$0xff]
    %v2807 = vld [vmem:[#allocation7 + $0x378] sm:$0xff]
    %v2808 = vld [vmem:[#allocation7 + $0x380] sm:$0xff]
    %v2809 = vld [vmem:[#allocation7 + $0x388] sm:$0xff]
    %v2810 = vld [vmem:[#allocation7 + $0x390] sm:$0xff]
    %v2811 = vld [vmem:[#allocation7 + $0x398] sm:$0xff]
    %v2812 = vld [vmem:[#allocation7 + $0x3a0] sm:$0xff]
    %v2813 = vld [vmem:[#allocation7 + $0x3a8] sm:$0xff]
    %v2814 = vld [vmem:[#allocation7 + $0x3b0] sm:$0xff]
    %v2815 = vld [vmem:[#allocation7 + $0x3b8] sm:$0xff]
    %v2816 = vld [vmem:[#allocation7 + $0x3c0] sm:$0xff]
    %v2817 = vld [vmem:[#allocation7 + $0x3c8] sm:$0xff]
    %v2818 = vld [vmem:[#allocation7 + $0x3d0] sm:$0xff]
    %v2819 = vld [vmem:[#allocation7 + $0x3d8] sm:$0xff]
    %v2820 = vld [vmem:[#allocation7 + $0x3e0] sm:$0xff]
    %v2821 = vld [vmem:[#allocation7 + $0x3e8] sm:$0xff]
    %v2822 = vld [vmem:[#allocation7 + $0x3f0] sm:$0xff]
    %v2823 = vld [vmem:[#allocation7 + $0x3f8] sm:$0xff]
    %v2824 = vld [vmem:[#allocation7 + $0x400] sm:$0xff]
    %v2825 = vld [vmem:[#allocation7 + $0x408] sm:$0xff]
    %v2826 = vld [vmem:[#allocation7 + $0x410] sm:$0xff]
    %v2827 = vld [vmem:[#allocation7 + $0x418] sm:$0xff]
    %v2828 = vld [vmem:[#allocation7 + $0x420] sm:$0xff]
    %v2829 = vld [vmem:[#allocation7 + $0x428] sm:$0xff]
    %v2830 = vld [vmem:[#allocation7 + $0x430] sm:$0xff]
    %v2831 = vld [vmem:[#allocation7 + $0x438] sm:$0xff]
    %v2832 = vld [vmem:[#allocation7 + $0x440] sm:$0xff]
    %v2833 = vld [vmem:[#allocation7 + $0x448] sm:$0xff]
    %v2834 = vld [vmem:[#allocation7 + $0x450] sm:$0xff]
    %v2835 = vld [vmem:[#allocation7 + $0x458] sm:$0xff]
    %v2836 = vld [vmem:[#allocation7 + $0x460] sm:$0xff]
    %v2837 = vld [vmem:[#allocation7 + $0x468] sm:$0xff]
    %v2838 = vld [vmem:[#allocation7 + $0x470] sm:$0xff]
    %v2839 = vld [vmem:[#allocation7 + $0x478] sm:$0xff]
    %v2840 = vld [vmem:[#allocation7 + $0x480] sm:$0xff]
    %v2841 = vld [vmem:[#allocation7 + $0x488] sm:$0xff]
    %v2842 = vld [vmem:[#allocation7 + $0x490] sm:$0xff]
    %v2843 = vld [vmem:[#allocation7 + $0x498] sm:$0xff]
    %v2844 = vld [vmem:[#allocation7 + $0x4a0] sm:$0xff]
    %v2845 = vld [vmem:[#allocation7 + $0x4a8] sm:$0xff]
    %v2846 = vld [vmem:[#allocation7 + $0x4b0] sm:$0xff]
    %v2847 = vld [vmem:[#allocation7 + $0x4b8] sm:$0xff]
    %v2848 = vld [vmem:[#allocation7 + $0x4c0] sm:$0xff]
    %v2849 = vld [vmem:[#allocation7 + $0x4c8] sm:$0xff]
    %v2850 = vld [vmem:[#allocation7 + $0x4d0] sm:$0xff]
    %v2851 = vld [vmem:[#allocation7 + $0x4d8] sm:$0xff]
    %v2852 = vld [vmem:[#allocation7 + $0x4e0] sm:$0xff]
    %v2853 = vld [vmem:[#allocation7 + $0x4e8] sm:$0xff]
    %v2854 = vld [vmem:[#allocation7 + $0x4f0] sm:$0xff]
    %v2855 = vld [vmem:[#allocation7 + $0x4f8] sm:$0xff]
    %v2856 = vld [vmem:[#allocation7 + $0x500] sm:$0xff]
    %v2857 = vld [vmem:[#allocation7 + $0x508] sm:$0xff]
    %v2858 = vld [vmem:[#allocation7 + $0x510] sm:$0xff]
    %v2859 = vld [vmem:[#allocation7 + $0x518] sm:$0xff]
    %v2860 = vld [vmem:[#allocation7 + $0x520] sm:$0xff]
    %v2861 = vld [vmem:[#allocation7 + $0x528] sm:$0xff]
    %v2862 = vld [vmem:[#allocation7 + $0x530] sm:$0xff]
    %v2863 = vld [vmem:[#allocation7 + $0x538] sm:$0xff]
    %v2864 = vld [vmem:[#allocation7 + $0x540] sm:$0xff]
    %v2865 = vld [vmem:[#allocation7 + $0x548] sm:$0xff]
    %v2866 = vld [vmem:[#allocation7 + $0x550] sm:$0xff]
    %v2867 = vld [vmem:[#allocation7 + $0x558] sm:$0xff]
    %v2868 = vld [vmem:[#allocation7 + $0x560] sm:$0xff]
    %v2869 = vld [vmem:[#allocation7 + $0x568] sm:$0xff]
    %v2870 = vld [vmem:[#allocation7 + $0x570] sm:$0xff]
    %v2871 = vld [vmem:[#allocation7 + $0x578] sm:$0xff]
    %v2872 = vld [vmem:[#allocation7 + $0x580] sm:$0xff]
    %v2873 = vld [vmem:[#allocation7 + $0x588] sm:$0xff]
    %v2874 = vld [vmem:[#allocation7 + $0x590] sm:$0xff]
    %v2875 = vld [vmem:[#allocation7 + $0x598] sm:$0xff]
    %v2876 = vld [vmem:[#allocation7 + $0x5a0] sm:$0xff]
    %v2877 = vld [vmem:[#allocation7 + $0x5a8] sm:$0xff]
    %v2878 = vld [vmem:[#allocation7 + $0x5b0] sm:$0xff]
    %v2879 = vld [vmem:[#allocation7 + $0x5b8] sm:$0xff]
    %v2880 = vld [vmem:[#allocation7 + $0x5c0] sm:$0xff]
    %v2881 = vld [vmem:[#allocation7 + $0x5c8] sm:$0xff]
    %v2882 = vld [vmem:[#allocation7 + $0x5d0] sm:$0xff]
    %v2883 = vld [vmem:[#allocation7 + $0x5d8] sm:$0xff]
    %v2884 = vld [vmem:[#allocation7 + $0x5e0] sm:$0xff]
    %v2885 = vld [vmem:[#allocation7 + $0x5e8] sm:$0xff]
    %v2886 = vld [vmem:[#allocation7 + $0x5f0] sm:$0xff]
    %v2887 = vld [vmem:[#allocation7 + $0x5f8] sm:$0xff]
    %v2888 = vld [vmem:[%s6] ss:$2 sm:$0x3f]
    %s2889 = scalar_lea.vmem %s6, 1
    %v2890 = vld [vmem:[%s2889] ss:$2 sm:$0x3f]
    %v2892 = vlaneseq
    %v2893 = vshrl.u32 %v2892, 7
    %v2894 = vsub.s32 0, %v2893
    %v2895 = vrot.slane %v2888, %v2894
    %v2896 = vlaneseq
    %v2897 = vshrl.u32 %v2896, 7
    %v2898 = vsub.s32 1, %v2897
    %v2899 = vrot.slane %v2888, %v2898
    %v2900 = vlaneseq
    %v2901 = vshrl.u32 %v2900, 7
    %v2902 = vsub.s32 2, %v2901
    %v2903 = vrot.slane %v2888, %v2902
    %v2904 = vlaneseq
    %v2905 = vshrl.u32 %v2904, 7
    %v2906 = vsub.s32 3, %v2905
    %v2907 = vrot.slane %v2888, %v2906
    %v2908 = vlaneseq
    %v2909 = vshrl.u32 %v2908, 7
    %v2910 = vsub.s32 4, %v2909
    %v2911 = vrot.slane %v2888, %v2910
    %v2912 = vlaneseq
    %v2913 = vshrl.u32 %v2912, 7
    %v2914 = vsub.s32 5, %v2913
    %v2915 = vrot.slane %v2888, %v2914
    %v3018 = vunpack.c.l.b16 %v2696
    %v3019 = vunpack.c.h.b16 %v2696
    %v3020 = vunpack.c.l.b16 %v2697
    %v3021 = vunpack.c.h.b16 %v2697
    %v3022 = vunpack.c.l.b16 %v2698
    %v3023 = vunpack.c.h.b16 %v2698
    %v3024 = vunpack.c.l.b16 %v2699
    %v3025 = vunpack.c.h.b16 %v2699
    %v3026 = vunpack.c.l.b16 %v2700
    %v3027 = vunpack.c.h.b16 %v2700
    %v3028 = vunpack.c.l.b16 %v2701
    %v3029 = vunpack.c.h.b16 %v2701
    %v3030 = vunpack.c.l.b16 %v2702
    %v3031 = vunpack.c.h.b16 %v2702
    %v3032 = vunpack.c.l.b16 %v2703
    %v3033 = vunpack.c.h.b16 %v2703
    %v3034 = vunpack.c.l.b16 %v2704
    %v3035 = vunpack.c.h.b16 %v2704
    %v3036 = vunpack.c.l.b16 %v2705
    %v3037 = vunpack.c.h.b16 %v2705
    %v3038 = vunpack.c.l.b16 %v2706
    %v3039 = vunpack.c.h.b16 %v2706
    %v3040 = vunpack.c.l.b16 %v2707
    %v3041 = vunpack.c.h.b16 %v2707
    %v3042 = vunpack.c.l.b16 %v2708
    %v3043 = vunpack.c.h.b16 %v2708
    %v3044 = vunpack.c.l.b16 %v2709
    %v3045 = vunpack.c.h.b16 %v2709
    %v3046 = vunpack.c.l.b16 %v2710
    %v3047 = vunpack.c.h.b16 %v2710
    %v3048 = vunpack.c.l.b16 %v2711
    %v3049 = vunpack.c.h.b16 %v2711
    %v3050 = vunpack.c.l.b16 %v2712
    %v3051 = vunpack.c.h.b16 %v2712
    %v3052 = vunpack.c.l.b16 %v2713
    %v3053 = vunpack.c.h.b16 %v2713
    %v3054 = vunpack.c.l.b16 %v2714
    %v3055 = vunpack.c.h.b16 %v2714
    %v3056 = vunpack.c.l.b16 %v2715
    %v3057 = vunpack.c.h.b16 %v2715
    %v3058 = vunpack.c.l.b16 %v2716
    %v3059 = vunpack.c.h.b16 %v2716
    %v3060 = vunpack.c.l.b16 %v2717
    %v3061 = vunpack.c.h.b16 %v2717
    %v3062 = vunpack.c.l.b16 %v2718
    %v3063 = vunpack.c.h.b16 %v2718
    %v3064 = vunpack.c.l.b16 %v2719
    %v3065 = vunpack.c.h.b16 %v2719
    %v3066 = vunpack.c.l.b16 %v2720
    %v3067 = vunpack.c.h.b16 %v2720
    %v3068 = vunpack.c.l.b16 %v2721
    %v3069 = vunpack.c.h.b16 %v2721
    %v3070 = vunpack.c.l.b16 %v2722
    %v3071 = vunpack.c.h.b16 %v2722
    %v3072 = vunpack.c.l.b16 %v2723
    %v3073 = vunpack.c.h.b16 %v2723
    %v3074 = vunpack.c.l.b16 %v2724
    %v3075 = vunpack.c.h.b16 %v2724
    %v3076 = vunpack.c.l.b16 %v2725
    %v3077 = vunpack.c.h.b16 %v2725
    %v3078 = vunpack.c.l.b16 %v2726
    %v3079 = vunpack.c.h.b16 %v2726
    %v3080 = vunpack.c.l.b16 %v2727
    %v3081 = vunpack.c.h.b16 %v2727
    %v3082 = vunpack.c.l.b16 %v2728
    %v3083 = vunpack.c.h.b16 %v2728
    %v3084 = vunpack.c.l.b16 %v2729
    %v3085 = vunpack.c.h.b16 %v2729
    %v3086 = vunpack.c.l.b16 %v2730
    %v3087 = vunpack.c.h.b16 %v2730
    %v3088 = vunpack.c.l.b16 %v2731
    %v3089 = vunpack.c.h.b16 %v2731
    %v3090 = vunpack.c.l.b16 %v2732
    %v3091 = vunpack.c.h.b16 %v2732
    %v3092 = vunpack.c.l.b16 %v2733
    %v3093 = vunpack.c.h.b16 %v2733
    %v3094 = vunpack.c.l.b16 %v2734
    %v3095 = vunpack.c.h.b16 %v2734
    %v3096 = vunpack.c.l.b16 %v2735
    %v3097 = vunpack.c.h.b16 %v2735
    %v3098 = vunpack.c.l.b16 %v2736
    %v3099 = vunpack.c.h.b16 %v2736
    %v3100 = vunpack.c.l.b16 %v2737
    %v3101 = vunpack.c.h.b16 %v2737
    %v3102 = vunpack.c.l.b16 %v2738
    %v3103 = vunpack.c.h.b16 %v2738
    %v3104 = vunpack.c.l.b16 %v2739
    %v3105 = vunpack.c.h.b16 %v2739
    %v3106 = vunpack.c.l.b16 %v2740
    %v3107 = vunpack.c.h.b16 %v2740
    %v3108 = vunpack.c.l.b16 %v2741
    %v3109 = vunpack.c.h.b16 %v2741
    %v3110 = vunpack.c.l.b16 %v2742
    %v3111 = vunpack.c.h.b16 %v2742
    %v3112 = vunpack.c.l.b16 %v2743
    %v3113 = vunpack.c.h.b16 %v2743
    %v3114 = vunpack.c.l.b16 %v2744
    %v3115 = vunpack.c.h.b16 %v2744
    %v3116 = vunpack.c.l.b16 %v2745
    %v3117 = vunpack.c.h.b16 %v2745
    %v3118 = vunpack.c.l.b16 %v2746
    %v3119 = vunpack.c.h.b16 %v2746
    %v3120 = vunpack.c.l.b16 %v2747
    %v3121 = vunpack.c.h.b16 %v2747
    %v3122 = vunpack.c.l.b16 %v2748
    %v3123 = vunpack.c.h.b16 %v2748
    %v3124 = vunpack.c.l.b16 %v2749
    %v3125 = vunpack.c.h.b16 %v2749
    %v3126 = vunpack.c.l.b16 %v2750
    %v3127 = vunpack.c.h.b16 %v2750
    %v3128 = vunpack.c.l.b16 %v2751
    %v3129 = vunpack.c.h.b16 %v2751
    %v3130 = vunpack.c.l.b16 %v2752
    %v3131 = vunpack.c.h.b16 %v2752
    %v3132 = vunpack.c.l.b16 %v2753
    %v3133 = vunpack.c.h.b16 %v2753
    %v3134 = vunpack.c.l.b16 %v2754
    %v3135 = vunpack.c.h.b16 %v2754
    %v3136 = vunpack.c.l.b16 %v2755
    %v3137 = vunpack.c.h.b16 %v2755
    %v3138 = vunpack.c.l.b16 %v2756
    %v3139 = vunpack.c.h.b16 %v2756
    %v3140 = vunpack.c.l.b16 %v2757
    %v3141 = vunpack.c.h.b16 %v2757
    %v3142 = vunpack.c.l.b16 %v2758
    %v3143 = vunpack.c.h.b16 %v2758
    %v3144 = vunpack.c.l.b16 %v2759
    %v3145 = vunpack.c.h.b16 %v2759
    %v3146 = vunpack.c.l.b16 %v2760
    %v3147 = vunpack.c.h.b16 %v2760
    %v3148 = vunpack.c.l.b16 %v2761
    %v3149 = vunpack.c.h.b16 %v2761
    %v3150 = vunpack.c.l.b16 %v2762
    %v3151 = vunpack.c.h.b16 %v2762
    %v3152 = vunpack.c.l.b16 %v2763
    %v3153 = vunpack.c.h.b16 %v2763
    %v3154 = vunpack.c.l.b16 %v2764
    %v3155 = vunpack.c.h.b16 %v2764
    %v3156 = vunpack.c.l.b16 %v2765
    %v3157 = vunpack.c.h.b16 %v2765
    %v3158 = vunpack.c.l.b16 %v2766
    %v3159 = vunpack.c.h.b16 %v2766
    %v3160 = vunpack.c.l.b16 %v2767
    %v3161 = vunpack.c.h.b16 %v2767
    %v3162 = vunpack.c.l.b16 %v2768
    %v3163 = vunpack.c.h.b16 %v2768
    %v3164 = vunpack.c.l.b16 %v2769
    %v3165 = vunpack.c.h.b16 %v2769
    %v3166 = vunpack.c.l.b16 %v2770
    %v3167 = vunpack.c.h.b16 %v2770
    %v3168 = vunpack.c.l.b16 %v2771
    %v3169 = vunpack.c.h.b16 %v2771
    %v3170 = vunpack.c.l.b16 %v2772
    %v3171 = vunpack.c.h.b16 %v2772
    %v3172 = vunpack.c.l.b16 %v2773
    %v3173 = vunpack.c.h.b16 %v2773
    %v3174 = vunpack.c.l.b16 %v2774
    %v3175 = vunpack.c.h.b16 %v2774
    %v3176 = vunpack.c.l.b16 %v2775
    %v3177 = vunpack.c.h.b16 %v2775
    %v3178 = vunpack.c.l.b16 %v2776
    %v3179 = vunpack.c.h.b16 %v2776
    %v3180 = vunpack.c.l.b16 %v2777
    %v3181 = vunpack.c.h.b16 %v2777
    %v3182 = vunpack.c.l.b16 %v2778
    %v3183 = vunpack.c.h.b16 %v2778
    %v3184 = vunpack.c.l.b16 %v2779
    %v3185 = vunpack.c.h.b16 %v2779
    %v3186 = vunpack.c.l.b16 %v2780
    %v3187 = vunpack.c.h.b16 %v2780
    %v3188 = vunpack.c.l.b16 %v2781
    %v3189 = vunpack.c.h.b16 %v2781
    %v3190 = vunpack.c.l.b16 %v2782
    %v3191 = vunpack.c.h.b16 %v2782
    %v3192 = vunpack.c.l.b16 %v2783
    %v3193 = vunpack.c.h.b16 %v2783
    %v3194 = vunpack.c.l.b16 %v2784
    %v3195 = vunpack.c.h.b16 %v2784
    %v3196 = vunpack.c.l.b16 %v2785
    %v3197 = vunpack.c.h.b16 %v2785
    %v3198 = vunpack.c.l.b16 %v2786
    %v3199 = vunpack.c.h.b16 %v2786
    %v3200 = vunpack.c.l.b16 %v2787
    %v3201 = vunpack.c.h.b16 %v2787
    %v3202 = vunpack.c.l.b16 %v2788
    %v3203 = vunpack.c.h.b16 %v2788
    %v3204 = vunpack.c.l.b16 %v2789
    %v3205 = vunpack.c.h.b16 %v2789
    %v3206 = vunpack.c.l.b16 %v2790
    %v3207 = vunpack.c.h.b16 %v2790
    %v3208 = vunpack.c.l.b16 %v2791
    %v3209 = vunpack.c.h.b16 %v2791
    %v3210 = vpack.c.b16 %v3024, %v3018
    %v3211 = vpack.c.b16 %v3025, %v3019
    %v3212 = vpack.c.b16 %v3026, %v3020
    %v3213 = vpack.c.b16 %v3027, %v3021
    %v3214 = vpack.c.b16 %v3028, %v3022
    %v3215 = vpack.c.b16 %v3029, %v3023
    %v3216 = vpack.c.b16 %v3036, %v3030
    %v3217 = vpack.c.b16 %v3037, %v3031
    %v3218 = vpack.c.b16 %v3038, %v3032
    %v3219 = vpack.c.b16 %v3039, %v3033
    %v3220 = vpack.c.b16 %v3040, %v3034
    %v3221 = vpack.c.b16 %v3041, %v3035
    %v3222 = vpack.c.b16 %v3048, %v3042
    %v3223 = vpack.c.b16 %v3049, %v3043
    %v3224 = vpack.c.b16 %v3050, %v3044
    %v3225 = vpack.c.b16 %v3051, %v3045
    %v3226 = vpack.c.b16 %v3052, %v3046
    %v3227 = vpack.c.b16 %v3053, %v3047
    %v3228 = vpack.c.b16 %v3060, %v3054
    %v3229 = vpack.c.b16 %v3061, %v3055
    %v3230 = vpack.c.b16 %v3062, %v3056
    %v3231 = vpack.c.b16 %v3063, %v3057
    %v3232 = vpack.c.b16 %v3064, %v3058
    %v3233 = vpack.c.b16 %v3065, %v3059
    %v3234 = vpack.c.b16 %v3072, %v3066
    %v3235 = vpack.c.b16 %v3073, %v3067
    %v3236 = vpack.c.b16 %v3074, %v3068
    %v3237 = vpack.c.b16 %v3075, %v3069
    %v3238 = vpack.c.b16 %v3076, %v3070
    %v3239 = vpack.c.b16 %v3077, %v3071
    %v3240 = vpack.c.b16 %v3084, %v3078
    %v3241 = vpack.c.b16 %v3085, %v3079
    %v3242 = vpack.c.b16 %v3086, %v3080
    %v3243 = vpack.c.b16 %v3087, %v3081
    %v3244 = vpack.c.b16 %v3088, %v3082
    %v3245 = vpack.c.b16 %v3089, %v3083
    %v3246 = vpack.c.b16 %v3096, %v3090
    %v3247 = vpack.c.b16 %v3097, %v3091
    %v3248 = vpack.c.b16 %v3098, %v3092
    %v3249 = vpack.c.b16 %v3099, %v3093
    %v3250 = vpack.c.b16 %v3100, %v3094
    %v3251 = vpack.c.b16 %v3101, %v3095
    %v3252 = vpack.c.b16 %v3108, %v3102
    %v3253 = vpack.c.b16 %v3109, %v3103
    %v3254 = vpack.c.b16 %v3110, %v3104
    %v3255 = vpack.c.b16 %v3111, %v3105
    %v3256 = vpack.c.b16 %v3112, %v3106
    %v3257 = vpack.c.b16 %v3113, %v3107
    %v3258 = vpack.c.b16 %v3120, %v3114
    %v3259 = vpack.c.b16 %v3121, %v3115
    %v3260 = vpack.c.b16 %v3122, %v3116
    %v3261 = vpack.c.b16 %v3123, %v3117
    %v3262 = vpack.c.b16 %v3124, %v3118
    %v3263 = vpack.c.b16 %v3125, %v3119
    %v3264 = vpack.c.b16 %v3132, %v3126
    %v3265 = vpack.c.b16 %v3133, %v3127
    %v3266 = vpack.c.b16 %v3134, %v3128
    %v3267 = vpack.c.b16 %v3135, %v3129
    %v3268 = vpack.c.b16 %v3136, %v3130
    %v3269 = vpack.c.b16 %v3137, %v3131
    %v3270 = vpack.c.b16 %v3144, %v3138
    %v3271 = vpack.c.b16 %v3145, %v3139
    %v3272 = vpack.c.b16 %v3146, %v3140
    %v3273 = vpack.c.b16 %v3147, %v3141
    %v3274 = vpack.c.b16 %v3148, %v3142
    %v3275 = vpack.c.b16 %v3149, %v3143
    %v3276 = vpack.c.b16 %v3156, %v3150
    %v3277 = vpack.c.b16 %v3157, %v3151
    %v3278 = vpack.c.b16 %v3158, %v3152
    %v3279 = vpack.c.b16 %v3159, %v3153
    %v3280 = vpack.c.b16 %v3160, %v3154
    %v3281 = vpack.c.b16 %v3161, %v3155
    %v3282 = vpack.c.b16 %v3168, %v3162
    %v3283 = vpack.c.b16 %v3169, %v3163
    %v3284 = vpack.c.b16 %v3170, %v3164
    %v3285 = vpack.c.b16 %v3171, %v3165
    %v3286 = vpack.c.b16 %v3172, %v3166
    %v3287 = vpack.c.b16 %v3173, %v3167
    %v3288 = vpack.c.b16 %v3180, %v3174
    %v3289 = vpack.c.b16 %v3181, %v3175
    %v3290 = vpack.c.b16 %v3182, %v3176
    %v3291 = vpack.c.b16 %v3183, %v3177
    %v3292 = vpack.c.b16 %v3184, %v3178
    %v3293 = vpack.c.b16 %v3185, %v3179
    %v3294 = vpack.c.b16 %v3192, %v3186
    %v3295 = vpack.c.b16 %v3193, %v3187
    %v3296 = vpack.c.b16 %v3194, %v3188
    %v3297 = vpack.c.b16 %v3195, %v3189
    %v3298 = vpack.c.b16 %v3196, %v3190
    %v3299 = vpack.c.b16 %v3197, %v3191
    %v3300 = vpack.c.b16 %v3204, %v3198
    %v3301 = vpack.c.b16 %v3205, %v3199
    %v3302 = vpack.c.b16 %v3206, %v3200
    %v3303 = vpack.c.b16 %v3207, %v3201
    %v3304 = vpack.c.b16 %v3208, %v3202
    %v3305 = vpack.c.b16 %v3209, %v3203
    %3402 = vmatprep.subr.bf16.mxu0 %v3211
    %3403 = vmatpush1.bf16.msra.mxu0 %v3210
    %3404 = vmatprep.subr.bf16.mxu0 %v3217
    %3405 = vmatpush1.bf16.msra.mxu0 %v3216
    %3406 = vmatprep.subr.bf16.mxu0 %v3223
    %3407 = vmatpush1.bf16.msra.mxu0 %v3222
    %3408 = vmatprep.subr.bf16.mxu0 %v3229
    %3409 = vmatpush1.bf16.msra.mxu0 %v3228
    %3410 = vmatprep.subr.bf16.mxu0 %v3235
    %3411 = vmatpush1.bf16.msra.mxu0 %v3234
    %3412 = vmatprep.subr.bf16.mxu0 %v3241
    %3413 = vmatpush1.bf16.msra.mxu0 %v3240
    %3414 = vmatprep.subr.bf16.mxu0 %v3247
    %3415 = vmatpush1.bf16.msra.mxu0 %v3246
    %3416 = vmatprep.subr.bf16.mxu0 %v3253
    %3417 = vmatpush1.bf16.msra.mxu0 %v3252
    %3418 = vmatprep.subr.bf16.mxu0 %v3259
    %3419 = vmatpush1.bf16.msra.mxu0 %v3258
    %3420 = vmatprep.subr.bf16.mxu0 %v3265
    %3421 = vmatpush1.bf16.msra.mxu0 %v3264
    %3422 = vmatprep.subr.bf16.mxu0 %v3271
    %3423 = vmatpush1.bf16.msra.mxu0 %v3270
    %3424 = vmatprep.subr.bf16.mxu0 %v3277
    %3425 = vmatpush1.bf16.msra.mxu0 %v3276
    %3426 = vmatprep.subr.bf16.mxu0 %v3283
    %3427 = vmatpush1.bf16.msra.mxu0 %v3282
    %3428 = vmatprep.subr.bf16.mxu0 %v3289
    %3429 = vmatpush1.bf16.msra.mxu0 %v3288
    %3430 = vmatprep.subr.bf16.mxu0 %v3295
    %3431 = vmatpush1.bf16.msra.mxu0 %v3294
    %3432 = vmatprep.subr.bf16.mxu0 %v3301
    %3433 = vmatpush1.bf16.msra.mxu0 %v3300
    %3434 = vmatprep.mubr.bf16.mxu0 %v2689
    %3435 = vmatmul.mubr.bf16.gmra.mrb[0].mxu0 %v2688
    %v3436 = vpop.f32.mrb[0].mxu0
    %v3437 = vadd.f32 %v2895, %v3436
    %v3438 = vpop.f32.mrb[0].mxu0
    %v3439 = vadd.f32 %v2899, %v3438
    %v3440 = vpop.f32.mrb[0].mxu0
    %v3441 = vadd.f32 %v2895, %v3440
    %v3442 = vpop.f32.mrb[0].mxu0
    %v3443 = vadd.f32 %v2899, %v3442
    %3444 = vmatprep.mubr.bf16.mxu0 %v2691
    %3445 = vmatmul.mubr.bf16.gmra.mrb[0].mxu0 %v2690
    %v3446 = vpop.f32.mrb[0].mxu0
    %v3447 = vadd.f32 %v2895, %v3446
    %v3448 = vpop.f32.mrb[0].mxu0
    %v3449 = vadd.f32 %v2899, %v3448
    %v3450 = vpop.f32.mrb[0].mxu0
    %v3451 = vadd.f32 %v2895, %v3450
    %v3452 = vpop.f32.mrb[0].mxu0
    %v3453 = vadd.f32 %v2899, %v3452
    %3454 = vmatprep.mubr.bf16.mxu0 %v2693
    %3455 = vmatmul.mubr.bf16.gmra.mrb[0].mxu0 %v2692
    %v3456 = vpop.f32.mrb[0].mxu0
    %v3457 = vadd.f32 %v2895, %v3456
    %v3458 = vpop.f32.mrb[0].mxu0
    %v3459 = vadd.f32 %v2899, %v3458
    %v3460 = vpop.f32.mrb[0].mxu0
    %v3461 = vadd.f32 %v2895, %v3460
    %v3462 = vpop.f32.mrb[0].mxu0
    %v3463 = vadd.f32 %v2899, %v3462
    %3464 = vmatprep.mubr.bf16.mxu0 %v2695
    %3465 = vmatmul.mubr.bf16.gmra.mrb[0].mxu0 %v2694
    %v3466 = vpop.f32.mrb[0].mxu0
    %v3467 = vadd.f32 %v2895, %v3466
    %v3468 = vpop.f32.mrb[0].mxu0
    %v3469 = vadd.f32 %v2899, %v3468
    %v3470 = vpop.f32.mrb[0].mxu0
    %v3471 = vadd.f32 %v2895, %v3470
    %v3472 = vpop.f32.mrb[0].mxu0
    %v3473 = vadd.f32 %v2899, %v3472
    %3474 = vdwg.mxu0
    %3475 = vmatprep.subr.bf16.mxu0 %v3213
    %3476 = vmatpush1.bf16.msra.mxu0 %v3212
    %3477 = vmatprep.subr.bf16.mxu0 %v3219
    %3478 = vmatpush1.bf16.msra.mxu0 %v3218
    %3479 = vmatprep.subr.bf16.mxu0 %v3225
    %3480 = vmatpush1.bf16.msra.mxu0 %v3224
    %3481 = vmatprep.subr.bf16.mxu0 %v3231
    %3482 = vmatpush1.bf16.msra.mxu0 %v3230
    %3483 = vmatprep.subr.bf16.mxu0 %v3237
    %3484 = vmatpush1.bf16.msra.mxu0 %v3236
    %3485 = vmatprep.subr.bf16.mxu0 %v3243
    %3486 = vmatpush1.bf16.msra.mxu0 %v3242
    %3487 = vmatprep.subr.bf16.mxu0 %v3249
    %3488 = vmatpush1.bf16.msra.mxu0 %v3248
    %3489 = vmatprep.subr.bf16.mxu0 %v3255
    %3490 = vmatpush1.bf16.msra.mxu0 %v3254
    %3491 = vmatprep.subr.bf16.mxu0 %v3261
    %3492 = vmatpush1.bf16.msra.mxu0 %v3260
    %3493 = vmatprep.subr.bf16.mxu0 %v3267
    %3494 = vmatpush1.bf16.msra.mxu0 %v3266
    %3495 = vmatprep.subr.bf16.mxu0 %v3273
    %3496 = vmatpush1.bf16.msra.mxu0 %v3272
    %3497 = vmatprep.subr.bf16.mxu0 %v3279
    %3498 = vmatpush1.bf16.msra.mxu0 %v3278
    %3499 = vmatprep.subr.bf16.mxu0 %v3285
    %3500 = vmatpush1.bf16.msra.mxu0 %v3284
    %3501 = vmatprep.subr.bf16.mxu0 %v3291
    %3502 = vmatpush1.bf16.msra.mxu0 %v3290
    %3503 = vmatprep.subr.bf16.mxu0 %v3297
    %3504 = vmatpush1.bf16.msra.mxu0 %v3296
    %3505 = vmatprep.subr.bf16.mxu0 %v3303
    %3506 = vmatpush1.bf16.msra.mxu0 %v3302
    %3507 = vmatprep.mubr.bf16.mxu0 %v2689
    %3508 = vmatmul.mubr.bf16.gmra.mrb[0].mxu0 %v2688
    %v3509 = vpop.f32.mrb[0].mxu0
    %v3510 = vadd.f32 %v2903, %v3509
    %v3511 = vpop.f32.mrb[0].mxu0
    %v3512 = vadd.f32 %v2907, %v3511
    %v3513 = vpop.f32.mrb[0].mxu0
    %v3514 = vadd.f32 %v2903, %v3513
    %v3515 = vpop.f32.mrb[0].mxu0
    %v3516 = vadd.f32 %v2907, %v3515
    %3517 = vmatprep.mubr.bf16.mxu0 %v2691
    %3518 = vmatmul.mubr.bf16.gmra.mrb[0].mxu0 %v2690
    %v3519 = vpop.f32.mrb[0].mxu0
    %v3520 = vadd.f32 %v2903, %v3519
    %v3521 = vpop.f32.mrb[0].mxu0
    %v3522 = vadd.f32 %v2907, %v3521
    %v3523 = vpop.f32.mrb[0].mxu0
    %v3524 = vadd.f32 %v2903, %v3523
    %v3525 = vpop.f32.mrb[0].mxu0
    %v3526 = vadd.f32 %v2907, %v3525
    %3527 = vmatprep.mubr.bf16.mxu0 %v2693
    %3528 = vmatmul.mubr.bf16.gmra.mrb[0].mxu0 %v2692
    %v3529 = vpop.f32.mrb[0].mxu0
    %v3530 = vadd.f32 %v2903, %v3529
    %v3531 = vpop.f32.mrb[0].mxu0
    %v3532 = vadd.f32 %v2907, %v3531
    %v3533 = vpop.f32.mrb[0].mxu0
    %v3534 = vadd.f32 %v2903, %v3533
    %v3535 = vpop.f32.mrb[0].mxu0
    %v3536 = vadd.f32 %v2907, %v3535
    %3537 = vmatprep.mubr.bf16.mxu0 %v2695
    %3538 = vmatmul.mubr.bf16.gmra.mrb[0].mxu0 %v2694
    %v3539 = vpop.f32.mrb[0].mxu0
    %v3540 = vadd.f32 %v2903, %v3539
    %v3541 = vpop.f32.mrb[0].mxu0
    %v3542 = vadd.f32 %v2907, %v3541
    %v3543 = vpop.f32.mrb[0].mxu0
    %v3544 = vadd.f32 %v2903, %v3543
    %v3545 = vpop.f32.mrb[0].mxu0
    %v3546 = vadd.f32 %v2907, %v3545
    %3547 = vdwg.mxu0
    %3548 = vmatprep.subr.bf16.mxu0 %v3215
    %3549 = vmatpush1.bf16.msra.mxu0 %v3214
    %3550 = vmatprep.subr.bf16.mxu0 %v3221
    %3551 = vmatpush1.bf16.msra.mxu0 %v3220
    %3552 = vmatprep.subr.bf16.mxu0 %v3227
    %3553 = vmatpush1.bf16.msra.mxu0 %v3226
    %3554 = vmatprep.subr.bf16.mxu0 %v3233
    %3555 = vmatpush1.bf16.msra.mxu0 %v3232
    %3556 = vmatprep.subr.bf16.mxu0 %v3239
    %3557 = vmatpush1.bf16.msra.mxu0 %v3238
    %3558 = vmatprep.subr.bf16.mxu0 %v3245
    %3559 = vmatpush1.bf16.msra.mxu0 %v3244
    %3560 = vmatprep.subr.bf16.mxu0 %v3251
    %3561 = vmatpush1.bf16.msra.mxu0 %v3250
    %3562 = vmatprep.subr.bf16.mxu0 %v3257
    %3563 = vmatpush1.bf16.msra.mxu0 %v3256
    %3564 = vmatprep.subr.bf16.mxu0 %v3263
    %3565 = vmatpush1.bf16.msra.mxu0 %v3262
    %3566 = vmatprep.subr.bf16.mxu0 %v3269
    %3567 = vmatpush1.bf16.msra.mxu0 %v3268
    %3568 = vmatprep.subr.bf16.mxu0 %v3275
    %3569 = vmatpush1.bf16.msra.mxu0 %v3274
    %3570 = vmatprep.subr.bf16.mxu0 %v3281
    %3571 = vmatpush1.bf16.msra.mxu0 %v3280
    %3572 = vmatprep.subr.bf16.mxu0 %v3287
    %3573 = vmatpush1.bf16.msra.mxu0 %v3286
    %3574 = vmatprep.subr.bf16.mxu0 %v3293
    %3575 = vmatpush1.bf16.msra.mxu0 %v3292
    %3576 = vmatprep.subr.bf16.mxu0 %v3299
    %3577 = vmatpush1.bf16.msra.mxu0 %v3298
    %3578 = vmatprep.subr.bf16.mxu0 %v3305
    %3579 = vmatpush1.bf16.msra.mxu0 %v3304
    %3580 = vmatprep.mubr.bf16.mxu0 %v2689
    %3581 = vmatmul.mubr.bf16.gmra.mrb[0].mxu0 %v2688
    %v3582 = vpop.f32.mrb[0].mxu0
    %v3583 = vadd.f32 %v2911, %v3582
    %v3584 = vpop.f32.mrb[0].mxu0
    %v3585 = vadd.f32 %v2915, %v3584
    %v3586 = vpop.f32.mrb[0].mxu0
    %v3587 = vadd.f32 %v2911, %v3586
    %v3588 = vpop.f32.mrb[0].mxu0
    %v3589 = vadd.f32 %v2915, %v3588
    %3590 = vmatprep.mubr.bf16.mxu0 %v2691
    %3591 = vmatmul.mubr.bf16.gmra.mrb[0].mxu0 %v2690
    %v3592 = vpop.f32.mrb[0].mxu0
    %v3593 = vadd.f32 %v2911, %v3592
    %v3594 = vpop.f32.mrb[0].mxu0
    %v3595 = vadd.f32 %v2915, %v3594
    %v3596 = vpop.f32.mrb[0].mxu0
    %v3597 = vadd.f32 %v2911, %v3596
    %v3598 = vpop.f32.mrb[0].mxu0
    %v3599 = vadd.f32 %v2915, %v3598
    %3600 = vmatprep.mubr.bf16.mxu0 %v2693
    %3601 = vmatmul.mubr.bf16.gmra.mrb[0].mxu0 %v2692
    %v3602 = vpop.f32.mrb[0].mxu0
    %v3603 = vadd.f32 %v2911, %v3602
    %v3604 = vpop.f32.mrb[0].mxu0
    %v3605 = vadd.f32 %v2915, %v3604
    %v3606 = vpop.f32.mrb[0].mxu0
    %v3607 = vadd.f32 %v2911, %v3606
    %v3608 = vpop.f32.mrb[0].mxu0
    %v3609 = vadd.f32 %v2915, %v3608
    %3610 = vmatprep.mubr.bf16.mxu0 %v2695
    %3611 = vmatmul.mubr.bf16.gmra.mrb[0].mxu0 %v2694
    %v3612 = vpop.f32.mrb[0].mxu0
    %v3613 = vadd.f32 %v2911, %v3612
    %v3614 = vpop.f32.mrb[0].mxu0
    %v3615 = vadd.f32 %v2915, %v3614
    %v3616 = vpop.f32.mrb[0].mxu0
    %v3617 = vadd.f32 %v2911, %v3616
    %v3618 = vpop.f32.mrb[0].mxu0
    %v3619 = vadd.f32 %v2915, %v3618
    %3620 = vdwg.mxu0
    %3621 = vst [vmem:[#allocation2] sm:$0xff] %v3437
    %3622 = vst [vmem:[#allocation2 + $0x8] sm:$0xff] %v3439
    %3623 = vst [vmem:[#allocation2 + $0x10] sm:$0xff] %v3510
    %3624 = vst [vmem:[#allocation2 + $0x18] sm:$0xff] %v3512
    %3625 = vst [vmem:[#allocation2 + $0x20] sm:$0xff] %v3583
    %3626 = vst [vmem:[#allocation2 + $0x28] sm:$0xff] %v3585
    %3627 = vst [vmem:[#allocation2 + $0x30] sm:$0xff] %v3441
    %3628 = vst [vmem:[#allocation2 + $0x38] sm:$0xff] %v3443
    %3629 = vst [vmem:[#allocation2 + $0x40] sm:$0xff] %v3514
    %3630 = vst [vmem:[#allocation2 + $0x48] sm:$0xff] %v3516
    %3631 = vst [vmem:[#allocation2 + $0x50] sm:$0xff] %v3587
    %3632 = vst [vmem:[#allocation2 + $0x58] sm:$0xff] %v3589
    %3633 = vst [vmem:[#allocation2 + $0x60] sm:$0xff] %v3447
    %3634 = vst [vmem:[#allocation2 + $0x68] sm:$0xff] %v3449
    %3635 = vst [vmem:[#allocation2 + $0x70] sm:$0xff] %v3520
    %3636 = vst [vmem:[#allocation2 + $0x78] sm:$0xff] %v3522
    %3637 = vst [vmem:[#allocation2 + $0x80] sm:$0xff] %v3593
    %3638 = vst [vmem:[#allocation2 + $0x88] sm:$0xff] %v3595
    %3639 = vst [vmem:[#allocation2 + $0x90] sm:$0xff] %v3451
    %3640 = vst [vmem:[#allocation2 + $0x98] sm:$0xff] %v3453
    %3641 = vst [vmem:[#allocation2 + $0xa0] sm:$0xff] %v3524
    %3642 = vst [vmem:[#allocation2 + $0xa8] sm:$0xff] %v3526
    %3643 = vst [vmem:[#allocation2 + $0xb0] sm:$0xff] %v3597
    %3644 = vst [vmem:[#allocation2 + $0xb8] sm:$0xff] %v3599
    %3645 = vst [vmem:[#allocation2 + $0xc0] sm:$0xff] %v3457
    %3646 = vst [vmem:[#allocation2 + $0xc8] sm:$0xff] %v3459
    %3647 = vst [vmem:[#allocation2 + $0xd0] sm:$0xff] %v3530
    %3648 = vst [vmem:[#allocation2 + $0xd8] sm:$0xff] %v3532
    %3649 = vst [vmem:[#allocation2 + $0xe0] sm:$0xff] %v3603
    %3650 = vst [vmem:[#allocation2 + $0xe8] sm:$0xff] %v3605
    %3651 = vst [vmem:[#allocation2 + $0xf0] sm:$0xff] %v3461
    %3652 = vst [vmem:[#allocation2 + $0xf8] sm:$0xff] %v3463
    %3653 = vst [vmem:[#allocation2 + $0x100] sm:$0xff] %v3534
    %3654 = vst [vmem:[#allocation2 + $0x108] sm:$0xff] %v3536
    %3655 = vst [vmem:[#allocation2 + $0x110] sm:$0xff] %v3607
    %3656 = vst [vmem:[#allocation2 + $0x118] sm:$0xff] %v3609
    %3657 = vst [vmem:[#allocation2 + $0x120] sm:$0xff] %v3467
    %3658 = vst [vmem:[#allocation2 + $0x128] sm:$0xff] %v3469
    %3659 = vst [vmem:[#allocation2 + $0x130] sm:$0xff] %v3540
    %3660 = vst [vmem:[#allocation2 + $0x138] sm:$0xff] %v3542
    %3661 = vst [vmem:[#allocation2 + $0x140] sm:$0xff] %v3613
    %3662 = vst [vmem:[#allocation2 + $0x148] sm:$0xff] %v3615
    %3663 = vst [vmem:[#allocation2 + $0x150] sm:$0xff] %v3471
    %3664 = vst [vmem:[#allocation2 + $0x158] sm:$0xff] %v3473
    %3665 = vst [vmem:[#allocation2 + $0x160] sm:$0xff] %v3544
    %3666 = vst [vmem:[#allocation2 + $0x168] sm:$0xff] %v3546
    %3667 = vst [vmem:[#allocation2 + $0x170] sm:$0xff] %v3617
    %3668 = vst [vmem:[#allocation2 + $0x178] sm:$0xff] %v3619
    %v3670 = vlaneseq
    %v3671 = vshrl.u32 %v3670, 7
    %v3672 = vsub.s32 0, %v3671
    %v3673 = vrot.slane %v2890, %v3672
    %v3674 = vlaneseq
    %v3675 = vshrl.u32 %v3674, 7
    %v3676 = vsub.s32 1, %v3675
    %v3677 = vrot.slane %v2890, %v3676
    %v3678 = vlaneseq
    %v3679 = vshrl.u32 %v3678, 7
    %v3680 = vsub.s32 2, %v3679
    %v3681 = vrot.slane %v2890, %v3680
    %v3682 = vlaneseq
    %v3683 = vshrl.u32 %v3682, 7
    %v3684 = vsub.s32 3, %v3683
    %v3685 = vrot.slane %v2890, %v3684
    %v3686 = vlaneseq
    %v3687 = vshrl.u32 %v3686, 7
    %v3688 = vsub.s32 4, %v3687
    %v3689 = vrot.slane %v2890, %v3688
    %v3690 = vlaneseq
    %v3691 = vshrl.u32 %v3690, 7
    %v3692 = vsub.s32 5, %v3691
    %v3693 = vrot.slane %v2890, %v3692
    %v3796 = vunpack.c.l.b16 %v2792
    %v3797 = vunpack.c.h.b16 %v2792
    %v3798 = vunpack.c.l.b16 %v2793
    %v3799 = vunpack.c.h.b16 %v2793
    %v3800 = vunpack.c.l.b16 %v2794
    %v3801 = vunpack.c.h.b16 %v2794
    %v3802 = vunpack.c.l.b16 %v2795
    %v3803 = vunpack.c.h.b16 %v2795
    %v3804 = vunpack.c.l.b16 %v2796
    %v3805 = vunpack.c.h.b16 %v2796
    %v3806 = vunpack.c.l.b16 %v2797
    %v3807 = vunpack.c.h.b16 %v2797
    %v3808 = vunpack.c.l.b16 %v2798
    %v3809 = vunpack.c.h.b16 %v2798
    %v3810 = vunpack.c.l.b16 %v2799
    %v3811 = vunpack.c.h.b16 %v2799
    %v3812 = vunpack.c.l.b16 %v2800
    %v3813 = vunpack.c.h.b16 %v2800
    %v3814 = vunpack.c.l.b16 %v2801
    %v3815 = vunpack.c.h.b16 %v2801
    %v3816 = vunpack.c.l.b16 %v2802
    %v3817 = vunpack.c.h.b16 %v2802
    %v3818 = vunpack.c.l.b16 %v2803
    %v3819 = vunpack.c.h.b16 %v2803
    %v3820 = vunpack.c.l.b16 %v2804
    %v3821 = vunpack.c.h.b16 %v2804
    %v3822 = vunpack.c.l.b16 %v2805
    %v3823 = vunpack.c.h.b16 %v2805
    %v3824 = vunpack.c.l.b16 %v2806
    %v3825 = vunpack.c.h.b16 %v2806
    %v3826 = vunpack.c.l.b16 %v2807
    %v3827 = vunpack.c.h.b16 %v2807
    %v3828 = vunpack.c.l.b16 %v2808
    %v3829 = vunpack.c.h.b16 %v2808
    %v3830 = vunpack.c.l.b16 %v2809
    %v3831 = vunpack.c.h.b16 %v2809
    %v3832 = vunpack.c.l.b16 %v2810
    %v3833 = vunpack.c.h.b16 %v2810
    %v3834 = vunpack.c.l.b16 %v2811
    %v3835 = vunpack.c.h.b16 %v2811
    %v3836 = vunpack.c.l.b16 %v2812
    %v3837 = vunpack.c.h.b16 %v2812
    %v3838 = vunpack.c.l.b16 %v2813
    %v3839 = vunpack.c.h.b16 %v2813
    %v3840 = vunpack.c.l.b16 %v2814
    %v3841 = vunpack.c.h.b16 %v2814
    %v3842 = vunpack.c.l.b16 %v2815
    %v3843 = vunpack.c.h.b16 %v2815
    %v3844 = vunpack.c.l.b16 %v2816
    %v3845 = vunpack.c.h.b16 %v2816
    %v3846 = vunpack.c.l.b16 %v2817
    %v3847 = vunpack.c.h.b16 %v2817
    %v3848 = vunpack.c.l.b16 %v2818
    %v3849 = vunpack.c.h.b16 %v2818
    %v3850 = vunpack.c.l.b16 %v2819
    %v3851 = vunpack.c.h.b16 %v2819
    %v3852 = vunpack.c.l.b16 %v2820
    %v3853 = vunpack.c.h.b16 %v2820
    %v3854 = vunpack.c.l.b16 %v2821
    %v3855 = vunpack.c.h.b16 %v2821
    %v3856 = vunpack.c.l.b16 %v2822
    %v3857 = vunpack.c.h.b16 %v2822
    %v3858 = vunpack.c.l.b16 %v2823
    %v3859 = vunpack.c.h.b16 %v2823
    %v3860 = vunpack.c.l.b16 %v2824
    %v3861 = vunpack.c.h.b16 %v2824
    %v3862 = vunpack.c.l.b16 %v2825
    %v3863 = vunpack.c.h.b16 %v2825
    %v3864 = vunpack.c.l.b16 %v2826
    %v3865 = vunpack.c.h.b16 %v2826
    %v3866 = vunpack.c.l.b16 %v2827
    %v3867 = vunpack.c.h.b16 %v2827
    %v3868 = vunpack.c.l.b16 %v2828
    %v3869 = vunpack.c.h.b16 %v2828
    %v3870 = vunpack.c.l.b16 %v2829
    %v3871 = vunpack.c.h.b16 %v2829
    %v3872 = vunpack.c.l.b16 %v2830
    %v3873 = vunpack.c.h.b16 %v2830
    %v3874 = vunpack.c.l.b16 %v2831
    %v3875 = vunpack.c.h.b16 %v2831
    %v3876 = vunpack.c.l.b16 %v2832
    %v3877 = vunpack.c.h.b16 %v2832
    %v3878 = vunpack.c.l.b16 %v2833
    %v3879 = vunpack.c.h.b16 %v2833
    %v3880 = vunpack.c.l.b16 %v2834
    %v3881 = vunpack.c.h.b16 %v2834
    %v3882 = vunpack.c.l.b16 %v2835
    %v3883 = vunpack.c.h.b16 %v2835
    %v3884 = vunpack.c.l.b16 %v2836
    %v3885 = vunpack.c.h.b16 %v2836
    %v3886 = vunpack.c.l.b16 %v2837
    %v3887 = vunpack.c.h.b16 %v2837
    %v3888 = vunpack.c.l.b16 %v2838
    %v3889 = vunpack.c.h.b16 %v2838
    %v3890 = vunpack.c.l.b16 %v2839
    %v3891 = vunpack.c.h.b16 %v2839
    %v3892 = vunpack.c.l.b16 %v2840
    %v3893 = vunpack.c.h.b16 %v2840
    %v3894 = vunpack.c.l.b16 %v2841
    %v3895 = vunpack.c.h.b16 %v2841
    %v3896 = vunpack.c.l.b16 %v2842
    %v3897 = vunpack.c.h.b16 %v2842
    %v3898 = vunpack.c.l.b16 %v2843
    %v3899 = vunpack.c.h.b16 %v2843
    %v3900 = vunpack.c.l.b16 %v2844
    %v3901 = vunpack.c.h.b16 %v2844
    %v3902 = vunpack.c.l.b16 %v2845
    %v3903 = vunpack.c.h.b16 %v2845
    %v3904 = vunpack.c.l.b16 %v2846
    %v3905 = vunpack.c.h.b16 %v2846
    %v3906 = vunpack.c.l.b16 %v2847
    %v3907 = vunpack.c.h.b16 %v2847
    %v3908 = vunpack.c.l.b16 %v2848
    %v3909 = vunpack.c.h.b16 %v2848
    %v3910 = vunpack.c.l.b16 %v2849
    %v3911 = vunpack.c.h.b16 %v2849
    %v3912 = vunpack.c.l.b16 %v2850
    %v3913 = vunpack.c.h.b16 %v2850
    %v3914 = vunpack.c.l.b16 %v2851
    %v3915 = vunpack.c.h.b16 %v2851
    %v3916 = vunpack.c.l.b16 %v2852
    %v3917 = vunpack.c.h.b16 %v2852
    %v3918 = vunpack.c.l.b16 %v2853
    %v3919 = vunpack.c.h.b16 %v2853
    %v3920 = vunpack.c.l.b16 %v2854
    %v3921 = vunpack.c.h.b16 %v2854
    %v3922 = vunpack.c.l.b16 %v2855
    %v3923 = vunpack.c.h.b16 %v2855
    %v3924 = vunpack.c.l.b16 %v2856
    %v3925 = vunpack.c.h.b16 %v2856
    %v3926 = vunpack.c.l.b16 %v2857
    %v3927 = vunpack.c.h.b16 %v2857
    %v3928 = vunpack.c.l.b16 %v2858
    %v3929 = vunpack.c.h.b16 %v2858
    %v3930 = vunpack.c.l.b16 %v2859
    %v3931 = vunpack.c.h.b16 %v2859
    %v3932 = vunpack.c.l.b16 %v2860
    %v3933 = vunpack.c.h.b16 %v2860
    %v3934 = vunpack.c.l.b16 %v2861
    %v3935 = vunpack.c.h.b16 %v2861
    %v3936 = vunpack.c.l.b16 %v2862
    %v3937 = vunpack.c.h.b16 %v2862
    %v3938 = vunpack.c.l.b16 %v2863
    %v3939 = vunpack.c.h.b16 %v2863
    %v3940 = vunpack.c.l.b16 %v2864
    %v3941 = vunpack.c.h.b16 %v2864
    %v3942 = vunpack.c.l.b16 %v2865
    %v3943 = vunpack.c.h.b16 %v2865
    %v3944 = vunpack.c.l.b16 %v2866
    %v3945 = vunpack.c.h.b16 %v2866
    %v3946 = vunpack.c.l.b16 %v2867
    %v3947 = vunpack.c.h.b16 %v2867
    %v3948 = vunpack.c.l.b16 %v2868
    %v3949 = vunpack.c.h.b16 %v2868
    %v3950 = vunpack.c.l.b16 %v2869
    %v3951 = vunpack.c.h.b16 %v2869
    %v3952 = vunpack.c.l.b16 %v2870
    %v3953 = vunpack.c.h.b16 %v2870
    %v3954 = vunpack.c.l.b16 %v2871
    %v3955 = vunpack.c.h.b16 %v2871
    %v3956 = vunpack.c.l.b16 %v2872
    %v3957 = vunpack.c.h.b16 %v2872
    %v3958 = vunpack.c.l.b16 %v2873
    %v3959 = vunpack.c.h.b16 %v2873
    %v3960 = vunpack.c.l.b16 %v2874
    %v3961 = vunpack.c.h.b16 %v2874
    %v3962 = vunpack.c.l.b16 %v2875
    %v3963 = vunpack.c.h.b16 %v2875
    %v3964 = vunpack.c.l.b16 %v2876
    %v3965 = vunpack.c.h.b16 %v2876
    %v3966 = vunpack.c.l.b16 %v2877
    %v3967 = vunpack.c.h.b16 %v2877
    %v3968 = vunpack.c.l.b16 %v2878
    %v3969 = vunpack.c.h.b16 %v2878
    %v3970 = vunpack.c.l.b16 %v2879
    %v3971 = vunpack.c.h.b16 %v2879
    %v3972 = vunpack.c.l.b16 %v2880
    %v3973 = vunpack.c.h.b16 %v2880
    %v3974 = vunpack.c.l.b16 %v2881
    %v3975 = vunpack.c.h.b16 %v2881
    %v3976 = vunpack.c.l.b16 %v2882
    %v3977 = vunpack.c.h.b16 %v2882
    %v3978 = vunpack.c.l.b16 %v2883
    %v3979 = vunpack.c.h.b16 %v2883
    %v3980 = vunpack.c.l.b16 %v2884
    %v3981 = vunpack.c.h.b16 %v2884
    %v3982 = vunpack.c.l.b16 %v2885
    %v3983 = vunpack.c.h.b16 %v2885
    %v3984 = vunpack.c.l.b16 %v2886
    %v3985 = vunpack.c.h.b16 %v2886
    %v3986 = vunpack.c.l.b16 %v2887
    %v3987 = vunpack.c.h.b16 %v2887
    %v3988 = vpack.c.b16 %v3802, %v3796
    %v3989 = vpack.c.b16 %v3803, %v3797
    %v3990 = vpack.c.b16 %v3804, %v3798
    %v3991 = vpack.c.b16 %v3805, %v3799
    %v3992 = vpack.c.b16 %v3806, %v3800
    %v3993 = vpack.c.b16 %v3807, %v3801
    %v3994 = vpack.c.b16 %v3814, %v3808
    %v3995 = vpack.c.b16 %v3815, %v3809
    %v3996 = vpack.c.b16 %v3816, %v3810
    %v3997 = vpack.c.b16 %v3817, %v3811
    %v3998 = vpack.c.b16 %v3818, %v3812
    %v3999 = vpack.c.b16 %v3819, %v3813
    %v4000 = vpack.c.b16 %v3826, %v3820
    %v4001 = vpack.c.b16 %v3827, %v3821
    %v4002 = vpack.c.b16 %v3828, %v3822
    %v4003 = vpack.c.b16 %v3829, %v3823
    %v4004 = vpack.c.b16 %v3830, %v3824
    %v4005 = vpack.c.b16 %v3831, %v3825
    %v4006 = vpack.c.b16 %v3838, %v3832
    %v4007 = vpack.c.b16 %v3839, %v3833
    %v4008 = vpack.c.b16 %v3840, %v3834
    %v4009 = vpack.c.b16 %v3841, %v3835
    %v4010 = vpack.c.b16 %v3842, %v3836
    %v4011 = vpack.c.b16 %v3843, %v3837
    %v4012 = vpack.c.b16 %v3850, %v3844
    %v4013 = vpack.c.b16 %v3851, %v3845
    %v4014 = vpack.c.b16 %v3852, %v3846
    %v4015 = vpack.c.b16 %v3853, %v3847
    %v4016 = vpack.c.b16 %v3854, %v3848
    %v4017 = vpack.c.b16 %v3855, %v3849
    %v4018 = vpack.c.b16 %v3862, %v3856
    %v4019 = vpack.c.b16 %v3863, %v3857
    %v4020 = vpack.c.b16 %v3864, %v3858
    %v4021 = vpack.c.b16 %v3865, %v3859
    %v4022 = vpack.c.b16 %v3866, %v3860
    %v4023 = vpack.c.b16 %v3867, %v3861
    %v4024 = vpack.c.b16 %v3874, %v3868
    %v4025 = vpack.c.b16 %v3875, %v3869
    %v4026 = vpack.c.b16 %v3876, %v3870
    %v4027 = vpack.c.b16 %v3877, %v3871
    %v4028 = vpack.c.b16 %v3878, %v3872
    %v4029 = vpack.c.b16 %v3879, %v3873
    %v4030 = vpack.c.b16 %v3886, %v3880
    %v4031 = vpack.c.b16 %v3887, %v3881
    %v4032 = vpack.c.b16 %v3888, %v3882
    %v4033 = vpack.c.b16 %v3889, %v3883
    %v4034 = vpack.c.b16 %v3890, %v3884
    %v4035 = vpack.c.b16 %v3891, %v3885
    %v4036 = vpack.c.b16 %v3898, %v3892
    %v4037 = vpack.c.b16 %v3899, %v3893
    %v4038 = vpack.c.b16 %v3900, %v3894
    %v4039 = vpack.c.b16 %v3901, %v3895
    %v4040 = vpack.c.b16 %v3902, %v3896
    %v4041 = vpack.c.b16 %v3903, %v3897
    %v4042 = vpack.c.b16 %v3910, %v3904
    %v4043 = vpack.c.b16 %v3911, %v3905
    %v4044 = vpack.c.b16 %v3912, %v3906
    %v4045 = vpack.c.b16 %v3913, %v3907
    %v4046 = vpack.c.b16 %v3914, %v3908
    %v4047 = vpack.c.b16 %v3915, %v3909
    %v4048 = vpack.c.b16 %v3922, %v3916
    %v4049 = vpack.c.b16 %v3923, %v3917
    %v4050 = vpack.c.b16 %v3924, %v3918
    %v4051 = vpack.c.b16 %v3925, %v3919
    %v4052 = vpack.c.b16 %v3926, %v3920
    %v4053 = vpack.c.b16 %v3927, %v3921
    %v4054 = vpack.c.b16 %v3934, %v3928
    %v4055 = vpack.c.b16 %v3935, %v3929
    %v4056 = vpack.c.b16 %v3936, %v3930
    %v4057 = vpack.c.b16 %v3937, %v3931
    %v4058 = vpack.c.b16 %v3938, %v3932
    %v4059 = vpack.c.b16 %v3939, %v3933
    %v4060 = vpack.c.b16 %v3946, %v3940
    %v4061 = vpack.c.b16 %v3947, %v3941
    %v4062 = vpack.c.b16 %v3948, %v3942
    %v4063 = vpack.c.b16 %v3949, %v3943
    %v4064 = vpack.c.b16 %v3950, %v3944
    %v4065 = vpack.c.b16 %v3951, %v3945
    %v4066 = vpack.c.b16 %v3958, %v3952
    %v4067 = vpack.c.b16 %v3959, %v3953
    %v4068 = vpack.c.b16 %v3960, %v3954
    %v4069 = vpack.c.b16 %v3961, %v3955
    %v4070 = vpack.c.b16 %v3962, %v3956
    %v4071 = vpack.c.b16 %v3963, %v3957
    %v4072 = vpack.c.b16 %v3970, %v3964
    %v4073 = vpack.c.b16 %v3971, %v3965
    %v4074 = vpack.c.b16 %v3972, %v3966
    %v4075 = vpack.c.b16 %v3973, %v3967
    %v4076 = vpack.c.b16 %v3974, %v3968
    %v4077 = vpack.c.b16 %v3975, %v3969
    %v4078 = vpack.c.b16 %v3982, %v3976
    %v4079 = vpack.c.b16 %v3983, %v3977
    %v4080 = vpack.c.b16 %v3984, %v3978
    %v4081 = vpack.c.b16 %v3985, %v3979
    %v4082 = vpack.c.b16 %v3986, %v3980
    %v4083 = vpack.c.b16 %v3987, %v3981
    %4180 = vmatprep.subr.bf16.mxu0 %v3989
    %4181 = vmatpush1.bf16.msra.mxu0 %v3988
    %4182 = vmatprep.subr.bf16.mxu0 %v3995
    %4183 = vmatpush1.bf16.msra.mxu0 %v3994
    %4184 = vmatprep.subr.bf16.mxu0 %v4001
    %4185 = vmatpush1.bf16.msra.mxu0 %v4000
    %4186 = vmatprep.subr.bf16.mxu0 %v4007
    %4187 = vmatpush1.bf16.msra.mxu0 %v4006
    %4188 = vmatprep.subr.bf16.mxu0 %v4013
    %4189 = vmatpush1.bf16.msra.mxu0 %v4012
    %4190 = vmatprep.subr.bf16.mxu0 %v4019
    %4191 = vmatpush1.bf16.msra.mxu0 %v4018
    %4192 = vmatprep.subr.bf16.mxu0 %v4025
    %4193 = vmatpush1.bf16.msra.mxu0 %v4024
    %4194 = vmatprep.subr.bf16.mxu0 %v4031
    %4195 = vmatpush1.bf16.msra.mxu0 %v4030
    %4196 = vmatprep.subr.bf16.mxu0 %v4037
    %4197 = vmatpush1.bf16.msra.mxu0 %v4036
    %4198 = vmatprep.subr.bf16.mxu0 %v4043
    %4199 = vmatpush1.bf16.msra.mxu0 %v4042
    %4200 = vmatprep.subr.bf16.mxu0 %v4049
    %4201 = vmatpush1.bf16.msra.mxu0 %v4048
    %4202 = vmatprep.subr.bf16.mxu0 %v4055
    %4203 = vmatpush1.bf16.msra.mxu0 %v4054
    %4204 = vmatprep.subr.bf16.mxu0 %v4061
    %4205 = vmatpush1.bf16.msra.mxu0 %v4060
    %4206 = vmatprep.subr.bf16.mxu0 %v4067
    %4207 = vmatpush1.bf16.msra.mxu0 %v4066
    %4208 = vmatprep.subr.bf16.mxu0 %v4073
    %4209 = vmatpush1.bf16.msra.mxu0 %v4072
    %4210 = vmatprep.subr.bf16.mxu0 %v4079
    %4211 = vmatpush1.bf16.msra.mxu0 %v4078
    %4212 = vmatprep.mubr.bf16.mxu0 %v762
    %4213 = vmatmul.mubr.bf16.gmra.mrb[0].mxu0 %v762
    %v4214 = vpop.f32.mrb[0].mxu0
    %v4215 = vadd.f32 %v3673, %v4214
    %v4216 = vpop.f32.mrb[0].mxu0
    %v4217 = vadd.f32 %v3677, %v4216
    %v4218 = vpop.f32.mrb[0].mxu0
    %v4219 = vpop.f32.mrb[0].mxu0
    %4220 = vdwg.mxu0
    %4221 = vmatprep.subr.bf16.mxu0 %v3991
    %4222 = vmatpush1.bf16.msra.mxu0 %v3990
    %4223 = vmatprep.subr.bf16.mxu0 %v3997
    %4224 = vmatpush1.bf16.msra.mxu0 %v3996
    %4225 = vmatprep.subr.bf16.mxu0 %v4003
    %4226 = vmatpush1.bf16.msra.mxu0 %v4002
    %4227 = vmatprep.subr.bf16.mxu0 %v4009
    %4228 = vmatpush1.bf16.msra.mxu0 %v4008
    %4229 = vmatprep.subr.bf16.mxu0 %v4015
    %4230 = vmatpush1.bf16.msra.mxu0 %v4014
    %4231 = vmatprep.subr.bf16.mxu0 %v4021
    %4232 = vmatpush1.bf16.msra.mxu0 %v4020
    %4233 = vmatprep.subr.bf16.mxu0 %v4027
    %4234 = vmatpush1.bf16.msra.mxu0 %v4026
    %4235 = vmatprep.subr.bf16.mxu0 %v4033
    %4236 = vmatpush1.bf16.msra.mxu0 %v4032
    %4237 = vmatprep.subr.bf16.mxu0 %v4039
    %4238 = vmatpush1.bf16.msra.mxu0 %v4038
    %4239 = vmatprep.subr.bf16.mxu0 %v4045
    %4240 = vmatpush1.bf16.msra.mxu0 %v4044
    %4241 = vmatprep.subr.bf16.mxu0 %v4051
    %4242 = vmatpush1.bf16.msra.mxu0 %v4050
    %4243 = vmatprep.subr.bf16.mxu0 %v4057
    %4244 = vmatpush1.bf16.msra.mxu0 %v4056
    %4245 = vmatprep.subr.bf16.mxu0 %v4063
    %4246 = vmatpush1.bf16.msra.mxu0 %v4062
    %4247 = vmatprep.subr.bf16.mxu0 %v4069
    %4248 = vmatpush1.bf16.msra.mxu0 %v4068
    %4249 = vmatprep.subr.bf16.mxu0 %v4075
    %4250 = vmatpush1.bf16.msra.mxu0 %v4074
    %4251 = vmatprep.subr.bf16.mxu0 %v4081
    %4252 = vmatpush1.bf16.msra.mxu0 %v4080
    %4253 = vmatprep.mubr.bf16.mxu0 %v762
    %4254 = vmatmul.mubr.bf16.gmra.mrb[0].mxu0 %v762
    %v4255 = vpop.f32.mrb[0].mxu0
    %v4256 = vadd.f32 %v3681, %v4255
    %v4257 = vpop.f32.mrb[0].mxu0
    %v4258 = vadd.f32 %v3685, %v4257
    %v4259 = vpop.f32.mrb[0].mxu0
    %v4260 = vpop.f32.mrb[0].mxu0
    %4261 = vdwg.mxu0
    %4262 = vmatprep.subr.bf16.mxu0 %v3993
    %4263 = vmatpush1.bf16.msra.mxu0 %v3992
    %4264 = vmatprep.subr.bf16.mxu0 %v3999
    %4265 = vmatpush1.bf16.msra.mxu0 %v3998
    %4266 = vmatprep.subr.bf16.mxu0 %v4005
    %4267 = vmatpush1.bf16.msra.mxu0 %v4004
    %4268 = vmatprep.subr.bf16.mxu0 %v4011
    %4269 = vmatpush1.bf16.msra.mxu0 %v4010
    %4270 = vmatprep.subr.bf16.mxu0 %v4017
    %4271 = vmatpush1.bf16.msra.mxu0 %v4016
    %4272 = vmatprep.subr.bf16.mxu0 %v4023
    %4273 = vmatpush1.bf16.msra.mxu0 %v4022
    %4274 = vmatprep.subr.bf16.mxu0 %v4029
    %4275 = vmatpush1.bf16.msra.mxu0 %v4028
    %4276 = vmatprep.subr.bf16.mxu0 %v4035
    %4277 = vmatpush1.bf16.msra.mxu0 %v4034
    %4278 = vmatprep.subr.bf16.mxu0 %v4041
    %4279 = vmatpush1.bf16.msra.mxu0 %v4040
    %4280 = vmatprep.subr.bf16.mxu0 %v4047
    %4281 = vmatpush1.bf16.msra.mxu0 %v4046
    %4282 = vmatprep.subr.bf16.mxu0 %v4053
    %4283 = vmatpush1.bf16.msra.mxu0 %v4052
    %4284 = vmatprep.subr.bf16.mxu0 %v4059
    %4285 = vmatpush1.bf16.msra.mxu0 %v4058
    %4286 = vmatprep.subr.bf16.mxu0 %v4065
    %4287 = vmatpush1.bf16.msra.mxu0 %v4064
    %4288 = vmatprep.subr.bf16.mxu0 %v4071
    %4289 = vmatpush1.bf16.msra.mxu0 %v4070
    %4290 = vmatprep.subr.bf16.mxu0 %v4077
    %4291 = vmatpush1.bf16.msra.mxu0 %v4076
    %4292 = vmatprep.subr.bf16.mxu0 %v4083
    %4293 = vmatpush1.bf16.msra.mxu0 %v4082
    %4294 = vmatprep.mubr.bf16.mxu0 %v762
    %4295 = vmatmul.mubr.bf16.gmra.mrb[0].mxu0 %v762
    %v4296 = vpop.f32.mrb[0].mxu0
    %v4297 = vadd.f32 %v3689, %v4296
    %v4298 = vpop.f32.mrb[0].mxu0
    %v4299 = vadd.f32 %v3693, %v4298
    %v4300 = vpop.f32.mrb[0].mxu0
    %v4301 = vpop.f32.mrb[0].mxu0
    %4302 = vdwg.mxu0
    %v4303 = vld [vmem:[#allocation2] sm:$0xff]
    %v4304 = vld [vmem:[#allocation2 + $0x8] sm:$0xff]
    %v4305 = vld [vmem:[#allocation2 + $0x10] sm:$0xff]
    %v4306 = vld [vmem:[#allocation2 + $0x168] sm:$0xff]
    %v4307 = vld [vmem:[#allocation2 + $0x170] sm:$0xff]
    %v4308 = vld [vmem:[#allocation2 + $0x178] sm:$0xff]
    %v4309 = vadd.f32 %v4303, %v4215
    %v4310 = vadd.f32 %v4304, %v4217
    %v4311 = vxor.u32 %v4309, 2147483648
    %v4312 = vxor.u32 %v4310, 2147483648
    %v4313 = vmul.f32 %v4311, 1.442695
    %v4314 = vpow.pop %v4313
    %v4315 = vmul.f32 %v4312, 1.442695
    %v4316 = vpow.pop %v4315
    %v4317 = vadd.f32 %v4314, 1.0
    %v4318 = vadd.f32 %v4316, 1.0
    %v4319 = vrcp.pop %v4317
    %v4320 = vmul.f32 1.0, %v4319
    %v4321 = vrcp.pop %v4318
    %v4322 = vmul.f32 1.0, %v4321
    %v4323 = vmul.f32 %v4320, %v4256
    %v4324 = vadd.f32 %v4305, %v4323
    %v4325 = vtanh.pop %v4324
    %v4326 = vsub.f32 1.0, %v4322
    %v4327 = vmul.f32 %v4326, %v4325
    %v4328 = vmul.f32 %v4322, 0.0
    %v4329 = vadd.f32 %v4327, %v4328
    %v4330 = vadd.f32 %v4306, %v4258
    %v4331 = vadd.f32 %v4307, %v4297
    %v4332 = vxor.u32 %v4330, 2147483648
    %v4333 = vxor.u32 %v4331, 2147483648
    %v4334 = vmul.f32 %v4332, 1.442695
    %v4335 = vpow.pop %v4334
    %v4336 = vmul.f32 %v4333, 1.442695
    %v4337 = vpow.pop %v4336
    %v4338 = vadd.f32 %v4335, 1.0
    %v4339 = vadd.f32 %v4337, 1.0
    %v4340 = vrcp.pop %v4338
    %v4341 = vmul.f32 1.0, %v4340
    %v4342 = vrcp.pop %v4339
    %v4343 = vmul.f32 1.0, %v4342
    %v4344 = vmul.f32 %v4341, %v4299
    %v4345 = vadd.f32 %v4308, %v4344
    %v4346 = vtanh.pop %v4345
    %v4347 = vsub.f32 1.0, %v4343
    %v4348 = vmul.f32 %v4347, %v4346
    %v4349 = vmul.f32 %v4343, 0.0
    %v4350 = vadd.f32 %v4348, %v4349
    %4351 = vst [vmem:[#allocation3] sm:$0xff] %v4329
    %4352 = vst [vmem:[#allocation3 + $0x78] sm:$0xff] %v4350
    %v4353 = vpack.c.bf16 %v4329, %v4329
    %v4354 = vpack.c.bf16 %v4350, %v4350
    %4355 = vmatprep.subr.bf16.mxu0 %v3989
    %4356 = vmatpush1.bf16.msra.mxu0 %v3988
    %4357 = vmatprep.subr.bf16.mxu0 %v3995
    %4358 = vmatpush1.bf16.msra.mxu0 %v3994
    %4359 = vmatprep.subr.bf16.mxu0 %v4001
    %4360 = vmatpush1.bf16.msra.mxu0 %v4000
    %4361 = vmatprep.subr.bf16.mxu0 %v4007
    %4362 = vmatpush1.bf16.msra.mxu0 %v4006
    %4363 = vmatprep.subr.bf16.mxu0 %v4013
    %4364 = vmatpush1.bf16.msra.mxu0 %v4012
    %4365 = vmatprep.subr.bf16.mxu0 %v4019
    %4366 = vmatpush1.bf16.msra.mxu0 %v4018
    %4367 = vmatprep.subr.bf16.mxu0 %v4025
    %4368 = vmatpush1.bf16.msra.mxu0 %v4024
    %4369 = vmatprep.subr.bf16.mxu0 %v4031
    %4370 = vmatpush1.bf16.msra.mxu0 %v4030
    %4371 = vmatprep.subr.bf16.mxu0 %v4037
    %4372 = vmatpush1.bf16.msra.mxu0 %v4036
    %4373 = vmatprep.subr.bf16.mxu0 %v4043
    %4374 = vmatpush1.bf16.msra.mxu0 %v4042
    %4375 = vmatprep.subr.bf16.mxu0 %v4049
    %4376 = vmatpush1.bf16.msra.mxu0 %v4048
    %4377 = vmatprep.subr.bf16.mxu0 %v4055
    %4378 = vmatpush1.bf16.msra.mxu0 %v4054
    %4379 = vmatprep.subr.bf16.mxu0 %v4061
    %4380 = vmatpush1.bf16.msra.mxu0 %v4060
    %4381 = vmatprep.subr.bf16.mxu0 %v4067
    %4382 = vmatpush1.bf16.msra.mxu0 %v4066
    %4383 = vmatprep.subr.bf16.mxu0 %v4073
    %4384 = vmatpush1.bf16.msra.mxu0 %v4072
    %4385 = vmatprep.subr.bf16.mxu0 %v4079
    %4386 = vmatpush1.bf16.msra.mxu0 %v4078
    %4387 = vmatprep.mubr.bf16.mxu0 %v4354
    %4388 = vmatmul.mubr.bf16.gmra.mrb[0].mxu0 %v4353
    %v4389 = vpop.f32.mrb[0].mxu0
    %v4390 = vadd.f32 %v3673, %v4389
    %v4391 = vpop.f32.mrb[0].mxu0
    %v4392 = vadd.f32 %v3677, %v4391
    %v4393 = vpop.f32.mrb[0].mxu0
    %v4394 = vpop.f32.mrb[0].mxu0
    %4395 = vdwg.mxu0
    %4396 = vmatprep.subr.bf16.mxu0 %v3991
    %4397 = vmatpush1.bf16.msra.mxu0 %v3990
    %4398 = vmatprep.subr.bf16.mxu0 %v3997
    %4399 = vmatpush1.bf16.msra.mxu0 %v3996
    %4400 = vmatprep.subr.bf16.mxu0 %v4003
    %4401 = vmatpush1.bf16.msra.mxu0 %v4002
    %4402 = vmatprep.subr.bf16.mxu0 %v4009
    %4403 = vmatpush1.bf16.msra.mxu0 %v4008
    %4404 = vmatprep.subr.bf16.mxu0 %v4015
    %4405 = vmatpush1.bf16.msra.mxu0 %v4014
    %4406 = vmatprep.subr.bf16.mxu0 %v4021
    %4407 = vmatpush1.bf16.msra.mxu0 %v4020
    %4408 = vmatprep.subr.bf16.mxu0 %v4027
    %4409 = vmatpush1.bf16.msra.mxu0 %v4026
    %4410 = vmatprep.subr.bf16.mxu0 %v4033
    %4411 = vmatpush1.bf16.msra.mxu0 %v4032
    %4412 = vmatprep.subr.bf16.mxu0 %v4039
    %4413 = vmatpush1.bf16.msra.mxu0 %v4038
    %4414 = vmatprep.subr.bf16.mxu0 %v4045
    %4415 = vmatpush1.bf16.msra.mxu0 %v4044
    %4416 = vmatprep.subr.bf16.mxu0 %v4051
    %4417 = vmatpush1.bf16.msra.mxu0 %v4050
    %4418 = vmatprep.subr.bf16.mxu0 %v4057
    %4419 = vmatpush1.bf16.msra.mxu0 %v4056
    %4420 = vmatprep.subr.bf16.mxu0 %v4063
    %4421 = vmatpush1.bf16.msra.mxu0 %v4062
    %4422 = vmatprep.subr.bf16.mxu0 %v4069
    %4423 = vmatpush1.bf16.msra.mxu0 %v4068
    %4424 = vmatprep.subr.bf16.mxu0 %v4075
    %4425 = vmatpush1.bf16.msra.mxu0 %v4074
    %4426 = vmatprep.subr.bf16.mxu0 %v4081
    %4427 = vmatpush1.bf16.msra.mxu0 %v4080
    %4428 = vmatprep.mubr.bf16.mxu0 %v4354
    %4429 = vmatmul.mubr.bf16.gmra.mrb[0].mxu0 %v4353
    %v4430 = vpop.f32.mrb[0].mxu0
    %v4431 = vadd.f32 %v3681, %v4430
    %v4432 = vpop.f32.mrb[0].mxu0
    %v4433 = vadd.f32 %v3685, %v4432
    %v4434 = vpop.f32.mrb[0].mxu0
    %v4435 = vpop.f32.mrb[0].mxu0
    %4436 = vdwg.mxu0
    %4437 = vmatprep.subr.bf16.mxu0 %v3993
    %4438 = vmatpush1.bf16.msra.mxu0 %v3992
    %4439 = vmatprep.subr.bf16.mxu0 %v3999
    %4440 = vmatpush1.bf16.msra.mxu0 %v3998
    %4441 = vmatprep.subr.bf16.mxu0 %v4005
    %4442 = vmatpush1.bf16.msra.mxu0 %v4004
    %4443 = vmatprep.subr.bf16.mxu0 %v4011
    %4444 = vmatpush1.bf16.msra.mxu0 %v4010
    %4445 = vmatprep.subr.bf16.mxu0 %v4017
    %4446 = vmatpush1.bf16.msra.mxu0 %v4016
    %4447 = vmatprep.subr.bf16.mxu0 %v4023
    %4448 = vmatpush1.bf16.msra.mxu0 %v4022
    %4449 = vmatprep.subr.bf16.mxu0 %v4029
    %4450 = vmatpush1.bf16.msra.mxu0 %v4028
    %4451 = vmatprep.subr.bf16.mxu0 %v4035
    %4452 = vmatpush1.bf16.msra.mxu0 %v4034
    %4453 = vmatprep.subr.bf16.mxu0 %v4041
    %4454 = vmatpush1.bf16.msra.mxu0 %v4040
    %4455 = vmatprep.subr.bf16.mxu0 %v4047
    %4456 = vmatpush1.bf16.msra.mxu0 %v4046
    %4457 = vmatprep.subr.bf16.mxu0 %v4053
    %4458 = vmatpush1.bf16.msra.mxu0 %v4052
    %4459 = vmatprep.subr.bf16.mxu0 %v4059
    %4460 = vmatpush1.bf16.msra.mxu0 %v4058
    %4461 = vmatprep.subr.bf16.mxu0 %v4065
    %4462 = vmatpush1.bf16.msra.mxu0 %v4064
    %4463 = vmatprep.subr.bf16.mxu0 %v4071
    %4464 = vmatpush1.bf16.msra.mxu0 %v4070
    %4465 = vmatprep.subr.bf16.mxu0 %v4077
    %4466 = vmatpush1.bf16.msra.mxu0 %v4076
    %4467 = vmatprep.subr.bf16.mxu0 %v4083
    %4468 = vmatpush1.bf16.msra.mxu0 %v4082
    %4469 = vmatprep.mubr.bf16.mxu0 %v4354
    %4470 = vmatmul.mubr.bf16.gmra.mrb[0].mxu0 %v4353
    %v4471 = vpop.f32.mrb[0].mxu0
    %v4472 = vadd.f32 %v3689, %v4471
    %v4473 = vpop.f32.mrb[0].mxu0
    %v4474 = vadd.f32 %v3693, %v4473
    %v4475 = vpop.f32.mrb[0].mxu0
    %v4476 = vpop.f32.mrb[0].mxu0
    %4477 = vdwg.mxu0
    %v4478 = vld [vmem:[#allocation2 + $0x30] sm:$0xff]
    %v4479 = vld [vmem:[#allocation2 + $0x38] sm:$0xff]
    %v4480 = vld [vmem:[#allocation2 + $0x40] sm:$0xff]
    %v4481 = vld [vmem:[#allocation2 + $0x138] sm:$0xff]
    %v4482 = vld [vmem:[#allocation2 + $0x140] sm:$0xff]
    %v4483 = vld [vmem:[#allocation2 + $0x148] sm:$0xff]
    %v4484 = vadd.f32 %v4478, %v4390
    %v4485 = vadd.f32 %v4479, %v4392
    %v4486 = vxor.u32 %v4484, 2147483648
    %v4487 = vxor.u32 %v4485, 2147483648
    %v4488 = vmul.f32 %v4486, 1.442695
    %v4489 = vpow.pop %v4488
    %v4490 = vmul.f32 %v4487, 1.442695
    %v4491 = vpow.pop %v4490
    %v4492 = vadd.f32 %v4489, 1.0
    %v4493 = vadd.f32 %v4491, 1.0
    %v4494 = vrcp.pop %v4492
    %v4495 = vmul.f32 1.0, %v4494
    %v4496 = vrcp.pop %v4493
    %v4497 = vmul.f32 1.0, %v4496
    %v4498 = vmul.f32 %v4495, %v4431
    %v4499 = vadd.f32 %v4480, %v4498
    %v4500 = vtanh.pop %v4499
    %v4501 = vsub.f32 1.0, %v4497
    %v4502 = vmul.f32 %v4501, %v4500
    %v4503 = vmul.f32 %v4497, %v4329
    %v4504 = vadd.f32 %v4502, %v4503
    %v4505 = vadd.f32 %v4481, %v4433
    %v4506 = vadd.f32 %v4482, %v4472
    %v4507 = vxor.u32 %v4505, 2147483648
    %v4508 = vxor.u32 %v4506, 2147483648
    %v4509 = vmul.f32 %v4507, 1.442695
    %v4510 = vpow.pop %v4509
    %v4511 = vmul.f32 %v4508, 1.442695
    %v4512 = vpow.pop %v4511
    %v4513 = vadd.f32 %v4510, 1.0
    %v4514 = vadd.f32 %v4512, 1.0
    %v4515 = vrcp.pop %v4513
    %v4516 = vmul.f32 1.0, %v4515
    %v4517 = vrcp.pop %v4514
    %v4518 = vmul.f32 1.0, %v4517
    %v4519 = vmul.f32 %v4516, %v4474
    %v4520 = vadd.f32 %v4483, %v4519
    %v4521 = vtanh.pop %v4520
    %v4522 = vsub.f32 1.0, %v4518
    %v4523 = vmul.f32 %v4522, %v4521
    %v4524 = vmul.f32 %v4518, %v4350
    %v4525 = vadd.f32 %v4523, %v4524
    %4526 = vst [vmem:[#allocation3 + $0x10] sm:$0xff] %v4504
    %4527 = vst [vmem:[#allocation3 + $0x68] sm:$0xff] %v4525
    %v4528 = vpack.c.bf16 %v4504, %v4504
    %v4529 = vpack.c.bf16 %v4525, %v4525
    %4530 = vmatprep.subr.bf16.mxu0 %v3989
    %4531 = vmatpush1.bf16.msra.mxu0 %v3988
    %4532 = vmatprep.subr.bf16.mxu0 %v3995
    %4533 = vmatpush1.bf16.msra.mxu0 %v3994
    %4534 = vmatprep.subr.bf16.mxu0 %v4001
    %4535 = vmatpush1.bf16.msra.mxu0 %v4000
    %4536 = vmatprep.subr.bf16.mxu0 %v4007
    %4537 = vmatpush1.bf16.msra.mxu0 %v4006
    %4538 = vmatprep.subr.bf16.mxu0 %v4013
    %4539 = vmatpush1.bf16.msra.mxu0 %v4012
    %4540 = vmatprep.subr.bf16.mxu0 %v4019
    %4541 = vmatpush1.bf16.msra.mxu0 %v4018
    %4542 = vmatprep.subr.bf16.mxu0 %v4025
    %4543 = vmatpush1.bf16.msra.mxu0 %v4024
    %4544 = vmatprep.subr.bf16.mxu0 %v4031
    %4545 = vmatpush1.bf16.msra.mxu0 %v4030
    %4546 = vmatprep.subr.bf16.mxu0 %v4037
    %4547 = vmatpush1.bf16.msra.mxu0 %v4036
    %4548 = vmatprep.subr.bf16.mxu0 %v4043
    %4549 = vmatpush1.bf16.msra.mxu0 %v4042
    %4550 = vmatprep.subr.bf16.mxu0 %v4049
    %4551 = vmatpush1.bf16.msra.mxu0 %v4048
    %4552 = vmatprep.subr.bf16.mxu0 %v4055
    %4553 = vmatpush1.bf16.msra.mxu0 %v4054
    %4554 = vmatprep.subr.bf16.mxu0 %v4061
    %4555 = vmatpush1.bf16.msra.mxu0 %v4060
    %4556 = vmatprep.subr.bf16.mxu0 %v4067
    %4557 = vmatpush1.bf16.msra.mxu0 %v4066
    %4558 = vmatprep.subr.bf16.mxu0 %v4073
    %4559 = vmatpush1.bf16.msra.mxu0 %v4072
    %4560 = vmatprep.subr.bf16.mxu0 %v4079
    %4561 = vmatpush1.bf16.msra.mxu0 %v4078
    %4562 = vmatprep.mubr.bf16.mxu0 %v4529
    %4563 = vmatmul.mubr.bf16.gmra.mrb[0].mxu0 %v4528
    %v4564 = vpop.f32.mrb[0].mxu0
    %v4565 = vadd.f32 %v3673, %v4564
    %v4566 = vpop.f32.mrb[0].mxu0
    %v4567 = vadd.f32 %v3677, %v4566
    %v4568 = vpop.f32.mrb[0].mxu0
    %v4569 = vpop.f32.mrb[0].mxu0
    %4570 = vdwg.mxu0
    %4571 = vmatprep.subr.bf16.mxu0 %v3991
    %4572 = vmatpush1.bf16.msra.mxu0 %v3990
    %4573 = vmatprep.subr.bf16.mxu0 %v3997
    %4574 = vmatpush1.bf16.msra.mxu0 %v3996
    %4575 = vmatprep.subr.bf16.mxu0 %v4003
    %4576 = vmatpush1.bf16.msra.mxu0 %v4002
    %4577 = vmatprep.subr.bf16.mxu0 %v4009
    %4578 = vmatpush1.bf16.msra.mxu0 %v4008
    %4579 = vmatprep.subr.bf16.mxu0 %v4015
    %4580 = vmatpush1.bf16.msra.mxu0 %v4014
    %4581 = vmatprep.subr.bf16.mxu0 %v4021
    %4582 = vmatpush1.bf16.msra.mxu0 %v4020
    %4583 = vmatprep.subr.bf16.mxu0 %v4027
    %4584 = vmatpush1.bf16.msra.mxu0 %v4026
    %4585 = vmatprep.subr.bf16.mxu0 %v4033
    %4586 = vmatpush1.bf16.msra.mxu0 %v4032
    %4587 = vmatprep.subr.bf16.mxu0 %v4039
    %4588 = vmatpush1.bf16.msra.mxu0 %v4038
    %4589 = vmatprep.subr.bf16.mxu0 %v4045
    %4590 = vmatpush1.bf16.msra.mxu0 %v4044
    %4591 = vmatprep.subr.bf16.mxu0 %v4051
    %4592 = vmatpush1.bf16.msra.mxu0 %v4050
    %4593 = vmatprep.subr.bf16.mxu0 %v4057
    %4594 = vmatpush1.bf16.msra.mxu0 %v4056
    %4595 = vmatprep.subr.bf16.mxu0 %v4063
    %4596 = vmatpush1.bf16.msra.mxu0 %v4062
    %4597 = vmatprep.subr.bf16.mxu0 %v4069
    %4598 = vmatpush1.bf16.msra.mxu0 %v4068
    %4599 = vmatprep.subr.bf16.mxu0 %v4075
    %4600 = vmatpush1.bf16.msra.mxu0 %v4074
    %4601 = vmatprep.subr.bf16.mxu0 %v4081
    %4602 = vmatpush1.bf16.msra.mxu0 %v4080
    %4603 = vmatprep.mubr.bf16.mxu0 %v4529
    %4604 = vmatmul.mubr.bf16.gmra.mrb[0].mxu0 %v4528
    %v4605 = vpop.f32.mrb[0].mxu0
    %v4606 = vadd.f32 %v3681, %v4605
    %v4607 = vpop.f32.mrb[0].mxu0
    %v4608 = vadd.f32 %v3685, %v4607
    %v4609 = vpop.f32.mrb[0].mxu0
    %v4610 = vpop.f32.mrb[0].mxu0
    %4611 = vdwg.mxu0
    %4612 = vmatprep.subr.bf16.mxu0 %v3993
    %4613 = vmatpush1.bf16.msra.mxu0 %v3992
    %4614 = vmatprep.subr.bf16.mxu0 %v3999
    %4615 = vmatpush1.bf16.msra.mxu0 %v3998
    %4616 = vmatprep.subr.bf16.mxu0 %v4005
    %4617 = vmatpush1.bf16.msra.mxu0 %v4004
    %4618 = vmatprep.subr.bf16.mxu0 %v4011
    %4619 = vmatpush1.bf16.msra.mxu0 %v4010
    %4620 = vmatprep.subr.bf16.mxu0 %v4017
    %4621 = vmatpush1.bf16.msra.mxu0 %v4016
    %4622 = vmatprep.subr.bf16.mxu0 %v4023
    %4623 = vmatpush1.bf16.msra.mxu0 %v4022
    %4624 = vmatprep.subr.bf16.mxu0 %v4029
    %4625 = vmatpush1.bf16.msra.mxu0 %v4028
    %4626 = vmatprep.subr.bf16.mxu0 %v4035
    %4627 = vmatpush1.bf16.msra.mxu0 %v4034
    %4628 = vmatprep.subr.bf16.mxu0 %v4041
    %4629 = vmatpush1.bf16.msra.mxu0 %v4040
    %4630 = vmatprep.subr.bf16.mxu0 %v4047
    %4631 = vmatpush1.bf16.msra.mxu0 %v4046
    %4632 = vmatprep.subr.bf16.mxu0 %v4053
    %4633 = vmatpush1.bf16.msra.mxu0 %v4052
    %4634 = vmatprep.subr.bf16.mxu0 %v4059
    %4635 = vmatpush1.bf16.msra.mxu0 %v4058
    %4636 = vmatprep.subr.bf16.mxu0 %v4065
    %4637 = vmatpush1.bf16.msra.mxu0 %v4064
    %4638 = vmatprep.subr.bf16.mxu0 %v4071
    %4639 = vmatpush1.bf16.msra.mxu0 %v4070
    %4640 = vmatprep.subr.bf16.mxu0 %v4077
    %4641 = vmatpush1.bf16.msra.mxu0 %v4076
    %4642 = vmatprep.subr.bf16.mxu0 %v4083
    %4643 = vmatpush1.bf16.msra.mxu0 %v4082
    %4644 = vmatprep.mubr.bf16.mxu0 %v4529
    %4645 = vmatmul.mubr.bf16.gmra.mrb[0].mxu0 %v4528
    %v4646 = vpop.f32.mrb[0].mxu0
    %v4647 = vadd.f32 %v3689, %v4646
    %v4648 = vpop.f32.mrb[0].mxu0
    %v4649 = vadd.f32 %v3693, %v4648
    %v4650 = vpop.f32.mrb[0].mxu0
    %v4651 = vpop.f32.mrb[0].mxu0
    %4652 = vdwg.mxu0
    %v4653 = vld [vmem:[#allocation2 + $0x60] sm:$0xff]
    %v4654 = vld [vmem:[#allocation2 + $0x68] sm:$0xff]
    %v4655 = vld [vmem:[#allocation2 + $0x70] sm:$0xff]
    %v4656 = vld [vmem:[#allocation2 + $0x108] sm:$0xff]
    %v4657 = vld [vmem:[#allocation2 + $0x110] sm:$0xff]
    %v4658 = vld [vmem:[#allocation2 + $0x118] sm:$0xff]
    %v4659 = vadd.f32 %v4653, %v4565
    %v4660 = vadd.f32 %v4654, %v4567
    %v4661 = vxor.u32 %v4659, 2147483648
    %v4662 = vxor.u32 %v4660, 2147483648
    %v4663 = vmul.f32 %v4661, 1.442695
    %v4664 = vpow.pop %v4663
    %v4665 = vmul.f32 %v4662, 1.442695
    %v4666 = vpow.pop %v4665
    %v4667 = vadd.f32 %v4664, 1.0
    %v4668 = vadd.f32 %v4666, 1.0
    %v4669 = vrcp.pop %v4667
    %v4670 = vmul.f32 1.0, %v4669
    %v4671 = vrcp.pop %v4668
    %v4672 = vmul.f32 1.0, %v4671
    %v4673 = vmul.f32 %v4670, %v4606
    %v4674 = vadd.f32 %v4655, %v4673
    %v4675 = vtanh.pop %v4674
    %v4676 = vsub.f32 1.0, %v4672
    %v4677 = vmul.f32 %v4676, %v4675
    %v4678 = vmul.f32 %v4672, %v4504
    %v4679 = vadd.f32 %v4677, %v4678
    %v4680 = vadd.f32 %v4656, %v4608
    %v4681 = vadd.f32 %v4657, %v4647
    %v4682 = vxor.u32 %v4680, 2147483648
    %v4683 = vxor.u32 %v4681, 2147483648
    %v4684 = vmul.f32 %v4682, 1.442695
    %v4685 = vpow.pop %v4684
    %v4686 = vmul.f32 %v4683, 1.442695
    %v4687 = vpow.pop %v4686
    %v4688 = vadd.f32 %v4685, 1.0
    %v4689 = vadd.f32 %v4687, 1.0
    %v4690 = vrcp.pop %v4688
    %v4691 = vmul.f32 1.0, %v4690
    %v4692 = vrcp.pop %v4689
    %v4693 = vmul.f32 1.0, %v4692
    %v4694 = vmul.f32 %v4691, %v4649
    %v4695 = vadd.f32 %v4658, %v4694
    %v4696 = vtanh.pop %v4695
    %v4697 = vsub.f32 1.0, %v4693
    %v4698 = vmul.f32 %v4697, %v4696
    %v4699 = vmul.f32 %v4693, %v4525
    %v4700 = vadd.f32 %v4698, %v4699
    %4701 = vst [vmem:[#allocation3 + $0x20] sm:$0xff] %v4679
    %4702 = vst [vmem:[#allocation3 + $0x58] sm:$0xff] %v4700
    %v4703 = vpack.c.bf16 %v4679, %v4679
    %v4704 = vpack.c.bf16 %v4700, %v4700
    %4705 = vmatprep.subr.bf16.mxu0 %v3989
    %4706 = vmatpush1.bf16.msra.mxu0 %v3988
    %4707 = vmatprep.subr.bf16.mxu0 %v3995
    %4708 = vmatpush1.bf16.msra.mxu0 %v3994
    %4709 = vmatprep.subr.bf16.mxu0 %v4001
    %4710 = vmatpush1.bf16.msra.mxu0 %v4000
    %4711 = vmatprep.subr.bf16.mxu0 %v4007
    %4712 = vmatpush1.bf16.msra.mxu0 %v4006
    %4713 = vmatprep.subr.bf16.mxu0 %v4013
    %4714 = vmatpush1.bf16.msra.mxu0 %v4012
    %4715 = vmatprep.subr.bf16.mxu0 %v4019
    %4716 = vmatpush1.bf16.msra.mxu0 %v4018
    %4717 = vmatprep.subr.bf16.mxu0 %v4025
    %4718 = vmatpush1.bf16.msra.mxu0 %v4024
    %4719 = vmatprep.subr.bf16.mxu0 %v4031
    %4720 = vmatpush1.bf16.msra.mxu0 %v4030
    %4721 = vmatprep.subr.bf16.mxu0 %v4037
    %4722 = vmatpush1.bf16.msra.mxu0 %v4036
    %4723 = vmatprep.subr.bf16.mxu0 %v4043
    %4724 = vmatpush1.bf16.msra.mxu0 %v4042
    %4725 = vmatprep.subr.bf16.mxu0 %v4049
    %4726 = vmatpush1.bf16.msra.mxu0 %v4048
    %4727 = vmatprep.subr.bf16.mxu0 %v4055
    %4728 = vmatpush1.bf16.msra.mxu0 %v4054
    %4729 = vmatprep.subr.bf16.mxu0 %v4061
    %4730 = vmatpush1.bf16.msra.mxu0 %v4060
    %4731 = vmatprep.subr.bf16.mxu0 %v4067
    %4732 = vmatpush1.bf16.msra.mxu0 %v4066
    %4733 = vmatprep.subr.bf16.mxu0 %v4073
    %4734 = vmatpush1.bf16.msra.mxu0 %v4072
    %4735 = vmatprep.subr.bf16.mxu0 %v4079
    %4736 = vmatpush1.bf16.msra.mxu0 %v4078
    %4737 = vmatprep.mubr.bf16.mxu0 %v4704
    %4738 = vmatmul.mubr.bf16.gmra.mrb[0].mxu0 %v4703
    %v4739 = vpop.f32.mrb[0].mxu0
    %v4740 = vadd.f32 %v3673, %v4739
    %v4741 = vpop.f32.mrb[0].mxu0
    %v4742 = vadd.f32 %v3677, %v4741
    %v4743 = vpop.f32.mrb[0].mxu0
    %v4744 = vpop.f32.mrb[0].mxu0
    %4745 = vdwg.mxu0
    %4746 = vmatprep.subr.bf16.mxu0 %v3991
    %4747 = vmatpush1.bf16.msra.mxu0 %v3990
    %4748 = vmatprep.subr.bf16.mxu0 %v3997
    %4749 = vmatpush1.bf16.msra.mxu0 %v3996
    %4750 = vmatprep.subr.bf16.mxu0 %v4003
    %4751 = vmatpush1.bf16.msra.mxu0 %v4002
    %4752 = vmatprep.subr.bf16.mxu0 %v4009
    %4753 = vmatpush1.bf16.msra.mxu0 %v4008
    %4754 = vmatprep.subr.bf16.mxu0 %v4015
    %4755 = vmatpush1.bf16.msra.mxu0 %v4014
    %4756 = vmatprep.subr.bf16.mxu0 %v4021
    %4757 = vmatpush1.bf16.msra.mxu0 %v4020
    %4758 = vmatprep.subr.bf16.mxu0 %v4027
    %4759 = vmatpush1.bf16.msra.mxu0 %v4026
    %4760 = vmatprep.subr.bf16.mxu0 %v4033
    %4761 = vmatpush1.bf16.msra.mxu0 %v4032
    %4762 = vmatprep.subr.bf16.mxu0 %v4039
    %4763 = vmatpush1.bf16.msra.mxu0 %v4038
    %4764 = vmatprep.subr.bf16.mxu0 %v4045
    %4765 = vmatpush1.bf16.msra.mxu0 %v4044
    %4766 = vmatprep.subr.bf16.mxu0 %v4051
    %4767 = vmatpush1.bf16.msra.mxu0 %v4050
    %4768 = vmatprep.subr.bf16.mxu0 %v4057
    %4769 = vmatpush1.bf16.msra.mxu0 %v4056
    %4770 = vmatprep.subr.bf16.mxu0 %v4063
    %4771 = vmatpush1.bf16.msra.mxu0 %v4062
    %4772 = vmatprep.subr.bf16.mxu0 %v4069
    %4773 = vmatpush1.bf16.msra.mxu0 %v4068
    %4774 = vmatprep.subr.bf16.mxu0 %v4075
    %4775 = vmatpush1.bf16.msra.mxu0 %v4074
    %4776 = vmatprep.subr.bf16.mxu0 %v4081
    %4777 = vmatpush1.bf16.msra.mxu0 %v4080
    %4778 = vmatprep.mubr.bf16.mxu0 %v4704
    %4779 = vmatmul.mubr.bf16.gmra.mrb[0].mxu0 %v4703
    %v4780 = vpop.f32.mrb[0].mxu0
    %v4781 = vadd.f32 %v3681, %v4780
    %v4782 = vpop.f32.mrb[0].mxu0
    %v4783 = vadd.f32 %v3685, %v4782
    %v4784 = vpop.f32.mrb[0].mxu0
    %v4785 = vpop.f32.mrb[0].mxu0
    %4786 = vdwg.mxu0
    %4787 = vmatprep.subr.bf16.mxu0 %v3993
    %4788 = vmatpush1.bf16.msra.mxu0 %v3992
    %4789 = vmatprep.subr.bf16.mxu0 %v3999
    %4790 = vmatpush1.bf16.msra.mxu0 %v3998
    %4791 = vmatprep.subr.bf16.mxu0 %v4005
    %4792 = vmatpush1.bf16.msra.mxu0 %v4004
    %4793 = vmatprep.subr.bf16.mxu0 %v4011
    %4794 = vmatpush1.bf16.msra.mxu0 %v4010
    %4795 = vmatprep.subr.bf16.mxu0 %v4017
    %4796 = vmatpush1.bf16.msra.mxu0 %v4016
    %4797 = vmatprep.subr.bf16.mxu0 %v4023
    %4798 = vmatpush1.bf16.msra.mxu0 %v4022
    %4799 = vmatprep.subr.bf16.mxu0 %v4029
    %4800 = vmatpush1.bf16.msra.mxu0 %v4028
    %4801 = vmatprep.subr.bf16.mxu0 %v4035
    %4802 = vmatpush1.bf16.msra.mxu0 %v4034
    %4803 = vmatprep.subr.bf16.mxu0 %v4041
    %4804 = vmatpush1.bf16.msra.mxu0 %v4040
    %4805 = vmatprep.subr.bf16.mxu0 %v4047
    %4806 = vmatpush1.bf16.msra.mxu0 %v4046
    %4807 = vmatprep.subr.bf16.mxu0 %v4053
    %4808 = vmatpush1.bf16.msra.mxu0 %v4052
    %4809 = vmatprep.subr.bf16.mxu0 %v4059
    %4810 = vmatpush1.bf16.msra.mxu0 %v4058
    %4811 = vmatprep.subr.bf16.mxu0 %v4065
    %4812 = vmatpush1.bf16.msra.mxu0 %v4064
    %4813 = vmatprep.subr.bf16.mxu0 %v4071
    %4814 = vmatpush1.bf16.msra.mxu0 %v4070
    %4815 = vmatprep.subr.bf16.mxu0 %v4077
    %4816 = vmatpush1.bf16.msra.mxu0 %v4076
    %4817 = vmatprep.subr.bf16.mxu0 %v4083
    %4818 = vmatpush1.bf16.msra.mxu0 %v4082
    %4819 = vmatprep.mubr.bf16.mxu0 %v4704
    %4820 = vmatmul.mubr.bf16.gmra.mrb[0].mxu0 %v4703
    %v4821 = vpop.f32.mrb[0].mxu0
    %v4822 = vadd.f32 %v3689, %v4821
    %v4823 = vpop.f32.mrb[0].mxu0
    %v4824 = vadd.f32 %v3693, %v4823
    %v4825 = vpop.f32.mrb[0].mxu0
    %v4826 = vpop.f32.mrb[0].mxu0
    %4827 = vdwg.mxu0
    %v4828 = vld [vmem:[#allocation2 + $0x90] sm:$0xff]
    %v4829 = vld [vmem:[#allocation2 + $0x98] sm:$0xff]
    %v4830 = vld [vmem:[#allocation2 + $0xa0] sm:$0xff]
    %v4831 = vld [vmem:[#allocation2 + $0xd8] sm:$0xff]
    %v4832 = vld [vmem:[#allocation2 + $0xe0] sm:$0xff]
    %v4833 = vld [vmem:[#allocation2 + $0xe8] sm:$0xff]
    %v4834 = vadd.f32 %v4828, %v4740
    %v4835 = vadd.f32 %v4829, %v4742
    %v4836 = vxor.u32 %v4834, 2147483648
    %v4837 = vxor.u32 %v4835, 2147483648
    %v4838 = vmul.f32 %v4836, 1.442695
    %v4839 = vpow.pop %v4838
    %v4840 = vmul.f32 %v4837, 1.442695
    %v4841 = vpow.pop %v4840
    %v4842 = vadd.f32 %v4839, 1.0
    %v4843 = vadd.f32 %v4841, 1.0
    %v4844 = vrcp.pop %v4842
    %v4845 = vmul.f32 1.0, %v4844
    %v4846 = vrcp.pop %v4843
    %v4847 = vmul.f32 1.0, %v4846
    %v4848 = vmul.f32 %v4845, %v4781
    %v4849 = vadd.f32 %v4830, %v4848
    %v4850 = vtanh.pop %v4849
    %v4851 = vsub.f32 1.0, %v4847
    %v4852 = vmul.f32 %v4851, %v4850
    %v4853 = vmul.f32 %v4847, %v4679
    %v4854 = vadd.f32 %v4852, %v4853
    %v4855 = vadd.f32 %v4831, %v4783
    %v4856 = vadd.f32 %v4832, %v4822
    %v4857 = vxor.u32 %v4855, 2147483648
    %v4858 = vxor.u32 %v4856, 2147483648
    %v4859 = vmul.f32 %v4857, 1.442695
    %v4860 = vpow.pop %v4859
    %v4861 = vmul.f32 %v4858, 1.442695
    %v4862 = vpow.pop %v4861
    %v4863 = vadd.f32 %v4860, 1.0
    %v4864 = vadd.f32 %v4862, 1.0
    %v4865 = vrcp.pop %v4863
    %v4866 = vmul.f32 1.0, %v4865
    %v4867 = vrcp.pop %v4864
    %v4868 = vmul.f32 1.0, %v4867
    %v4869 = vmul.f32 %v4866, %v4824
    %v4870 = vadd.f32 %v4833, %v4869
    %v4871 = vtanh.pop %v4870
    %v4872 = vsub.f32 1.0, %v4868
    %v4873 = vmul.f32 %v4872, %v4871
    %v4874 = vmul.f32 %v4868, %v4700
    %v4875 = vadd.f32 %v4873, %v4874
    %4876 = vst [vmem:[#allocation3 + $0x30] sm:$0xff] %v4854
    %4877 = vst [vmem:[#allocation3 + $0x48] sm:$0xff] %v4875
    %v4878 = vpack.c.bf16 %v4854, %v4854
    %v4879 = vpack.c.bf16 %v4875, %v4875
    %4880 = vmatprep.subr.bf16.mxu0 %v3989
    %4881 = vmatpush1.bf16.msra.mxu0 %v3988
    %4882 = vmatprep.subr.bf16.mxu0 %v3995
    %4883 = vmatpush1.bf16.msra.mxu0 %v3994
    %4884 = vmatprep.subr.bf16.mxu0 %v4001
    %4885 = vmatpush1.bf16.msra.mxu0 %v4000
    %4886 = vmatprep.subr.bf16.mxu0 %v4007
    %4887 = vmatpush1.bf16.msra.mxu0 %v4006
    %4888 = vmatprep.subr.bf16.mxu0 %v4013
    %4889 = vmatpush1.bf16.msra.mxu0 %v4012
    %4890 = vmatprep.subr.bf16.mxu0 %v4019
    %4891 = vmatpush1.bf16.msra.mxu0 %v4018
    %4892 = vmatprep.subr.bf16.mxu0 %v4025
    %4893 = vmatpush1.bf16.msra.mxu0 %v4024
    %4894 = vmatprep.subr.bf16.mxu0 %v4031
    %4895 = vmatpush1.bf16.msra.mxu0 %v4030
    %4896 = vmatprep.subr.bf16.mxu0 %v4037
    %4897 = vmatpush1.bf16.msra.mxu0 %v4036
    %4898 = vmatprep.subr.bf16.mxu0 %v4043
    %4899 = vmatpush1.bf16.msra.mxu0 %v4042
    %4900 = vmatprep.subr.bf16.mxu0 %v4049
    %4901 = vmatpush1.bf16.msra.mxu0 %v4048
    %4902 = vmatprep.subr.bf16.mxu0 %v4055
    %4903 = vmatpush1.bf16.msra.mxu0 %v4054
    %4904 = vmatprep.subr.bf16.mxu0 %v4061
    %4905 = vmatpush1.bf16.msra.mxu0 %v4060
    %4906 = vmatprep.subr.bf16.mxu0 %v4067
    %4907 = vmatpush1.bf16.msra.mxu0 %v4066
    %4908 = vmatprep.subr.bf16.mxu0 %v4073
    %4909 = vmatpush1.bf16.msra.mxu0 %v4072
    %4910 = vmatprep.subr.bf16.mxu0 %v4079
    %4911 = vmatpush1.bf16.msra.mxu0 %v4078
    %4912 = vmatprep.mubr.bf16.mxu0 %v4879
    %4913 = vmatmul.mubr.bf16.gmra.mrb[0].mxu0 %v4878
    %v4914 = vpop.f32.mrb[0].mxu0
    %v4915 = vadd.f32 %v3673, %v4914
    %v4916 = vpop.f32.mrb[0].mxu0
    %v4917 = vadd.f32 %v3677, %v4916
    %v4918 = vpop.f32.mrb[0].mxu0
    %v4919 = vpop.f32.mrb[0].mxu0
    %4920 = vdwg.mxu0
    %4921 = vmatprep.subr.bf16.mxu0 %v3991
    %4922 = vmatpush1.bf16.msra.mxu0 %v3990
    %4923 = vmatprep.subr.bf16.mxu0 %v3997
    %4924 = vmatpush1.bf16.msra.mxu0 %v3996
    %4925 = vmatprep.subr.bf16.mxu0 %v4003
    %4926 = vmatpush1.bf16.msra.mxu0 %v4002
    %4927 = vmatprep.subr.bf16.mxu0 %v4009
    %4928 = vmatpush1.bf16.msra.mxu0 %v4008
    %4929 = vmatprep.subr.bf16.mxu0 %v4015
    %4930 = vmatpush1.bf16.msra.mxu0 %v4014
    %4931 = vmatprep.subr.bf16.mxu0 %v4021
    %4932 = vmatpush1.bf16.msra.mxu0 %v4020
    %4933 = vmatprep.subr.bf16.mxu0 %v4027
    %4934 = vmatpush1.bf16.msra.mxu0 %v4026
    %4935 = vmatprep.subr.bf16.mxu0 %v4033
    %4936 = vmatpush1.bf16.msra.mxu0 %v4032
    %4937 = vmatprep.subr.bf16.mxu0 %v4039
    %4938 = vmatpush1.bf16.msra.mxu0 %v4038
    %4939 = vmatprep.subr.bf16.mxu0 %v4045
    %4940 = vmatpush1.bf16.msra.mxu0 %v4044
    %4941 = vmatprep.subr.bf16.mxu0 %v4051
    %4942 = vmatpush1.bf16.msra.mxu0 %v4050
    %4943 = vmatprep.subr.bf16.mxu0 %v4057
    %4944 = vmatpush1.bf16.msra.mxu0 %v4056
    %4945 = vmatprep.subr.bf16.mxu0 %v4063
    %4946 = vmatpush1.bf16.msra.mxu0 %v4062
    %4947 = vmatprep.subr.bf16.mxu0 %v4069
    %4948 = vmatpush1.bf16.msra.mxu0 %v4068
    %4949 = vmatprep.subr.bf16.mxu0 %v4075
    %4950 = vmatpush1.bf16.msra.mxu0 %v4074
    %4951 = vmatprep.subr.bf16.mxu0 %v4081
    %4952 = vmatpush1.bf16.msra.mxu0 %v4080
    %4953 = vmatprep.mubr.bf16.mxu0 %v4879
    %4954 = vmatmul.mubr.bf16.gmra.mrb[0].mxu0 %v4878
    %v4955 = vpop.f32.mrb[0].mxu0
    %v4956 = vadd.f32 %v3681, %v4955
    %v4957 = vpop.f32.mrb[0].mxu0
    %v4958 = vadd.f32 %v3685, %v4957
    %v4959 = vpop.f32.mrb[0].mxu0
    %v4960 = vpop.f32.mrb[0].mxu0
    %4961 = vdwg.mxu0
    %4962 = vmatprep.subr.bf16.mxu0 %v3993
    %4963 = vmatpush1.bf16.msra.mxu0 %v3992
    %4964 = vmatprep.subr.bf16.mxu0 %v3999
    %4965 = vmatpush1.bf16.msra.mxu0 %v3998
    %4966 = vmatprep.subr.bf16.mxu0 %v4005
    %4967 = vmatpush1.bf16.msra.mxu0 %v4004
    %4968 = vmatprep.subr.bf16.mxu0 %v4011
    %4969 = vmatpush1.bf16.msra.mxu0 %v4010
    %4970 = vmatprep.subr.bf16.mxu0 %v4017
    %4971 = vmatpush1.bf16.msra.mxu0 %v4016
    %4972 = vmatprep.subr.bf16.mxu0 %v4023
    %4973 = vmatpush1.bf16.msra.mxu0 %v4022
    %4974 = vmatprep.subr.bf16.mxu0 %v4029
    %4975 = vmatpush1.bf16.msra.mxu0 %v4028
    %4976 = vmatprep.subr.bf16.mxu0 %v4035
    %4977 = vmatpush1.bf16.msra.mxu0 %v4034
    %4978 = vmatprep.subr.bf16.mxu0 %v4041
    %4979 = vmatpush1.bf16.msra.mxu0 %v4040
    %4980 = vmatprep.subr.bf16.mxu0 %v4047
    %4981 = vmatpush1.bf16.msra.mxu0 %v4046
    %4982 = vmatprep.subr.bf16.mxu0 %v4053
    %4983 = vmatpush1.bf16.msra.mxu0 %v4052
    %4984 = vmatprep.subr.bf16.mxu0 %v4059
    %4985 = vmatpush1.bf16.msra.mxu0 %v4058
    %4986 = vmatprep.subr.bf16.mxu0 %v4065
    %4987 = vmatpush1.bf16.msra.mxu0 %v4064
    %4988 = vmatprep.subr.bf16.mxu0 %v4071
    %4989 = vmatpush1.bf16.msra.mxu0 %v4070
    %4990 = vmatprep.subr.bf16.mxu0 %v4077
    %4991 = vmatpush1.bf16.msra.mxu0 %v4076
    %4992 = vmatprep.subr.bf16.mxu0 %v4083
    %4993 = vmatpush1.bf16.msra.mxu0 %v4082
    %4994 = vmatprep.mubr.bf16.mxu0 %v4879
    %4995 = vmatmul.mubr.bf16.gmra.mrb[0].mxu0 %v4878
    %v4996 = vpop.f32.mrb[0].mxu0
    %v4997 = vadd.f32 %v3689, %v4996
    %v4998 = vpop.f32.mrb[0].mxu0
    %v4999 = vadd.f32 %v3693, %v4998
    %v5000 = vpop.f32.mrb[0].mxu0
    %v5001 = vpop.f32.mrb[0].mxu0
    %5002 = vdwg.mxu0
    %v5003 = vld [vmem:[#allocation2 + $0xc0] sm:$0xff]
    %v5004 = vld [vmem:[#allocation2 + $0xc8] sm:$0xff]
    %v5005 = vld [vmem:[#allocation2 + $0xd0] sm:$0xff]
    %v5006 = vld [vmem:[#allocation2 + $0xa8] sm:$0xff]
    %v5007 = vld [vmem:[#allocation2 + $0xb0] sm:$0xff]
    %v5008 = vld [vmem:[#allocation2 + $0xb8] sm:$0xff]
    %v5009 = vadd.f32 %v5003, %v4915
    %v5010 = vadd.f32 %v5004, %v4917
    %v5011 = vxor.u32 %v5009, 2147483648
    %v5012 = vxor.u32 %v5010, 2147483648
    %v5013 = vmul.f32 %v5011, 1.442695
    %v5014 = vpow.pop %v5013
    %v5015 = vmul.f32 %v5012, 1.442695
    %v5016 = vpow.pop %v5015
    %v5017 = vadd.f32 %v5014, 1.0
    %v5018 = vadd.f32 %v5016, 1.0
    %v5019 = vrcp.pop %v5017
    %v5020 = vmul.f32 1.0, %v5019
    %v5021 = vrcp.pop %v5018
    %v5022 = vmul.f32 1.0, %v5021
    %v5023 = vmul.f32 %v5020, %v4956
    %v5024 = vadd.f32 %v5005, %v5023
    %v5025 = vtanh.pop %v5024
    %v5026 = vsub.f32 1.0, %v5022
    %v5027 = vmul.f32 %v5026, %v5025
    %v5028 = vmul.f32 %v5022, %v4854
    %v5029 = vadd.f32 %v5027, %v5028
    %v5030 = vadd.f32 %v5006, %v4958
    %v5031 = vadd.f32 %v5007, %v4997
    %v5032 = vxor.u32 %v5030, 2147483648
    %v5033 = vxor.u32 %v5031, 2147483648
    %v5034 = vmul.f32 %v5032, 1.442695
    %v5035 = vpow.pop %v5034
    %v5036 = vmul.f32 %v5033, 1.442695
    %v5037 = vpow.pop %v5036
    %v5038 = vadd.f32 %v5035, 1.0
    %v5039 = vadd.f32 %v5037, 1.0
    %v5040 = vrcp.pop %v5038
    %v5041 = vmul.f32 1.0, %v5040
    %v5042 = vrcp.pop %v5039
    %v5043 = vmul.f32 1.0, %v5042
    %v5044 = vmul.f32 %v5041, %v4999
    %v5045 = vadd.f32 %v5008, %v5044
    %v5046 = vtanh.pop %v5045
    %v5047 = vsub.f32 1.0, %v5043
    %v5048 = vmul.f32 %v5047, %v5046
    %v5049 = vmul.f32 %v5043, %v4875
    %v5050 = vadd.f32 %v5048, %v5049
    %5051 = vst [vmem:[#allocation3 + $0x40] sm:$0xff] %v5029
    %5052 = vst [vmem:[#allocation3 + $0x38] sm:$0xff] %v5050
    %v5053 = vpack.c.bf16 %v5029, %v5029
    %v5054 = vpack.c.bf16 %v5050, %v5050
    %5055 = vmatprep.subr.bf16.mxu0 %v3989
    %5056 = vmatpush1.bf16.msra.mxu0 %v3988
    %5057 = vmatprep.subr.bf16.mxu0 %v3995
    %5058 = vmatpush1.bf16.msra.mxu0 %v3994
    %5059 = vmatprep.subr.bf16.mxu0 %v4001
    %5060 = vmatpush1.bf16.msra.mxu0 %v4000
    %5061 = vmatprep.subr.bf16.mxu0 %v4007
    %5062 = vmatpush1.bf16.msra.mxu0 %v4006
    %5063 = vmatprep.subr.bf16.mxu0 %v4013
    %5064 = vmatpush1.bf16.msra.mxu0 %v4012
    %5065 = vmatprep.subr.bf16.mxu0 %v4019
    %5066 = vmatpush1.bf16.msra.mxu0 %v4018
    %5067 = vmatprep.subr.bf16.mxu0 %v4025
    %5068 = vmatpush1.bf16.msra.mxu0 %v4024
    %5069 = vmatprep.subr.bf16.mxu0 %v4031
    %5070 = vmatpush1.bf16.msra.mxu0 %v4030
    %5071 = vmatprep.subr.bf16.mxu0 %v4037
    %5072 = vmatpush1.bf16.msra.mxu0 %v4036
    %5073 = vmatprep.subr.bf16.mxu0 %v4043
    %5074 = vmatpush1.bf16.msra.mxu0 %v4042
    %5075 = vmatprep.subr.bf16.mxu0 %v4049
    %5076 = vmatpush1.bf16.msra.mxu0 %v4048
    %5077 = vmatprep.subr.bf16.mxu0 %v4055
    %5078 = vmatpush1.bf16.msra.mxu0 %v4054
    %5079 = vmatprep.subr.bf16.mxu0 %v4061
    %5080 = vmatpush1.bf16.msra.mxu0 %v4060
    %5081 = vmatprep.subr.bf16.mxu0 %v4067
    %5082 = vmatpush1.bf16.msra.mxu0 %v4066
    %5083 = vmatprep.subr.bf16.mxu0 %v4073
    %5084 = vmatpush1.bf16.msra.mxu0 %v4072
    %5085 = vmatprep.subr.bf16.mxu0 %v4079
    %5086 = vmatpush1.bf16.msra.mxu0 %v4078
    %5087 = vmatprep.mubr.bf16.mxu0 %v5054
    %5088 = vmatmul.mubr.bf16.gmra.mrb[0].mxu0 %v5053
    %v5089 = vpop.f32.mrb[0].mxu0
    %v5090 = vadd.f32 %v3673, %v5089
    %v5091 = vpop.f32.mrb[0].mxu0
    %v5092 = vadd.f32 %v3677, %v5091
    %v5093 = vpop.f32.mrb[0].mxu0
    %v5094 = vpop.f32.mrb[0].mxu0
    %5095 = vdwg.mxu0
    %5096 = vmatprep.subr.bf16.mxu0 %v3991
    %5097 = vmatpush1.bf16.msra.mxu0 %v3990
    %5098 = vmatprep.subr.bf16.mxu0 %v3997
    %5099 = vmatpush1.bf16.msra.mxu0 %v3996
    %5100 = vmatprep.subr.bf16.mxu0 %v4003
    %5101 = vmatpush1.bf16.msra.mxu0 %v4002
    %5102 = vmatprep.subr.bf16.mxu0 %v4009
    %5103 = vmatpush1.bf16.msra.mxu0 %v4008
    %5104 = vmatprep.subr.bf16.mxu0 %v4015
    %5105 = vmatpush1.bf16.msra.mxu0 %v4014
    %5106 = vmatprep.subr.bf16.mxu0 %v4021
    %5107 = vmatpush1.bf16.msra.mxu0 %v4020
    %5108 = vmatprep.subr.bf16.mxu0 %v4027
    %5109 = vmatpush1.bf16.msra.mxu0 %v4026
    %5110 = vmatprep.subr.bf16.mxu0 %v4033
    %5111 = vmatpush1.bf16.msra.mxu0 %v4032
    %5112 = vmatprep.subr.bf16.mxu0 %v4039
    %5113 = vmatpush1.bf16.msra.mxu0 %v4038
    %5114 = vmatprep.subr.bf16.mxu0 %v4045
    %5115 = vmatpush1.bf16.msra.mxu0 %v4044
    %5116 = vmatprep.subr.bf16.mxu0 %v4051
    %5117 = vmatpush1.bf16.msra.mxu0 %v4050
    %5118 = vmatprep.subr.bf16.mxu0 %v4057
    %5119 = vmatpush1.bf16.msra.mxu0 %v4056
    %5120 = vmatprep.subr.bf16.mxu0 %v4063
    %5121 = vmatpush1.bf16.msra.mxu0 %v4062
    %5122 = vmatprep.subr.bf16.mxu0 %v4069
    %5123 = vmatpush1.bf16.msra.mxu0 %v4068
    %5124 = vmatprep.subr.bf16.mxu0 %v4075
    %5125 = vmatpush1.bf16.msra.mxu0 %v4074
    %5126 = vmatprep.subr.bf16.mxu0 %v4081
    %5127 = vmatpush1.bf16.msra.mxu0 %v4080
    %5128 = vmatprep.mubr.bf16.mxu0 %v5054
    %5129 = vmatmul.mubr.bf16.gmra.mrb[0].mxu0 %v5053
    %v5130 = vpop.f32.mrb[0].mxu0
    %v5131 = vadd.f32 %v3681, %v5130
    %v5132 = vpop.f32.mrb[0].mxu0
    %v5133 = vadd.f32 %v3685, %v5132
    %v5134 = vpop.f32.mrb[0].mxu0
    %v5135 = vpop.f32.mrb[0].mxu0
    %5136 = vdwg.mxu0
    %5137 = vmatprep.subr.bf16.mxu0 %v3993
    %5138 = vmatpush1.bf16.msra.mxu0 %v3992
    %5139 = vmatprep.subr.bf16.mxu0 %v3999
    %5140 = vmatpush1.bf16.msra.mxu0 %v3998
    %5141 = vmatprep.subr.bf16.mxu0 %v4005
    %5142 = vmatpush1.bf16.msra.mxu0 %v4004
    %5143 = vmatprep.subr.bf16.mxu0 %v4011
    %5144 = vmatpush1.bf16.msra.mxu0 %v4010
    %5145 = vmatprep.subr.bf16.mxu0 %v4017
    %5146 = vmatpush1.bf16.msra.mxu0 %v4016
    %5147 = vmatprep.subr.bf16.mxu0 %v4023
    %5148 = vmatpush1.bf16.msra.mxu0 %v4022
    %5149 = vmatprep.subr.bf16.mxu0 %v4029
    %5150 = vmatpush1.bf16.msra.mxu0 %v4028
    %5151 = vmatprep.subr.bf16.mxu0 %v4035
    %5152 = vmatpush1.bf16.msra.mxu0 %v4034
    %5153 = vmatprep.subr.bf16.mxu0 %v4041
    %5154 = vmatpush1.bf16.msra.mxu0 %v4040
    %5155 = vmatprep.subr.bf16.mxu0 %v4047
    %5156 = vmatpush1.bf16.msra.mxu0 %v4046
    %5157 = vmatprep.subr.bf16.mxu0 %v4053
    %5158 = vmatpush1.bf16.msra.mxu0 %v4052
    %5159 = vmatprep.subr.bf16.mxu0 %v4059
    %5160 = vmatpush1.bf16.msra.mxu0 %v4058
    %5161 = vmatprep.subr.bf16.mxu0 %v4065
    %5162 = vmatpush1.bf16.msra.mxu0 %v4064
    %5163 = vmatprep.subr.bf16.mxu0 %v4071
    %5164 = vmatpush1.bf16.msra.mxu0 %v4070
    %5165 = vmatprep.subr.bf16.mxu0 %v4077
    %5166 = vmatpush1.bf16.msra.mxu0 %v4076
    %5167 = vmatprep.subr.bf16.mxu0 %v4083
    %5168 = vmatpush1.bf16.msra.mxu0 %v4082
    %5169 = vmatprep.mubr.bf16.mxu0 %v5054
    %5170 = vmatmul.mubr.bf16.gmra.mrb[0].mxu0 %v5053
    %v5171 = vpop.f32.mrb[0].mxu0
    %v5172 = vadd.f32 %v3689, %v5171
    %v5173 = vpop.f32.mrb[0].mxu0
    %v5174 = vadd.f32 %v3693, %v5173
    %v5175 = vpop.f32.mrb[0].mxu0
    %v5176 = vpop.f32.mrb[0].mxu0
    %5177 = vdwg.mxu0
    %v5178 = vld [vmem:[#allocation2 + $0xf0] sm:$0xff]
    %v5179 = vld [vmem:[#allocation2 + $0xf8] sm:$0xff]
    %v5180 = vld [vmem:[#allocation2 + $0x100] sm:$0xff]
    %v5181 = vld [vmem:[#allocation2 + $0x78] sm:$0xff]
    %v5182 = vld [vmem:[#allocation2 + $0x80] sm:$0xff]
    %v5183 = vld [vmem:[#allocation2 + $0x88] sm:$0xff]
    %v5184 = vadd.f32 %v5178, %v5090
    %v5185 = vadd.f32 %v5179, %v5092
    %v5186 = vxor.u32 %v5184, 2147483648
    %v5187 = vxor.u32 %v5185, 2147483648
    %v5188 = vmul.f32 %v5186, 1.442695
    %v5189 = vpow.pop %v5188
    %v5190 = vmul.f32 %v5187, 1.442695
    %v5191 = vpow.pop %v5190
    %v5192 = vadd.f32 %v5189, 1.0
    %v5193 = vadd.f32 %v5191, 1.0
    %v5194 = vrcp.pop %v5192
    %v5195 = vmul.f32 1.0, %v5194
    %v5196 = vrcp.pop %v5193
    %v5197 = vmul.f32 1.0, %v5196
    %v5198 = vmul.f32 %v5195, %v5131
    %v5199 = vadd.f32 %v5180, %v5198
    %v5200 = vtanh.pop %v5199
    %v5201 = vsub.f32 1.0, %v5197
    %v5202 = vmul.f32 %v5201, %v5200
    %v5203 = vmul.f32 %v5197, %v5029
    %v5204 = vadd.f32 %v5202, %v5203
    %v5205 = vadd.f32 %v5181, %v5133
    %v5206 = vadd.f32 %v5182, %v5172
    %v5207 = vxor.u32 %v5205, 2147483648
    %v5208 = vxor.u32 %v5206, 2147483648
    %v5209 = vmul.f32 %v5207, 1.442695
    %v5210 = vpow.pop %v5209
    %v5211 = vmul.f32 %v5208, 1.442695
    %v5212 = vpow.pop %v5211
    %v5213 = vadd.f32 %v5210, 1.0
    %v5214 = vadd.f32 %v5212, 1.0
    %v5215 = vrcp.pop %v5213
    %v5216 = vmul.f32 1.0, %v5215
    %v5217 = vrcp.pop %v5214
    %v5218 = vmul.f32 1.0, %v5217
    %v5219 = vmul.f32 %v5216, %v5174
    %v5220 = vadd.f32 %v5183, %v5219
    %v5221 = vtanh.pop %v5220
    %v5222 = vsub.f32 1.0, %v5218
    %v5223 = vmul.f32 %v5222, %v5221
    %v5224 = vmul.f32 %v5218, %v5050
    %v5225 = vadd.f32 %v5223, %v5224
    %5226 = vst [vmem:[#allocation3 + $0x50] sm:$0xff] %v5204
    %5227 = vst [vmem:[#allocation3 + $0x28] sm:$0xff] %v5225
    %v5228 = vpack.c.bf16 %v5204, %v5204
    %v5229 = vpack.c.bf16 %v5225, %v5225
    %5230 = vmatprep.subr.bf16.mxu0 %v3989
    %5231 = vmatpush1.bf16.msra.mxu0 %v3988
    %5232 = vmatprep.subr.bf16.mxu0 %v3995
    %5233 = vmatpush1.bf16.msra.mxu0 %v3994
    %5234 = vmatprep.subr.bf16.mxu0 %v4001
    %5235 = vmatpush1.bf16.msra.mxu0 %v4000
    %5236 = vmatprep.subr.bf16.mxu0 %v4007
    %5237 = vmatpush1.bf16.msra.mxu0 %v4006
    %5238 = vmatprep.subr.bf16.mxu0 %v4013
    %5239 = vmatpush1.bf16.msra.mxu0 %v4012
    %5240 = vmatprep.subr.bf16.mxu0 %v4019
    %5241 = vmatpush1.bf16.msra.mxu0 %v4018
    %5242 = vmatprep.subr.bf16.mxu0 %v4025
    %5243 = vmatpush1.bf16.msra.mxu0 %v4024
    %5244 = vmatprep.subr.bf16.mxu0 %v4031
    %5245 = vmatpush1.bf16.msra.mxu0 %v4030
    %5246 = vmatprep.subr.bf16.mxu0 %v4037
    %5247 = vmatpush1.bf16.msra.mxu0 %v4036
    %5248 = vmatprep.subr.bf16.mxu0 %v4043
    %5249 = vmatpush1.bf16.msra.mxu0 %v4042
    %5250 = vmatprep.subr.bf16.mxu0 %v4049
    %5251 = vmatpush1.bf16.msra.mxu0 %v4048
    %5252 = vmatprep.subr.bf16.mxu0 %v4055
    %5253 = vmatpush1.bf16.msra.mxu0 %v4054
    %5254 = vmatprep.subr.bf16.mxu0 %v4061
    %5255 = vmatpush1.bf16.msra.mxu0 %v4060
    %5256 = vmatprep.subr.bf16.mxu0 %v4067
    %5257 = vmatpush1.bf16.msra.mxu0 %v4066
    %5258 = vmatprep.subr.bf16.mxu0 %v4073
    %5259 = vmatpush1.bf16.msra.mxu0 %v4072
    %5260 = vmatprep.subr.bf16.mxu0 %v4079
    %5261 = vmatpush1.bf16.msra.mxu0 %v4078
    %5262 = vmatprep.mubr.bf16.mxu0 %v5229
    %5263 = vmatmul.mubr.bf16.gmra.mrb[0].mxu0 %v5228
    %v5264 = vpop.f32.mrb[0].mxu0
    %v5265 = vadd.f32 %v3673, %v5264
    %v5266 = vpop.f32.mrb[0].mxu0
    %v5267 = vadd.f32 %v3677, %v5266
    %v5268 = vpop.f32.mrb[0].mxu0
    %v5269 = vpop.f32.mrb[0].mxu0
    %5270 = vdwg.mxu0
    %5271 = vmatprep.subr.bf16.mxu0 %v3991
    %5272 = vmatpush1.bf16.msra.mxu0 %v3990
    %5273 = vmatprep.subr.bf16.mxu0 %v3997
    %5274 = vmatpush1.bf16.msra.mxu0 %v3996
    %5275 = vmatprep.subr.bf16.mxu0 %v4003
    %5276 = vmatpush1.bf16.msra.mxu0 %v4002
    %5277 = vmatprep.subr.bf16.mxu0 %v4009
    %5278 = vmatpush1.bf16.msra.mxu0 %v4008
    %5279 = vmatprep.subr.bf16.mxu0 %v4015
    %5280 = vmatpush1.bf16.msra.mxu0 %v4014
    %5281 = vmatprep.subr.bf16.mxu0 %v4021
    %5282 = vmatpush1.bf16.msra.mxu0 %v4020
    %5283 = vmatprep.subr.bf16.mxu0 %v4027
    %5284 = vmatpush1.bf16.msra.mxu0 %v4026
    %5285 = vmatprep.subr.bf16.mxu0 %v4033
    %5286 = vmatpush1.bf16.msra.mxu0 %v4032
    %5287 = vmatprep.subr.bf16.mxu0 %v4039
    %5288 = vmatpush1.bf16.msra.mxu0 %v4038
    %5289 = vmatprep.subr.bf16.mxu0 %v4045
    %5290 = vmatpush1.bf16.msra.mxu0 %v4044
    %5291 = vmatprep.subr.bf16.mxu0 %v4051
    %5292 = vmatpush1.bf16.msra.mxu0 %v4050
    %5293 = vmatprep.subr.bf16.mxu0 %v4057
    %5294 = vmatpush1.bf16.msra.mxu0 %v4056
    %5295 = vmatprep.subr.bf16.mxu0 %v4063
    %5296 = vmatpush1.bf16.msra.mxu0 %v4062
    %5297 = vmatprep.subr.bf16.mxu0 %v4069
    %5298 = vmatpush1.bf16.msra.mxu0 %v4068
    %5299 = vmatprep.subr.bf16.mxu0 %v4075
    %5300 = vmatpush1.bf16.msra.mxu0 %v4074
    %5301 = vmatprep.subr.bf16.mxu0 %v4081
    %5302 = vmatpush1.bf16.msra.mxu0 %v4080
    %5303 = vmatprep.mubr.bf16.mxu0 %v5229
    %5304 = vmatmul.mubr.bf16.gmra.mrb[0].mxu0 %v5228
    %v5305 = vpop.f32.mrb[0].mxu0
    %v5306 = vadd.f32 %v3681, %v5305
    %v5307 = vpop.f32.mrb[0].mxu0
    %v5308 = vadd.f32 %v3685, %v5307
    %v5309 = vpop.f32.mrb[0].mxu0
    %v5310 = vpop.f32.mrb[0].mxu0
    %5311 = vdwg.mxu0
    %5312 = vmatprep.subr.bf16.mxu0 %v3993
    %5313 = vmatpush1.bf16.msra.mxu0 %v3992
    %5314 = vmatprep.subr.bf16.mxu0 %v3999
    %5315 = vmatpush1.bf16.msra.mxu0 %v3998
    %5316 = vmatprep.subr.bf16.mxu0 %v4005
    %5317 = vmatpush1.bf16.msra.mxu0 %v4004
    %5318 = vmatprep.subr.bf16.mxu0 %v4011
    %5319 = vmatpush1.bf16.msra.mxu0 %v4010
    %5320 = vmatprep.subr.bf16.mxu0 %v4017
    %5321 = vmatpush1.bf16.msra.mxu0 %v4016
    %5322 = vmatprep.subr.bf16.mxu0 %v4023
    %5323 = vmatpush1.bf16.msra.mxu0 %v4022
    %5324 = vmatprep.subr.bf16.mxu0 %v4029
    %5325 = vmatpush1.bf16.msra.mxu0 %v4028
    %5326 = vmatprep.subr.bf16.mxu0 %v4035
    %5327 = vmatpush1.bf16.msra.mxu0 %v4034
    %5328 = vmatprep.subr.bf16.mxu0 %v4041
    %5329 = vmatpush1.bf16.msra.mxu0 %v4040
    %5330 = vmatprep.subr.bf16.mxu0 %v4047
    %5331 = vmatpush1.bf16.msra.mxu0 %v4046
    %5332 = vmatprep.subr.bf16.mxu0 %v4053
    %5333 = vmatpush1.bf16.msra.mxu0 %v4052
    %5334 = vmatprep.subr.bf16.mxu0 %v4059
    %5335 = vmatpush1.bf16.msra.mxu0 %v4058
    %5336 = vmatprep.subr.bf16.mxu0 %v4065
    %5337 = vmatpush1.bf16.msra.mxu0 %v4064
    %5338 = vmatprep.subr.bf16.mxu0 %v4071
    %5339 = vmatpush1.bf16.msra.mxu0 %v4070
    %5340 = vmatprep.subr.bf16.mxu0 %v4077
    %5341 = vmatpush1.bf16.msra.mxu0 %v4076
    %5342 = vmatprep.subr.bf16.mxu0 %v4083
    %5343 = vmatpush1.bf16.msra.mxu0 %v4082
    %5344 = vmatprep.mubr.bf16.mxu0 %v5229
    %5345 = vmatmul.mubr.bf16.gmra.mrb[0].mxu0 %v5228
    %v5346 = vpop.f32.mrb[0].mxu0
    %v5347 = vadd.f32 %v3689, %v5346
    %v5348 = vpop.f32.mrb[0].mxu0
    %v5349 = vadd.f32 %v3693, %v5348
    %v5350 = vpop.f32.mrb[0].mxu0
    %v5351 = vpop.f32.mrb[0].mxu0
    %5352 = vdwg.mxu0
    %v5353 = vld [vmem:[#allocation2 + $0x120] sm:$0xff]
    %v5354 = vld [vmem:[#allocation2 + $0x128] sm:$0xff]
    %v5355 = vld [vmem:[#allocation2 + $0x130] sm:$0xff]
    %v5356 = vld [vmem:[#allocation2 + $0x48] sm:$0xff]
    %v5357 = vld [vmem:[#allocation2 + $0x50] sm:$0xff]
    %v5358 = vld [vmem:[#allocation2 + $0x58] sm:$0xff]
    %v5359 = vadd.f32 %v5353, %v5265
    %v5360 = vadd.f32 %v5354, %v5267
    %v5361 = vxor.u32 %v5359, 2147483648
    %v5362 = vxor.u32 %v5360, 2147483648
    %v5363 = vmul.f32 %v5361, 1.442695
    %v5364 = vpow.pop %v5363
    %v5365 = vmul.f32 %v5362, 1.442695
    %v5366 = vpow.pop %v5365
    %v5367 = vadd.f32 %v5364, 1.0
    %v5368 = vadd.f32 %v5366, 1.0
    %v5369 = vrcp.pop %v5367
    %v5370 = vmul.f32 1.0, %v5369
    %v5371 = vrcp.pop %v5368
    %v5372 = vmul.f32 1.0, %v5371
    %v5373 = vmul.f32 %v5370, %v5306
    %v5374 = vadd.f32 %v5355, %v5373
    %v5375 = vtanh.pop %v5374
    %v5376 = vsub.f32 1.0, %v5372
    %v5377 = vmul.f32 %v5376, %v5375
    %v5378 = vmul.f32 %v5372, %v5204
    %v5379 = vadd.f32 %v5377, %v5378
    %v5380 = vadd.f32 %v5356, %v5308
    %v5381 = vadd.f32 %v5357, %v5347
    %v5382 = vxor.u32 %v5380, 2147483648
    %v5383 = vxor.u32 %v5381, 2147483648
    %v5384 = vmul.f32 %v5382, 1.442695
    %v5385 = vpow.pop %v5384
    %v5386 = vmul.f32 %v5383, 1.442695
    %v5387 = vpow.pop %v5386
    %v5388 = vadd.f32 %v5385, 1.0
    %v5389 = vadd.f32 %v5387, 1.0
    %v5390 = vrcp.pop %v5388
    %v5391 = vmul.f32 1.0, %v5390
    %v5392 = vrcp.pop %v5389
    %v5393 = vmul.f32 1.0, %v5392
    %v5394 = vmul.f32 %v5391, %v5349
    %v5395 = vadd.f32 %v5358, %v5394
    %v5396 = vtanh.pop %v5395
    %v5397 = vsub.f32 1.0, %v5393
    %v5398 = vmul.f32 %v5397, %v5396
    %v5399 = vmul.f32 %v5393, %v5225
    %v5400 = vadd.f32 %v5398, %v5399
    %5401 = vst [vmem:[#allocation3 + $0x60] sm:$0xff] %v5379
    %5402 = vst [vmem:[#allocation3 + $0x18] sm:$0xff] %v5400
    %v5403 = vpack.c.bf16 %v5379, %v5379
    %v5404 = vpack.c.bf16 %v5400, %v5400
    %5405 = vmatprep.subr.bf16.mxu0 %v3989
    %5406 = vmatpush1.bf16.msra.mxu0 %v3988
    %5407 = vmatprep.subr.bf16.mxu0 %v3995
    %5408 = vmatpush1.bf16.msra.mxu0 %v3994
    %5409 = vmatprep.subr.bf16.mxu0 %v4001
    %5410 = vmatpush1.bf16.msra.mxu0 %v4000
    %5411 = vmatprep.subr.bf16.mxu0 %v4007
    %5412 = vmatpush1.bf16.msra.mxu0 %v4006
    %5413 = vmatprep.subr.bf16.mxu0 %v4013
    %5414 = vmatpush1.bf16.msra.mxu0 %v4012
    %5415 = vmatprep.subr.bf16.mxu0 %v4019
    %5416 = vmatpush1.bf16.msra.mxu0 %v4018
    %5417 = vmatprep.subr.bf16.mxu0 %v4025
    %5418 = vmatpush1.bf16.msra.mxu0 %v4024
    %5419 = vmatprep.subr.bf16.mxu0 %v4031
    %5420 = vmatpush1.bf16.msra.mxu0 %v4030
    %5421 = vmatprep.subr.bf16.mxu0 %v4037
    %5422 = vmatpush1.bf16.msra.mxu0 %v4036
    %5423 = vmatprep.subr.bf16.mxu0 %v4043
    %5424 = vmatpush1.bf16.msra.mxu0 %v4042
    %5425 = vmatprep.subr.bf16.mxu0 %v4049
    %5426 = vmatpush1.bf16.msra.mxu0 %v4048
    %5427 = vmatprep.subr.bf16.mxu0 %v4055
    %5428 = vmatpush1.bf16.msra.mxu0 %v4054
    %5429 = vmatprep.subr.bf16.mxu0 %v4061
    %5430 = vmatpush1.bf16.msra.mxu0 %v4060
    %5431 = vmatprep.subr.bf16.mxu0 %v4067
    %5432 = vmatpush1.bf16.msra.mxu0 %v4066
    %5433 = vmatprep.subr.bf16.mxu0 %v4073
    %5434 = vmatpush1.bf16.msra.mxu0 %v4072
    %5435 = vmatprep.subr.bf16.mxu0 %v4079
    %5436 = vmatpush1.bf16.msra.mxu0 %v4078
    %5437 = vmatprep.mubr.bf16.mxu0 %v5404
    %5438 = vmatmul.mubr.bf16.gmra.mrb[0].mxu0 %v5403
    %v5439 = vpop.f32.mrb[0].mxu0
    %v5440 = vadd.f32 %v3673, %v5439
    %v5441 = vpop.f32.mrb[0].mxu0
    %v5442 = vadd.f32 %v3677, %v5441
    %v5443 = vpop.f32.mrb[0].mxu0
    %v5444 = vpop.f32.mrb[0].mxu0
    %5445 = vdwg.mxu0
    %5446 = vmatprep.subr.bf16.mxu0 %v3991
    %5447 = vmatpush1.bf16.msra.mxu0 %v3990
    %5448 = vmatprep.subr.bf16.mxu0 %v3997
    %5449 = vmatpush1.bf16.msra.mxu0 %v3996
    %5450 = vmatprep.subr.bf16.mxu0 %v4003
    %5451 = vmatpush1.bf16.msra.mxu0 %v4002
    %5452 = vmatprep.subr.bf16.mxu0 %v4009
    %5453 = vmatpush1.bf16.msra.mxu0 %v4008
    %5454 = vmatprep.subr.bf16.mxu0 %v4015
    %5455 = vmatpush1.bf16.msra.mxu0 %v4014
    %5456 = vmatprep.subr.bf16.mxu0 %v4021
    %5457 = vmatpush1.bf16.msra.mxu0 %v4020
    %5458 = vmatprep.subr.bf16.mxu0 %v4027
    %5459 = vmatpush1.bf16.msra.mxu0 %v4026
    %5460 = vmatprep.subr.bf16.mxu0 %v4033
    %5461 = vmatpush1.bf16.msra.mxu0 %v4032
    %5462 = vmatprep.subr.bf16.mxu0 %v4039
    %5463 = vmatpush1.bf16.msra.mxu0 %v4038
    %5464 = vmatprep.subr.bf16.mxu0 %v4045
    %5465 = vmatpush1.bf16.msra.mxu0 %v4044
    %5466 = vmatprep.subr.bf16.mxu0 %v4051
    %5467 = vmatpush1.bf16.msra.mxu0 %v4050
    %5468 = vmatprep.subr.bf16.mxu0 %v4057
    %5469 = vmatpush1.bf16.msra.mxu0 %v4056
    %5470 = vmatprep.subr.bf16.mxu0 %v4063
    %5471 = vmatpush1.bf16.msra.mxu0 %v4062
    %5472 = vmatprep.subr.bf16.mxu0 %v4069
    %5473 = vmatpush1.bf16.msra.mxu0 %v4068
    %5474 = vmatprep.subr.bf16.mxu0 %v4075
    %5475 = vmatpush1.bf16.msra.mxu0 %v4074
    %5476 = vmatprep.subr.bf16.mxu0 %v4081
    %5477 = vmatpush1.bf16.msra.mxu0 %v4080
    %5478 = vmatprep.mubr.bf16.mxu0 %v5404
    %5479 = vmatmul.mubr.bf16.gmra.mrb[0].mxu0 %v5403
    %v5480 = vpop.f32.mrb[0].mxu0
    %v5481 = vadd.f32 %v3681, %v5480
    %v5482 = vpop.f32.mrb[0].mxu0
    %v5483 = vadd.f32 %v3685, %v5482
    %v5484 = vpop.f32.mrb[0].mxu0
    %v5485 = vpop.f32.mrb[0].mxu0
    %5486 = vdwg.mxu0
    %5487 = vmatprep.subr.bf16.mxu0 %v3993
    %5488 = vmatpush1.bf16.msra.mxu0 %v3992
    %5489 = vmatprep.subr.bf16.mxu0 %v3999
    %5490 = vmatpush1.bf16.msra.mxu0 %v3998
    %5491 = vmatprep.subr.bf16.mxu0 %v4005
    %5492 = vmatpush1.bf16.msra.mxu0 %v4004
    %5493 = vmatprep.subr.bf16.mxu0 %v4011
    %5494 = vmatpush1.bf16.msra.mxu0 %v4010
    %5495 = vmatprep.subr.bf16.mxu0 %v4017
    %5496 = vmatpush1.bf16.msra.mxu0 %v4016
    %5497 = vmatprep.subr.bf16.mxu0 %v4023
    %5498 = vmatpush1.bf16.msra.mxu0 %v4022
    %5499 = vmatprep.subr.bf16.mxu0 %v4029
    %5500 = vmatpush1.bf16.msra.mxu0 %v4028
    %5501 = vmatprep.subr.bf16.mxu0 %v4035
    %5502 = vmatpush1.bf16.msra.mxu0 %v4034
    %5503 = vmatprep.subr.bf16.mxu0 %v4041
    %5504 = vmatpush1.bf16.msra.mxu0 %v4040
    %5505 = vmatprep.subr.bf16.mxu0 %v4047
    %5506 = vmatpush1.bf16.msra.mxu0 %v4046
    %5507 = vmatprep.subr.bf16.mxu0 %v4053
    %5508 = vmatpush1.bf16.msra.mxu0 %v4052
    %5509 = vmatprep.subr.bf16.mxu0 %v4059
    %5510 = vmatpush1.bf16.msra.mxu0 %v4058
    %5511 = vmatprep.subr.bf16.mxu0 %v4065
    %5512 = vmatpush1.bf16.msra.mxu0 %v4064
    %5513 = vmatprep.subr.bf16.mxu0 %v4071
    %5514 = vmatpush1.bf16.msra.mxu0 %v4070
    %5515 = vmatprep.subr.bf16.mxu0 %v4077
    %5516 = vmatpush1.bf16.msra.mxu0 %v4076
    %5517 = vmatprep.subr.bf16.mxu0 %v4083
    %5518 = vmatpush1.bf16.msra.mxu0 %v4082
    %5519 = vmatprep.mubr.bf16.mxu0 %v5404
    %5520 = vmatmul.mubr.bf16.gmra.mrb[0].mxu0 %v5403
    %v5521 = vpop.f32.mrb[0].mxu0
    %v5522 = vadd.f32 %v3689, %v5521
    %v5523 = vpop.f32.mrb[0].mxu0
    %v5524 = vadd.f32 %v3693, %v5523
    %v5525 = vpop.f32.mrb[0].mxu0
    %v5526 = vpop.f32.mrb[0].mxu0
    %5527 = vdwg.mxu0
    %v5528 = vld [vmem:[#allocation2 + $0x150] sm:$0xff]
    %v5529 = vld [vmem:[#allocation2 + $0x158] sm:$0xff]
    %v5530 = vld [vmem:[#allocation2 + $0x160] sm:$0xff]
    %v5531 = vld [vmem:[#allocation2 + $0x18] sm:$0xff]
    %v5532 = vld [vmem:[#allocation2 + $0x20] sm:$0xff]
    %v5533 = vld [vmem:[#allocation2 + $0x28] sm:$0xff]
    %v5534 = vadd.f32 %v5528, %v5440
    %v5535 = vadd.f32 %v5529, %v5442
    %v5536 = vxor.u32 %v5534, 2147483648
    %v5537 = vxor.u32 %v5535, 2147483648
    %v5538 = vmul.f32 %v5536, 1.442695
    %v5539 = vpow.pop %v5538
    %v5540 = vmul.f32 %v5537, 1.442695
    %v5541 = vpow.pop %v5540
    %v5542 = vadd.f32 %v5539, 1.0
    %v5543 = vadd.f32 %v5541, 1.0
    %v5544 = vrcp.pop %v5542
    %v5545 = vmul.f32 1.0, %v5544
    %v5546 = vrcp.pop %v5543
    %v5547 = vmul.f32 1.0, %v5546
    %v5548 = vmul.f32 %v5545, %v5481
    %v5549 = vadd.f32 %v5530, %v5548
    %v5550 = vtanh.pop %v5549
    %v5551 = vsub.f32 1.0, %v5547
    %v5552 = vmul.f32 %v5551, %v5550
    %v5553 = vmul.f32 %v5547, %v5379
    %v5554 = vadd.f32 %v5552, %v5553
    %v5555 = vadd.f32 %v5531, %v5483
    %v5556 = vadd.f32 %v5532, %v5522
    %v5557 = vxor.u32 %v5555, 2147483648
    %v5558 = vxor.u32 %v5556, 2147483648
    %v5559 = vmul.f32 %v5557, 1.442695
    %v5560 = vpow.pop %v5559
    %v5561 = vmul.f32 %v5558, 1.442695
    %v5562 = vpow.pop %v5561
    %v5563 = vadd.f32 %v5560, 1.0
    %v5564 = vadd.f32 %v5562, 1.0
    %v5565 = vrcp.pop %v5563
    %v5566 = vmul.f32 1.0, %v5565
    %v5567 = vrcp.pop %v5564
    %v5568 = vmul.f32 1.0, %v5567
    %v5569 = vmul.f32 %v5566, %v5524
    %v5570 = vadd.f32 %v5533, %v5569
    %v5571 = vtanh.pop %v5570
    %v5572 = vsub.f32 1.0, %v5568
    %v5573 = vmul.f32 %v5572, %v5571
    %v5574 = vmul.f32 %v5568, %v5400
    %v5575 = vadd.f32 %v5573, %v5574
    %5576 = vst [vmem:[#allocation3 + $0x70] sm:$0xff] %v5554
    %5577 = vst [vmem:[#allocation3 + $0x8] sm:$0xff] %v5575
    %v5578 = vld [vmem:[#allocation3] sm:$0xff]
    %v5579 = vld [vmem:[#allocation3 + $0x8] sm:$0xff]
    %v5580 = vld [vmem:[#allocation3 + $0x10] sm:$0xff]
    %v5581 = vld [vmem:[#allocation3 + $0x18] sm:$0xff]
    %v5582 = vld [vmem:[#allocation3 + $0x20] sm:$0xff]
    %v5583 = vld [vmem:[#allocation3 + $0x28] sm:$0xff]
    %v5584 = vld [vmem:[#allocation3 + $0x30] sm:$0xff]
    %v5585 = vld [vmem:[#allocation3 + $0x38] sm:$0xff]
    %v5586 = vld [vmem:[#allocation3 + $0x40] sm:$0xff]
    %v5587 = vld [vmem:[#allocation3 + $0x48] sm:$0xff]
    %v5588 = vld [vmem:[#allocation3 + $0x50] sm:$0xff]
    %v5589 = vld [vmem:[#allocation3 + $0x58] sm:$0xff]
    %v5590 = vld [vmem:[#allocation3 + $0x60] sm:$0xff]
    %v5591 = vld [vmem:[#allocation3 + $0x68] sm:$0xff]
    %v5592 = vld [vmem:[#allocation3 + $0x70] sm:$0xff]
    %v5593 = vld [vmem:[#allocation3 + $0x78] sm:$0xff]
    %v5594 = vpack.c.bf16 %v5580, %v5578
    %v5595 = vpack.c.bf16 %v5581, %v5579
    %v5596 = vpack.c.bf16 %v5584, %v5582
    %v5597 = vpack.c.bf16 %v5585, %v5583
    %v5598 = vpack.c.bf16 %v5588, %v5586
    %v5599 = vpack.c.bf16 %v5589, %v5587
    %v5600 = vpack.c.bf16 %v5592, %v5590
    %v5601 = vpack.c.bf16 %v5593, %v5591
    %v5602 = vld [vmem:[#allocation9] sm:$0xff]
    %v5603 = vld [vmem:[#allocation9 + $0x8] sm:$0xff]
    %v5604 = vld [vmem:[#allocation9 + $0x10] sm:$0xff]
    %v5605 = vld [vmem:[#allocation9 + $0x18] sm:$0xff]
    %v5606 = vld [vmem:[#allocation9 + $0x20] sm:$0xff]
    %v5607 = vld [vmem:[#allocation9 + $0x28] sm:$0xff]
    %v5608 = vld [vmem:[#allocation9 + $0x30] sm:$0xff]
    %v5609 = vld [vmem:[#allocation9 + $0x38] sm:$0xff]
    %v5610 = vld [vmem:[#allocation9 + $0x40] sm:$0xff]
    %v5611 = vld [vmem:[#allocation9 + $0x48] sm:$0xff]
    %v5612 = vld [vmem:[#allocation9 + $0x50] sm:$0xff]
    %v5613 = vld [vmem:[#allocation9 + $0x58] sm:$0xff]
    %v5614 = vld [vmem:[#allocation9 + $0x60] sm:$0xff]
    %v5615 = vld [vmem:[#allocation9 + $0x68] sm:$0xff]
    %v5616 = vld [vmem:[#allocation9 + $0x70] sm:$0xff]
    %v5617 = vld [vmem:[#allocation9 + $0x78] sm:$0xff]
    %v5618 = vld [vmem:[#allocation9 + $0x80] sm:$0xff]
    %v5619 = vld [vmem:[#allocation9 + $0x88] sm:$0xff]
    %v5620 = vld [vmem:[#allocation9 + $0x90] sm:$0xff]
    %v5621 = vld [vmem:[#allocation9 + $0x98] sm:$0xff]
    %v5622 = vld [vmem:[#allocation9 + $0xa0] sm:$0xff]
    %v5623 = vld [vmem:[#allocation9 + $0xa8] sm:$0xff]
    %v5624 = vld [vmem:[#allocation9 + $0xb0] sm:$0xff]
    %v5625 = vld [vmem:[#allocation9 + $0xb8] sm:$0xff]
    %v5626 = vld [vmem:[#allocation9 + $0xc0] sm:$0xff]
    %v5627 = vld [vmem:[#allocation9 + $0xc8] sm:$0xff]
    %v5628 = vld [vmem:[#allocation9 + $0xd0] sm:$0xff]
    %v5629 = vld [vmem:[#allocation9 + $0xd8] sm:$0xff]
    %v5630 = vld [vmem:[#allocation9 + $0xe0] sm:$0xff]
    %v5631 = vld [vmem:[#allocation9 + $0xe8] sm:$0xff]
    %v5632 = vld [vmem:[#allocation9 + $0xf0] sm:$0xff]
    %v5633 = vld [vmem:[#allocation9 + $0xf8] sm:$0xff]
    %v5634 = vld [vmem:[#allocation9 + $0x100] sm:$0xff]
    %v5635 = vld [vmem:[#allocation9 + $0x108] sm:$0xff]
    %v5636 = vld [vmem:[#allocation9 + $0x110] sm:$0xff]
    %v5637 = vld [vmem:[#allocation9 + $0x118] sm:$0xff]
    %v5638 = vld [vmem:[#allocation9 + $0x120] sm:$0xff]
    %v5639 = vld [vmem:[#allocation9 + $0x128] sm:$0xff]
    %v5640 = vld [vmem:[#allocation9 + $0x130] sm:$0xff]
    %v5641 = vld [vmem:[#allocation9 + $0x138] sm:$0xff]
    %v5642 = vld [vmem:[#allocation9 + $0x140] sm:$0xff]
    %v5643 = vld [vmem:[#allocation9 + $0x148] sm:$0xff]
    %v5644 = vld [vmem:[#allocation9 + $0x150] sm:$0xff]
    %v5645 = vld [vmem:[#allocation9 + $0x158] sm:$0xff]
    %v5646 = vld [vmem:[#allocation9 + $0x160] sm:$0xff]
    %v5647 = vld [vmem:[#allocation9 + $0x168] sm:$0xff]
    %v5648 = vld [vmem:[#allocation9 + $0x170] sm:$0xff]
    %v5649 = vld [vmem:[#allocation9 + $0x178] sm:$0xff]
    %v5650 = vld [vmem:[#allocation9 + $0x180] sm:$0xff]
    %v5651 = vld [vmem:[#allocation9 + $0x188] sm:$0xff]
    %v5652 = vld [vmem:[#allocation9 + $0x190] sm:$0xff]
    %v5653 = vld [vmem:[#allocation9 + $0x198] sm:$0xff]
    %v5654 = vld [vmem:[#allocation9 + $0x1a0] sm:$0xff]
    %v5655 = vld [vmem:[#allocation9 + $0x1a8] sm:$0xff]
    %v5656 = vld [vmem:[#allocation9 + $0x1b0] sm:$0xff]
    %v5657 = vld [vmem:[#allocation9 + $0x1b8] sm:$0xff]
    %v5658 = vld [vmem:[#allocation9 + $0x1c0] sm:$0xff]
    %v5659 = vld [vmem:[#allocation9 + $0x1c8] sm:$0xff]
    %v5660 = vld [vmem:[#allocation9 + $0x1d0] sm:$0xff]
    %v5661 = vld [vmem:[#allocation9 + $0x1d8] sm:$0xff]
    %v5662 = vld [vmem:[#allocation9 + $0x1e0] sm:$0xff]
    %v5663 = vld [vmem:[#allocation9 + $0x1e8] sm:$0xff]
    %v5664 = vld [vmem:[#allocation9 + $0x1f0] sm:$0xff]
    %v5665 = vld [vmem:[#allocation9 + $0x1f8] sm:$0xff]
    %v5666 = vld [vmem:[#allocation9 + $0x200] sm:$0xff]
    %v5667 = vld [vmem:[#allocation9 + $0x208] sm:$0xff]
    %v5668 = vld [vmem:[#allocation9 + $0x210] sm:$0xff]
    %v5669 = vld [vmem:[#allocation9 + $0x218] sm:$0xff]
    %v5670 = vld [vmem:[#allocation9 + $0x220] sm:$0xff]
    %v5671 = vld [vmem:[#allocation9 + $0x228] sm:$0xff]
    %v5672 = vld [vmem:[#allocation9 + $0x230] sm:$0xff]
    %v5673 = vld [vmem:[#allocation9 + $0x238] sm:$0xff]
    %v5674 = vld [vmem:[#allocation9 + $0x240] sm:$0xff]
    %v5675 = vld [vmem:[#allocation9 + $0x248] sm:$0xff]
    %v5676 = vld [vmem:[#allocation9 + $0x250] sm:$0xff]
    %v5677 = vld [vmem:[#allocation9 + $0x258] sm:$0xff]
    %v5678 = vld [vmem:[#allocation9 + $0x260] sm:$0xff]
    %v5679 = vld [vmem:[#allocation9 + $0x268] sm:$0xff]
    %v5680 = vld [vmem:[#allocation9 + $0x270] sm:$0xff]
    %v5681 = vld [vmem:[#allocation9 + $0x278] sm:$0xff]
    %v5682 = vld [vmem:[#allocation9 + $0x280] sm:$0xff]
    %v5683 = vld [vmem:[#allocation9 + $0x288] sm:$0xff]
    %v5684 = vld [vmem:[#allocation9 + $0x290] sm:$0xff]
    %v5685 = vld [vmem:[#allocation9 + $0x298] sm:$0xff]
    %v5686 = vld [vmem:[#allocation9 + $0x2a0] sm:$0xff]
    %v5687 = vld [vmem:[#allocation9 + $0x2a8] sm:$0xff]
    %v5688 = vld [vmem:[#allocation9 + $0x2b0] sm:$0xff]
    %v5689 = vld [vmem:[#allocation9 + $0x2b8] sm:$0xff]
    %v5690 = vld [vmem:[#allocation9 + $0x2c0] sm:$0xff]
    %v5691 = vld [vmem:[#allocation9 + $0x2c8] sm:$0xff]
    %v5692 = vld [vmem:[#allocation9 + $0x2d0] sm:$0xff]
    %v5693 = vld [vmem:[#allocation9 + $0x2d8] sm:$0xff]
    %v5694 = vld [vmem:[#allocation9 + $0x2e0] sm:$0xff]
    %v5695 = vld [vmem:[#allocation9 + $0x2e8] sm:$0xff]
    %v5696 = vld [vmem:[#allocation9 + $0x2f0] sm:$0xff]
    %v5697 = vld [vmem:[#allocation9 + $0x2f8] sm:$0xff]
    %v5698 = vld [vmem:[#allocation9 + $0x300] sm:$0xff]
    %v5699 = vld [vmem:[#allocation9 + $0x308] sm:$0xff]
    %v5700 = vld [vmem:[#allocation9 + $0x310] sm:$0xff]
    %v5701 = vld [vmem:[#allocation9 + $0x318] sm:$0xff]
    %v5702 = vld [vmem:[#allocation9 + $0x320] sm:$0xff]
    %v5703 = vld [vmem:[#allocation9 + $0x328] sm:$0xff]
    %v5704 = vld [vmem:[#allocation9 + $0x330] sm:$0xff]
    %v5705 = vld [vmem:[#allocation9 + $0x338] sm:$0xff]
    %v5706 = vld [vmem:[#allocation9 + $0x340] sm:$0xff]
    %v5707 = vld [vmem:[#allocation9 + $0x348] sm:$0xff]
    %v5708 = vld [vmem:[#allocation9 + $0x350] sm:$0xff]
    %v5709 = vld [vmem:[#allocation9 + $0x358] sm:$0xff]
    %v5710 = vld [vmem:[#allocation9 + $0x360] sm:$0xff]
    %v5711 = vld [vmem:[#allocation9 + $0x368] sm:$0xff]
    %v5712 = vld [vmem:[#allocation9 + $0x370] sm:$0xff]
    %v5713 = vld [vmem:[#allocation9 + $0x378] sm:$0xff]
    %v5714 = vld [vmem:[#allocation9 + $0x380] sm:$0xff]
    %v5715 = vld [vmem:[#allocation9 + $0x388] sm:$0xff]
    %v5716 = vld [vmem:[#allocation9 + $0x390] sm:$0xff]
    %v5717 = vld [vmem:[#allocation9 + $0x398] sm:$0xff]
    %v5718 = vld [vmem:[#allocation9 + $0x3a0] sm:$0xff]
    %v5719 = vld [vmem:[#allocation9 + $0x3a8] sm:$0xff]
    %v5720 = vld [vmem:[#allocation9 + $0x3b0] sm:$0xff]
    %v5721 = vld [vmem:[#allocation9 + $0x3b8] sm:$0xff]
    %v5722 = vld [vmem:[#allocation9 + $0x3c0] sm:$0xff]
    %v5723 = vld [vmem:[#allocation9 + $0x3c8] sm:$0xff]
    %v5724 = vld [vmem:[#allocation9 + $0x3d0] sm:$0xff]
    %v5725 = vld [vmem:[#allocation9 + $0x3d8] sm:$0xff]
    %v5726 = vld [vmem:[#allocation9 + $0x3e0] sm:$0xff]
    %v5727 = vld [vmem:[#allocation9 + $0x3e8] sm:$0xff]
    %v5728 = vld [vmem:[#allocation9 + $0x3f0] sm:$0xff]
    %v5729 = vld [vmem:[#allocation9 + $0x3f8] sm:$0xff]
    %v5730 = vld [vmem:[#allocation9 + $0x400] sm:$0xff]
    %v5731 = vld [vmem:[#allocation9 + $0x408] sm:$0xff]
    %v5732 = vld [vmem:[#allocation9 + $0x410] sm:$0xff]
    %v5733 = vld [vmem:[#allocation9 + $0x418] sm:$0xff]
    %v5734 = vld [vmem:[#allocation9 + $0x420] sm:$0xff]
    %v5735 = vld [vmem:[#allocation9 + $0x428] sm:$0xff]
    %v5736 = vld [vmem:[#allocation9 + $0x430] sm:$0xff]
    %v5737 = vld [vmem:[#allocation9 + $0x438] sm:$0xff]
    %v5738 = vld [vmem:[#allocation9 + $0x440] sm:$0xff]
    %v5739 = vld [vmem:[#allocation9 + $0x448] sm:$0xff]
    %v5740 = vld [vmem:[#allocation9 + $0x450] sm:$0xff]
    %v5741 = vld [vmem:[#allocation9 + $0x458] sm:$0xff]
    %v5742 = vld [vmem:[#allocation9 + $0x460] sm:$0xff]
    %v5743 = vld [vmem:[#allocation9 + $0x468] sm:$0xff]
    %v5744 = vld [vmem:[#allocation9 + $0x470] sm:$0xff]
    %v5745 = vld [vmem:[#allocation9 + $0x478] sm:$0xff]
    %v5746 = vld [vmem:[#allocation9 + $0x480] sm:$0xff]
    %v5747 = vld [vmem:[#allocation9 + $0x488] sm:$0xff]
    %v5748 = vld [vmem:[#allocation9 + $0x490] sm:$0xff]
    %v5749 = vld [vmem:[#allocation9 + $0x498] sm:$0xff]
    %v5750 = vld [vmem:[#allocation9 + $0x4a0] sm:$0xff]
    %v5751 = vld [vmem:[#allocation9 + $0x4a8] sm:$0xff]
    %v5752 = vld [vmem:[#allocation9 + $0x4b0] sm:$0xff]
    %v5753 = vld [vmem:[#allocation9 + $0x4b8] sm:$0xff]
    %v5754 = vld [vmem:[#allocation9 + $0x4c0] sm:$0xff]
    %v5755 = vld [vmem:[#allocation9 + $0x4c8] sm:$0xff]
    %v5756 = vld [vmem:[#allocation9 + $0x4d0] sm:$0xff]
    %v5757 = vld [vmem:[#allocation9 + $0x4d8] sm:$0xff]
    %v5758 = vld [vmem:[#allocation9 + $0x4e0] sm:$0xff]
    %v5759 = vld [vmem:[#allocation9 + $0x4e8] sm:$0xff]
    %v5760 = vld [vmem:[#allocation9 + $0x4f0] sm:$0xff]
    %v5761 = vld [vmem:[#allocation9 + $0x4f8] sm:$0xff]
    %v5762 = vld [vmem:[#allocation9 + $0x500] sm:$0xff]
    %v5763 = vld [vmem:[#allocation9 + $0x508] sm:$0xff]
    %v5764 = vld [vmem:[#allocation9 + $0x510] sm:$0xff]
    %v5765 = vld [vmem:[#allocation9 + $0x518] sm:$0xff]
    %v5766 = vld [vmem:[#allocation9 + $0x520] sm:$0xff]
    %v5767 = vld [vmem:[#allocation9 + $0x528] sm:$0xff]
    %v5768 = vld [vmem:[#allocation9 + $0x530] sm:$0xff]
    %v5769 = vld [vmem:[#allocation9 + $0x538] sm:$0xff]
    %v5770 = vld [vmem:[#allocation9 + $0x540] sm:$0xff]
    %v5771 = vld [vmem:[#allocation9 + $0x548] sm:$0xff]
    %v5772 = vld [vmem:[#allocation9 + $0x550] sm:$0xff]
    %v5773 = vld [vmem:[#allocation9 + $0x558] sm:$0xff]
    %v5774 = vld [vmem:[#allocation9 + $0x560] sm:$0xff]
    %v5775 = vld [vmem:[#allocation9 + $0x568] sm:$0xff]
    %v5776 = vld [vmem:[#allocation9 + $0x570] sm:$0xff]
    %v5777 = vld [vmem:[#allocation9 + $0x578] sm:$0xff]
    %v5778 = vld [vmem:[#allocation9 + $0x580] sm:$0xff]
    %v5779 = vld [vmem:[#allocation9 + $0x588] sm:$0xff]
    %v5780 = vld [vmem:[#allocation9 + $0x590] sm:$0xff]
    %v5781 = vld [vmem:[#allocation9 + $0x598] sm:$0xff]
    %v5782 = vld [vmem:[#allocation9 + $0x5a0] sm:$0xff]
    %v5783 = vld [vmem:[#allocation9 + $0x5a8] sm:$0xff]
    %v5784 = vld [vmem:[#allocation9 + $0x5b0] sm:$0xff]
    %v5785 = vld [vmem:[#allocation9 + $0x5b8] sm:$0xff]
    %v5786 = vld [vmem:[#allocation9 + $0x5c0] sm:$0xff]
    %v5787 = vld [vmem:[#allocation9 + $0x5c8] sm:$0xff]
    %v5788 = vld [vmem:[#allocation9 + $0x5d0] sm:$0xff]
    %v5789 = vld [vmem:[#allocation9 + $0x5d8] sm:$0xff]
    %v5790 = vld [vmem:[#allocation9 + $0x5e0] sm:$0xff]
    %v5791 = vld [vmem:[#allocation9 + $0x5e8] sm:$0xff]
    %v5792 = vld [vmem:[#allocation9 + $0x5f0] sm:$0xff]
    %v5793 = vld [vmem:[#allocation9 + $0x5f8] sm:$0xff]
    %v5794 = vld [vmem:[%s8] ss:$2 sm:$0x3f]
    %s5795 = scalar_lea.vmem %s8, 1
    %v5796 = vld [vmem:[%s5795] ss:$2 sm:$0x3f]
    %v5798 = vlaneseq
    %v5799 = vshrl.u32 %v5798, 7
    %v5800 = vsub.s32 0, %v5799
    %v5801 = vrot.slane %v5794, %v5800
    %v5802 = vlaneseq
    %v5803 = vshrl.u32 %v5802, 7
    %v5804 = vsub.s32 1, %v5803
    %v5805 = vrot.slane %v5794, %v5804
    %v5806 = vlaneseq
    %v5807 = vshrl.u32 %v5806, 7
    %v5808 = vsub.s32 2, %v5807
    %v5809 = vrot.slane %v5794, %v5808
    %v5810 = vlaneseq
    %v5811 = vshrl.u32 %v5810, 7
    %v5812 = vsub.s32 3, %v5811
    %v5813 = vrot.slane %v5794, %v5812
    %v5814 = vlaneseq
    %v5815 = vshrl.u32 %v5814, 7
    %v5816 = vsub.s32 4, %v5815
    %v5817 = vrot.slane %v5794, %v5816
    %v5818 = vlaneseq
    %v5819 = vshrl.u32 %v5818, 7
    %v5820 = vsub.s32 5, %v5819
    %v5821 = vrot.slane %v5794, %v5820
    %v5924 = vunpack.c.l.b16 %v5602
    %v5925 = vunpack.c.h.b16 %v5602
    %v5926 = vunpack.c.l.b16 %v5603
    %v5927 = vunpack.c.h.b16 %v5603
    %v5928 = vunpack.c.l.b16 %v5604
    %v5929 = vunpack.c.h.b16 %v5604
    %v5930 = vunpack.c.l.b16 %v5605
    %v5931 = vunpack.c.h.b16 %v5605
    %v5932 = vunpack.c.l.b16 %v5606
    %v5933 = vunpack.c.h.b16 %v5606
    %v5934 = vunpack.c.l.b16 %v5607
    %v5935 = vunpack.c.h.b16 %v5607
    %v5936 = vunpack.c.l.b16 %v5608
    %v5937 = vunpack.c.h.b16 %v5608
    %v5938 = vunpack.c.l.b16 %v5609
    %v5939 = vunpack.c.h.b16 %v5609
    %v5940 = vunpack.c.l.b16 %v5610
    %v5941 = vunpack.c.h.b16 %v5610
    %v5942 = vunpack.c.l.b16 %v5611
    %v5943 = vunpack.c.h.b16 %v5611
    %v5944 = vunpack.c.l.b16 %v5612
    %v5945 = vunpack.c.h.b16 %v5612
    %v5946 = vunpack.c.l.b16 %v5613
    %v5947 = vunpack.c.h.b16 %v5613
    %v5948 = vunpack.c.l.b16 %v5614
    %v5949 = vunpack.c.h.b16 %v5614
    %v5950 = vunpack.c.l.b16 %v5615
    %v5951 = vunpack.c.h.b16 %v5615
    %v5952 = vunpack.c.l.b16 %v5616
    %v5953 = vunpack.c.h.b16 %v5616
    %v5954 = vunpack.c.l.b16 %v5617
    %v5955 = vunpack.c.h.b16 %v5617
    %v5956 = vunpack.c.l.b16 %v5618
    %v5957 = vunpack.c.h.b16 %v5618
    %v5958 = vunpack.c.l.b16 %v5619
    %v5959 = vunpack.c.h.b16 %v5619
    %v5960 = vunpack.c.l.b16 %v5620
    %v5961 = vunpack.c.h.b16 %v5620
    %v5962 = vunpack.c.l.b16 %v5621
    %v5963 = vunpack.c.h.b16 %v5621
    %v5964 = vunpack.c.l.b16 %v5622
    %v5965 = vunpack.c.h.b16 %v5622
    %v5966 = vunpack.c.l.b16 %v5623
    %v5967 = vunpack.c.h.b16 %v5623
    %v5968 = vunpack.c.l.b16 %v5624
    %v5969 = vunpack.c.h.b16 %v5624
    %v5970 = vunpack.c.l.b16 %v5625
    %v5971 = vunpack.c.h.b16 %v5625
    %v5972 = vunpack.c.l.b16 %v5626
    %v5973 = vunpack.c.h.b16 %v5626
    %v5974 = vunpack.c.l.b16 %v5627
    %v5975 = vunpack.c.h.b16 %v5627
    %v5976 = vunpack.c.l.b16 %v5628
    %v5977 = vunpack.c.h.b16 %v5628
    %v5978 = vunpack.c.l.b16 %v5629
    %v5979 = vunpack.c.h.b16 %v5629
    %v5980 = vunpack.c.l.b16 %v5630
    %v5981 = vunpack.c.h.b16 %v5630
    %v5982 = vunpack.c.l.b16 %v5631
    %v5983 = vunpack.c.h.b16 %v5631
    %v5984 = vunpack.c.l.b16 %v5632
    %v5985 = vunpack.c.h.b16 %v5632
    %v5986 = vunpack.c.l.b16 %v5633
    %v5987 = vunpack.c.h.b16 %v5633
    %v5988 = vunpack.c.l.b16 %v5634
    %v5989 = vunpack.c.h.b16 %v5634
    %v5990 = vunpack.c.l.b16 %v5635
    %v5991 = vunpack.c.h.b16 %v5635
    %v5992 = vunpack.c.l.b16 %v5636
    %v5993 = vunpack.c.h.b16 %v5636
    %v5994 = vunpack.c.l.b16 %v5637
    %v5995 = vunpack.c.h.b16 %v5637
    %v5996 = vunpack.c.l.b16 %v5638
    %v5997 = vunpack.c.h.b16 %v5638
    %v5998 = vunpack.c.l.b16 %v5639
    %v5999 = vunpack.c.h.b16 %v5639
    %v6000 = vunpack.c.l.b16 %v5640
    %v6001 = vunpack.c.h.b16 %v5640
    %v6002 = vunpack.c.l.b16 %v5641
    %v6003 = vunpack.c.h.b16 %v5641
    %v6004 = vunpack.c.l.b16 %v5642
    %v6005 = vunpack.c.h.b16 %v5642
    %v6006 = vunpack.c.l.b16 %v5643
    %v6007 = vunpack.c.h.b16 %v5643
    %v6008 = vunpack.c.l.b16 %v5644
    %v6009 = vunpack.c.h.b16 %v5644
    %v6010 = vunpack.c.l.b16 %v5645
    %v6011 = vunpack.c.h.b16 %v5645
    %v6012 = vunpack.c.l.b16 %v5646
    %v6013 = vunpack.c.h.b16 %v5646
    %v6014 = vunpack.c.l.b16 %v5647
    %v6015 = vunpack.c.h.b16 %v5647
    %v6016 = vunpack.c.l.b16 %v5648
    %v6017 = vunpack.c.h.b16 %v5648
    %v6018 = vunpack.c.l.b16 %v5649
    %v6019 = vunpack.c.h.b16 %v5649
    %v6020 = vunpack.c.l.b16 %v5650
    %v6021 = vunpack.c.h.b16 %v5650
    %v6022 = vunpack.c.l.b16 %v5651
    %v6023 = vunpack.c.h.b16 %v5651
    %v6024 = vunpack.c.l.b16 %v5652
    %v6025 = vunpack.c.h.b16 %v5652
    %v6026 = vunpack.c.l.b16 %v5653
    %v6027 = vunpack.c.h.b16 %v5653
    %v6028 = vunpack.c.l.b16 %v5654
    %v6029 = vunpack.c.h.b16 %v5654
    %v6030 = vunpack.c.l.b16 %v5655
    %v6031 = vunpack.c.h.b16 %v5655
    %v6032 = vunpack.c.l.b16 %v5656
    %v6033 = vunpack.c.h.b16 %v5656
    %v6034 = vunpack.c.l.b16 %v5657
    %v6035 = vunpack.c.h.b16 %v5657
    %v6036 = vunpack.c.l.b16 %v5658
    %v6037 = vunpack.c.h.b16 %v5658
    %v6038 = vunpack.c.l.b16 %v5659
    %v6039 = vunpack.c.h.b16 %v5659
    %v6040 = vunpack.c.l.b16 %v5660
    %v6041 = vunpack.c.h.b16 %v5660
    %v6042 = vunpack.c.l.b16 %v5661
    %v6043 = vunpack.c.h.b16 %v5661
    %v6044 = vunpack.c.l.b16 %v5662
    %v6045 = vunpack.c.h.b16 %v5662
    %v6046 = vunpack.c.l.b16 %v5663
    %v6047 = vunpack.c.h.b16 %v5663
    %v6048 = vunpack.c.l.b16 %v5664
    %v6049 = vunpack.c.h.b16 %v5664
    %v6050 = vunpack.c.l.b16 %v5665
    %v6051 = vunpack.c.h.b16 %v5665
    %v6052 = vunpack.c.l.b16 %v5666
    %v6053 = vunpack.c.h.b16 %v5666
    %v6054 = vunpack.c.l.b16 %v5667
    %v6055 = vunpack.c.h.b16 %v5667
    %v6056 = vunpack.c.l.b16 %v5668
    %v6057 = vunpack.c.h.b16 %v5668
    %v6058 = vunpack.c.l.b16 %v5669
    %v6059 = vunpack.c.h.b16 %v5669
    %v6060 = vunpack.c.l.b16 %v5670
    %v6061 = vunpack.c.h.b16 %v5670
    %v6062 = vunpack.c.l.b16 %v5671
    %v6063 = vunpack.c.h.b16 %v5671
    %v6064 = vunpack.c.l.b16 %v5672
    %v6065 = vunpack.c.h.b16 %v5672
    %v6066 = vunpack.c.l.b16 %v5673
    %v6067 = vunpack.c.h.b16 %v5673
    %v6068 = vunpack.c.l.b16 %v5674
    %v6069 = vunpack.c.h.b16 %v5674
    %v6070 = vunpack.c.l.b16 %v5675
    %v6071 = vunpack.c.h.b16 %v5675
    %v6072 = vunpack.c.l.b16 %v5676
    %v6073 = vunpack.c.h.b16 %v5676
    %v6074 = vunpack.c.l.b16 %v5677
    %v6075 = vunpack.c.h.b16 %v5677
    %v6076 = vunpack.c.l.b16 %v5678
    %v6077 = vunpack.c.h.b16 %v5678
    %v6078 = vunpack.c.l.b16 %v5679
    %v6079 = vunpack.c.h.b16 %v5679
    %v6080 = vunpack.c.l.b16 %v5680
    %v6081 = vunpack.c.h.b16 %v5680
    %v6082 = vunpack.c.l.b16 %v5681
    %v6083 = vunpack.c.h.b16 %v5681
    %v6084 = vunpack.c.l.b16 %v5682
    %v6085 = vunpack.c.h.b16 %v5682
    %v6086 = vunpack.c.l.b16 %v5683
    %v6087 = vunpack.c.h.b16 %v5683
    %v6088 = vunpack.c.l.b16 %v5684
    %v6089 = vunpack.c.h.b16 %v5684
    %v6090 = vunpack.c.l.b16 %v5685
    %v6091 = vunpack.c.h.b16 %v5685
    %v6092 = vunpack.c.l.b16 %v5686
    %v6093 = vunpack.c.h.b16 %v5686
    %v6094 = vunpack.c.l.b16 %v5687
    %v6095 = vunpack.c.h.b16 %v5687
    %v6096 = vunpack.c.l.b16 %v5688
    %v6097 = vunpack.c.h.b16 %v5688
    %v6098 = vunpack.c.l.b16 %v5689
    %v6099 = vunpack.c.h.b16 %v5689
    %v6100 = vunpack.c.l.b16 %v5690
    %v6101 = vunpack.c.h.b16 %v5690
    %v6102 = vunpack.c.l.b16 %v5691
    %v6103 = vunpack.c.h.b16 %v5691
    %v6104 = vunpack.c.l.b16 %v5692
    %v6105 = vunpack.c.h.b16 %v5692
    %v6106 = vunpack.c.l.b16 %v5693
    %v6107 = vunpack.c.h.b16 %v5693
    %v6108 = vunpack.c.l.b16 %v5694
    %v6109 = vunpack.c.h.b16 %v5694
    %v6110 = vunpack.c.l.b16 %v5695
    %v6111 = vunpack.c.h.b16 %v5695
    %v6112 = vunpack.c.l.b16 %v5696
    %v6113 = vunpack.c.h.b16 %v5696
    %v6114 = vunpack.c.l.b16 %v5697
    %v6115 = vunpack.c.h.b16 %v5697
    %v6116 = vpack.c.b16 %v5930, %v5924
    %v6117 = vpack.c.b16 %v5931, %v5925
    %v6118 = vpack.c.b16 %v5932, %v5926
    %v6119 = vpack.c.b16 %v5933, %v5927
    %v6120 = vpack.c.b16 %v5934, %v5928
    %v6121 = vpack.c.b16 %v5935, %v5929
    %v6122 = vpack.c.b16 %v5942, %v5936
    %v6123 = vpack.c.b16 %v5943, %v5937
    %v6124 = vpack.c.b16 %v5944, %v5938
    %v6125 = vpack.c.b16 %v5945, %v5939
    %v6126 = vpack.c.b16 %v5946, %v5940
    %v6127 = vpack.c.b16 %v5947, %v5941
    %v6128 = vpack.c.b16 %v5954, %v5948
    %v6129 = vpack.c.b16 %v5955, %v5949
    %v6130 = vpack.c.b16 %v5956, %v5950
    %v6131 = vpack.c.b16 %v5957, %v5951
    %v6132 = vpack.c.b16 %v5958, %v5952
    %v6133 = vpack.c.b16 %v5959, %v5953
    %v6134 = vpack.c.b16 %v5966, %v5960
    %v6135 = vpack.c.b16 %v5967, %v5961
    %v6136 = vpack.c.b16 %v5968, %v5962
    %v6137 = vpack.c.b16 %v5969, %v5963
    %v6138 = vpack.c.b16 %v5970, %v5964
    %v6139 = vpack.c.b16 %v5971, %v5965
    %v6140 = vpack.c.b16 %v5978, %v5972
    %v6141 = vpack.c.b16 %v5979, %v5973
    %v6142 = vpack.c.b16 %v5980, %v5974
    %v6143 = vpack.c.b16 %v5981, %v5975
    %v6144 = vpack.c.b16 %v5982, %v5976
    %v6145 = vpack.c.b16 %v5983, %v5977
    %v6146 = vpack.c.b16 %v5990, %v5984
    %v6147 = vpack.c.b16 %v5991, %v5985
    %v6148 = vpack.c.b16 %v5992, %v5986
    %v6149 = vpack.c.b16 %v5993, %v5987
    %v6150 = vpack.c.b16 %v5994, %v5988
    %v6151 = vpack.c.b16 %v5995, %v5989
    %v6152 = vpack.c.b16 %v6002, %v5996
    %v6153 = vpack.c.b16 %v6003, %v5997
    %v6154 = vpack.c.b16 %v6004, %v5998
    %v6155 = vpack.c.b16 %v6005, %v5999
    %v6156 = vpack.c.b16 %v6006, %v6000
    %v6157 = vpack.c.b16 %v6007, %v6001
    %v6158 = vpack.c.b16 %v6014, %v6008
    %v6159 = vpack.c.b16 %v6015, %v6009
    %v6160 = vpack.c.b16 %v6016, %v6010
    %v6161 = vpack.c.b16 %v6017, %v6011
    %v6162 = vpack.c.b16 %v6018, %v6012
    %v6163 = vpack.c.b16 %v6019, %v6013
    %v6164 = vpack.c.b16 %v6026, %v6020
    %v6165 = vpack.c.b16 %v6027, %v6021
    %v6166 = vpack.c.b16 %v6028, %v6022
    %v6167 = vpack.c.b16 %v6029, %v6023
    %v6168 = vpack.c.b16 %v6030, %v6024
    %v6169 = vpack.c.b16 %v6031, %v6025
    %v6170 = vpack.c.b16 %v6038, %v6032
    %v6171 = vpack.c.b16 %v6039, %v6033
    %v6172 = vpack.c.b16 %v6040, %v6034
    %v6173 = vpack.c.b16 %v6041, %v6035
    %v6174 = vpack.c.b16 %v6042, %v6036
    %v6175 = vpack.c.b16 %v6043, %v6037
    %v6176 = vpack.c.b16 %v6050, %v6044
    %v6177 = vpack.c.b16 %v6051, %v6045
    %v6178 = vpack.c.b16 %v6052, %v6046
    %v6179 = vpack.c.b16 %v6053, %v6047
    %v6180 = vpack.c.b16 %v6054, %v6048
    %v6181 = vpack.c.b16 %v6055, %v6049
    %v6182 = vpack.c.b16 %v6062, %v6056
    %v6183 = vpack.c.b16 %v6063, %v6057
    %v6184 = vpack.c.b16 %v6064, %v6058
    %v6185 = vpack.c.b16 %v6065, %v6059
    %v6186 = vpack.c.b16 %v6066, %v6060
    %v6187 = vpack.c.b16 %v6067, %v6061
    %v6188 = vpack.c.b16 %v6074, %v6068
    %v6189 = vpack.c.b16 %v6075, %v6069
    %v6190 = vpack.c.b16 %v6076, %v6070
    %v6191 = vpack.c.b16 %v6077, %v6071
    %v6192 = vpack.c.b16 %v6078, %v6072
    %v6193 = vpack.c.b16 %v6079, %v6073
    %v6194 = vpack.c.b16 %v6086, %v6080
    %v6195 = vpack.c.b16 %v6087, %v6081
    %v6196 = vpack.c.b16 %v6088, %v6082
    %v6197 = vpack.c.b16 %v6089, %v6083
    %v6198 = vpack.c.b16 %v6090, %v6084
    %v6199 = vpack.c.b16 %v6091, %v6085
    %v6200 = vpack.c.b16 %v6098, %v6092
    %v6201 = vpack.c.b16 %v6099, %v6093
    %v6202 = vpack.c.b16 %v6100, %v6094
    %v6203 = vpack.c.b16 %v6101, %v6095
    %v6204 = vpack.c.b16 %v6102, %v6096
    %v6205 = vpack.c.b16 %v6103, %v6097
    %v6206 = vpack.c.b16 %v6110, %v6104
    %v6207 = vpack.c.b16 %v6111, %v6105
    %v6208 = vpack.c.b16 %v6112, %v6106
    %v6209 = vpack.c.b16 %v6113, %v6107
    %v6210 = vpack.c.b16 %v6114, %v6108
    %v6211 = vpack.c.b16 %v6115, %v6109
    %6308 = vmatprep.subr.bf16.mxu0 %v6117
    %6309 = vmatpush1.bf16.msra.mxu0 %v6116
    %6310 = vmatprep.subr.bf16.mxu0 %v6123
    %6311 = vmatpush1.bf16.msra.mxu0 %v6122
    %6312 = vmatprep.subr.bf16.mxu0 %v6129
    %6313 = vmatpush1.bf16.msra.mxu0 %v6128
    %6314 = vmatprep.subr.bf16.mxu0 %v6135
    %6315 = vmatpush1.bf16.msra.mxu0 %v6134
    %6316 = vmatprep.subr.bf16.mxu0 %v6141
    %6317 = vmatpush1.bf16.msra.mxu0 %v6140
    %6318 = vmatprep.subr.bf16.mxu0 %v6147
    %6319 = vmatpush1.bf16.msra.mxu0 %v6146
    %6320 = vmatprep.subr.bf16.mxu0 %v6153
    %6321 = vmatpush1.bf16.msra.mxu0 %v6152
    %6322 = vmatprep.subr.bf16.mxu0 %v6159
    %6323 = vmatpush1.bf16.msra.mxu0 %v6158
    %6324 = vmatprep.subr.bf16.mxu0 %v6165
    %6325 = vmatpush1.bf16.msra.mxu0 %v6164
    %6326 = vmatprep.subr.bf16.mxu0 %v6171
    %6327 = vmatpush1.bf16.msra.mxu0 %v6170
    %6328 = vmatprep.subr.bf16.mxu0 %v6177
    %6329 = vmatpush1.bf16.msra.mxu0 %v6176
    %6330 = vmatprep.subr.bf16.mxu0 %v6183
    %6331 = vmatpush1.bf16.msra.mxu0 %v6182
    %6332 = vmatprep.subr.bf16.mxu0 %v6189
    %6333 = vmatpush1.bf16.msra.mxu0 %v6188
    %6334 = vmatprep.subr.bf16.mxu0 %v6195
    %6335 = vmatpush1.bf16.msra.mxu0 %v6194
    %6336 = vmatprep.subr.bf16.mxu0 %v6201
    %6337 = vmatpush1.bf16.msra.mxu0 %v6200
    %6338 = vmatprep.subr.bf16.mxu0 %v6207
    %6339 = vmatpush1.bf16.msra.mxu0 %v6206
    %6340 = vmatprep.mubr.bf16.mxu0 %v5595
    %6341 = vmatmul.mubr.bf16.gmra.mrb[0].mxu0 %v5594
    %v6342 = vpop.f32.mrb[0].mxu0
    %v6343 = vadd.f32 %v5801, %v6342
    %v6344 = vpop.f32.mrb[0].mxu0
    %v6345 = vadd.f32 %v5805, %v6344
    %v6346 = vpop.f32.mrb[0].mxu0
    %v6347 = vadd.f32 %v5801, %v6346
    %v6348 = vpop.f32.mrb[0].mxu0
    %v6349 = vadd.f32 %v5805, %v6348
    %6350 = vmatprep.mubr.bf16.mxu0 %v5597
    %6351 = vmatmul.mubr.bf16.gmra.mrb[0].mxu0 %v5596
    %v6352 = vpop.f32.mrb[0].mxu0
    %v6353 = vadd.f32 %v5801, %v6352
    %v6354 = vpop.f32.mrb[0].mxu0
    %v6355 = vadd.f32 %v5805, %v6354
    %v6356 = vpop.f32.mrb[0].mxu0
    %v6357 = vadd.f32 %v5801, %v6356
    %v6358 = vpop.f32.mrb[0].mxu0
    %v6359 = vadd.f32 %v5805, %v6358
    %6360 = vmatprep.mubr.bf16.mxu0 %v5599
    %6361 = vmatmul.mubr.bf16.gmra.mrb[0].mxu0 %v5598
    %v6362 = vpop.f32.mrb[0].mxu0
    %v6363 = vadd.f32 %v5801, %v6362
    %v6364 = vpop.f32.mrb[0].mxu0
    %v6365 = vadd.f32 %v5805, %v6364
    %v6366 = vpop.f32.mrb[0].mxu0
    %v6367 = vadd.f32 %v5801, %v6366
    %v6368 = vpop.f32.mrb[0].mxu0
    %v6369 = vadd.f32 %v5805, %v6368
    %6370 = vmatprep.mubr.bf16.mxu0 %v5601
    %6371 = vmatmul.mubr.bf16.gmra.mrb[0].mxu0 %v5600
    %v6372 = vpop.f32.mrb[0].mxu0
    %v6373 = vadd.f32 %v5801, %v6372
    %v6374 = vpop.f32.mrb[0].mxu0
    %v6375 = vadd.f32 %v5805, %v6374
    %v6376 = vpop.f32.mrb[0].mxu0
    %v6377 = vadd.f32 %v5801, %v6376
    %v6378 = vpop.f32.mrb[0].mxu0
    %v6379 = vadd.f32 %v5805, %v6378
    %6380 = vdwg.mxu0
    %6381 = vmatprep.subr.bf16.mxu0 %v6119
    %6382 = vmatpush1.bf16.msra.mxu0 %v6118
    %6383 = vmatprep.subr.bf16.mxu0 %v6125
    %6384 = vmatpush1.bf16.msra.mxu0 %v6124
    %6385 = vmatprep.subr.bf16.mxu0 %v6131
    %6386 = vmatpush1.bf16.msra.mxu0 %v6130
    %6387 = vmatprep.subr.bf16.mxu0 %v6137
    %6388 = vmatpush1.bf16.msra.mxu0 %v6136
    %6389 = vmatprep.subr.bf16.mxu0 %v6143
    %6390 = vmatpush1.bf16.msra.mxu0 %v6142
    %6391 = vmatprep.subr.bf16.mxu0 %v6149
    %6392 = vmatpush1.bf16.msra.mxu0 %v6148
    %6393 = vmatprep.subr.bf16.mxu0 %v6155
    %6394 = vmatpush1.bf16.msra.mxu0 %v6154
    %6395 = vmatprep.subr.bf16.mxu0 %v6161
    %6396 = vmatpush1.bf16.msra.mxu0 %v6160
    %6397 = vmatprep.subr.bf16.mxu0 %v6167
    %6398 = vmatpush1.bf16.msra.mxu0 %v6166
    %6399 = vmatprep.subr.bf16.mxu0 %v6173
    %6400 = vmatpush1.bf16.msra.mxu0 %v6172
    %6401 = vmatprep.subr.bf16.mxu0 %v6179
    %6402 = vmatpush1.bf16.msra.mxu0 %v6178
    %6403 = vmatprep.subr.bf16.mxu0 %v6185
    %6404 = vmatpush1.bf16.msra.mxu0 %v6184
    %6405 = vmatprep.subr.bf16.mxu0 %v6191
    %6406 = vmatpush1.bf16.msra.mxu0 %v6190
    %6407 = vmatprep.subr.bf16.mxu0 %v6197
    %6408 = vmatpush1.bf16.msra.mxu0 %v6196
    %6409 = vmatprep.subr.bf16.mxu0 %v6203
    %6410 = vmatpush1.bf16.msra.mxu0 %v6202
    %6411 = vmatprep.subr.bf16.mxu0 %v6209
    %6412 = vmatpush1.bf16.msra.mxu0 %v6208
    %6413 = vmatprep.mubr.bf16.mxu0 %v5595
    %6414 = vmatmul.mubr.bf16.gmra.mrb[0].mxu0 %v5594
    %v6415 = vpop.f32.mrb[0].mxu0
    %v6416 = vadd.f32 %v5809, %v6415
    %v6417 = vpop.f32.mrb[0].mxu0
    %v6418 = vadd.f32 %v5813, %v6417
    %v6419 = vpop.f32.mrb[0].mxu0
    %v6420 = vadd.f32 %v5809, %v6419
    %v6421 = vpop.f32.mrb[0].mxu0
    %v6422 = vadd.f32 %v5813, %v6421
    %6423 = vmatprep.mubr.bf16.mxu0 %v5597
    %6424 = vmatmul.mubr.bf16.gmra.mrb[0].mxu0 %v5596
    %v6425 = vpop.f32.mrb[0].mxu0
    %v6426 = vadd.f32 %v5809, %v6425
    %v6427 = vpop.f32.mrb[0].mxu0
    %v6428 = vadd.f32 %v5813, %v6427
    %v6429 = vpop.f32.mrb[0].mxu0
    %v6430 = vadd.f32 %v5809, %v6429
    %v6431 = vpop.f32.mrb[0].mxu0
    %v6432 = vadd.f32 %v5813, %v6431
    %6433 = vmatprep.mubr.bf16.mxu0 %v5599
    %6434 = vmatmul.mubr.bf16.gmra.mrb[0].mxu0 %v5598
    %v6435 = vpop.f32.mrb[0].mxu0
    %v6436 = vadd.f32 %v5809, %v6435
    %v6437 = vpop.f32.mrb[0].mxu0
    %v6438 = vadd.f32 %v5813, %v6437
    %v6439 = vpop.f32.mrb[0].mxu0
    %v6440 = vadd.f32 %v5809, %v6439
    %v6441 = vpop.f32.mrb[0].mxu0
    %v6442 = vadd.f32 %v5813, %v6441
    %6443 = vmatprep.mubr.bf16.mxu0 %v5601
    %6444 = vmatmul.mubr.bf16.gmra.mrb[0].mxu0 %v5600
    %v6445 = vpop.f32.mrb[0].mxu0
    %v6446 = vadd.f32 %v5809, %v6445
    %v6447 = vpop.f32.mrb[0].mxu0
    %v6448 = vadd.f32 %v5813, %v6447
    %v6449 = vpop.f32.mrb[0].mxu0
    %v6450 = vadd.f32 %v5809, %v6449
    %v6451 = vpop.f32.mrb[0].mxu0
    %v6452 = vadd.f32 %v5813, %v6451
    %6453 = vdwg.mxu0
    %6454 = vmatprep.subr.bf16.mxu0 %v6121
    %6455 = vmatpush1.bf16.msra.mxu0 %v6120
    %6456 = vmatprep.subr.bf16.mxu0 %v6127
    %6457 = vmatpush1.bf16.msra.mxu0 %v6126
    %6458 = vmatprep.subr.bf16.mxu0 %v6133
    %6459 = vmatpush1.bf16.msra.mxu0 %v6132
    %6460 = vmatprep.subr.bf16.mxu0 %v6139
    %6461 = vmatpush1.bf16.msra.mxu0 %v6138
    %6462 = vmatprep.subr.bf16.mxu0 %v6145
    %6463 = vmatpush1.bf16.msra.mxu0 %v6144
    %6464 = vmatprep.subr.bf16.mxu0 %v6151
    %6465 = vmatpush1.bf16.msra.mxu0 %v6150
    %6466 = vmatprep.subr.bf16.mxu0 %v6157
    %6467 = vmatpush1.bf16.msra.mxu0 %v6156
    %6468 = vmatprep.subr.bf16.mxu0 %v6163
    %6469 = vmatpush1.bf16.msra.mxu0 %v6162
    %6470 = vmatprep.subr.bf16.mxu0 %v6169
    %6471 = vmatpush1.bf16.msra.mxu0 %v6168
    %6472 = vmatprep.subr.bf16.mxu0 %v6175
    %6473 = vmatpush1.bf16.msra.mxu0 %v6174
    %6474 = vmatprep.subr.bf16.mxu0 %v6181
    %6475 = vmatpush1.bf16.msra.mxu0 %v6180
    %6476 = vmatprep.subr.bf16.mxu0 %v6187
    %6477 = vmatpush1.bf16.msra.mxu0 %v6186
    %6478 = vmatprep.subr.bf16.mxu0 %v6193
    %6479 = vmatpush1.bf16.msra.mxu0 %v6192
    %6480 = vmatprep.subr.bf16.mxu0 %v6199
    %6481 = vmatpush1.bf16.msra.mxu0 %v6198
    %6482 = vmatprep.subr.bf16.mxu0 %v6205
    %6483 = vmatpush1.bf16.msra.mxu0 %v6204
    %6484 = vmatprep.subr.bf16.mxu0 %v6211
    %6485 = vmatpush1.bf16.msra.mxu0 %v6210
    %6486 = vmatprep.mubr.bf16.mxu0 %v5595
    %6487 = vmatmul.mubr.bf16.gmra.mrb[0].mxu0 %v5594
    %v6488 = vpop.f32.mrb[0].mxu0
    %v6489 = vadd.f32 %v5817, %v6488
    %v6490 = vpop.f32.mrb[0].mxu0
    %v6491 = vadd.f32 %v5821, %v6490
    %v6492 = vpop.f32.mrb[0].mxu0
    %v6493 = vadd.f32 %v5817, %v6492
    %v6494 = vpop.f32.mrb[0].mxu0
    %v6495 = vadd.f32 %v5821, %v6494
    %6496 = vmatprep.mubr.bf16.mxu0 %v5597
    %6497 = vmatmul.mubr.bf16.gmra.mrb[0].mxu0 %v5596
    %v6498 = vpop.f32.mrb[0].mxu0
    %v6499 = vadd.f32 %v5817, %v6498
    %v6500 = vpop.f32.mrb[0].mxu0
    %v6501 = vadd.f32 %v5821, %v6500
    %v6502 = vpop.f32.mrb[0].mxu0
    %v6503 = vadd.f32 %v5817, %v6502
    %v6504 = vpop.f32.mrb[0].mxu0
    %v6505 = vadd.f32 %v5821, %v6504
    %6506 = vmatprep.mubr.bf16.mxu0 %v5599
    %6507 = vmatmul.mubr.bf16.gmra.mrb[0].mxu0 %v5598
    %v6508 = vpop.f32.mrb[0].mxu0
    %v6509 = vadd.f32 %v5817, %v6508
    %v6510 = vpop.f32.mrb[0].mxu0
    %v6511 = vadd.f32 %v5821, %v6510
    %v6512 = vpop.f32.mrb[0].mxu0
    %v6513 = vadd.f32 %v5817, %v6512
    %v6514 = vpop.f32.mrb[0].mxu0
    %v6515 = vadd.f32 %v5821, %v6514
    %6516 = vmatprep.mubr.bf16.mxu0 %v5601
    %6517 = vmatmul.mubr.bf16.gmra.mrb[0].mxu0 %v5600
    %v6518 = vpop.f32.mrb[0].mxu0
    %v6519 = vadd.f32 %v5817, %v6518
    %v6520 = vpop.f32.mrb[0].mxu0
    %v6521 = vadd.f32 %v5821, %v6520
    %v6522 = vpop.f32.mrb[0].mxu0
    %v6523 = vadd.f32 %v5817, %v6522
    %v6524 = vpop.f32.mrb[0].mxu0
    %v6525 = vadd.f32 %v5821, %v6524
    %6526 = vdwg.mxu0
    %6527 = vst [vmem:[#allocation2] sm:$0xff] %v6343
    %6528 = vst [vmem:[#allocation2 + $0x8] sm:$0xff] %v6345
    %6529 = vst [vmem:[#allocation2 + $0x10] sm:$0xff] %v6416
    %6530 = vst [vmem:[#allocation2 + $0x18] sm:$0xff] %v6418
    %6531 = vst [vmem:[#allocation2 + $0x20] sm:$0xff] %v6489
    %6532 = vst [vmem:[#allocation2 + $0x28] sm:$0xff] %v6491
    %6533 = vst [vmem:[#allocation2 + $0x30] sm:$0xff] %v6347
    %6534 = vst [vmem:[#allocation2 + $0x38] sm:$0xff] %v6349
    %6535 = vst [vmem:[#allocation2 + $0x40] sm:$0xff] %v6420
    %6536 = vst [vmem:[#allocation2 + $0x48] sm:$0xff] %v6422
    %6537 = vst [vmem:[#allocation2 + $0x50] sm:$0xff] %v6493
    %6538 = vst [vmem:[#allocation2 + $0x58] sm:$0xff] %v6495
    %6539 = vst [vmem:[#allocation2 + $0x60] sm:$0xff] %v6353
    %6540 = vst [vmem:[#allocation2 + $0x68] sm:$0xff] %v6355
    %6541 = vst [vmem:[#allocation2 + $0x70] sm:$0xff] %v6426
    %6542 = vst [vmem:[#allocation2 + $0x78] sm:$0xff] %v6428
    %6543 = vst [vmem:[#allocation2 + $0x80] sm:$0xff] %v6499
    %6544 = vst [vmem:[#allocation2 + $0x88] sm:$0xff] %v6501
    %6545 = vst [vmem:[#allocation2 + $0x90] sm:$0xff] %v6357
    %6546 = vst [vmem:[#allocation2 + $0x98] sm:$0xff] %v6359
    %6547 = vst [vmem:[#allocation2 + $0xa0] sm:$0xff] %v6430
    %6548 = vst [vmem:[#allocation2 + $0xa8] sm:$0xff] %v6432
    %6549 = vst [vmem:[#allocation2 + $0xb0] sm:$0xff] %v6503
    %6550 = vst [vmem:[#allocation2 + $0xb8] sm:$0xff] %v6505
    %6551 = vst [vmem:[#allocation2 + $0xc0] sm:$0xff] %v6363
    %6552 = vst [vmem:[#allocation2 + $0xc8] sm:$0xff] %v6365
    %6553 = vst [vmem:[#allocation2 + $0xd0] sm:$0xff] %v6436
    %6554 = vst [vmem:[#allocation2 + $0xd8] sm:$0xff] %v6438
    %6555 = vst [vmem:[#allocation2 + $0xe0] sm:$0xff] %v6509
    %6556 = vst [vmem:[#allocation2 + $0xe8] sm:$0xff] %v6511
    %6557 = vst [vmem:[#allocation2 + $0xf0] sm:$0xff] %v6367
    %6558 = vst [vmem:[#allocation2 + $0xf8] sm:$0xff] %v6369
    %6559 = vst [vmem:[#allocation2 + $0x100] sm:$0xff] %v6440
    %6560 = vst [vmem:[#allocation2 + $0x108] sm:$0xff] %v6442
    %6561 = vst [vmem:[#allocation2 + $0x110] sm:$0xff] %v6513
    %6562 = vst [vmem:[#allocation2 + $0x118] sm:$0xff] %v6515
    %6563 = vst [vmem:[#allocation2 + $0x120] sm:$0xff] %v6373
    %6564 = vst [vmem:[#allocation2 + $0x128] sm:$0xff] %v6375
    %6565 = vst [vmem:[#allocation2 + $0x130] sm:$0xff] %v6446
    %6566 = vst [vmem:[#allocation2 + $0x138] sm:$0xff] %v6448
    %6567 = vst [vmem:[#allocation2 + $0x140] sm:$0xff] %v6519
    %6568 = vst [vmem:[#allocation2 + $0x148] sm:$0xff] %v6521
    %6569 = vst [vmem:[#allocation2 + $0x150] sm:$0xff] %v6377
    %6570 = vst [vmem:[#allocation2 + $0x158] sm:$0xff] %v6379
    %6571 = vst [vmem:[#allocation2 + $0x160] sm:$0xff] %v6450
    %6572 = vst [vmem:[#allocation2 + $0x168] sm:$0xff] %v6452
    %6573 = vst [vmem:[#allocation2 + $0x170] sm:$0xff] %v6523
    %6574 = vst [vmem:[#allocation2 + $0x178] sm:$0xff] %v6525
    %v6576 = vlaneseq
    %v6577 = vshrl.u32 %v6576, 7
    %v6578 = vsub.s32 0, %v6577
    %v6579 = vrot.slane %v5796, %v6578
    %v6580 = vlaneseq
    %v6581 = vshrl.u32 %v6580, 7
    %v6582 = vsub.s32 1, %v6581
    %v6583 = vrot.slane %v5796, %v6582
    %v6584 = vlaneseq
    %v6585 = vshrl.u32 %v6584, 7
    %v6586 = vsub.s32 2, %v6585
    %v6587 = vrot.slane %v5796, %v6586
    %v6588 = vlaneseq
    %v6589 = vshrl.u32 %v6588, 7
    %v6590 = vsub.s32 3, %v6589
    %v6591 = vrot.slane %v5796, %v6590
    %v6592 = vlaneseq
    %v6593 = vshrl.u32 %v6592, 7
    %v6594 = vsub.s32 4, %v6593
    %v6595 = vrot.slane %v5796, %v6594
    %v6596 = vlaneseq
    %v6597 = vshrl.u32 %v6596, 7
    %v6598 = vsub.s32 5, %v6597
    %v6599 = vrot.slane %v5796, %v6598
    %v6702 = vunpack.c.l.b16 %v5698
    %v6703 = vunpack.c.h.b16 %v5698
    %v6704 = vunpack.c.l.b16 %v5699
    %v6705 = vunpack.c.h.b16 %v5699
    %v6706 = vunpack.c.l.b16 %v5700
    %v6707 = vunpack.c.h.b16 %v5700
    %v6708 = vunpack.c.l.b16 %v5701
    %v6709 = vunpack.c.h.b16 %v5701
    %v6710 = vunpack.c.l.b16 %v5702
    %v6711 = vunpack.c.h.b16 %v5702
    %v6712 = vunpack.c.l.b16 %v5703
    %v6713 = vunpack.c.h.b16 %v5703
    %v6714 = vunpack.c.l.b16 %v5704
    %v6715 = vunpack.c.h.b16 %v5704
    %v6716 = vunpack.c.l.b16 %v5705
    %v6717 = vunpack.c.h.b16 %v5705
    %v6718 = vunpack.c.l.b16 %v5706
    %v6719 = vunpack.c.h.b16 %v5706
    %v6720 = vunpack.c.l.b16 %v5707
    %v6721 = vunpack.c.h.b16 %v5707
    %v6722 = vunpack.c.l.b16 %v5708
    %v6723 = vunpack.c.h.b16 %v5708
    %v6724 = vunpack.c.l.b16 %v5709
    %v6725 = vunpack.c.h.b16 %v5709
    %v6726 = vunpack.c.l.b16 %v5710
    %v6727 = vunpack.c.h.b16 %v5710
    %v6728 = vunpack.c.l.b16 %v5711
    %v6729 = vunpack.c.h.b16 %v5711
    %v6730 = vunpack.c.l.b16 %v5712
    %v6731 = vunpack.c.h.b16 %v5712
    %v6732 = vunpack.c.l.b16 %v5713
    %v6733 = vunpack.c.h.b16 %v5713
    %v6734 = vunpack.c.l.b16 %v5714
    %v6735 = vunpack.c.h.b16 %v5714
    %v6736 = vunpack.c.l.b16 %v5715
    %v6737 = vunpack.c.h.b16 %v5715
    %v6738 = vunpack.c.l.b16 %v5716
    %v6739 = vunpack.c.h.b16 %v5716
    %v6740 = vunpack.c.l.b16 %v5717
    %v6741 = vunpack.c.h.b16 %v5717
    %v6742 = vunpack.c.l.b16 %v5718
    %v6743 = vunpack.c.h.b16 %v5718
    %v6744 = vunpack.c.l.b16 %v5719
    %v6745 = vunpack.c.h.b16 %v5719
    %v6746 = vunpack.c.l.b16 %v5720
    %v6747 = vunpack.c.h.b16 %v5720
    %v6748 = vunpack.c.l.b16 %v5721
    %v6749 = vunpack.c.h.b16 %v5721
    %v6750 = vunpack.c.l.b16 %v5722
    %v6751 = vunpack.c.h.b16 %v5722
    %v6752 = vunpack.c.l.b16 %v5723
    %v6753 = vunpack.c.h.b16 %v5723
    %v6754 = vunpack.c.l.b16 %v5724
    %v6755 = vunpack.c.h.b16 %v5724
    %v6756 = vunpack.c.l.b16 %v5725
    %v6757 = vunpack.c.h.b16 %v5725
    %v6758 = vunpack.c.l.b16 %v5726
    %v6759 = vunpack.c.h.b16 %v5726
    %v6760 = vunpack.c.l.b16 %v5727
    %v6761 = vunpack.c.h.b16 %v5727
    %v6762 = vunpack.c.l.b16 %v5728
    %v6763 = vunpack.c.h.b16 %v5728
    %v6764 = vunpack.c.l.b16 %v5729
    %v6765 = vunpack.c.h.b16 %v5729
    %v6766 = vunpack.c.l.b16 %v5730
    %v6767 = vunpack.c.h.b16 %v5730
    %v6768 = vunpack.c.l.b16 %v5731
    %v6769 = vunpack.c.h.b16 %v5731
    %v6770 = vunpack.c.l.b16 %v5732
    %v6771 = vunpack.c.h.b16 %v5732
    %v6772 = vunpack.c.l.b16 %v5733
    %v6773 = vunpack.c.h.b16 %v5733
    %v6774 = vunpack.c.l.b16 %v5734
    %v6775 = vunpack.c.h.b16 %v5734
    %v6776 = vunpack.c.l.b16 %v5735
    %v6777 = vunpack.c.h.b16 %v5735
    %v6778 = vunpack.c.l.b16 %v5736
    %v6779 = vunpack.c.h.b16 %v5736
    %v6780 = vunpack.c.l.b16 %v5737
    %v6781 = vunpack.c.h.b16 %v5737
    %v6782 = vunpack.c.l.b16 %v5738
    %v6783 = vunpack.c.h.b16 %v5738
    %v6784 = vunpack.c.l.b16 %v5739
    %v6785 = vunpack.c.h.b16 %v5739
    %v6786 = vunpack.c.l.b16 %v5740
    %v6787 = vunpack.c.h.b16 %v5740
    %v6788 = vunpack.c.l.b16 %v5741
    %v6789 = vunpack.c.h.b16 %v5741
    %v6790 = vunpack.c.l.b16 %v5742
    %v6791 = vunpack.c.h.b16 %v5742
    %v6792 = vunpack.c.l.b16 %v5743
    %v6793 = vunpack.c.h.b16 %v5743
    %v6794 = vunpack.c.l.b16 %v5744
    %v6795 = vunpack.c.h.b16 %v5744
    %v6796 = vunpack.c.l.b16 %v5745
    %v6797 = vunpack.c.h.b16 %v5745
    %v6798 = vunpack.c.l.b16 %v5746
    %v6799 = vunpack.c.h.b16 %v5746
    %v6800 = vunpack.c.l.b16 %v5747
    %v6801 = vunpack.c.h.b16 %v5747
    %v6802 = vunpack.c.l.b16 %v5748
    %v6803 = vunpack.c.h.b16 %v5748
    %v6804 = vunpack.c.l.b16 %v5749
    %v6805 = vunpack.c.h.b16 %v5749
    %v6806 = vunpack.c.l.b16 %v5750
    %v6807 = vunpack.c.h.b16 %v5750
    %v6808 = vunpack.c.l.b16 %v5751
    %v6809 = vunpack.c.h.b16 %v5751
    %v6810 = vunpack.c.l.b16 %v5752
    %v6811 = vunpack.c.h.b16 %v5752
    %v6812 = vunpack.c.l.b16 %v5753
    %v6813 = vunpack.c.h.b16 %v5753
    %v6814 = vunpack.c.l.b16 %v5754
    %v6815 = vunpack.c.h.b16 %v5754
    %v6816 = vunpack.c.l.b16 %v5755
    %v6817 = vunpack.c.h.b16 %v5755
    %v6818 = vunpack.c.l.b16 %v5756
    %v6819 = vunpack.c.h.b16 %v5756
    %v6820 = vunpack.c.l.b16 %v5757
    %v6821 = vunpack.c.h.b16 %v5757
    %v6822 = vunpack.c.l.b16 %v5758
    %v6823 = vunpack.c.h.b16 %v5758
    %v6824 = vunpack.c.l.b16 %v5759
    %v6825 = vunpack.c.h.b16 %v5759
    %v6826 = vunpack.c.l.b16 %v5760
    %v6827 = vunpack.c.h.b16 %v5760
    %v6828 = vunpack.c.l.b16 %v5761
    %v6829 = vunpack.c.h.b16 %v5761
    %v6830 = vunpack.c.l.b16 %v5762
    %v6831 = vunpack.c.h.b16 %v5762
    %v6832 = vunpack.c.l.b16 %v5763
    %v6833 = vunpack.c.h.b16 %v5763
    %v6834 = vunpack.c.l.b16 %v5764
    %v6835 = vunpack.c.h.b16 %v5764
    %v6836 = vunpack.c.l.b16 %v5765
    %v6837 = vunpack.c.h.b16 %v5765
    %v6838 = vunpack.c.l.b16 %v5766
    %v6839 = vunpack.c.h.b16 %v5766
    %v6840 = vunpack.c.l.b16 %v5767
    %v6841 = vunpack.c.h.b16 %v5767
    %v6842 = vunpack.c.l.b16 %v5768
    %v6843 = vunpack.c.h.b16 %v5768
    %v6844 = vunpack.c.l.b16 %v5769
    %v6845 = vunpack.c.h.b16 %v5769
    %v6846 = vunpack.c.l.b16 %v5770
    %v6847 = vunpack.c.h.b16 %v5770
    %v6848 = vunpack.c.l.b16 %v5771
    %v6849 = vunpack.c.h.b16 %v5771
    %v6850 = vunpack.c.l.b16 %v5772
    %v6851 = vunpack.c.h.b16 %v5772
    %v6852 = vunpack.c.l.b16 %v5773
    %v6853 = vunpack.c.h.b16 %v5773
    %v6854 = vunpack.c.l.b16 %v5774
    %v6855 = vunpack.c.h.b16 %v5774
    %v6856 = vunpack.c.l.b16 %v5775
    %v6857 = vunpack.c.h.b16 %v5775
    %v6858 = vunpack.c.l.b16 %v5776
    %v6859 = vunpack.c.h.b16 %v5776
    %v6860 = vunpack.c.l.b16 %v5777
    %v6861 = vunpack.c.h.b16 %v5777
    %v6862 = vunpack.c.l.b16 %v5778
    %v6863 = vunpack.c.h.b16 %v5778
    %v6864 = vunpack.c.l.b16 %v5779
    %v6865 = vunpack.c.h.b16 %v5779
    %v6866 = vunpack.c.l.b16 %v5780
    %v6867 = vunpack.c.h.b16 %v5780
    %v6868 = vunpack.c.l.b16 %v5781
    %v6869 = vunpack.c.h.b16 %v5781
    %v6870 = vunpack.c.l.b16 %v5782
    %v6871 = vunpack.c.h.b16 %v5782
    %v6872 = vunpack.c.l.b16 %v5783
    %v6873 = vunpack.c.h.b16 %v5783
    %v6874 = vunpack.c.l.b16 %v5784
    %v6875 = vunpack.c.h.b16 %v5784
    %v6876 = vunpack.c.l.b16 %v5785
    %v6877 = vunpack.c.h.b16 %v5785
    %v6878 = vunpack.c.l.b16 %v5786
    %v6879 = vunpack.c.h.b16 %v5786
    %v6880 = vunpack.c.l.b16 %v5787
    %v6881 = vunpack.c.h.b16 %v5787
    %v6882 = vunpack.c.l.b16 %v5788
    %v6883 = vunpack.c.h.b16 %v5788
    %v6884 = vunpack.c.l.b16 %v5789
    %v6885 = vunpack.c.h.b16 %v5789
    %v6886 = vunpack.c.l.b16 %v5790
    %v6887 = vunpack.c.h.b16 %v5790
    %v6888 = vunpack.c.l.b16 %v5791
    %v6889 = vunpack.c.h.b16 %v5791
    %v6890 = vunpack.c.l.b16 %v5792
    %v6891 = vunpack.c.h.b16 %v5792
    %v6892 = vunpack.c.l.b16 %v5793
    %v6893 = vunpack.c.h.b16 %v5793
    %v6894 = vpack.c.b16 %v6708, %v6702
    %v6895 = vpack.c.b16 %v6709, %v6703
    %v6896 = vpack.c.b16 %v6710, %v6704
    %v6897 = vpack.c.b16 %v6711, %v6705
    %v6898 = vpack.c.b16 %v6712, %v6706
    %v6899 = vpack.c.b16 %v6713, %v6707
    %v6900 = vpack.c.b16 %v6720, %v6714
    %v6901 = vpack.c.b16 %v6721, %v6715
    %v6902 = vpack.c.b16 %v6722, %v6716
    %v6903 = vpack.c.b16 %v6723, %v6717
    %v6904 = vpack.c.b16 %v6724, %v6718
    %v6905 = vpack.c.b16 %v6725, %v6719
    %v6906 = vpack.c.b16 %v6732, %v6726
    %v6907 = vpack.c.b16 %v6733, %v6727
    %v6908 = vpack.c.b16 %v6734, %v6728
    %v6909 = vpack.c.b16 %v6735, %v6729
    %v6910 = vpack.c.b16 %v6736, %v6730
    %v6911 = vpack.c.b16 %v6737, %v6731
    %v6912 = vpack.c.b16 %v6744, %v6738
    %v6913 = vpack.c.b16 %v6745, %v6739
    %v6914 = vpack.c.b16 %v6746, %v6740
    %v6915 = vpack.c.b16 %v6747, %v6741
    %v6916 = vpack.c.b16 %v6748, %v6742
    %v6917 = vpack.c.b16 %v6749, %v6743
    %v6918 = vpack.c.b16 %v6756, %v6750
    %v6919 = vpack.c.b16 %v6757, %v6751
    %v6920 = vpack.c.b16 %v6758, %v6752
    %v6921 = vpack.c.b16 %v6759, %v6753
    %v6922 = vpack.c.b16 %v6760, %v6754
    %v6923 = vpack.c.b16 %v6761, %v6755
    %v6924 = vpack.c.b16 %v6768, %v6762
    %v6925 = vpack.c.b16 %v6769, %v6763
    %v6926 = vpack.c.b16 %v6770, %v6764
    %v6927 = vpack.c.b16 %v6771, %v6765
    %v6928 = vpack.c.b16 %v6772, %v6766
    %v6929 = vpack.c.b16 %v6773, %v6767
    %v6930 = vpack.c.b16 %v6780, %v6774
    %v6931 = vpack.c.b16 %v6781, %v6775
    %v6932 = vpack.c.b16 %v6782, %v6776
    %v6933 = vpack.c.b16 %v6783, %v6777
    %v6934 = vpack.c.b16 %v6784, %v6778
    %v6935 = vpack.c.b16 %v6785, %v6779
    %v6936 = vpack.c.b16 %v6792, %v6786
    %v6937 = vpack.c.b16 %v6793, %v6787
    %v6938 = vpack.c.b16 %v6794, %v6788
    %v6939 = vpack.c.b16 %v6795, %v6789
    %v6940 = vpack.c.b16 %v6796, %v6790
    %v6941 = vpack.c.b16 %v6797, %v6791
    %v6942 = vpack.c.b16 %v6804, %v6798
    %v6943 = vpack.c.b16 %v6805, %v6799
    %v6944 = vpack.c.b16 %v6806, %v6800
    %v6945 = vpack.c.b16 %v6807, %v6801
    %v6946 = vpack.c.b16 %v6808, %v6802
    %v6947 = vpack.c.b16 %v6809, %v6803
    %v6948 = vpack.c.b16 %v6816, %v6810
    %v6949 = vpack.c.b16 %v6817, %v6811
    %v6950 = vpack.c.b16 %v6818, %v6812
    %v6951 = vpack.c.b16 %v6819, %v6813
    %v6952 = vpack.c.b16 %v6820, %v6814
    %v6953 = vpack.c.b16 %v6821, %v6815
    %v6954 = vpack.c.b16 %v6828, %v6822
    %v6955 = vpack.c.b16 %v6829, %v6823
    %v6956 = vpack.c.b16 %v6830, %v6824
    %v6957 = vpack.c.b16 %v6831, %v6825
    %v6958 = vpack.c.b16 %v6832, %v6826
    %v6959 = vpack.c.b16 %v6833, %v6827
    %v6960 = vpack.c.b16 %v6840, %v6834
    %v6961 = vpack.c.b16 %v6841, %v6835
    %v6962 = vpack.c.b16 %v6842, %v6836
    %v6963 = vpack.c.b16 %v6843, %v6837
    %v6964 = vpack.c.b16 %v6844, %v6838
    %v6965 = vpack.c.b16 %v6845, %v6839
    %v6966 = vpack.c.b16 %v6852, %v6846
    %v6967 = vpack.c.b16 %v6853, %v6847
    %v6968 = vpack.c.b16 %v6854, %v6848
    %v6969 = vpack.c.b16 %v6855, %v6849
    %v6970 = vpack.c.b16 %v6856, %v6850
    %v6971 = vpack.c.b16 %v6857, %v6851
    %v6972 = vpack.c.b16 %v6864, %v6858
    %v6973 = vpack.c.b16 %v6865, %v6859
    %v6974 = vpack.c.b16 %v6866, %v6860
    %v6975 = vpack.c.b16 %v6867, %v6861
    %v6976 = vpack.c.b16 %v6868, %v6862
    %v6977 = vpack.c.b16 %v6869, %v6863
    %v6978 = vpack.c.b16 %v6876, %v6870
    %v6979 = vpack.c.b16 %v6877, %v6871
    %v6980 = vpack.c.b16 %v6878, %v6872
    %v6981 = vpack.c.b16 %v6879, %v6873
    %v6982 = vpack.c.b16 %v6880, %v6874
    %v6983 = vpack.c.b16 %v6881, %v6875
    %v6984 = vpack.c.b16 %v6888, %v6882
    %v6985 = vpack.c.b16 %v6889, %v6883
    %v6986 = vpack.c.b16 %v6890, %v6884
    %v6987 = vpack.c.b16 %v6891, %v6885
    %v6988 = vpack.c.b16 %v6892, %v6886
    %v6989 = vpack.c.b16 %v6893, %v6887
    %7086 = vmatprep.subr.bf16.mxu0 %v6895
    %7087 = vmatpush1.bf16.msra.mxu0 %v6894
    %7088 = vmatprep.subr.bf16.mxu0 %v6901
    %7089 = vmatpush1.bf16.msra.mxu0 %v6900
    %7090 = vmatprep.subr.bf16.mxu0 %v6907
    %7091 = vmatpush1.bf16.msra.mxu0 %v6906
    %7092 = vmatprep.subr.bf16.mxu0 %v6913
    %7093 = vmatpush1.bf16.msra.mxu0 %v6912
    %7094 = vmatprep.subr.bf16.mxu0 %v6919
    %7095 = vmatpush1.bf16.msra.mxu0 %v6918
    %7096 = vmatprep.subr.bf16.mxu0 %v6925
    %7097 = vmatpush1.bf16.msra.mxu0 %v6924
    %7098 = vmatprep.subr.bf16.mxu0 %v6931
    %7099 = vmatpush1.bf16.msra.mxu0 %v6930
    %7100 = vmatprep.subr.bf16.mxu0 %v6937
    %7101 = vmatpush1.bf16.msra.mxu0 %v6936
    %7102 = vmatprep.subr.bf16.mxu0 %v6943
    %7103 = vmatpush1.bf16.msra.mxu0 %v6942
    %7104 = vmatprep.subr.bf16.mxu0 %v6949
    %7105 = vmatpush1.bf16.msra.mxu0 %v6948
    %7106 = vmatprep.subr.bf16.mxu0 %v6955
    %7107 = vmatpush1.bf16.msra.mxu0 %v6954
    %7108 = vmatprep.subr.bf16.mxu0 %v6961
    %7109 = vmatpush1.bf16.msra.mxu0 %v6960
    %7110 = vmatprep.subr.bf16.mxu0 %v6967
    %7111 = vmatpush1.bf16.msra.mxu0 %v6966
    %7112 = vmatprep.subr.bf16.mxu0 %v6973
    %7113 = vmatpush1.bf16.msra.mxu0 %v6972
    %7114 = vmatprep.subr.bf16.mxu0 %v6979
    %7115 = vmatpush1.bf16.msra.mxu0 %v6978
    %7116 = vmatprep.subr.bf16.mxu0 %v6985
    %7117 = vmatpush1.bf16.msra.mxu0 %v6984
    %7118 = vmatprep.mubr.bf16.mxu0 %v762
    %7119 = vmatmul.mubr.bf16.gmra.mrb[0].mxu0 %v762
    %v7120 = vpop.f32.mrb[0].mxu0
    %v7121 = vadd.f32 %v6579, %v7120
    %v7122 = vpop.f32.mrb[0].mxu0
    %v7123 = vadd.f32 %v6583, %v7122
    %v7124 = vpop.f32.mrb[0].mxu0
    %v7125 = vpop.f32.mrb[0].mxu0
    %7126 = vdwg.mxu0
    %7127 = vmatprep.subr.bf16.mxu0 %v6897
    %7128 = vmatpush1.bf16.msra.mxu0 %v6896
    %7129 = vmatprep.subr.bf16.mxu0 %v6903
    %7130 = vmatpush1.bf16.msra.mxu0 %v6902
    %7131 = vmatprep.subr.bf16.mxu0 %v6909
    %7132 = vmatpush1.bf16.msra.mxu0 %v6908
    %7133 = vmatprep.subr.bf16.mxu0 %v6915
    %7134 = vmatpush1.bf16.msra.mxu0 %v6914
    %7135 = vmatprep.subr.bf16.mxu0 %v6921
    %7136 = vmatpush1.bf16.msra.mxu0 %v6920
    %7137 = vmatprep.subr.bf16.mxu0 %v6927
    %7138 = vmatpush1.bf16.msra.mxu0 %v6926
    %7139 = vmatprep.subr.bf16.mxu0 %v6933
    %7140 = vmatpush1.bf16.msra.mxu0 %v6932
    %7141 = vmatprep.subr.bf16.mxu0 %v6939
    %7142 = vmatpush1.bf16.msra.mxu0 %v6938
    %7143 = vmatprep.subr.bf16.mxu0 %v6945
    %7144 = vmatpush1.bf16.msra.mxu0 %v6944
    %7145 = vmatprep.subr.bf16.mxu0 %v6951
    %7146 = vmatpush1.bf16.msra.mxu0 %v6950
    %7147 = vmatprep.subr.bf16.mxu0 %v6957
    %7148 = vmatpush1.bf16.msra.mxu0 %v6956
    %7149 = vmatprep.subr.bf16.mxu0 %v6963
    %7150 = vmatpush1.bf16.msra.mxu0 %v6962
    %7151 = vmatprep.subr.bf16.mxu0 %v6969
    %7152 = vmatpush1.bf16.msra.mxu0 %v6968
    %7153 = vmatprep.subr.bf16.mxu0 %v6975
    %7154 = vmatpush1.bf16.msra.mxu0 %v6974
    %7155 = vmatprep.subr.bf16.mxu0 %v6981
    %7156 = vmatpush1.bf16.msra.mxu0 %v6980
    %7157 = vmatprep.subr.bf16.mxu0 %v6987
    %7158 = vmatpush1.bf16.msra.mxu0 %v6986
    %7159 = vmatprep.mubr.bf16.mxu0 %v762
    %7160 = vmatmul.mubr.bf16.gmra.mrb[0].mxu0 %v762
    %v7161 = vpop.f32.mrb[0].mxu0
    %v7162 = vadd.f32 %v6587, %v7161
    %v7163 = vpop.f32.mrb[0].mxu0
    %v7164 = vadd.f32 %v6591, %v7163
    %v7165 = vpop.f32.mrb[0].mxu0
    %v7166 = vpop.f32.mrb[0].mxu0
    %7167 = vdwg.mxu0
    %7168 = vmatprep.subr.bf16.mxu0 %v6899
    %7169 = vmatpush1.bf16.msra.mxu0 %v6898
    %7170 = vmatprep.subr.bf16.mxu0 %v6905
    %7171 = vmatpush1.bf16.msra.mxu0 %v6904
    %7172 = vmatprep.subr.bf16.mxu0 %v6911
    %7173 = vmatpush1.bf16.msra.mxu0 %v6910
    %7174 = vmatprep.subr.bf16.mxu0 %v6917
    %7175 = vmatpush1.bf16.msra.mxu0 %v6916
    %7176 = vmatprep.subr.bf16.mxu0 %v6923
    %7177 = vmatpush1.bf16.msra.mxu0 %v6922
    %7178 = vmatprep.subr.bf16.mxu0 %v6929
    %7179 = vmatpush1.bf16.msra.mxu0 %v6928
    %7180 = vmatprep.subr.bf16.mxu0 %v6935
    %7181 = vmatpush1.bf16.msra.mxu0 %v6934
    %7182 = vmatprep.subr.bf16.mxu0 %v6941
    %7183 = vmatpush1.bf16.msra.mxu0 %v6940
    %7184 = vmatprep.subr.bf16.mxu0 %v6947
    %7185 = vmatpush1.bf16.msra.mxu0 %v6946
    %7186 = vmatprep.subr.bf16.mxu0 %v6953
    %7187 = vmatpush1.bf16.msra.mxu0 %v6952
    %7188 = vmatprep.subr.bf16.mxu0 %v6959
    %7189 = vmatpush1.bf16.msra.mxu0 %v6958
    %7190 = vmatprep.subr.bf16.mxu0 %v6965
    %7191 = vmatpush1.bf16.msra.mxu0 %v6964
    %7192 = vmatprep.subr.bf16.mxu0 %v6971
    %7193 = vmatpush1.bf16.msra.mxu0 %v6970
    %7194 = vmatprep.subr.bf16.mxu0 %v6977
    %7195 = vmatpush1.bf16.msra.mxu0 %v6976
    %7196 = vmatprep.subr.bf16.mxu0 %v6983
    %7197 = vmatpush1.bf16.msra.mxu0 %v6982
    %7198 = vmatprep.subr.bf16.mxu0 %v6989
    %7199 = vmatpush1.bf16.msra.mxu0 %v6988
    %7200 = vmatprep.mubr.bf16.mxu0 %v762
    %7201 = vmatmul.mubr.bf16.gmra.mrb[0].mxu0 %v762
    %v7202 = vpop.f32.mrb[0].mxu0
    %v7203 = vadd.f32 %v6595, %v7202
    %v7204 = vpop.f32.mrb[0].mxu0
    %v7205 = vadd.f32 %v6599, %v7204
    %v7206 = vpop.f32.mrb[0].mxu0
    %v7207 = vpop.f32.mrb[0].mxu0
    %7208 = vdwg.mxu0
    %v7209 = vld [vmem:[#allocation2] sm:$0xff]
    %v7210 = vld [vmem:[#allocation2 + $0x8] sm:$0xff]
    %v7211 = vld [vmem:[#allocation2 + $0x10] sm:$0xff]
    %v7212 = vld [vmem:[#allocation2 + $0x168] sm:$0xff]
    %v7213 = vld [vmem:[#allocation2 + $0x170] sm:$0xff]
    %v7214 = vld [vmem:[#allocation2 + $0x178] sm:$0xff]
    %v7215 = vadd.f32 %v7209, %v7121
    %v7216 = vadd.f32 %v7210, %v7123
    %v7217 = vxor.u32 %v7215, 2147483648
    %v7218 = vxor.u32 %v7216, 2147483648
    %v7219 = vmul.f32 %v7217, 1.442695
    %v7220 = vpow.pop %v7219
    %v7221 = vmul.f32 %v7218, 1.442695
    %v7222 = vpow.pop %v7221
    %v7223 = vadd.f32 %v7220, 1.0
    %v7224 = vadd.f32 %v7222, 1.0
    %v7225 = vrcp.pop %v7223
    %v7226 = vmul.f32 1.0, %v7225
    %v7227 = vrcp.pop %v7224
    %v7228 = vmul.f32 1.0, %v7227
    %v7229 = vmul.f32 %v7226, %v7162
    %v7230 = vadd.f32 %v7211, %v7229
    %v7231 = vtanh.pop %v7230
    %v7232 = vsub.f32 1.0, %v7228
    %v7233 = vmul.f32 %v7232, %v7231
    %v7234 = vmul.f32 %v7228, 0.0
    %v7235 = vadd.f32 %v7233, %v7234
    %v7236 = vadd.f32 %v7212, %v7164
    %v7237 = vadd.f32 %v7213, %v7203
    %v7238 = vxor.u32 %v7236, 2147483648
    %v7239 = vxor.u32 %v7237, 2147483648
    %v7240 = vmul.f32 %v7238, 1.442695
    %v7241 = vpow.pop %v7240
    %v7242 = vmul.f32 %v7239, 1.442695
    %v7243 = vpow.pop %v7242
    %v7244 = vadd.f32 %v7241, 1.0
    %v7245 = vadd.f32 %v7243, 1.0
    %v7246 = vrcp.pop %v7244
    %v7247 = vmul.f32 1.0, %v7246
    %v7248 = vrcp.pop %v7245
    %v7249 = vmul.f32 1.0, %v7248
    %v7250 = vmul.f32 %v7247, %v7205
    %v7251 = vadd.f32 %v7214, %v7250
    %v7252 = vtanh.pop %v7251
    %v7253 = vsub.f32 1.0, %v7249
    %v7254 = vmul.f32 %v7253, %v7252
    %v7255 = vmul.f32 %v7249, 0.0
    %v7256 = vadd.f32 %v7254, %v7255
    %7257 = vst [vmem:[#allocation3] sm:$0xff] %v7235
    %7258 = vst [vmem:[#allocation3 + $0x78] sm:$0xff] %v7256
    %v7259 = vpack.c.bf16 %v7235, %v7235
    %v7260 = vpack.c.bf16 %v7256, %v7256
    %7261 = vmatprep.subr.bf16.mxu0 %v6895
    %7262 = vmatpush1.bf16.msra.mxu0 %v6894
    %7263 = vmatprep.subr.bf16.mxu0 %v6901
    %7264 = vmatpush1.bf16.msra.mxu0 %v6900
    %7265 = vmatprep.subr.bf16.mxu0 %v6907
    %7266 = vmatpush1.bf16.msra.mxu0 %v6906
    %7267 = vmatprep.subr.bf16.mxu0 %v6913
    %7268 = vmatpush1.bf16.msra.mxu0 %v6912
    %7269 = vmatprep.subr.bf16.mxu0 %v6919
    %7270 = vmatpush1.bf16.msra.mxu0 %v6918
    %7271 = vmatprep.subr.bf16.mxu0 %v6925
    %7272 = vmatpush1.bf16.msra.mxu0 %v6924
    %7273 = vmatprep.subr.bf16.mxu0 %v6931
    %7274 = vmatpush1.bf16.msra.mxu0 %v6930
    %7275 = vmatprep.subr.bf16.mxu0 %v6937
    %7276 = vmatpush1.bf16.msra.mxu0 %v6936
    %7277 = vmatprep.subr.bf16.mxu0 %v6943
    %7278 = vmatpush1.bf16.msra.mxu0 %v6942
    %7279 = vmatprep.subr.bf16.mxu0 %v6949
    %7280 = vmatpush1.bf16.msra.mxu0 %v6948
    %7281 = vmatprep.subr.bf16.mxu0 %v6955
    %7282 = vmatpush1.bf16.msra.mxu0 %v6954
    %7283 = vmatprep.subr.bf16.mxu0 %v6961
    %7284 = vmatpush1.bf16.msra.mxu0 %v6960
    %7285 = vmatprep.subr.bf16.mxu0 %v6967
    %7286 = vmatpush1.bf16.msra.mxu0 %v6966
    %7287 = vmatprep.subr.bf16.mxu0 %v6973
    %7288 = vmatpush1.bf16.msra.mxu0 %v6972
    %7289 = vmatprep.subr.bf16.mxu0 %v6979
    %7290 = vmatpush1.bf16.msra.mxu0 %v6978
    %7291 = vmatprep.subr.bf16.mxu0 %v6985
    %7292 = vmatpush1.bf16.msra.mxu0 %v6984
    %7293 = vmatprep.mubr.bf16.mxu0 %v7260
    %7294 = vmatmul.mubr.bf16.gmra.mrb[0].mxu0 %v7259
    %v7295 = vpop.f32.mrb[0].mxu0
    %v7296 = vadd.f32 %v6579, %v7295
    %v7297 = vpop.f32.mrb[0].mxu0
    %v7298 = vadd.f32 %v6583, %v7297
    %v7299 = vpop.f32.mrb[0].mxu0
    %v7300 = vpop.f32.mrb[0].mxu0
    %7301 = vdwg.mxu0
    %7302 = vmatprep.subr.bf16.mxu0 %v6897
    %7303 = vmatpush1.bf16.msra.mxu0 %v6896
    %7304 = vmatprep.subr.bf16.mxu0 %v6903
    %7305 = vmatpush1.bf16.msra.mxu0 %v6902
    %7306 = vmatprep.subr.bf16.mxu0 %v6909
    %7307 = vmatpush1.bf16.msra.mxu0 %v6908
    %7308 = vmatprep.subr.bf16.mxu0 %v6915
    %7309 = vmatpush1.bf16.msra.mxu0 %v6914
    %7310 = vmatprep.subr.bf16.mxu0 %v6921
    %7311 = vmatpush1.bf16.msra.mxu0 %v6920
    %7312 = vmatprep.subr.bf16.mxu0 %v6927
    %7313 = vmatpush1.bf16.msra.mxu0 %v6926
    %7314 = vmatprep.subr.bf16.mxu0 %v6933
    %7315 = vmatpush1.bf16.msra.mxu0 %v6932
    %7316 = vmatprep.subr.bf16.mxu0 %v6939
    %7317 = vmatpush1.bf16.msra.mxu0 %v6938
    %7318 = vmatprep.subr.bf16.mxu0 %v6945
    %7319 = vmatpush1.bf16.msra.mxu0 %v6944
    %7320 = vmatprep.subr.bf16.mxu0 %v6951
    %7321 = vmatpush1.bf16.msra.mxu0 %v6950
    %7322 = vmatprep.subr.bf16.mxu0 %v6957
    %7323 = vmatpush1.bf16.msra.mxu0 %v6956
    %7324 = vmatprep.subr.bf16.mxu0 %v6963
    %7325 = vmatpush1.bf16.msra.mxu0 %v6962
    %7326 = vmatprep.subr.bf16.mxu0 %v6969
    %7327 = vmatpush1.bf16.msra.mxu0 %v6968
    %7328 = vmatprep.subr.bf16.mxu0 %v6975
    %7329 = vmatpush1.bf16.msra.mxu0 %v6974
    %7330 = vmatprep.subr.bf16.mxu0 %v6981
    %7331 = vmatpush1.bf16.msra.mxu0 %v6980
    %7332 = vmatprep.subr.bf16.mxu0 %v6987
    %7333 = vmatpush1.bf16.msra.mxu0 %v6986
    %7334 = vmatprep.mubr.bf16.mxu0 %v7260
    %7335 = vmatmul.mubr.bf16.gmra.mrb[0].mxu0 %v7259
    %v7336 = vpop.f32.mrb[0].mxu0
    %v7337 = vadd.f32 %v6587, %v7336
    %v7338 = vpop.f32.mrb[0].mxu0
    %v7339 = vadd.f32 %v6591, %v7338
    %v7340 = vpop.f32.mrb[0].mxu0
    %v7341 = vpop.f32.mrb[0].mxu0
    %7342 = vdwg.mxu0
    %7343 = vmatprep.subr.bf16.mxu0 %v6899
    %7344 = vmatpush1.bf16.msra.mxu0 %v6898
    %7345 = vmatprep.subr.bf16.mxu0 %v6905
    %7346 = vmatpush1.bf16.msra.mxu0 %v6904
    %7347 = vmatprep.subr.bf16.mxu0 %v6911
    %7348 = vmatpush1.bf16.msra.mxu0 %v6910
    %7349 = vmatprep.subr.bf16.mxu0 %v6917
    %7350 = vmatpush1.bf16.msra.mxu0 %v6916
    %7351 = vmatprep.subr.bf16.mxu0 %v6923
    %7352 = vmatpush1.bf16.msra.mxu0 %v6922
    %7353 = vmatprep.subr.bf16.mxu0 %v6929
    %7354 = vmatpush1.bf16.msra.mxu0 %v6928
    %7355 = vmatprep.subr.bf16.mxu0 %v6935
    %7356 = vmatpush1.bf16.msra.mxu0 %v6934
    %7357 = vmatprep.subr.bf16.mxu0 %v6941
    %7358 = vmatpush1.bf16.msra.mxu0 %v6940
    %7359 = vmatprep.subr.bf16.mxu0 %v6947
    %7360 = vmatpush1.bf16.msra.mxu0 %v6946
    %7361 = vmatprep.subr.bf16.mxu0 %v6953
    %7362 = vmatpush1.bf16.msra.mxu0 %v6952
    %7363 = vmatprep.subr.bf16.mxu0 %v6959
    %7364 = vmatpush1.bf16.msra.mxu0 %v6958
    %7365 = vmatprep.subr.bf16.mxu0 %v6965
    %7366 = vmatpush1.bf16.msra.mxu0 %v6964
    %7367 = vmatprep.subr.bf16.mxu0 %v6971
    %7368 = vmatpush1.bf16.msra.mxu0 %v6970
    %7369 = vmatprep.subr.bf16.mxu0 %v6977
    %7370 = vmatpush1.bf16.msra.mxu0 %v6976
    %7371 = vmatprep.subr.bf16.mxu0 %v6983
    %7372 = vmatpush1.bf16.msra.mxu0 %v6982
    %7373 = vmatprep.subr.bf16.mxu0 %v6989
    %7374 = vmatpush1.bf16.msra.mxu0 %v6988
    %7375 = vmatprep.mubr.bf16.mxu0 %v7260
    %7376 = vmatmul.mubr.bf16.gmra.mrb[0].mxu0 %v7259
    %v7377 = vpop.f32.mrb[0].mxu0
    %v7378 = vadd.f32 %v6595, %v7377
    %v7379 = vpop.f32.mrb[0].mxu0
    %v7380 = vadd.f32 %v6599, %v7379
    %v7381 = vpop.f32.mrb[0].mxu0
    %v7382 = vpop.f32.mrb[0].mxu0
    %7383 = vdwg.mxu0
    %v7384 = vld [vmem:[#allocation2 + $0x30] sm:$0xff]
    %v7385 = vld [vmem:[#allocation2 + $0x38] sm:$0xff]
    %v7386 = vld [vmem:[#allocation2 + $0x40] sm:$0xff]
    %v7387 = vld [vmem:[#allocation2 + $0x138] sm:$0xff]
    %v7388 = vld [vmem:[#allocation2 + $0x140] sm:$0xff]
    %v7389 = vld [vmem:[#allocation2 + $0x148] sm:$0xff]
    %v7390 = vadd.f32 %v7384, %v7296
    %v7391 = vadd.f32 %v7385, %v7298
    %v7392 = vxor.u32 %v7390, 2147483648
    %v7393 = vxor.u32 %v7391, 2147483648
    %v7394 = vmul.f32 %v7392, 1.442695
    %v7395 = vpow.pop %v7394
    %v7396 = vmul.f32 %v7393, 1.442695
    %v7397 = vpow.pop %v7396
    %v7398 = vadd.f32 %v7395, 1.0
    %v7399 = vadd.f32 %v7397, 1.0
    %v7400 = vrcp.pop %v7398
    %v7401 = vmul.f32 1.0, %v7400
    %v7402 = vrcp.pop %v7399
    %v7403 = vmul.f32 1.0, %v7402
    %v7404 = vmul.f32 %v7401, %v7337
    %v7405 = vadd.f32 %v7386, %v7404
    %v7406 = vtanh.pop %v7405
    %v7407 = vsub.f32 1.0, %v7403
    %v7408 = vmul.f32 %v7407, %v7406
    %v7409 = vmul.f32 %v7403, %v7235
    %v7410 = vadd.f32 %v7408, %v7409
    %v7411 = vadd.f32 %v7387, %v7339
    %v7412 = vadd.f32 %v7388, %v7378
    %v7413 = vxor.u32 %v7411, 2147483648
    %v7414 = vxor.u32 %v7412, 2147483648
    %v7415 = vmul.f32 %v7413, 1.442695
    %v7416 = vpow.pop %v7415
    %v7417 = vmul.f32 %v7414, 1.442695
    %v7418 = vpow.pop %v7417
    %v7419 = vadd.f32 %v7416, 1.0
    %v7420 = vadd.f32 %v7418, 1.0
    %v7421 = vrcp.pop %v7419
    %v7422 = vmul.f32 1.0, %v7421
    %v7423 = vrcp.pop %v7420
    %v7424 = vmul.f32 1.0, %v7423
    %v7425 = vmul.f32 %v7422, %v7380
    %v7426 = vadd.f32 %v7389, %v7425
    %v7427 = vtanh.pop %v7426
    %v7428 = vsub.f32 1.0, %v7424
    %v7429 = vmul.f32 %v7428, %v7427
    %v7430 = vmul.f32 %v7424, %v7256
    %v7431 = vadd.f32 %v7429, %v7430
    %7432 = vst [vmem:[#allocation3 + $0x10] sm:$0xff] %v7410
    %7433 = vst [vmem:[#allocation3 + $0x68] sm:$0xff] %v7431
    %v7434 = vpack.c.bf16 %v7410, %v7410
    %v7435 = vpack.c.bf16 %v7431, %v7431
    %7436 = vmatprep.subr.bf16.mxu0 %v6895
    %7437 = vmatpush1.bf16.msra.mxu0 %v6894
    %7438 = vmatprep.subr.bf16.mxu0 %v6901
    %7439 = vmatpush1.bf16.msra.mxu0 %v6900
    %7440 = vmatprep.subr.bf16.mxu0 %v6907
    %7441 = vmatpush1.bf16.msra.mxu0 %v6906
    %7442 = vmatprep.subr.bf16.mxu0 %v6913
    %7443 = vmatpush1.bf16.msra.mxu0 %v6912
    %7444 = vmatprep.subr.bf16.mxu0 %v6919
    %7445 = vmatpush1.bf16.msra.mxu0 %v6918
    %7446 = vmatprep.subr.bf16.mxu0 %v6925
    %7447 = vmatpush1.bf16.msra.mxu0 %v6924
    %7448 = vmatprep.subr.bf16.mxu0 %v6931
    %7449 = vmatpush1.bf16.msra.mxu0 %v6930
    %7450 = vmatprep.subr.bf16.mxu0 %v6937
    %7451 = vmatpush1.bf16.msra.mxu0 %v6936
    %7452 = vmatprep.subr.bf16.mxu0 %v6943
    %7453 = vmatpush1.bf16.msra.mxu0 %v6942
    %7454 = vmatprep.subr.bf16.mxu0 %v6949
    %7455 = vmatpush1.bf16.msra.mxu0 %v6948
    %7456 = vmatprep.subr.bf16.mxu0 %v6955
    %7457 = vmatpush1.bf16.msra.mxu0 %v6954
    %7458 = vmatprep.subr.bf16.mxu0 %v6961
    %7459 = vmatpush1.bf16.msra.mxu0 %v6960
    %7460 = vmatprep.subr.bf16.mxu0 %v6967
    %7461 = vmatpush1.bf16.msra.mxu0 %v6966
    %7462 = vmatprep.subr.bf16.mxu0 %v6973
    %7463 = vmatpush1.bf16.msra.mxu0 %v6972
    %7464 = vmatprep.subr.bf16.mxu0 %v6979
    %7465 = vmatpush1.bf16.msra.mxu0 %v6978
    %7466 = vmatprep.subr.bf16.mxu0 %v6985
    %7467 = vmatpush1.bf16.msra.mxu0 %v6984
    %7468 = vmatprep.mubr.bf16.mxu0 %v7435
    %7469 = vmatmul.mubr.bf16.gmra.mrb[0].mxu0 %v7434
    %v7470 = vpop.f32.mrb[0].mxu0
    %v7471 = vadd.f32 %v6579, %v7470
    %v7472 = vpop.f32.mrb[0].mxu0
    %v7473 = vadd.f32 %v6583, %v7472
    %v7474 = vpop.f32.mrb[0].mxu0
    %v7475 = vpop.f32.mrb[0].mxu0
    %7476 = vdwg.mxu0
    %7477 = vmatprep.subr.bf16.mxu0 %v6897
    %7478 = vmatpush1.bf16.msra.mxu0 %v6896
    %7479 = vmatprep.subr.bf16.mxu0 %v6903
    %7480 = vmatpush1.bf16.msra.mxu0 %v6902
    %7481 = vmatprep.subr.bf16.mxu0 %v6909
    %7482 = vmatpush1.bf16.msra.mxu0 %v6908
    %7483 = vmatprep.subr.bf16.mxu0 %v6915
    %7484 = vmatpush1.bf16.msra.mxu0 %v6914
    %7485 = vmatprep.subr.bf16.mxu0 %v6921
    %7486 = vmatpush1.bf16.msra.mxu0 %v6920
    %7487 = vmatprep.subr.bf16.mxu0 %v6927
    %7488 = vmatpush1.bf16.msra.mxu0 %v6926
    %7489 = vmatprep.subr.bf16.mxu0 %v6933
    %7490 = vmatpush1.bf16.msra.mxu0 %v6932
    %7491 = vmatprep.subr.bf16.mxu0 %v6939
    %7492 = vmatpush1.bf16.msra.mxu0 %v6938
    %7493 = vmatprep.subr.bf16.mxu0 %v6945
    %7494 = vmatpush1.bf16.msra.mxu0 %v6944
    %7495 = vmatprep.subr.bf16.mxu0 %v6951
    %7496 = vmatpush1.bf16.msra.mxu0 %v6950
    %7497 = vmatprep.subr.bf16.mxu0 %v6957
    %7498 = vmatpush1.bf16.msra.mxu0 %v6956
    %7499 = vmatprep.subr.bf16.mxu0 %v6963
    %7500 = vmatpush1.bf16.msra.mxu0 %v6962
    %7501 = vmatprep.subr.bf16.mxu0 %v6969
    %7502 = vmatpush1.bf16.msra.mxu0 %v6968
    %7503 = vmatprep.subr.bf16.mxu0 %v6975
    %7504 = vmatpush1.bf16.msra.mxu0 %v6974
    %7505 = vmatprep.subr.bf16.mxu0 %v6981
    %7506 = vmatpush1.bf16.msra.mxu0 %v6980
    %7507 = vmatprep.subr.bf16.mxu0 %v6987
    %7508 = vmatpush1.bf16.msra.mxu0 %v6986
    %7509 = vmatprep.mubr.bf16.mxu0 %v7435
    %7510 = vmatmul.mubr.bf16.gmra.mrb[0].mxu0 %v7434
    %v7511 = vpop.f32.mrb[0].mxu0
    %v7512 = vadd.f32 %v6587, %v7511
    %v7513 = vpop.f32.mrb[0].mxu0
    %v7514 = vadd.f32 %v6591, %v7513
    %v7515 = vpop.f32.mrb[0].mxu0
    %v7516 = vpop.f32.mrb[0].mxu0
    %7517 = vdwg.mxu0
    %7518 = vmatprep.subr.bf16.mxu0 %v6899
    %7519 = vmatpush1.bf16.msra.mxu0 %v6898
    %7520 = vmatprep.subr.bf16.mxu0 %v6905
    %7521 = vmatpush1.bf16.msra.mxu0 %v6904
    %7522 = vmatprep.subr.bf16.mxu0 %v6911
    %7523 = vmatpush1.bf16.msra.mxu0 %v6910
    %7524 = vmatprep.subr.bf16.mxu0 %v6917
    %7525 = vmatpush1.bf16.msra.mxu0 %v6916
    %7526 = vmatprep.subr.bf16.mxu0 %v6923
    %7527 = vmatpush1.bf16.msra.mxu0 %v6922
    %7528 = vmatprep.subr.bf16.mxu0 %v6929
    %7529 = vmatpush1.bf16.msra.mxu0 %v6928
    %7530 = vmatprep.subr.bf16.mxu0 %v6935
    %7531 = vmatpush1.bf16.msra.mxu0 %v6934
    %7532 = vmatprep.subr.bf16.mxu0 %v6941
    %7533 = vmatpush1.bf16.msra.mxu0 %v6940
    %7534 = vmatprep.subr.bf16.mxu0 %v6947
    %7535 = vmatpush1.bf16.msra.mxu0 %v6946
    %7536 = vmatprep.subr.bf16.mxu0 %v6953
    %7537 = vmatpush1.bf16.msra.mxu0 %v6952
    %7538 = vmatprep.subr.bf16.mxu0 %v6959
    %7539 = vmatpush1.bf16.msra.mxu0 %v6958
    %7540 = vmatprep.subr.bf16.mxu0 %v6965
    %7541 = vmatpush1.bf16.msra.mxu0 %v6964
    %7542 = vmatprep.subr.bf16.mxu0 %v6971
    %7543 = vmatpush1.bf16.msra.mxu0 %v6970
    %7544 = vmatprep.subr.bf16.mxu0 %v6977
    %7545 = vmatpush1.bf16.msra.mxu0 %v6976
    %7546 = vmatprep.subr.bf16.mxu0 %v6983
    %7547 = vmatpush1.bf16.msra.mxu0 %v6982
    %7548 = vmatprep.subr.bf16.mxu0 %v6989
    %7549 = vmatpush1.bf16.msra.mxu0 %v6988
    %7550 = vmatprep.mubr.bf16.mxu0 %v7435
    %7551 = vmatmul.mubr.bf16.gmra.mrb[0].mxu0 %v7434
    %v7552 = vpop.f32.mrb[0].mxu0
    %v7553 = vadd.f32 %v6595, %v7552
    %v7554 = vpop.f32.mrb[0].mxu0
    %v7555 = vadd.f32 %v6599, %v7554
    %v7556 = vpop.f32.mrb[0].mxu0
    %v7557 = vpop.f32.mrb[0].mxu0
    %7558 = vdwg.mxu0
    %v7559 = vld [vmem:[#allocation2 + $0x60] sm:$0xff]
    %v7560 = vld [vmem:[#allocation2 + $0x68] sm:$0xff]
    %v7561 = vld [vmem:[#allocation2 + $0x70] sm:$0xff]
    %v7562 = vld [vmem:[#allocation2 + $0x108] sm:$0xff]
    %v7563 = vld [vmem:[#allocation2 + $0x110] sm:$0xff]
    %v7564 = vld [vmem:[#allocation2 + $0x118] sm:$0xff]
    %v7565 = vadd.f32 %v7559, %v7471
    %v7566 = vadd.f32 %v7560, %v7473
    %v7567 = vxor.u32 %v7565, 2147483648
    %v7568 = vxor.u32 %v7566, 2147483648
    %v7569 = vmul.f32 %v7567, 1.442695
    %v7570 = vpow.pop %v7569
    %v7571 = vmul.f32 %v7568, 1.442695
    %v7572 = vpow.pop %v7571
    %v7573 = vadd.f32 %v7570, 1.0
    %v7574 = vadd.f32 %v7572, 1.0
    %v7575 = vrcp.pop %v7573
    %v7576 = vmul.f32 1.0, %v7575
    %v7577 = vrcp.pop %v7574
    %v7578 = vmul.f32 1.0, %v7577
    %v7579 = vmul.f32 %v7576, %v7512
    %v7580 = vadd.f32 %v7561, %v7579
    %v7581 = vtanh.pop %v7580
    %v7582 = vsub.f32 1.0, %v7578
    %v7583 = vmul.f32 %v7582, %v7581
    %v7584 = vmul.f32 %v7578, %v7410
    %v7585 = vadd.f32 %v7583, %v7584
    %v7586 = vadd.f32 %v7562, %v7514
    %v7587 = vadd.f32 %v7563, %v7553
    %v7588 = vxor.u32 %v7586, 2147483648
    %v7589 = vxor.u32 %v7587, 2147483648
    %v7590 = vmul.f32 %v7588, 1.442695
    %v7591 = vpow.pop %v7590
    %v7592 = vmul.f32 %v7589, 1.442695
    %v7593 = vpow.pop %v7592
    %v7594 = vadd.f32 %v7591, 1.0
    %v7595 = vadd.f32 %v7593, 1.0
    %v7596 = vrcp.pop %v7594
    %v7597 = vmul.f32 1.0, %v7596
    %v7598 = vrcp.pop %v7595
    %v7599 = vmul.f32 1.0, %v7598
    %v7600 = vmul.f32 %v7597, %v7555
    %v7601 = vadd.f32 %v7564, %v7600
    %v7602 = vtanh.pop %v7601
    %v7603 = vsub.f32 1.0, %v7599
    %v7604 = vmul.f32 %v7603, %v7602
    %v7605 = vmul.f32 %v7599, %v7431
    %v7606 = vadd.f32 %v7604, %v7605
    %7607 = vst [vmem:[#allocation3 + $0x20] sm:$0xff] %v7585
    %7608 = vst [vmem:[#allocation3 + $0x58] sm:$0xff] %v7606
    %v7609 = vpack.c.bf16 %v7585, %v7585
    %v7610 = vpack.c.bf16 %v7606, %v7606
    %7611 = vmatprep.subr.bf16.mxu0 %v6895
    %7612 = vmatpush1.bf16.msra.mxu0 %v6894
    %7613 = vmatprep.subr.bf16.mxu0 %v6901
    %7614 = vmatpush1.bf16.msra.mxu0 %v6900
    %7615 = vmatprep.subr.bf16.mxu0 %v6907
    %7616 = vmatpush1.bf16.msra.mxu0 %v6906
    %7617 = vmatprep.subr.bf16.mxu0 %v6913
    %7618 = vmatpush1.bf16.msra.mxu0 %v6912
    %7619 = vmatprep.subr.bf16.mxu0 %v6919
    %7620 = vmatpush1.bf16.msra.mxu0 %v6918
    %7621 = vmatprep.subr.bf16.mxu0 %v6925
    %7622 = vmatpush1.bf16.msra.mxu0 %v6924
    %7623 = vmatprep.subr.bf16.mxu0 %v6931
    %7624 = vmatpush1.bf16.msra.mxu0 %v6930
    %7625 = vmatprep.subr.bf16.mxu0 %v6937
    %7626 = vmatpush1.bf16.msra.mxu0 %v6936
    %7627 = vmatprep.subr.bf16.mxu0 %v6943
    %7628 = vmatpush1.bf16.msra.mxu0 %v6942
    %7629 = vmatprep.subr.bf16.mxu0 %v6949
    %7630 = vmatpush1.bf16.msra.mxu0 %v6948
    %7631 = vmatprep.subr.bf16.mxu0 %v6955
    %7632 = vmatpush1.bf16.msra.mxu0 %v6954
    %7633 = vmatprep.subr.bf16.mxu0 %v6961
    %7634 = vmatpush1.bf16.msra.mxu0 %v6960
    %7635 = vmatprep.subr.bf16.mxu0 %v6967
    %7636 = vmatpush1.bf16.msra.mxu0 %v6966
    %7637 = vmatprep.subr.bf16.mxu0 %v6973
    %7638 = vmatpush1.bf16.msra.mxu0 %v6972
    %7639 = vmatprep.subr.bf16.mxu0 %v6979
    %7640 = vmatpush1.bf16.msra.mxu0 %v6978
    %7641 = vmatprep.subr.bf16.mxu0 %v6985
    %7642 = vmatpush1.bf16.msra.mxu0 %v6984
    %7643 = vmatprep.mubr.bf16.mxu0 %v7610
    %7644 = vmatmul.mubr.bf16.gmra.mrb[0].mxu0 %v7609
    %v7645 = vpop.f32.mrb[0].mxu0
    %v7646 = vadd.f32 %v6579, %v7645
    %v7647 = vpop.f32.mrb[0].mxu0
    %v7648 = vadd.f32 %v6583, %v7647
    %v7649 = vpop.f32.mrb[0].mxu0
    %v7650 = vpop.f32.mrb[0].mxu0
    %7651 = vdwg.mxu0
    %7652 = vmatprep.subr.bf16.mxu0 %v6897
    %7653 = vmatpush1.bf16.msra.mxu0 %v6896
    %7654 = vmatprep.subr.bf16.mxu0 %v6903
    %7655 = vmatpush1.bf16.msra.mxu0 %v6902
    %7656 = vmatprep.subr.bf16.mxu0 %v6909
    %7657 = vmatpush1.bf16.msra.mxu0 %v6908
    %7658 = vmatprep.subr.bf16.mxu0 %v6915
    %7659 = vmatpush1.bf16.msra.mxu0 %v6914
    %7660 = vmatprep.subr.bf16.mxu0 %v6921
    %7661 = vmatpush1.bf16.msra.mxu0 %v6920
    %7662 = vmatprep.subr.bf16.mxu0 %v6927
    %7663 = vmatpush1.bf16.msra.mxu0 %v6926
    %7664 = vmatprep.subr.bf16.mxu0 %v6933
    %7665 = vmatpush1.bf16.msra.mxu0 %v6932
    %7666 = vmatprep.subr.bf16.mxu0 %v6939
    %7667 = vmatpush1.bf16.msra.mxu0 %v6938
    %7668 = vmatprep.subr.bf16.mxu0 %v6945
    %7669 = vmatpush1.bf16.msra.mxu0 %v6944
    %7670 = vmatprep.subr.bf16.mxu0 %v6951
    %7671 = vmatpush1.bf16.msra.mxu0 %v6950
    %7672 = vmatprep.subr.bf16.mxu0 %v6957
    %7673 = vmatpush1.bf16.msra.mxu0 %v6956
    %7674 = vmatprep.subr.bf16.mxu0 %v6963
    %7675 = vmatpush1.bf16.msra.mxu0 %v6962
    %7676 = vmatprep.subr.bf16.mxu0 %v6969
    %7677 = vmatpush1.bf16.msra.mxu0 %v6968
    %7678 = vmatprep.subr.bf16.mxu0 %v6975
    %7679 = vmatpush1.bf16.msra.mxu0 %v6974
    %7680 = vmatprep.subr.bf16.mxu0 %v6981
    %7681 = vmatpush1.bf16.msra.mxu0 %v6980
    %7682 = vmatprep.subr.bf16.mxu0 %v6987
    %7683 = vmatpush1.bf16.msra.mxu0 %v6986
    %7684 = vmatprep.mubr.bf16.mxu0 %v7610
    %7685 = vmatmul.mubr.bf16.gmra.mrb[0].mxu0 %v7609
    %v7686 = vpop.f32.mrb[0].mxu0
    %v7687 = vadd.f32 %v6587, %v7686
    %v7688 = vpop.f32.mrb[0].mxu0
    %v7689 = vadd.f32 %v6591, %v7688
    %v7690 = vpop.f32.mrb[0].mxu0
    %v7691 = vpop.f32.mrb[0].mxu0
    %7692 = vdwg.mxu0
    %7693 = vmatprep.subr.bf16.mxu0 %v6899
    %7694 = vmatpush1.bf16.msra.mxu0 %v6898
    %7695 = vmatprep.subr.bf16.mxu0 %v6905
    %7696 = vmatpush1.bf16.msra.mxu0 %v6904
    %7697 = vmatprep.subr.bf16.mxu0 %v6911
    %7698 = vmatpush1.bf16.msra.mxu0 %v6910
    %7699 = vmatprep.subr.bf16.mxu0 %v6917
    %7700 = vmatpush1.bf16.msra.mxu0 %v6916
    %7701 = vmatprep.subr.bf16.mxu0 %v6923
    %7702 = vmatpush1.bf16.msra.mxu0 %v6922
    %7703 = vmatprep.subr.bf16.mxu0 %v6929
    %7704 = vmatpush1.bf16.msra.mxu0 %v6928
    %7705 = vmatprep.subr.bf16.mxu0 %v6935
    %7706 = vmatpush1.bf16.msra.mxu0 %v6934
    %7707 = vmatprep.subr.bf16.mxu0 %v6941
    %7708 = vmatpush1.bf16.msra.mxu0 %v6940
    %7709 = vmatprep.subr.bf16.mxu0 %v6947
    %7710 = vmatpush1.bf16.msra.mxu0 %v6946
    %7711 = vmatprep.subr.bf16.mxu0 %v6953
    %7712 = vmatpush1.bf16.msra.mxu0 %v6952
    %7713 = vmatprep.subr.bf16.mxu0 %v6959
    %7714 = vmatpush1.bf16.msra.mxu0 %v6958
    %7715 = vmatprep.subr.bf16.mxu0 %v6965
    %7716 = vmatpush1.bf16.msra.mxu0 %v6964
    %7717 = vmatprep.subr.bf16.mxu0 %v6971
    %7718 = vmatpush1.bf16.msra.mxu0 %v6970
    %7719 = vmatprep.subr.bf16.mxu0 %v6977
    %7720 = vmatpush1.bf16.msra.mxu0 %v6976
    %7721 = vmatprep.subr.bf16.mxu0 %v6983
    %7722 = vmatpush1.bf16.msra.mxu0 %v6982
    %7723 = vmatprep.subr.bf16.mxu0 %v6989
    %7724 = vmatpush1.bf16.msra.mxu0 %v6988
    %7725 = vmatprep.mubr.bf16.mxu0 %v7610
    %7726 = vmatmul.mubr.bf16.gmra.mrb[0].mxu0 %v7609
    %v7727 = vpop.f32.mrb[0].mxu0
    %v7728 = vadd.f32 %v6595, %v7727
    %v7729 = vpop.f32.mrb[0].mxu0
    %v7730 = vadd.f32 %v6599, %v7729
    %v7731 = vpop.f32.mrb[0].mxu0
    %v7732 = vpop.f32.mrb[0].mxu0
    %7733 = vdwg.mxu0
    %v7734 = vld [vmem:[#allocation2 + $0x90] sm:$0xff]
    %v7735 = vld [vmem:[#allocation2 + $0x98] sm:$0xff]
    %v7736 = vld [vmem:[#allocation2 + $0xa0] sm:$0xff]
    %v7737 = vld [vmem:[#allocation2 + $0xd8] sm:$0xff]
    %v7738 = vld [vmem:[#allocation2 + $0xe0] sm:$0xff]
    %v7739 = vld [vmem:[#allocation2 + $0xe8] sm:$0xff]
    %v7740 = vadd.f32 %v7734, %v7646
    %v7741 = vadd.f32 %v7735, %v7648
    %v7742 = vxor.u32 %v7740, 2147483648
    %v7743 = vxor.u32 %v7741, 2147483648
    %v7744 = vmul.f32 %v7742, 1.442695
    %v7745 = vpow.pop %v7744
    %v7746 = vmul.f32 %v7743, 1.442695
    %v7747 = vpow.pop %v7746
    %v7748 = vadd.f32 %v7745, 1.0
    %v7749 = vadd.f32 %v7747, 1.0
    %v7750 = vrcp.pop %v7748
    %v7751 = vmul.f32 1.0, %v7750
    %v7752 = vrcp.pop %v7749
    %v7753 = vmul.f32 1.0, %v7752
    %v7754 = vmul.f32 %v7751, %v7687
    %v7755 = vadd.f32 %v7736, %v7754
    %v7756 = vtanh.pop %v7755
    %v7757 = vsub.f32 1.0, %v7753
    %v7758 = vmul.f32 %v7757, %v7756
    %v7759 = vmul.f32 %v7753, %v7585
    %v7760 = vadd.f32 %v7758, %v7759
    %v7761 = vadd.f32 %v7737, %v7689
    %v7762 = vadd.f32 %v7738, %v7728
    %v7763 = vxor.u32 %v7761, 2147483648
    %v7764 = vxor.u32 %v7762, 2147483648
    %v7765 = vmul.f32 %v7763, 1.442695
    %v7766 = vpow.pop %v7765
    %v7767 = vmul.f32 %v7764, 1.442695
    %v7768 = vpow.pop %v7767
    %v7769 = vadd.f32 %v7766, 1.0
    %v7770 = vadd.f32 %v7768, 1.0
    %v7771 = vrcp.pop %v7769
    %v7772 = vmul.f32 1.0, %v7771
    %v7773 = vrcp.pop %v7770
    %v7774 = vmul.f32 1.0, %v7773
    %v7775 = vmul.f32 %v7772, %v7730
    %v7776 = vadd.f32 %v7739, %v7775
    %v7777 = vtanh.pop %v7776
    %v7778 = vsub.f32 1.0, %v7774
    %v7779 = vmul.f32 %v7778, %v7777
    %v7780 = vmul.f32 %v7774, %v7606
    %v7781 = vadd.f32 %v7779, %v7780
    %7782 = vst [vmem:[#allocation3 + $0x30] sm:$0xff] %v7760
    %7783 = vst [vmem:[#allocation3 + $0x48] sm:$0xff] %v7781
    %v7784 = vpack.c.bf16 %v7760, %v7760
    %v7785 = vpack.c.bf16 %v7781, %v7781
    %7786 = vmatprep.subr.bf16.mxu0 %v6895
    %7787 = vmatpush1.bf16.msra.mxu0 %v6894
    %7788 = vmatprep.subr.bf16.mxu0 %v6901
    %7789 = vmatpush1.bf16.msra.mxu0 %v6900
    %7790 = vmatprep.subr.bf16.mxu0 %v6907
    %7791 = vmatpush1.bf16.msra.mxu0 %v6906
    %7792 = vmatprep.subr.bf16.mxu0 %v6913
    %7793 = vmatpush1.bf16.msra.mxu0 %v6912
    %7794 = vmatprep.subr.bf16.mxu0 %v6919
    %7795 = vmatpush1.bf16.msra.mxu0 %v6918
    %7796 = vmatprep.subr.bf16.mxu0 %v6925
    %7797 = vmatpush1.bf16.msra.mxu0 %v6924
    %7798 = vmatprep.subr.bf16.mxu0 %v6931
    %7799 = vmatpush1.bf16.msra.mxu0 %v6930
    %7800 = vmatprep.subr.bf16.mxu0 %v6937
    %7801 = vmatpush1.bf16.msra.mxu0 %v6936
    %7802 = vmatprep.subr.bf16.mxu0 %v6943
    %7803 = vmatpush1.bf16.msra.mxu0 %v6942
    %7804 = vmatprep.subr.bf16.mxu0 %v6949
    %7805 = vmatpush1.bf16.msra.mxu0 %v6948
    %7806 = vmatprep.subr.bf16.mxu0 %v6955
    %7807 = vmatpush1.bf16.msra.mxu0 %v6954
    %7808 = vmatprep.subr.bf16.mxu0 %v6961
    %7809 = vmatpush1.bf16.msra.mxu0 %v6960
    %7810 = vmatprep.subr.bf16.mxu0 %v6967
    %7811 = vmatpush1.bf16.msra.mxu0 %v6966
    %7812 = vmatprep.subr.bf16.mxu0 %v6973
    %7813 = vmatpush1.bf16.msra.mxu0 %v6972
    %7814 = vmatprep.subr.bf16.mxu0 %v6979
    %7815 = vmatpush1.bf16.msra.mxu0 %v6978
    %7816 = vmatprep.subr.bf16.mxu0 %v6985
    %7817 = vmatpush1.bf16.msra.mxu0 %v6984
    %7818 = vmatprep.mubr.bf16.mxu0 %v7785
    %7819 = vmatmul.mubr.bf16.gmra.mrb[0].mxu0 %v7784
    %v7820 = vpop.f32.mrb[0].mxu0
    %v7821 = vadd.f32 %v6579, %v7820
    %v7822 = vpop.f32.mrb[0].mxu0
    %v7823 = vadd.f32 %v6583, %v7822
    %v7824 = vpop.f32.mrb[0].mxu0
    %v7825 = vpop.f32.mrb[0].mxu0
    %7826 = vdwg.mxu0
    %7827 = vmatprep.subr.bf16.mxu0 %v6897
    %7828 = vmatpush1.bf16.msra.mxu0 %v6896
    %7829 = vmatprep.subr.bf16.mxu0 %v6903
    %7830 = vmatpush1.bf16.msra.mxu0 %v6902
    %7831 = vmatprep.subr.bf16.mxu0 %v6909
    %7832 = vmatpush1.bf16.msra.mxu0 %v6908
    %7833 = vmatprep.subr.bf16.mxu0 %v6915
    %7834 = vmatpush1.bf16.msra.mxu0 %v6914
    %7835 = vmatprep.subr.bf16.mxu0 %v6921
    %7836 = vmatpush1.bf16.msra.mxu0 %v6920
    %7837 = vmatprep.subr.bf16.mxu0 %v6927
    %7838 = vmatpush1.bf16.msra.mxu0 %v6926
    %7839 = vmatprep.subr.bf16.mxu0 %v6933
    %7840 = vmatpush1.bf16.msra.mxu0 %v6932
    %7841 = vmatprep.subr.bf16.mxu0 %v6939
    %7842 = vmatpush1.bf16.msra.mxu0 %v6938
    %7843 = vmatprep.subr.bf16.mxu0 %v6945
    %7844 = vmatpush1.bf16.msra.mxu0 %v6944
    %7845 = vmatprep.subr.bf16.mxu0 %v6951
    %7846 = vmatpush1.bf16.msra.mxu0 %v6950
    %7847 = vmatprep.subr.bf16.mxu0 %v6957
    %7848 = vmatpush1.bf16.msra.mxu0 %v6956
    %7849 = vmatprep.subr.bf16.mxu0 %v6963
    %7850 = vmatpush1.bf16.msra.mxu0 %v6962
    %7851 = vmatprep.subr.bf16.mxu0 %v6969
    %7852 = vmatpush1.bf16.msra.mxu0 %v6968
    %7853 = vmatprep.subr.bf16.mxu0 %v6975
    %7854 = vmatpush1.bf16.msra.mxu0 %v6974
    %7855 = vmatprep.subr.bf16.mxu0 %v6981
    %7856 = vmatpush1.bf16.msra.mxu0 %v6980
    %7857 = vmatprep.subr.bf16.mxu0 %v6987
    %7858 = vmatpush1.bf16.msra.mxu0 %v6986
    %7859 = vmatprep.mubr.bf16.mxu0 %v7785
    %7860 = vmatmul.mubr.bf16.gmra.mrb[0].mxu0 %v7784
    %v7861 = vpop.f32.mrb[0].mxu0
    %v7862 = vadd.f32 %v6587, %v7861
    %v7863 = vpop.f32.mrb[0].mxu0
    %v7864 = vadd.f32 %v6591, %v7863
    %v7865 = vpop.f32.mrb[0].mxu0
    %v7866 = vpop.f32.mrb[0].mxu0
    %7867 = vdwg.mxu0
    %7868 = vmatprep.subr.bf16.mxu0 %v6899
    %7869 = vmatpush1.bf16.msra.mxu0 %v6898
    %7870 = vmatprep.subr.bf16.mxu0 %v6905
    %7871 = vmatpush1.bf16.msra.mxu0 %v6904
    %7872 = vmatprep.subr.bf16.mxu0 %v6911
    %7873 = vmatpush1.bf16.msra.mxu0 %v6910
    %7874 = vmatprep.subr.bf16.mxu0 %v6917
    %7875 = vmatpush1.bf16.msra.mxu0 %v6916
    %7876 = vmatprep.subr.bf16.mxu0 %v6923
    %7877 = vmatpush1.bf16.msra.mxu0 %v6922
    %7878 = vmatprep.subr.bf16.mxu0 %v6929
    %7879 = vmatpush1.bf16.msra.mxu0 %v6928
    %7880 = vmatprep.subr.bf16.mxu0 %v6935
    %7881 = vmatpush1.bf16.msra.mxu0 %v6934
    %7882 = vmatprep.subr.bf16.mxu0 %v6941
    %7883 = vmatpush1.bf16.msra.mxu0 %v6940
    %7884 = vmatprep.subr.bf16.mxu0 %v6947
    %7885 = vmatpush1.bf16.msra.mxu0 %v6946
    %7886 = vmatprep.subr.bf16.mxu0 %v6953
    %7887 = vmatpush1.bf16.msra.mxu0 %v6952
    %7888 = vmatprep.subr.bf16.mxu0 %v6959
    %7889 = vmatpush1.bf16.msra.mxu0 %v6958
    %7890 = vmatprep.subr.bf16.mxu0 %v6965
    %7891 = vmatpush1.bf16.msra.mxu0 %v6964
    %7892 = vmatprep.subr.bf16.mxu0 %v6971
    %7893 = vmatpush1.bf16.msra.mxu0 %v6970
    %7894 = vmatprep.subr.bf16.mxu0 %v6977
    %7895 = vmatpush1.bf16.msra.mxu0 %v6976
    %7896 = vmatprep.subr.bf16.mxu0 %v6983
    %7897 = vmatpush1.bf16.msra.mxu0 %v6982
    %7898 = vmatprep.subr.bf16.mxu0 %v6989
    %7899 = vmatpush1.bf16.msra.mxu0 %v6988
    %7900 = vmatprep.mubr.bf16.mxu0 %v7785
    %7901 = vmatmul.mubr.bf16.gmra.mrb[0].mxu0 %v7784
    %v7902 = vpop.f32.mrb[0].mxu0
    %v7903 = vadd.f32 %v6595, %v7902
    %v7904 = vpop.f32.mrb[0].mxu0
    %v7905 = vadd.f32 %v6599, %v7904
    %v7906 = vpop.f32.mrb[0].mxu0
    %v7907 = vpop.f32.mrb[0].mxu0
    %7908 = vdwg.mxu0
    %v7909 = vld [vmem:[#allocation2 + $0xc0] sm:$0xff]
    %v7910 = vld [vmem:[#allocation2 + $0xc8] sm:$0xff]
    %v7911 = vld [vmem:[#allocation2 + $0xd0] sm:$0xff]
    %v7912 = vld [vmem:[#allocation2 + $0xa8] sm:$0xff]
    %v7913 = vld [vmem:[#allocation2 + $0xb0] sm:$0xff]
    %v7914 = vld [vmem:[#allocation2 + $0xb8] sm:$0xff]
    %v7915 = vadd.f32 %v7909, %v7821
    %v7916 = vadd.f32 %v7910, %v7823
    %v7917 = vxor.u32 %v7915, 2147483648
    %v7918 = vxor.u32 %v7916, 2147483648
    %v7919 = vmul.f32 %v7917, 1.442695
    %v7920 = vpow.pop %v7919
    %v7921 = vmul.f32 %v7918, 1.442695
    %v7922 = vpow.pop %v7921
    %v7923 = vadd.f32 %v7920, 1.0
    %v7924 = vadd.f32 %v7922, 1.0
    %v7925 = vrcp.pop %v7923
    %v7926 = vmul.f32 1.0, %v7925
    %v7927 = vrcp.pop %v7924
    %v7928 = vmul.f32 1.0, %v7927
    %v7929 = vmul.f32 %v7926, %v7862
    %v7930 = vadd.f32 %v7911, %v7929
    %v7931 = vtanh.pop %v7930
    %v7932 = vsub.f32 1.0, %v7928
    %v7933 = vmul.f32 %v7932, %v7931
    %v7934 = vmul.f32 %v7928, %v7760
    %v7935 = vadd.f32 %v7933, %v7934
    %v7936 = vadd.f32 %v7912, %v7864
    %v7937 = vadd.f32 %v7913, %v7903
    %v7938 = vxor.u32 %v7936, 2147483648
    %v7939 = vxor.u32 %v7937, 2147483648
    %v7940 = vmul.f32 %v7938, 1.442695
    %v7941 = vpow.pop %v7940
    %v7942 = vmul.f32 %v7939, 1.442695
    %v7943 = vpow.pop %v7942
    %v7944 = vadd.f32 %v7941, 1.0
    %v7945 = vadd.f32 %v7943, 1.0
    %v7946 = vrcp.pop %v7944
    %v7947 = vmul.f32 1.0, %v7946
    %v7948 = vrcp.pop %v7945
    %v7949 = vmul.f32 1.0, %v7948
    %v7950 = vmul.f32 %v7947, %v7905
    %v7951 = vadd.f32 %v7914, %v7950
    %v7952 = vtanh.pop %v7951
    %v7953 = vsub.f32 1.0, %v7949
    %v7954 = vmul.f32 %v7953, %v7952
    %v7955 = vmul.f32 %v7949, %v7781
    %v7956 = vadd.f32 %v7954, %v7955
    %7957 = vst [vmem:[#allocation3 + $0x40] sm:$0xff] %v7935
    %7958 = vst [vmem:[#allocation3 + $0x38] sm:$0xff] %v7956
    %v7959 = vpack.c.bf16 %v7935, %v7935
    %v7960 = vpack.c.bf16 %v7956, %v7956
    %7961 = vmatprep.subr.bf16.mxu0 %v6895
    %7962 = vmatpush1.bf16.msra.mxu0 %v6894
    %7963 = vmatprep.subr.bf16.mxu0 %v6901
    %7964 = vmatpush1.bf16.msra.mxu0 %v6900
    %7965 = vmatprep.subr.bf16.mxu0 %v6907
    %7966 = vmatpush1.bf16.msra.mxu0 %v6906
    %7967 = vmatprep.subr.bf16.mxu0 %v6913
    %7968 = vmatpush1.bf16.msra.mxu0 %v6912
    %7969 = vmatprep.subr.bf16.mxu0 %v6919
    %7970 = vmatpush1.bf16.msra.mxu0 %v6918
    %7971 = vmatprep.subr.bf16.mxu0 %v6925
    %7972 = vmatpush1.bf16.msra.mxu0 %v6924
    %7973 = vmatprep.subr.bf16.mxu0 %v6931
    %7974 = vmatpush1.bf16.msra.mxu0 %v6930
    %7975 = vmatprep.subr.bf16.mxu0 %v6937
    %7976 = vmatpush1.bf16.msra.mxu0 %v6936
    %7977 = vmatprep.subr.bf16.mxu0 %v6943
    %7978 = vmatpush1.bf16.msra.mxu0 %v6942
    %7979 = vmatprep.subr.bf16.mxu0 %v6949
    %7980 = vmatpush1.bf16.msra.mxu0 %v6948
    %7981 = vmatprep.subr.bf16.mxu0 %v6955
    %7982 = vmatpush1.bf16.msra.mxu0 %v6954
    %7983 = vmatprep.subr.bf16.mxu0 %v6961
    %7984 = vmatpush1.bf16.msra.mxu0 %v6960
    %7985 = vmatprep.subr.bf16.mxu0 %v6967
    %7986 = vmatpush1.bf16.msra.mxu0 %v6966
    %7987 = vmatprep.subr.bf16.mxu0 %v6973
    %7988 = vmatpush1.bf16.msra.mxu0 %v6972
    %7989 = vmatprep.subr.bf16.mxu0 %v6979
    %7990 = vmatpush1.bf16.msra.mxu0 %v6978
    %7991 = vmatprep.subr.bf16.mxu0 %v6985
    %7992 = vmatpush1.bf16.msra.mxu0 %v6984
    %7993 = vmatprep.mubr.bf16.mxu0 %v7960
    %7994 = vmatmul.mubr.bf16.gmra.mrb[0].mxu0 %v7959
    %v7995 = vpop.f32.mrb[0].mxu0
    %v7996 = vadd.f32 %v6579, %v7995
    %v7997 = vpop.f32.mrb[0].mxu0
    %v7998 = vadd.f32 %v6583, %v7997
    %v7999 = vpop.f32.mrb[0].mxu0
    %v8000 = vpop.f32.mrb[0].mxu0
    %8001 = vdwg.mxu0
    %8002 = vmatprep.subr.bf16.mxu0 %v6897
    %8003 = vmatpush1.bf16.msra.mxu0 %v6896
    %8004 = vmatprep.subr.bf16.mxu0 %v6903
    %8005 = vmatpush1.bf16.msra.mxu0 %v6902
    %8006 = vmatprep.subr.bf16.mxu0 %v6909
    %8007 = vmatpush1.bf16.msra.mxu0 %v6908
    %8008 = vmatprep.subr.bf16.mxu0 %v6915
    %8009 = vmatpush1.bf16.msra.mxu0 %v6914
    %8010 = vmatprep.subr.bf16.mxu0 %v6921
    %8011 = vmatpush1.bf16.msra.mxu0 %v6920
    %8012 = vmatprep.subr.bf16.mxu0 %v6927
    %8013 = vmatpush1.bf16.msra.mxu0 %v6926
    %8014 = vmatprep.subr.bf16.mxu0 %v6933
    %8015 = vmatpush1.bf16.msra.mxu0 %v6932
    %8016 = vmatprep.subr.bf16.mxu0 %v6939
    %8017 = vmatpush1.bf16.msra.mxu0 %v6938
    %8018 = vmatprep.subr.bf16.mxu0 %v6945
    %8019 = vmatpush1.bf16.msra.mxu0 %v6944
    %8020 = vmatprep.subr.bf16.mxu0 %v6951
    %8021 = vmatpush1.bf16.msra.mxu0 %v6950
    %8022 = vmatprep.subr.bf16.mxu0 %v6957
    %8023 = vmatpush1.bf16.msra.mxu0 %v6956
    %8024 = vmatprep.subr.bf16.mxu0 %v6963
    %8025 = vmatpush1.bf16.msra.mxu0 %v6962
    %8026 = vmatprep.subr.bf16.mxu0 %v6969
    %8027 = vmatpush1.bf16.msra.mxu0 %v6968
    %8028 = vmatprep.subr.bf16.mxu0 %v6975
    %8029 = vmatpush1.bf16.msra.mxu0 %v6974
    %8030 = vmatprep.subr.bf16.mxu0 %v6981
    %8031 = vmatpush1.bf16.msra.mxu0 %v6980
    %8032 = vmatprep.subr.bf16.mxu0 %v6987
    %8033 = vmatpush1.bf16.msra.mxu0 %v6986
    %8034 = vmatprep.mubr.bf16.mxu0 %v7960
    %8035 = vmatmul.mubr.bf16.gmra.mrb[0].mxu0 %v7959
    %v8036 = vpop.f32.mrb[0].mxu0
    %v8037 = vadd.f32 %v6587, %v8036
    %v8038 = vpop.f32.mrb[0].mxu0
    %v8039 = vadd.f32 %v6591, %v8038
    %v8040 = vpop.f32.mrb[0].mxu0
    %v8041 = vpop.f32.mrb[0].mxu0
    %8042 = vdwg.mxu0
    %8043 = vmatprep.subr.bf16.mxu0 %v6899
    %8044 = vmatpush1.bf16.msra.mxu0 %v6898
    %8045 = vmatprep.subr.bf16.mxu0 %v6905
    %8046 = vmatpush1.bf16.msra.mxu0 %v6904
    %8047 = vmatprep.subr.bf16.mxu0 %v6911
    %8048 = vmatpush1.bf16.msra.mxu0 %v6910
    %8049 = vmatprep.subr.bf16.mxu0 %v6917
    %8050 = vmatpush1.bf16.msra.mxu0 %v6916
    %8051 = vmatprep.subr.bf16.mxu0 %v6923
    %8052 = vmatpush1.bf16.msra.mxu0 %v6922
    %8053 = vmatprep.subr.bf16.mxu0 %v6929
    %8054 = vmatpush1.bf16.msra.mxu0 %v6928
    %8055 = vmatprep.subr.bf16.mxu0 %v6935
    %8056 = vmatpush1.bf16.msra.mxu0 %v6934
    %8057 = vmatprep.subr.bf16.mxu0 %v6941
    %8058 = vmatpush1.bf16.msra.mxu0 %v6940
    %8059 = vmatprep.subr.bf16.mxu0 %v6947
    %8060 = vmatpush1.bf16.msra.mxu0 %v6946
    %8061 = vmatprep.subr.bf16.mxu0 %v6953
    %8062 = vmatpush1.bf16.msra.mxu0 %v6952
    %8063 = vmatprep.subr.bf16.mxu0 %v6959
    %8064 = vmatpush1.bf16.msra.mxu0 %v6958
    %8065 = vmatprep.subr.bf16.mxu0 %v6965
    %8066 = vmatpush1.bf16.msra.mxu0 %v6964
    %8067 = vmatprep.subr.bf16.mxu0 %v6971
    %8068 = vmatpush1.bf16.msra.mxu0 %v6970
    %8069 = vmatprep.subr.bf16.mxu0 %v6977
    %8070 = vmatpush1.bf16.msra.mxu0 %v6976
    %8071 = vmatprep.subr.bf16.mxu0 %v6983
    %8072 = vmatpush1.bf16.msra.mxu0 %v6982
    %8073 = vmatprep.subr.bf16.mxu0 %v6989
    %8074 = vmatpush1.bf16.msra.mxu0 %v6988
    %8075 = vmatprep.mubr.bf16.mxu0 %v7960
    %8076 = vmatmul.mubr.bf16.gmra.mrb[0].mxu0 %v7959
    %v8077 = vpop.f32.mrb[0].mxu0
    %v8078 = vadd.f32 %v6595, %v8077
    %v8079 = vpop.f32.mrb[0].mxu0
    %v8080 = vadd.f32 %v6599, %v8079
    %v8081 = vpop.f32.mrb[0].mxu0
    %v8082 = vpop.f32.mrb[0].mxu0
    %8083 = vdwg.mxu0
    %v8084 = vld [vmem:[#allocation2 + $0xf0] sm:$0xff]
    %v8085 = vld [vmem:[#allocation2 + $0xf8] sm:$0xff]
    %v8086 = vld [vmem:[#allocation2 + $0x100] sm:$0xff]
    %v8087 = vld [vmem:[#allocation2 + $0x78] sm:$0xff]
    %v8088 = vld [vmem:[#allocation2 + $0x80] sm:$0xff]
    %v8089 = vld [vmem:[#allocation2 + $0x88] sm:$0xff]
    %v8090 = vadd.f32 %v8084, %v7996
    %v8091 = vadd.f32 %v8085, %v7998
    %v8092 = vxor.u32 %v8090, 2147483648
    %v8093 = vxor.u32 %v8091, 2147483648
    %v8094 = vmul.f32 %v8092, 1.442695
    %v8095 = vpow.pop %v8094
    %v8096 = vmul.f32 %v8093, 1.442695
    %v8097 = vpow.pop %v8096
    %v8098 = vadd.f32 %v8095, 1.0
    %v8099 = vadd.f32 %v8097, 1.0
    %v8100 = vrcp.pop %v8098
    %v8101 = vmul.f32 1.0, %v8100
    %v8102 = vrcp.pop %v8099
    %v8103 = vmul.f32 1.0, %v8102
    %v8104 = vmul.f32 %v8101, %v8037
    %v8105 = vadd.f32 %v8086, %v8104
    %v8106 = vtanh.pop %v8105
    %v8107 = vsub.f32 1.0, %v8103
    %v8108 = vmul.f32 %v8107, %v8106
    %v8109 = vmul.f32 %v8103, %v7935
    %v8110 = vadd.f32 %v8108, %v8109
    %v8111 = vadd.f32 %v8087, %v8039
    %v8112 = vadd.f32 %v8088, %v8078
    %v8113 = vxor.u32 %v8111, 2147483648
    %v8114 = vxor.u32 %v8112, 2147483648
    %v8115 = vmul.f32 %v8113, 1.442695
    %v8116 = vpow.pop %v8115
    %v8117 = vmul.f32 %v8114, 1.442695
    %v8118 = vpow.pop %v8117
    %v8119 = vadd.f32 %v8116, 1.0
    %v8120 = vadd.f32 %v8118, 1.0
    %v8121 = vrcp.pop %v8119
    %v8122 = vmul.f32 1.0, %v8121
    %v8123 = vrcp.pop %v8120
    %v8124 = vmul.f32 1.0, %v8123
    %v8125 = vmul.f32 %v8122, %v8080
    %v8126 = vadd.f32 %v8089, %v8125
    %v8127 = vtanh.pop %v8126
    %v8128 = vsub.f32 1.0, %v8124
    %v8129 = vmul.f32 %v8128, %v8127
    %v8130 = vmul.f32 %v8124, %v7956
    %v8131 = vadd.f32 %v8129, %v8130
    %8132 = vst [vmem:[#allocation3 + $0x50] sm:$0xff] %v8110
    %8133 = vst [vmem:[#allocation3 + $0x28] sm:$0xff] %v8131
    %v8134 = vpack.c.bf16 %v8110, %v8110
    %v8135 = vpack.c.bf16 %v8131, %v8131
    %8136 = vmatprep.subr.bf16.mxu0 %v6895
    %8137 = vmatpush1.bf16.msra.mxu0 %v6894
    %8138 = vmatprep.subr.bf16.mxu0 %v6901
    %8139 = vmatpush1.bf16.msra.mxu0 %v6900
    %8140 = vmatprep.subr.bf16.mxu0 %v6907
    %8141 = vmatpush1.bf16.msra.mxu0 %v6906
    %8142 = vmatprep.subr.bf16.mxu0 %v6913
    %8143 = vmatpush1.bf16.msra.mxu0 %v6912
    %8144 = vmatprep.subr.bf16.mxu0 %v6919
    %8145 = vmatpush1.bf16.msra.mxu0 %v6918
    %8146 = vmatprep.subr.bf16.mxu0 %v6925
    %8147 = vmatpush1.bf16.msra.mxu0 %v6924
    %8148 = vmatprep.subr.bf16.mxu0 %v6931
    %8149 = vmatpush1.bf16.msra.mxu0 %v6930
    %8150 = vmatprep.subr.bf16.mxu0 %v6937
    %8151 = vmatpush1.bf16.msra.mxu0 %v6936
    %8152 = vmatprep.subr.bf16.mxu0 %v6943
    %8153 = vmatpush1.bf16.msra.mxu0 %v6942
    %8154 = vmatprep.subr.bf16.mxu0 %v6949
    %8155 = vmatpush1.bf16.msra.mxu0 %v6948
    %8156 = vmatprep.subr.bf16.mxu0 %v6955
    %8157 = vmatpush1.bf16.msra.mxu0 %v6954
    %8158 = vmatprep.subr.bf16.mxu0 %v6961
    %8159 = vmatpush1.bf16.msra.mxu0 %v6960
    %8160 = vmatprep.subr.bf16.mxu0 %v6967
    %8161 = vmatpush1.bf16.msra.mxu0 %v6966
    %8162 = vmatprep.subr.bf16.mxu0 %v6973
    %8163 = vmatpush1.bf16.msra.mxu0 %v6972
    %8164 = vmatprep.subr.bf16.mxu0 %v6979
    %8165 = vmatpush1.bf16.msra.mxu0 %v6978
    %8166 = vmatprep.subr.bf16.mxu0 %v6985
    %8167 = vmatpush1.bf16.msra.mxu0 %v6984
    %8168 = vmatprep.mubr.bf16.mxu0 %v8135
    %8169 = vmatmul.mubr.bf16.gmra.mrb[0].mxu0 %v8134
    %v8170 = vpop.f32.mrb[0].mxu0
    %v8171 = vadd.f32 %v6579, %v8170
    %v8172 = vpop.f32.mrb[0].mxu0
    %v8173 = vadd.f32 %v6583, %v8172
    %v8174 = vpop.f32.mrb[0].mxu0
    %v8175 = vpop.f32.mrb[0].mxu0
    %8176 = vdwg.mxu0
    %8177 = vmatprep.subr.bf16.mxu0 %v6897
    %8178 = vmatpush1.bf16.msra.mxu0 %v6896
    %8179 = vmatprep.subr.bf16.mxu0 %v6903
    %8180 = vmatpush1.bf16.msra.mxu0 %v6902
    %8181 = vmatprep.subr.bf16.mxu0 %v6909
    %8182 = vmatpush1.bf16.msra.mxu0 %v6908
    %8183 = vmatprep.subr.bf16.mxu0 %v6915
    %8184 = vmatpush1.bf16.msra.mxu0 %v6914
    %8185 = vmatprep.subr.bf16.mxu0 %v6921
    %8186 = vmatpush1.bf16.msra.mxu0 %v6920
    %8187 = vmatprep.subr.bf16.mxu0 %v6927
    %8188 = vmatpush1.bf16.msra.mxu0 %v6926
    %8189 = vmatprep.subr.bf16.mxu0 %v6933
    %8190 = vmatpush1.bf16.msra.mxu0 %v6932
    %8191 = vmatprep.subr.bf16.mxu0 %v6939
    %8192 = vmatpush1.bf16.msra.mxu0 %v6938
    %8193 = vmatprep.subr.bf16.mxu0 %v6945
    %8194 = vmatpush1.bf16.msra.mxu0 %v6944
    %8195 = vmatprep.subr.bf16.mxu0 %v6951
    %8196 = vmatpush1.bf16.msra.mxu0 %v6950
    %8197 = vmatprep.subr.bf16.mxu0 %v6957
    %8198 = vmatpush1.bf16.msra.mxu0 %v6956
    %8199 = vmatprep.subr.bf16.mxu0 %v6963
    %8200 = vmatpush1.bf16.msra.mxu0 %v6962
    %8201 = vmatprep.subr.bf16.mxu0 %v6969
    %8202 = vmatpush1.bf16.msra.mxu0 %v6968
    %8203 = vmatprep.subr.bf16.mxu0 %v6975
    %8204 = vmatpush1.bf16.msra.mxu0 %v6974
    %8205 = vmatprep.subr.bf16.mxu0 %v6981
    %8206 = vmatpush1.bf16.msra.mxu0 %v6980
    %8207 = vmatprep.subr.bf16.mxu0 %v6987
    %8208 = vmatpush1.bf16.msra.mxu0 %v6986
    %8209 = vmatprep.mubr.bf16.mxu0 %v8135
    %8210 = vmatmul.mubr.bf16.gmra.mrb[0].mxu0 %v8134
    %v8211 = vpop.f32.mrb[0].mxu0
    %v8212 = vadd.f32 %v6587, %v8211
    %v8213 = vpop.f32.mrb[0].mxu0
    %v8214 = vadd.f32 %v6591, %v8213
    %v8215 = vpop.f32.mrb[0].mxu0
    %v8216 = vpop.f32.mrb[0].mxu0
    %8217 = vdwg.mxu0
    %8218 = vmatprep.subr.bf16.mxu0 %v6899
    %8219 = vmatpush1.bf16.msra.mxu0 %v6898
    %8220 = vmatprep.subr.bf16.mxu0 %v6905
    %8221 = vmatpush1.bf16.msra.mxu0 %v6904
    %8222 = vmatprep.subr.bf16.mxu0 %v6911
    %8223 = vmatpush1.bf16.msra.mxu0 %v6910
    %8224 = vmatprep.subr.bf16.mxu0 %v6917
    %8225 = vmatpush1.bf16.msra.mxu0 %v6916
    %8226 = vmatprep.subr.bf16.mxu0 %v6923
    %8227 = vmatpush1.bf16.msra.mxu0 %v6922
    %8228 = vmatprep.subr.bf16.mxu0 %v6929
    %8229 = vmatpush1.bf16.msra.mxu0 %v6928
    %8230 = vmatprep.subr.bf16.mxu0 %v6935
    %8231 = vmatpush1.bf16.msra.mxu0 %v6934
    %8232 = vmatprep.subr.bf16.mxu0 %v6941
    %8233 = vmatpush1.bf16.msra.mxu0 %v6940
    %8234 = vmatprep.subr.bf16.mxu0 %v6947
    %8235 = vmatpush1.bf16.msra.mxu0 %v6946
    %8236 = vmatprep.subr.bf16.mxu0 %v6953
    %8237 = vmatpush1.bf16.msra.mxu0 %v6952
    %8238 = vmatprep.subr.bf16.mxu0 %v6959
    %8239 = vmatpush1.bf16.msra.mxu0 %v6958
    %8240 = vmatprep.subr.bf16.mxu0 %v6965
    %8241 = vmatpush1.bf16.msra.mxu0 %v6964
    %8242 = vmatprep.subr.bf16.mxu0 %v6971
    %8243 = vmatpush1.bf16.msra.mxu0 %v6970
    %8244 = vmatprep.subr.bf16.mxu0 %v6977
    %8245 = vmatpush1.bf16.msra.mxu0 %v6976
    %8246 = vmatprep.subr.bf16.mxu0 %v6983
    %8247 = vmatpush1.bf16.msra.mxu0 %v6982
    %8248 = vmatprep.subr.bf16.mxu0 %v6989
    %8249 = vmatpush1.bf16.msra.mxu0 %v6988
    %8250 = vmatprep.mubr.bf16.mxu0 %v8135
    %8251 = vmatmul.mubr.bf16.gmra.mrb[0].mxu0 %v8134
    %v8252 = vpop.f32.mrb[0].mxu0
    %v8253 = vadd.f32 %v6595, %v8252
    %v8254 = vpop.f32.mrb[0].mxu0
    %v8255 = vadd.f32 %v6599, %v8254
    %v8256 = vpop.f32.mrb[0].mxu0
    %v8257 = vpop.f32.mrb[0].mxu0
    %8258 = vdwg.mxu0
    %v8259 = vld [vmem:[#allocation2 + $0x120] sm:$0xff]
    %v8260 = vld [vmem:[#allocation2 + $0x128] sm:$0xff]
    %v8261 = vld [vmem:[#allocation2 + $0x130] sm:$0xff]
    %v8262 = vld [vmem:[#allocation2 + $0x48] sm:$0xff]
    %v8263 = vld [vmem:[#allocation2 + $0x50] sm:$0xff]
    %v8264 = vld [vmem:[#allocation2 + $0x58] sm:$0xff]
    %v8265 = vadd.f32 %v8259, %v8171
    %v8266 = vadd.f32 %v8260, %v8173
    %v8267 = vxor.u32 %v8265, 2147483648
    %v8268 = vxor.u32 %v8266, 2147483648
    %v8269 = vmul.f32 %v8267, 1.442695
    %v8270 = vpow.pop %v8269
    %v8271 = vmul.f32 %v8268, 1.442695
    %v8272 = vpow.pop %v8271
    %v8273 = vadd.f32 %v8270, 1.0
    %v8274 = vadd.f32 %v8272, 1.0
    %v8275 = vrcp.pop %v8273
    %v8276 = vmul.f32 1.0, %v8275
    %v8277 = vrcp.pop %v8274
    %v8278 = vmul.f32 1.0, %v8277
    %v8279 = vmul.f32 %v8276, %v8212
    %v8280 = vadd.f32 %v8261, %v8279
    %v8281 = vtanh.pop %v8280
    %v8282 = vsub.f32 1.0, %v8278
    %v8283 = vmul.f32 %v8282, %v8281
    %v8284 = vmul.f32 %v8278, %v8110
    %v8285 = vadd.f32 %v8283, %v8284
    %v8286 = vadd.f32 %v8262, %v8214
    %v8287 = vadd.f32 %v8263, %v8253
    %v8288 = vxor.u32 %v8286, 2147483648
    %v8289 = vxor.u32 %v8287, 2147483648
    %v8290 = vmul.f32 %v8288, 1.442695
    %v8291 = vpow.pop %v8290
    %v8292 = vmul.f32 %v8289, 1.442695
    %v8293 = vpow.pop %v8292
    %v8294 = vadd.f32 %v8291, 1.0
    %v8295 = vadd.f32 %v8293, 1.0
    %v8296 = vrcp.pop %v8294
    %v8297 = vmul.f32 1.0, %v8296
    %v8298 = vrcp.pop %v8295
    %v8299 = vmul.f32 1.0, %v8298
    %v8300 = vmul.f32 %v8297, %v8255
    %v8301 = vadd.f32 %v8264, %v8300
    %v8302 = vtanh.pop %v8301
    %v8303 = vsub.f32 1.0, %v8299
    %v8304 = vmul.f32 %v8303, %v8302
    %v8305 = vmul.f32 %v8299, %v8131
    %v8306 = vadd.f32 %v8304, %v8305
    %8307 = vst [vmem:[#allocation3 + $0x60] sm:$0xff] %v8285
    %8308 = vst [vmem:[#allocation3 + $0x18] sm:$0xff] %v8306
    %v8309 = vpack.c.bf16 %v8285, %v8285
    %v8310 = vpack.c.bf16 %v8306, %v8306
    %8311 = vmatprep.subr.bf16.mxu0 %v6895
    %8312 = vmatpush1.bf16.msra.mxu0 %v6894
    %8313 = vmatprep.subr.bf16.mxu0 %v6901
    %8314 = vmatpush1.bf16.msra.mxu0 %v6900
    %8315 = vmatprep.subr.bf16.mxu0 %v6907
    %8316 = vmatpush1.bf16.msra.mxu0 %v6906
    %8317 = vmatprep.subr.bf16.mxu0 %v6913
    %8318 = vmatpush1.bf16.msra.mxu0 %v6912
    %8319 = vmatprep.subr.bf16.mxu0 %v6919
    %8320 = vmatpush1.bf16.msra.mxu0 %v6918
    %8321 = vmatprep.subr.bf16.mxu0 %v6925
    %8322 = vmatpush1.bf16.msra.mxu0 %v6924
    %8323 = vmatprep.subr.bf16.mxu0 %v6931
    %8324 = vmatpush1.bf16.msra.mxu0 %v6930
    %8325 = vmatprep.subr.bf16.mxu0 %v6937
    %8326 = vmatpush1.bf16.msra.mxu0 %v6936
    %8327 = vmatprep.subr.bf16.mxu0 %v6943
    %8328 = vmatpush1.bf16.msra.mxu0 %v6942
    %8329 = vmatprep.subr.bf16.mxu0 %v6949
    %8330 = vmatpush1.bf16.msra.mxu0 %v6948
    %8331 = vmatprep.subr.bf16.mxu0 %v6955
    %8332 = vmatpush1.bf16.msra.mxu0 %v6954
    %8333 = vmatprep.subr.bf16.mxu0 %v6961
    %8334 = vmatpush1.bf16.msra.mxu0 %v6960
    %8335 = vmatprep.subr.bf16.mxu0 %v6967
    %8336 = vmatpush1.bf16.msra.mxu0 %v6966
    %8337 = vmatprep.subr.bf16.mxu0 %v6973
    %8338 = vmatpush1.bf16.msra.mxu0 %v6972
    %8339 = vmatprep.subr.bf16.mxu0 %v6979
    %8340 = vmatpush1.bf16.msra.mxu0 %v6978
    %8341 = vmatprep.subr.bf16.mxu0 %v6985
    %8342 = vmatpush1.bf16.msra.mxu0 %v6984
    %8343 = vmatprep.mubr.bf16.mxu0 %v8310
    %8344 = vmatmul.mubr.bf16.gmra.mrb[0].mxu0 %v8309
    %v8345 = vpop.f32.mrb[0].mxu0
    %v8346 = vadd.f32 %v6579, %v8345
    %v8347 = vpop.f32.mrb[0].mxu0
    %v8348 = vadd.f32 %v6583, %v8347
    %v8349 = vpop.f32.mrb[0].mxu0
    %v8350 = vpop.f32.mrb[0].mxu0
    %8351 = vdwg.mxu0
    %8352 = vmatprep.subr.bf16.mxu0 %v6897
    %8353 = vmatpush1.bf16.msra.mxu0 %v6896
    %8354 = vmatprep.subr.bf16.mxu0 %v6903
    %8355 = vmatpush1.bf16.msra.mxu0 %v6902
    %8356 = vmatprep.subr.bf16.mxu0 %v6909
    %8357 = vmatpush1.bf16.msra.mxu0 %v6908
    %8358 = vmatprep.subr.bf16.mxu0 %v6915
    %8359 = vmatpush1.bf16.msra.mxu0 %v6914
    %8360 = vmatprep.subr.bf16.mxu0 %v6921
    %8361 = vmatpush1.bf16.msra.mxu0 %v6920
    %8362 = vmatprep.subr.bf16.mxu0 %v6927
    %8363 = vmatpush1.bf16.msra.mxu0 %v6926
    %8364 = vmatprep.subr.bf16.mxu0 %v6933
    %8365 = vmatpush1.bf16.msra.mxu0 %v6932
    %8366 = vmatprep.subr.bf16.mxu0 %v6939
    %8367 = vmatpush1.bf16.msra.mxu0 %v6938
    %8368 = vmatprep.subr.bf16.mxu0 %v6945
    %8369 = vmatpush1.bf16.msra.mxu0 %v6944
    %8370 = vmatprep.subr.bf16.mxu0 %v6951
    %8371 = vmatpush1.bf16.msra.mxu0 %v6950
    %8372 = vmatprep.subr.bf16.mxu0 %v6957
    %8373 = vmatpush1.bf16.msra.mxu0 %v6956
    %8374 = vmatprep.subr.bf16.mxu0 %v6963
    %8375 = vmatpush1.bf16.msra.mxu0 %v6962
    %8376 = vmatprep.subr.bf16.mxu0 %v6969
    %8377 = vmatpush1.bf16.msra.mxu0 %v6968
    %8378 = vmatprep.subr.bf16.mxu0 %v6975
    %8379 = vmatpush1.bf16.msra.mxu0 %v6974
    %8380 = vmatprep.subr.bf16.mxu0 %v6981
    %8381 = vmatpush1.bf16.msra.mxu0 %v6980
    %8382 = vmatprep.subr.bf16.mxu0 %v6987
    %8383 = vmatpush1.bf16.msra.mxu0 %v6986
    %8384 = vmatprep.mubr.bf16.mxu0 %v8310
    %8385 = vmatmul.mubr.bf16.gmra.mrb[0].mxu0 %v8309
    %v8386 = vpop.f32.mrb[0].mxu0
    %v8387 = vadd.f32 %v6587, %v8386
    %v8388 = vpop.f32.mrb[0].mxu0
    %v8389 = vadd.f32 %v6591, %v8388
    %v8390 = vpop.f32.mrb[0].mxu0
    %v8391 = vpop.f32.mrb[0].mxu0
    %8392 = vdwg.mxu0
    %8393 = vmatprep.subr.bf16.mxu0 %v6899
    %8394 = vmatpush1.bf16.msra.mxu0 %v6898
    %8395 = vmatprep.subr.bf16.mxu0 %v6905
    %8396 = vmatpush1.bf16.msra.mxu0 %v6904
    %8397 = vmatprep.subr.bf16.mxu0 %v6911
    %8398 = vmatpush1.bf16.msra.mxu0 %v6910
    %8399 = vmatprep.subr.bf16.mxu0 %v6917
    %8400 = vmatpush1.bf16.msra.mxu0 %v6916
    %8401 = vmatprep.subr.bf16.mxu0 %v6923
    %8402 = vmatpush1.bf16.msra.mxu0 %v6922
    %8403 = vmatprep.subr.bf16.mxu0 %v6929
    %8404 = vmatpush1.bf16.msra.mxu0 %v6928
    %8405 = vmatprep.subr.bf16.mxu0 %v6935
    %8406 = vmatpush1.bf16.msra.mxu0 %v6934
    %8407 = vmatprep.subr.bf16.mxu0 %v6941
    %8408 = vmatpush1.bf16.msra.mxu0 %v6940
    %8409 = vmatprep.subr.bf16.mxu0 %v6947
    %8410 = vmatpush1.bf16.msra.mxu0 %v6946
    %8411 = vmatprep.subr.bf16.mxu0 %v6953
    %8412 = vmatpush1.bf16.msra.mxu0 %v6952
    %8413 = vmatprep.subr.bf16.mxu0 %v6959
    %8414 = vmatpush1.bf16.msra.mxu0 %v6958
    %8415 = vmatprep.subr.bf16.mxu0 %v6965
    %8416 = vmatpush1.bf16.msra.mxu0 %v6964
    %8417 = vmatprep.subr.bf16.mxu0 %v6971
    %8418 = vmatpush1.bf16.msra.mxu0 %v6970
    %8419 = vmatprep.subr.bf16.mxu0 %v6977
    %8420 = vmatpush1.bf16.msra.mxu0 %v6976
    %8421 = vmatprep.subr.bf16.mxu0 %v6983
    %8422 = vmatpush1.bf16.msra.mxu0 %v6982
    %8423 = vmatprep.subr.bf16.mxu0 %v6989
    %8424 = vmatpush1.bf16.msra.mxu0 %v6988
    %8425 = vmatprep.mubr.bf16.mxu0 %v8310
    %8426 = vmatmul.mubr.bf16.gmra.mrb[0].mxu0 %v8309
    %v8427 = vpop.f32.mrb[0].mxu0
    %v8428 = vadd.f32 %v6595, %v8427
    %v8429 = vpop.f32.mrb[0].mxu0
    %v8430 = vadd.f32 %v6599, %v8429
    %v8431 = vpop.f32.mrb[0].mxu0
    %v8432 = vpop.f32.mrb[0].mxu0
    %8433 = vdwg.mxu0
    %v8434 = vld [vmem:[#allocation2 + $0x150] sm:$0xff]
    %v8435 = vld [vmem:[#allocation2 + $0x158] sm:$0xff]
    %v8436 = vld [vmem:[#allocation2 + $0x160] sm:$0xff]
    %v8437 = vld [vmem:[#allocation2 + $0x18] sm:$0xff]
    %v8438 = vld [vmem:[#allocation2 + $0x20] sm:$0xff]
    %v8439 = vld [vmem:[#allocation2 + $0x28] sm:$0xff]
    %v8440 = vadd.f32 %v8434, %v8346
    %v8441 = vadd.f32 %v8435, %v8348
    %v8442 = vxor.u32 %v8440, 2147483648
    %v8443 = vxor.u32 %v8441, 2147483648
    %v8444 = vmul.f32 %v8442, 1.442695
    %v8445 = vpow.pop %v8444
    %v8446 = vmul.f32 %v8443, 1.442695
    %v8447 = vpow.pop %v8446
    %v8448 = vadd.f32 %v8445, 1.0
    %v8449 = vadd.f32 %v8447, 1.0
    %v8450 = vrcp.pop %v8448
    %v8451 = vmul.f32 1.0, %v8450
    %v8452 = vrcp.pop %v8449
    %v8453 = vmul.f32 1.0, %v8452
    %v8454 = vmul.f32 %v8451, %v8387
    %v8455 = vadd.f32 %v8436, %v8454
    %v8456 = vtanh.pop %v8455
    %v8457 = vsub.f32 1.0, %v8453
    %v8458 = vmul.f32 %v8457, %v8456
    %v8459 = vmul.f32 %v8453, %v8285
    %v8460 = vadd.f32 %v8458, %v8459
    %v8461 = vadd.f32 %v8437, %v8389
    %v8462 = vadd.f32 %v8438, %v8428
    %v8463 = vxor.u32 %v8461, 2147483648
    %v8464 = vxor.u32 %v8462, 2147483648
    %v8465 = vmul.f32 %v8463, 1.442695
    %v8466 = vpow.pop %v8465
    %v8467 = vmul.f32 %v8464, 1.442695
    %v8468 = vpow.pop %v8467
    %v8469 = vadd.f32 %v8466, 1.0
    %v8470 = vadd.f32 %v8468, 1.0
    %v8471 = vrcp.pop %v8469
    %v8472 = vmul.f32 1.0, %v8471
    %v8473 = vrcp.pop %v8470
    %v8474 = vmul.f32 1.0, %v8473
    %v8475 = vmul.f32 %v8472, %v8430
    %v8476 = vadd.f32 %v8439, %v8475
    %v8477 = vtanh.pop %v8476
    %v8478 = vsub.f32 1.0, %v8474
    %v8479 = vmul.f32 %v8478, %v8477
    %v8480 = vmul.f32 %v8474, %v8306
    %v8481 = vadd.f32 %v8479, %v8480
    %8482 = vst [vmem:[#allocation3 + $0x70] sm:$0xff] %v8460
    %8483 = vst [vmem:[#allocation3 + $0x8] sm:$0xff] %v8481
    %v8484 = vld [vmem:[%s9] ss:$4 sm:$0x3]
    %s8485 = scalar_lea.vmem %s9, 1
    %v8486 = vld [vmem:[%s8485] ss:$4 sm:$0x3]
    %s8487 = scalar_lea.vmem %s9, 2
    %v8488 = vld [vmem:[%s8487] ss:$4 sm:$0x3]
    %v8489 = vld [vmem:[#allocation3] sm:$0xff]
    %v8490 = vld [vmem:[#allocation3 + $0x8] sm:$0xff]
    %v8492 = vlaneseq
    %v8493 = vshrl.u32 %v8492, 7
    %v8494 = vsub.s32 0, %v8493
    %v8495 = vrot.slane %v8484, %v8494
    %v8496 = vlaneseq
    %v8497 = vshrl.u32 %v8496, 7
    %v8498 = vsub.s32 1, %v8497
    %v8499 = vrot.slane %v8484, %v8498
    %v8502 = vmul.f32 %v8489, %v8495
    %v8503 = vmul.f32 %v8490, %v8499
    %v8504 = vadd.f32 %v8502, %v8503
    %8505 = vadd.xlane.f32.xlu0 %v8504
    %v8506 = vpop.xlane.xlu0 %8505
    %s8507 = sld [smem:[#allocation10]]
    %v8508 = vstv %s8507
    %v8509 = vadd.f32 %v8506, %v8508
    %v8510 = vtanh.pop %v8509
    %v8511 = vmul.f32 %v8510, 1.442695
    %v8512 = vpow.pop %v8511
    %v8513 = vadd.f32 %v8512, 0.0
    %v8514 = vmul.f32 %v8489, %v8512
    %v8515 = vmul.f32 %v8490, %v8512
    %v8516 = vadd.f32 %v8514, 0.0
    %v8517 = vadd.f32 %v8515, 0.0
    %v8518 = vld [vmem:[#allocation3 + $0x10] sm:$0xff]
    %v8519 = vld [vmem:[#allocation3 + $0x18] sm:$0xff]
    %v8520 = vmul.f32 %v8518, %v8495
    %v8521 = vmul.f32 %v8519, %v8499
    %v8522 = vadd.f32 %v8520, %v8521
    %8523 = vadd.xlane.f32.xlu0 %v8522
    %v8524 = vpop.xlane.xlu0 %8523
    %s8525 = sld [smem:[#allocation10 + $0x1]]
    %v8526 = vstv %s8525
    %v8527 = vadd.f32 %v8524, %v8526
    %v8528 = vtanh.pop %v8527
    %v8529 = vmul.f32 %v8528, 1.442695
    %v8530 = vpow.pop %v8529
    %v8531 = vadd.f32 %v8513, %v8530
    %v8532 = vmul.f32 %v8518, %v8530
    %v8533 = vmul.f32 %v8519, %v8530
    %v8534 = vadd.f32 %v8516, %v8532
    %v8535 = vadd.f32 %v8517, %v8533
    %v8536 = vld [vmem:[#allocation3 + $0x20] sm:$0xff]
    %v8537 = vld [vmem:[#allocation3 + $0x28] sm:$0xff]
    %v8538 = vmul.f32 %v8536, %v8495
    %v8539 = vmul.f32 %v8537, %v8499
    %v8540 = vadd.f32 %v8538, %v8539
    %8541 = vadd.xlane.f32.xlu0 %v8540
    %v8542 = vpop.xlane.xlu0 %8541
    %s8543 = sld [smem:[#allocation10 + $0x2]]
    %v8544 = vstv %s8543
    %v8545 = vadd.f32 %v8542, %v8544
    %v8546 = vtanh.pop %v8545
    %v8547 = vmul.f32 %v8546, 1.442695
    %v8548 = vpow.pop %v8547
    %v8549 = vadd.f32 %v8531, %v8548
    %v8550 = vmul.f32 %v8536, %v8548
    %v8551 = vmul.f32 %v8537, %v8548
    %v8552 = vadd.f32 %v8534, %v8550
    %v8553 = vadd.f32 %v8535, %v8551
    %v8554 = vld [vmem:[#allocation3 + $0x30] sm:$0xff]
    %v8555 = vld [vmem:[#allocation3 + $0x38] sm:$0xff]
    %v8556 = vmul.f32 %v8554, %v8495
    %v8557 = vmul.f32 %v8555, %v8499
    %v8558 = vadd.f32 %v8556, %v8557
    %8559 = vadd.xlane.f32.xlu0 %v8558
    %v8560 = vpop.xlane.xlu0 %8559
    %s8561 = sld [smem:[#allocation10 + $0x3]]
    %v8562 = vstv %s8561
    %v8563 = vadd.f32 %v8560, %v8562
    %v8564 = vtanh.pop %v8563
    %v8565 = vmul.f32 %v8564, 1.442695
    %v8566 = vpow.pop %v8565
    %v8567 = vadd.f32 %v8549, %v8566
    %v8568 = vmul.f32 %v8554, %v8566
    %v8569 = vmul.f32 %v8555, %v8566
    %v8570 = vadd.f32 %v8552, %v8568
    %v8571 = vadd.f32 %v8553, %v8569
    %v8572 = vld [vmem:[#allocation3 + $0x40] sm:$0xff]
    %v8573 = vld [vmem:[#allocation3 + $0x48] sm:$0xff]
    %v8574 = vmul.f32 %v8572, %v8495
    %v8575 = vmul.f32 %v8573, %v8499
    %v8576 = vadd.f32 %v8574, %v8575
    %8577 = vadd.xlane.f32.xlu0 %v8576
    %v8578 = vpop.xlane.xlu0 %8577
    %s8579 = sld [smem:[#allocation10 + $0x4]]
    %v8580 = vstv %s8579
    %v8581 = vadd.f32 %v8578, %v8580
    %v8582 = vtanh.pop %v8581
    %v8583 = vmul.f32 %v8582, 1.442695
    %v8584 = vpow.pop %v8583
    %v8585 = vadd.f32 %v8567, %v8584
    %v8586 = vmul.f32 %v8572, %v8584
    %v8587 = vmul.f32 %v8573, %v8584
    %v8588 = vadd.f32 %v8570, %v8586
    %v8589 = vadd.f32 %v8571, %v8587
    %v8590 = vld [vmem:[#allocation3 + $0x50] sm:$0xff]
    %v8591 = vld [vmem:[#allocation3 + $0x58] sm:$0xff]
    %v8592 = vmul.f32 %v8590, %v8495
    %v8593 = vmul.f32 %v8591, %v8499
    %v8594 = vadd.f32 %v8592, %v8593
    %8595 = vadd.xlane.f32.xlu0 %v8594
    %v8596 = vpop.xlane.xlu0 %8595
    %s8597 = sld [smem:[#allocation10 + $0x5]]
    %v8598 = vstv %s8597
    %v8599 = vadd.f32 %v8596, %v8598
    %v8600 = vtanh.pop %v8599
    %v8601 = vmul.f32 %v8600, 1.442695
    %v8602 = vpow.pop %v8601
    %v8603 = vadd.f32 %v8585, %v8602
    %v8604 = vmul.f32 %v8590, %v8602
    %v8605 = vmul.f32 %v8591, %v8602
    %v8606 = vadd.f32 %v8588, %v8604
    %v8607 = vadd.f32 %v8589, %v8605
    %v8608 = vld [vmem:[#allocation3 + $0x60] sm:$0xff]
    %v8609 = vld [vmem:[#allocation3 + $0x68] sm:$0xff]
    %v8610 = vmul.f32 %v8608, %v8495
    %v8611 = vmul.f32 %v8609, %v8499
    %v8612 = vadd.f32 %v8610, %v8611
    %8613 = vadd.xlane.f32.xlu0 %v8612
    %v8614 = vpop.xlane.xlu0 %8613
    %s8615 = sld [smem:[#allocation10 + $0x6]]
    %v8616 = vstv %s8615
    %v8617 = vadd.f32 %v8614, %v8616
    %v8618 = vtanh.pop %v8617
    %v8619 = vmul.f32 %v8618, 1.442695
    %v8620 = vpow.pop %v8619
    %v8621 = vadd.f32 %v8603, %v8620
    %v8622 = vmul.f32 %v8608, %v8620
    %v8623 = vmul.f32 %v8609, %v8620
    %v8624 = vadd.f32 %v8606, %v8622
    %v8625 = vadd.f32 %v8607, %v8623
    %v8626 = vld [vmem:[#allocation3 + $0x70] sm:$0xff]
    %v8627 = vld [vmem:[#allocation3 + $0x78] sm:$0xff]
    %v8628 = vmul.f32 %v8626, %v8495
    %v8629 = vmul.f32 %v8627, %v8499
    %v8630 = vadd.f32 %v8628, %v8629
    %8631 = vadd.xlane.f32.xlu0 %v8630
    %v8632 = vpop.xlane.xlu0 %8631
    %s8633 = sld [smem:[#allocation10 + $0x7]]
    %v8634 = vstv %s8633
    %v8635 = vadd.f32 %v8632, %v8634
    %v8636 = vtanh.pop %v8635
    %v8637 = vmul.f32 %v8636, 1.442695
    %v8638 = vpow.pop %v8637
    %v8639 = vadd.f32 %v8621, %v8638
    %v8640 = vmul.f32 %v8626, %v8638
    %v8641 = vmul.f32 %v8627, %v8638
    %v8642 = vadd.f32 %v8624, %v8640
    %v8643 = vadd.f32 %v8625, %v8641
    %v8644 = vadd.f32 %v8639, 1e-10
    %v8645 = vrcp.pop %v8644
    %v8646 = vmul.f32 1.0, %v8645
    %v8647 = vmul.f32 %v8642, %v8646
    %v8648 = vmul.f32 %v8643, %v8646
    %v8650 = vlaneseq
    %v8651 = vshrl.u32 %v8650, 7
    %v8652 = vsub.s32 0, %v8651
    %v8653 = vrot.slane %v8486, %v8652
    %v8654 = vlaneseq
    %v8655 = vshrl.u32 %v8654, 7
    %v8656 = vsub.s32 1, %v8655
    %v8657 = vrot.slane %v8486, %v8656
    %v8660 = vmul.f32 %v8647, %v8653
    %v8661 = vmul.f32 %v8648, %v8657
    %v8662 = vadd.f32 %v8660, %v8661
    %8663 = vadd.xlane.f32.xlu0 %v8662
    %v8664 = vpop.xlane.xlu0 %8663
    %v8665 = vld [vmem:[%s2] sm:$0xff]
    %v8666 = vld [vmem:[%s2 + $0x8] sm:$0xff]
    %v8668 = vlaneseq
    %v8669 = vshrl.u32 %v8668, 7
    %v8670 = vsub.s32 0, %v8669
    %v8671 = vrot.slane %v8488, %v8670
    %v8672 = vlaneseq
    %v8673 = vshrl.u32 %v8672, 7
    %v8674 = vsub.s32 1, %v8673
    %v8675 = vrot.slane %v8488, %v8674
    %v8678 = vmul.f32 %v8665, %v8671
    %v8679 = vmul.f32 %v8666, %v8675
    %v8680 = vadd.f32 %v8678, %v8679
    %8681 = vadd.xlane.f32.xlu0 %v8680
    %v8682 = vpop.xlane.xlu0 %8681
    %v8683 = vadd.f32 %v8664, %v8682
    %s8684 = sld [smem:[#allocation10 + $0x8]]
    %v8685 = vstv %s8684
    %v8686 = vadd.f32 %v8683, %v8685
    %8687 = vst [vmem:[%s11] sm:$0xff] %v8686
    // Predicated region
    $region62: #{model_forward.1} parent=1 // pred_check
      _
    $region63: #{model_forward.1} parent=1 // pred_check_branch
      %8689 = sbr.rel (0) target = $region65
    $region64: #{model_forward.1} parent=1 // pred_region
      _
    $region65: #{model_forward.1} parent=1 // pred_fallthru
      _
    // Predicated region
    $region66: #{model_forward.1} parent=1 // pred_check
      _
    $region67: #{model_forward.1} parent=1 // pred_check_branch
      %8691 = sbr.rel (0) target = $region69
    $region68: #{model_forward.1} parent=1 // pred_region
      _
    $region69: #{model_forward.1} parent=1 // pred_fallthru
      _
    %8692 = vsyncpa [#allocation5], 1
    %8693 = vsyncpa [#allocation8], 1
    %8694 = vsyncpa [#allocation6], 1

</llo_original>
